<compile_context>
chip_gen: v6e
topology: v6e:2x2x1
jax: 0.10.0
libtpu: 0.0.40
codegen_flags: <defaults>
</compile_context>

<pallas_src>
import functools
import math

import jax
import jax.numpy as jnp
from jax import lax
from jax.experimental import pallas as pl
from jax.experimental.pallas import tpu as pltpu

# ---------------- small synthetic CLIP configuration ----------------
IMG_B, IMG_C, IMG_HW = 2, 3, 32          # batch, channels, spatial
PATCH = 16                               # patch size -> 2x2 = 4 patches (+1 cls)
D_V, HEADS_V, LAYERS_V = 64, 4, 2        # vision width / heads / depth
EMBED = 32                               # joint embedding dim
VOCAB, CTX_LEN = 64, 8                   # text vocab / context length
D_T, HEADS_T, LAYERS_T = 32, 4, 2        # text width / heads / depth
N_CLASSES = 3
MLP_RATIO = 4
LOGIT_SCALE = math.log(1.0 / 0.07)       # CLIP default logit_scale init
EPS = 1e-5
NEG_INF = -1e9                           # finite mask constant (robust vs -inf)
APPROX_RECIPROCAL = True                 # EUP approx reciprocal in softmax (~1e-3 rel)
MM_DTYPE = jnp.bfloat16                  # MXU operand dtype (accumulation is f32)


# ============================ in-kernel building blocks ============================

def _layernorm(x, g, b):
    mu = jnp.mean(x, axis=-1, keepdims=True)
    xc = x - mu
    var = jnp.mean(xc * xc, axis=-1, keepdims=True)
    return xc * lax.rsqrt(var + EPS) * g + b


def _softmax(s):
    s = s - jnp.max(s, axis=-1, keepdims=True)
    p = jnp.exp(s)
    denom = jnp.sum(p, axis=-1, keepdims=True)
    if APPROX_RECIPROCAL:
        return p * pl.reciprocal(denom, approx=True)
    return p / denom


def _block_mask(n_seq, seq_len, causal):
    """Additive attention mask over the stacked (n_seq*seq_len) rows.

    Block-diagonal (each sequence only attends to itself); optionally causal inside
    each block. Built in-kernel with iota + compares only (no integer division)."""
    m = n_seq * seq_len
    row = lax.broadcasted_iota(jnp.int32, (m, m), 0)
    col = lax.broadcasted_iota(jnp.int32, (m, m), 1)
    same = jnp.zeros((m, m), dtype=jnp.bool_)
    for s in range(n_seq):
        in_r = (row >= s * seq_len) & (row < (s + 1) * seq_len)
        in_c = (col >= s * seq_len) & (col < (s + 1) * seq_len)
        same = same | (in_r & in_c)
    allow = same & (col <= row) if causal else same
    return jnp.where(allow, jnp.float32(0.0), jnp.float32(NEG_INF))


def _transformer_tower(x, mask, ln_ref, qkv_w, qkv_b, out_w, out_b,
                       fc1_w, fc1_b, fc2_w, fc2_b, *, n_layers, n_heads, ln_base):
    """All residual blocks on a stacked (M, D) activation held in VMEM/vregs.

    One fused QKV matmul and one fused out-proj matmul per layer; per-head work is
    only the tiny score/softmax/value dots on static lane views of the QKV result."""
    m, d = x.shape
    hd = d // n_heads
    scale = 1.0 / math.sqrt(hd)
    for l in range(n_layers):
        g1 = ln_ref[ln_base + 4 * l + 0]
        b1 = ln_ref[ln_base + 4 * l + 1]
        g2 = ln_ref[ln_base + 4 * l + 2]
        b2 = ln_ref[ln_base + 4 * l + 3]
        # ---- multi-head self-attention: x = x + out_proj(attn(ln_1(x))) ----
        h = _layernorm(x, g1, b1)
        qkv = jnp.dot(h.astype(MM_DTYPE), qkv_w[l],
                      preferred_element_type=jnp.float32) + qkv_b[l]       # (M, 3d)
        heads = []
        for hh in range(n_heads):
            q = qkv[:, hh * hd:(hh + 1) * hd]
            k = qkv[:, d + hh * hd:d + (hh + 1) * hd]
            v = qkv[:, 2 * d + hh * hd:2 * d + (hh + 1) * hd]
            s = lax.dot_general(q, k, (((1,), (1,)), ((), ())),
                                preferred_element_type=jnp.float32) * scale
            s = s + mask
            heads.append(jnp.dot(_softmax(s), v, preferred_element_type=jnp.float32))
        o = jnp.concatenate(heads, axis=-1)                                 # (M, d)
        x = x + jnp.dot(o.astype(MM_DTYPE), out_w[l],
                        preferred_element_type=jnp.float32) + out_b[l]
        # ---- MLP: x = x + fc2(QuickGELU(fc1(ln_2(x)))) ----
        h = _layernorm(x, g2, b2)
        h = jnp.dot(h.astype(MM_DTYPE), fc1_w[l],
                    preferred_element_type=jnp.float32) + fc1_b[l]
        h = h * jax.nn.sigmoid(1.702 * h)                                   # QuickGELU
        x = x + jnp.dot(h.astype(MM_DTYPE), fc2_w[l],
                        preferred_element_type=jnp.float32) + fc2_b[l]
    return x


# ============================ fused encoder kernels ============================

def _vision_kernel(rows_ref, conv_w_ref, pos_ref, ln_ref,
                   qkv_w, qkv_b, out_w, out_b, fc1_w, fc1_b, fc2_w, fc2_b,
                   proj_ref, o_ref, *, n_layers, n_heads, n_seq, seq_len):
    m = n_seq * seq_len
    # Patch-embed conv (stride==kernel, no bias) as one K=768 matmul over all batches.
    # The class-token input row is zero; the cls embedding is folded into pos[0].
    x = jnp.dot(rows_ref[...], conv_w_ref[...],
                preferred_element_type=jnp.float32) + pos_ref[...]          # (M, D_V)
    x = _layernorm(x, ln_ref[0], ln_ref[1])
    x = _transformer_tower(x, _block_mask(n_seq, seq_len, causal=False),
                           ln_ref, qkv_w, qkv_b, out_w, out_b,
                           fc1_w, fc1_b, fc2_w, fc2_b,
                           n_layers=n_layers, n_heads=n_heads, ln_base=2)
    # Select each sequence's cls row with a one-hot matmul (no strided slicing).
    r = lax.broadcasted_iota(jnp.int32, (n_seq, m), 0)
    c = lax.broadcasted_iota(jnp.int32, (n_seq, m), 1)
    cls_sel = jnp.where(c == r * seq_len, jnp.float32(1.0), jnp.float32(0.0))
    cls = jnp.dot(cls_sel, x, preferred_element_type=jnp.float32)           # (B, D_V)
    cls = _layernorm(cls, ln_ref[2 + 4 * n_layers], ln_ref[3 + 4 * n_layers])
    feat = jnp.dot(cls.astype(MM_DTYPE), proj_ref[...],
                   preferred_element_type=jnp.float32)                      # (B, EMBED)
    # L2-normalization fused into the epilogue.
    feat = feat * lax.rsqrt(jnp.sum(feat * feat, axis=-1, keepdims=True) + 1e-12)
    o_ref[...] = feat


def _text_kernel(emb_ref, pos_ref, sel_ref, ln_ref,
                 qkv_w, qkv_b, out_w, out_b, fc1_w, fc1_b, fc2_w, fc2_b,
                 tproj_ref, o_ref, *, n_layers, n_heads, n_seq, seq_len):
    x = emb_ref[...] + pos_ref[...]                                         # (N*L, D_T)
    x = _transformer_tower(x, _block_mask(n_seq, seq_len, causal=True),
                           ln_ref, qkv_w, qkv_b, out_w, out_b,
                           fc1_w, fc1_b, fc2_w, fc2_b,
                           n_layers=n_layers, n_heads=n_heads, ln_base=0)
    x = _layernorm(x, ln_ref[4 * n_layers], ln_ref[4 * n_layers + 1])
    feat = jnp.dot(sel_ref[...], x, preferred_element_type=jnp.float32)     # EOT pick
    feat = jnp.dot(feat.astype(MM_DTYPE), tproj_ref[...],
                   preferred_element_type=jnp.float32)                      # (N, EMBED)
    feat = feat * lax.rsqrt(jnp.sum(feat * feat, axis=-1, keepdims=True) + 1e-12)
    o_ref[...] = feat


# ============================ wrappers (one pallas_call each) ============================

def _full_spec(arr):
    nd = arr.ndim
    return pl.BlockSpec(arr.shape, lambda *_, _nd=nd: (0,) * _nd)


def encode_image(image, vp):
    B, C, H, W = image.shape
    gh, gw = H // PATCH, W // PATCH
    n_patches = gh * gw
    L = n_patches + 1
    cpp = C * PATCH * PATCH
    # NCHW -> (B, n_patches, C*P*P) patch rows; prepend a ZERO row per image where the
    # class token sits (cls embedding is folded into pos[0]); K stays exactly 768.
    patches = image.reshape(B, C, gh, PATCH, gw, PATCH).transpose(0, 2, 4, 1, 3, 5)
    patches = patches.reshape(B, n_patches, cpp)
    rows = jnp.concatenate([jnp.zeros((B, 1, cpp), image.dtype), patches], axis=1)
    rows = rows.reshape(B * L, cpp).astype(MM_DTYPE)
    pos_eff = vp["pos"].at[0].add(vp["cls"])                    # cls folded into pos[0]
    pos_stacked = jnp.tile(pos_eff, (B, 1))                     # (B*L, D_V)

    consts = [vp["conv_w"], pos_stacked, vp["ln"],
              vp["qkv_w"], vp["qkv_b"], vp["out_w"], vp["out_b"],
              vp["fc1_w"], vp["fc1_b"], vp["fc2_w"], vp["fc2_b"], vp["proj"]]

    kernel = functools.partial(_vision_kernel, n_layers=LAYERS_V, n_heads=HEADS_V,
                               n_seq=B, seq_len=L)
    return pl.pallas_call(
        kernel,
        out_shape=jax.ShapeDtypeStruct((B, EMBED), jnp.float32),
        grid=(1,),
        in_specs=[_full_spec(rows)] + [_full_spec(w) for w in consts],
        out_specs=pl.BlockSpec((B, EMBED), lambda i: (0, 0)),
        compiler_params=pltpu.CompilerParams(dimension_semantics=("arbitrary",)),
    )(rows, *consts)                                            # (B, EMBED), L2-normed


def encode_text(tokens, tp):
    N, L = tokens.shape
    emb = tp["token_emb"][tokens].reshape(N * L, D_T)           # embedding lookup (glue)
    pos_stacked = jnp.tile(tp["pos"], (N, 1))                   # (N*L, D_T)
    # EOT selection: argmax over token ids (EOT is the maximal id), offset per row.
    eot = jnp.argmax(tokens, axis=-1) + jnp.arange(N) * L
    sel = jax.nn.one_hot(eot, N * L, dtype=jnp.float32)         # (N, N*L)

    consts = [pos_stacked, sel, tp["ln"],
              tp["qkv_w"], tp["qkv_b"], tp["out_w"], tp["out_b"],
              tp["fc1_w"], tp["fc1_b"], tp["fc2_w"], tp["fc2_b"], tp["text_proj"]]

    kernel = functools.partial(_text_kernel, n_layers=LAYERS_T, n_heads=HEADS_T,
                               n_seq=N, seq_len=L)
    return pl.pallas_call(
        kernel,
        out_shape=jax.ShapeDtypeStruct((N, EMBED), jnp.float32),
        grid=(1,),
        in_specs=[_full_spec(emb)] + [_full_spec(w) for w in consts],
        out_specs=pl.BlockSpec((N, EMBED), lambda i: (0, 0)),
        compiler_params=pltpu.CompilerParams(dimension_semantics=("arbitrary",)),
    )(emb, *consts)                                             # (N, EMBED), L2-normed


@jax.jit
def clip_inference(image, tokens, params):
    img_f = encode_image(image, params["visual"])               # already normalized
    txt_f = encode_text(tokens, params["text"])                 # already normalized
    # The (B, N) logits matmul is ~6K FLOPs: leave it to plain XLA (no 3rd launch).
    return math.exp(LOGIT_SCALE) * (img_f @ txt_f.T)


# ======================= deterministic parameter init =======================

def init_params(key):
    keys = iter(jax.random.split(key, 64))

    def nrm(shape, std=0.02, dtype=jnp.float32):
        return (std * jax.random.normal(next(keys), shape, jnp.float32)).astype(dtype)

    def tower(d, n_layers, n_pre_ln):
        # Consolidated LN stack: [optional pre g,b] + per-layer [g1,b1,g2,b2] + [final g,b]
        n_ln = n_pre_ln + 4 * n_layers + 2
        ln = jnp.stack([(jnp.ones if i % 2 == 0 else jnp.zeros)((1, d), jnp.float32)
                        for i in range(n_ln)])                  # (n_ln, 1, d)
        return dict(
            ln=ln,
            qkv_w=nrm((n_layers, d, 3 * d), dtype=MM_DTYPE),    # fused in_proj (q|k|v)
            qkv_b=nrm((n_layers, 1, 3 * d)),
            out_w=nrm((n_layers, d, d), dtype=MM_DTYPE),
            out_b=nrm((n_layers, 1, d)),
            fc1_w=nrm((n_layers, d, MLP_RATIO * d), dtype=MM_DTYPE),
            fc1_b=nrm((n_layers, 1, MLP_RATIO * d)),
            fc2_w=nrm((n_layers, MLP_RATIO * d, d), dtype=MM_DTYPE),
            fc2_b=nrm((n_layers, 1, d)),
        )

    n_patches = (IMG_HW // PATCH) ** 2
    visual = dict(
        conv_w=nrm((IMG_C * PATCH * PATCH, D_V), dtype=MM_DTYPE),
        cls=nrm((D_V,)),
        pos=nrm((n_patches + 1, D_V)),
        proj=nrm((D_V, EMBED), dtype=MM_DTYPE),
        **tower(D_V, LAYERS_V, n_pre_ln=2),
    )
    text = dict(
        token_emb=nrm((VOCAB, D_T)),
        pos=nrm((CTX_LEN, D_T)),
        text_proj=nrm((D_T, EMBED), dtype=MM_DTYPE),
        **tower(D_T, LAYERS_T, n_pre_ln=0),
    )
    return dict(visual=visual, text=text)


# ================================= main =================================

if __name__ == "__main__":
    key = jax.random.PRNGKey(0)
    pkey, ikey, tkey = jax.random.split(key, 3)
    params = init_params(pkey)

    image = jax.random.normal(ikey, (IMG_B, IMG_C, IMG_HW, IMG_HW), jnp.float32)

    # Synthetic "tokenized class descriptions": random tokens, EOT (= VOCAB-1, the
    # maximal id, so argmax finds it) at a per-class position, zero padding after.
    # TODO(synk): real CLIP BPE tokenization has no in-script Pallas/JAX equivalent.
    body = jax.random.randint(tkey, (N_CLASSES, CTX_LEN), 1, VOCAB - 2)
    eot_pos = jnp.array([3, 5, 6])
    col = jnp.arange(CTX_LEN)[None, :]
    tokens = jnp.where(col == eot_pos[:, None], VOCAB - 1,
                       jnp.where(col > eot_pos[:, None], 0, body)).astype(jnp.int32)

    logits = clip_inference(image, tokens, params)
    jax.block_until_ready(logits)
    assert logits.shape == (IMG_B, N_CLASSES)
    assert bool(jnp.all(jnp.isfinite(logits)))
    print("KERNEL_OK")
</pallas_src>

<mosaic_0001>
module attributes {stable_mosaic.version = 11 : i64} {
  func.func @_vision_kernel(%arg0: i32, %arg1: memref<10x768xbf16, #tpu.memory_space<vmem>>, %arg2: memref<768x64xbf16, #tpu.memory_space<vmem>>, %arg3: memref<10x64xf32, #tpu.memory_space<vmem>>, %arg4: memref<12x1x64xf32, #tpu.memory_space<vmem>>, %arg5: memref<2x64x192xbf16, #tpu.memory_space<vmem>>, %arg6: memref<2x1x192xf32, #tpu.memory_space<vmem>>, %arg7: memref<2x64x64xbf16, #tpu.memory_space<vmem>>, %arg8: memref<2x1x64xf32, #tpu.memory_space<vmem>>, %arg9: memref<2x64x256xbf16, #tpu.memory_space<vmem>>, %arg10: memref<2x1x256xf32, #tpu.memory_space<vmem>>, %arg11: memref<2x256x64xbf16, #tpu.memory_space<vmem>>, %arg12: memref<2x1x64xf32, #tpu.memory_space<vmem>>, %arg13: memref<64x32xbf16, #tpu.memory_space<vmem>>, %arg14: memref<2x32xf32, #tpu.memory_space<vmem>>) attributes {dimension_semantics = [#tpu.dimension_semantics<arbitrary>], iteration_bounds = array<i64: 1>, scalar_prefetch = 0 : i64, scratch_operands = 0 : i64, tpu.core_type = #tpu.core_type<tc>, window_params = [{pipeline_mode = #tpu.pipeline_mode<synchronous>, transform_indices = @transform_0, window_bounds = array<i64: 10, 768>}, {pipeline_mode = #tpu.pipeline_mode<synchronous>, transform_indices = @transform_1, window_bounds = array<i64: 768, 64>}, {pipeline_mode = #tpu.pipeline_mode<synchronous>, transform_indices = @transform_2, window_bounds = array<i64: 10, 64>}, {pipeline_mode = #tpu.pipeline_mode<synchronous>, transform_indices = @transform_3, window_bounds = array<i64: 12, 1, 64>}, {pipeline_mode = #tpu.pipeline_mode<synchronous>, transform_indices = @transform_4, window_bounds = array<i64: 2, 64, 192>}, {pipeline_mode = #tpu.pipeline_mode<synchronous>, transform_indices = @transform_5, window_bounds = array<i64: 2, 1, 192>}, {pipeline_mode = #tpu.pipeline_mode<synchronous>, transform_indices = @transform_6, window_bounds = array<i64: 2, 64, 64>}, {pipeline_mode = #tpu.pipeline_mode<synchronous>, transform_indices = @transform_7, window_bounds = array<i64: 2, 1, 64>}, {pipeline_mode = #tpu.pipeline_mode<synchronous>, transform_indices = @transform_8, window_bounds = array<i64: 2, 64, 256>}, {pipeline_mode = #tpu.pipeline_mode<synchronous>, transform_indices = @transform_9, window_bounds = array<i64: 2, 1, 256>}, {pipeline_mode = #tpu.pipeline_mode<synchronous>, transform_indices = @transform_10, window_bounds = array<i64: 2, 256, 64>}, {pipeline_mode = #tpu.pipeline_mode<synchronous>, transform_indices = @transform_11, window_bounds = array<i64: 2, 1, 64>}, {pipeline_mode = #tpu.pipeline_mode<synchronous>, transform_indices = @transform_12, window_bounds = array<i64: 64, 32>}, {pipeline_mode = #tpu.pipeline_mode<synchronous>, transform_indices = @transform_13, window_bounds = array<i64: 2, 32>}]} {
    %c0 = arith.constant 0 : index
    %c0_0 = arith.constant 0 : index
    %0 = vector.load %arg1[%c0, %c0_0] : memref<10x768xbf16, #tpu.memory_space<vmem>>, vector<10x768xbf16>
    %c0_1 = arith.constant 0 : index
    %c0_2 = arith.constant 0 : index
    %1 = vector.load %arg2[%c0_1, %c0_2] : memref<768x64xbf16, #tpu.memory_space<vmem>>, vector<768x64xbf16>
    %cst = arith.constant dense<0.000000e+00> : vector<10x64xf32>
    %2 = tpu.matmul %0, %1, %cst {dimension_numbers = #tpu.dot_dimension_numbers<[1], [0], [0], [1], [0, 0, 1, 1], [], []>} : vector<10x768xbf16>, vector<768x64xbf16>, vector<10x64xf32> -> vector<10x64xf32>
    %c0_3 = arith.constant 0 : index
    %c0_4 = arith.constant 0 : index
    %3 = vector.load %arg3[%c0_3, %c0_4] : memref<10x64xf32, #tpu.memory_space<vmem>>, vector<10x64xf32>
    %4 = arith.addf %2, %3 : vector<10x64xf32>
    %c0_5 = arith.constant 0 : index
    %c0_6 = arith.constant 0 : index
    %c0_7 = arith.constant 0 : index
    %5 = vector.load %arg4[%c0_5, %c0_6, %c0_7] : memref<12x1x64xf32, #tpu.memory_space<vmem>>, vector<1x1x64xf32>
    %6 = vector.shape_cast %5 : vector<1x1x64xf32> to vector<1x64xf32>
    %c1 = arith.constant 1 : index
    %c0_8 = arith.constant 0 : index
    %c0_9 = arith.constant 0 : index
    %7 = vector.load %arg4[%c1, %c0_8, %c0_9] : memref<12x1x64xf32, #tpu.memory_space<vmem>>, vector<1x1x64xf32>
    %8 = vector.shape_cast %7 : vector<1x1x64xf32> to vector<1x64xf32>
    %cst_10 = arith.constant dense<0.000000e+00> : vector<10xf32>
    %9 = vector.multi_reduction <add>, %4, %cst_10 [1] : vector<10x64xf32> to vector<10xf32>
    %10 = vector.shape_cast %9 : vector<10xf32> to vector<10x1xf32>
    %cst_11 = arith.constant 6.400000e+01 : f32
    %11 = vector.broadcast %cst_11 : f32 to vector<10x1xf32>
    %12 = arith.divf %10, %11 : vector<10x1xf32>
    %13 = vector.broadcast %12 : vector<10x1xf32> to vector<10x64xf32>
    %14 = arith.subf %4, %13 : vector<10x64xf32>
    %15 = arith.mulf %14, %14 : vector<10x64xf32>
    %cst_12 = arith.constant dense<0.000000e+00> : vector<10xf32>
    %16 = vector.multi_reduction <add>, %15, %cst_12 [1] : vector<10x64xf32> to vector<10xf32>
    %17 = vector.shape_cast %16 : vector<10xf32> to vector<10x1xf32>
    %cst_13 = arith.constant 6.400000e+01 : f32
    %18 = vector.broadcast %cst_13 : f32 to vector<10x1xf32>
    %19 = arith.divf %17, %18 : vector<10x1xf32>
    %cst_14 = arith.constant 9.99999974E-6 : f32
    %20 = vector.broadcast %cst_14 : f32 to vector<10x1xf32>
    %21 = arith.addf %19, %20 : vector<10x1xf32>
    %22 = math.rsqrt %21 : vector<10x1xf32>
    %23 = vector.broadcast %22 : vector<10x1xf32> to vector<10x64xf32>
    %24 = arith.mulf %14, %23 : vector<10x64xf32>
    %25 = vector.broadcast %6 : vector<1x64xf32> to vector<10x64xf32>
    %26 = arith.mulf %24, %25 : vector<10x64xf32>
    %27 = vector.broadcast %8 : vector<1x64xf32> to vector<10x64xf32>
    %28 = arith.addf %26, %27 : vector<10x64xf32>
    %29 = tpu.iota {dimensions = array<i32: 0>} : vector<10x10xi32>
    %30 = tpu.iota {dimensions = array<i32: 1>} : vector<10x10xi32>
    %false = arith.constant false
    %31 = vector.broadcast %false : i1 to vector<10x10xi1>
    %c0_i32 = arith.constant 0 : i32
    %32 = vector.broadcast %c0_i32 : i32 to vector<10x10xi32>
    %33 = arith.cmpi sge, %29, %32 : vector<10x10xi32>
    %c5_i32 = arith.constant 5 : i32
    %34 = vector.broadcast %c5_i32 : i32 to vector<10x10xi32>
    %35 = arith.cmpi slt, %29, %34 : vector<10x10xi32>
    %36 = arith.andi %33, %35 : vector<10x10xi1>
    %c0_i32_15 = arith.constant 0 : i32
    %37 = vector.broadcast %c0_i32_15 : i32 to vector<10x10xi32>
    %38 = arith.cmpi sge, %30, %37 : vector<10x10xi32>
    %c5_i32_16 = arith.constant 5 : i32
    %39 = vector.broadcast %c5_i32_16 : i32 to vector<10x10xi32>
    %40 = arith.cmpi slt, %30, %39 : vector<10x10xi32>
    %41 = arith.andi %38, %40 : vector<10x10xi1>
    %42 = arith.andi %36, %41 : vector<10x10xi1>
    %43 = arith.ori %31, %42 : vector<10x10xi1>
    %c5_i32_17 = arith.constant 5 : i32
    %44 = vector.broadcast %c5_i32_17 : i32 to vector<10x10xi32>
    %45 = arith.cmpi sge, %29, %44 : vector<10x10xi32>
    %c10_i32 = arith.constant 10 : i32
    %46 = vector.broadcast %c10_i32 : i32 to vector<10x10xi32>
    %47 = arith.cmpi slt, %29, %46 : vector<10x10xi32>
    %48 = arith.andi %45, %47 : vector<10x10xi1>
    %c5_i32_18 = arith.constant 5 : i32
    %49 = vector.broadcast %c5_i32_18 : i32 to vector<10x10xi32>
    %50 = arith.cmpi sge, %30, %49 : vector<10x10xi32>
    %c10_i32_19 = arith.constant 10 : i32
    %51 = vector.broadcast %c10_i32_19 : i32 to vector<10x10xi32>
    %52 = arith.cmpi slt, %30, %51 : vector<10x10xi32>
    %53 = arith.andi %50, %52 : vector<10x10xi1>
    %54 = arith.andi %48, %53 : vector<10x10xi1>
    %55 = arith.ori %43, %54 : vector<10x10xi1>
    %cst_20 = arith.constant 0.000000e+00 : f32
    %cst_21 = arith.constant -1.000000e+09 : f32
    %56 = vector.broadcast %cst_20 : f32 to vector<10x10xf32>
    %57 = vector.broadcast %cst_21 : f32 to vector<10x10xf32>
    %58 = arith.select %55, %56, %57 : vector<10x10xi1>, vector<10x10xf32>
    %c2 = arith.constant 2 : index
    %c0_22 = arith.constant 0 : index
    %c0_23 = arith.constant 0 : index
    %59 = vector.load %arg4[%c2, %c0_22, %c0_23] : memref<12x1x64xf32, #tpu.memory_space<vmem>>, vector<1x1x64xf32>
    %60 = vector.shape_cast %59 : vector<1x1x64xf32> to vector<1x64xf32>
    %c3 = arith.constant 3 : index
    %c0_24 = arith.constant 0 : index
    %c0_25 = arith.constant 0 : index
    %61 = vector.load %arg4[%c3, %c0_24, %c0_25] : memref<12x1x64xf32, #tpu.memory_space<vmem>>, vector<1x1x64xf32>
    %62 = vector.shape_cast %61 : vector<1x1x64xf32> to vector<1x64xf32>
    %c4 = arith.constant 4 : index
    %c0_26 = arith.constant 0 : index
    %c0_27 = arith.constant 0 : index
    %63 = vector.load %arg4[%c4, %c0_26, %c0_27] : memref<12x1x64xf32, #tpu.memory_space<vmem>>, vector<1x1x64xf32>
    %64 = vector.shape_cast %63 : vector<1x1x64xf32> to vector<1x64xf32>
    %c5 = arith.constant 5 : index
    %c0_28 = arith.constant 0 : index
    %c0_29 = arith.constant 0 : index
    %65 = vector.load %arg4[%c5, %c0_28, %c0_29] : memref<12x1x64xf32, #tpu.memory_space<vmem>>, vector<1x1x64xf32>
    %66 = vector.shape_cast %65 : vector<1x1x64xf32> to vector<1x64xf32>
    %cst_30 = arith.constant dense<0.000000e+00> : vector<10xf32>
    %67 = vector.multi_reduction <add>, %28, %cst_30 [1] : vector<10x64xf32> to vector<10xf32>
    %68 = vector.shape_cast %67 : vector<10xf32> to vector<10x1xf32>
    %cst_31 = arith.constant 6.400000e+01 : f32
    %69 = vector.broadcast %cst_31 : f32 to vector<10x1xf32>
    %70 = arith.divf %68, %69 : vector<10x1xf32>
    %71 = vector.broadcast %70 : vector<10x1xf32> to vector<10x64xf32>
    %72 = arith.subf %28, %71 : vector<10x64xf32>
    %73 = arith.mulf %72, %72 : vector<10x64xf32>
    %cst_32 = arith.constant dense<0.000000e+00> : vector<10xf32>
    %74 = vector.multi_reduction <add>, %73, %cst_32 [1] : vector<10x64xf32> to vector<10xf32>
    %75 = vector.shape_cast %74 : vector<10xf32> to vector<10x1xf32>
    %cst_33 = arith.constant 6.400000e+01 : f32
    %76 = vector.broadcast %cst_33 : f32 to vector<10x1xf32>
    %77 = arith.divf %75, %76 : vector<10x1xf32>
    %cst_34 = arith.constant 9.99999974E-6 : f32
    %78 = vector.broadcast %cst_34 : f32 to vector<10x1xf32>
    %79 = arith.addf %77, %78 : vector<10x1xf32>
    %80 = math.rsqrt %79 : vector<10x1xf32>
    %81 = vector.broadcast %80 : vector<10x1xf32> to vector<10x64xf32>
    %82 = arith.mulf %72, %81 : vector<10x64xf32>
    %83 = vector.broadcast %60 : vector<1x64xf32> to vector<10x64xf32>
    %84 = arith.mulf %82, %83 : vector<10x64xf32>
    %85 = vector.broadcast %62 : vector<1x64xf32> to vector<10x64xf32>
    %86 = arith.addf %84, %85 : vector<10x64xf32>
    %87 = arith.truncf %86 : vector<10x64xf32> to vector<10x64xbf16>
    %c0_35 = arith.constant 0 : index
    %c0_36 = arith.constant 0 : index
    %c0_37 = arith.constant 0 : index
    %88 = vector.load %arg5[%c0_35, %c0_36, %c0_37] : memref<2x64x192xbf16, #tpu.memory_space<vmem>>, vector<1x64x192xbf16>
    %89 = vector.shape_cast %88 : vector<1x64x192xbf16> to vector<64x192xbf16>
    %cst_38 = arith.constant dense<0.000000e+00> : vector<10x192xf32>
    %90 = tpu.matmul %87, %89, %cst_38 {dimension_numbers = #tpu.dot_dimension_numbers<[1], [0], [0], [1], [0, 0, 1, 1], [], []>} : vector<10x64xbf16>, vector<64x192xbf16>, vector<10x192xf32> -> vector<10x192xf32>
    %c0_39 = arith.constant 0 : index
    %c0_40 = arith.constant 0 : index
    %c0_41 = arith.constant 0 : index
    %91 = vector.load %arg6[%c0_39, %c0_40, %c0_41] : memref<2x1x192xf32, #tpu.memory_space<vmem>>, vector<1x1x192xf32>
    %92 = vector.shape_cast %91 : vector<1x1x192xf32> to vector<1x192xf32>
    %93 = vector.broadcast %92 : vector<1x192xf32> to vector<10x192xf32>
    %94 = arith.addf %90, %93 : vector<10x192xf32>
    %95 = vector.extract_strided_slice %94 {offsets = [0, 0], sizes = [10, 16], strides = [1, 1]} : vector<10x192xf32> to vector<10x16xf32>
    %96 = vector.extract_strided_slice %94 {offsets = [0, 64], sizes = [10, 16], strides = [1, 1]} : vector<10x192xf32> to vector<10x16xf32>
    %97 = vector.extract_strided_slice %94 {offsets = [0, 128], sizes = [10, 16], strides = [1, 1]} : vector<10x192xf32> to vector<10x16xf32>
    %cst_42 = arith.constant dense<0.000000e+00> : vector<10x10xf32>
    %98 = tpu.matmul %95, %96, %cst_42 {dimension_numbers = #tpu.dot_dimension_numbers<[1], [1], [0], [0], [0, 0, 1, 0], [], []>} : vector<10x16xf32>, vector<10x16xf32>, vector<10x10xf32> -> vector<10x10xf32>
    %cst_43 = arith.constant 2.500000e-01 : f32
    %99 = vector.broadcast %cst_43 : f32 to vector<10x10xf32>
    %100 = arith.mulf %98, %99 : vector<10x10xf32>
    %101 = arith.addf %100, %58 : vector<10x10xf32>
    %cst_44 = arith.constant dense<0xFF800000> : vector<10xf32>
    %102 = vector.multi_reduction <maximumf>, %101, %cst_44 [1] : vector<10x10xf32> to vector<10xf32>
    %103 = vector.shape_cast %102 : vector<10xf32> to vector<10x1xf32>
    %104 = vector.broadcast %103 : vector<10x1xf32> to vector<10x10xf32>
    %105 = arith.subf %101, %104 : vector<10x10xf32>
    %106 = math.exp %105 : vector<10x10xf32>
    %cst_45 = arith.constant dense<0.000000e+00> : vector<10xf32>
    %107 = vector.multi_reduction <add>, %106, %cst_45 [1] : vector<10x10xf32> to vector<10xf32>
    %108 = vector.shape_cast %107 : vector<10xf32> to vector<10x1xf32>
    %109 = tpu.reciprocal %108 {approx = true} : vector<10x1xf32> -> vector<10x1xf32>
    %110 = vector.broadcast %109 : vector<10x1xf32> to vector<10x10xf32>
    %111 = arith.mulf %106, %110 : vector<10x10xf32>
    %cst_46 = arith.constant dense<0.000000e+00> : vector<10x16xf32>
    %112 = tpu.matmul %111, %97, %cst_46 {dimension_numbers = #tpu.dot_dimension_numbers<[1], [0], [0], [1], [0, 0, 1, 1], [], []>} : vector<10x10xf32>, vector<10x16xf32>, vector<10x16xf32> -> vector<10x16xf32>
    %113 = vector.extract_strided_slice %94 {offsets = [0, 16], sizes = [10, 16], strides = [1, 1]} : vector<10x192xf32> to vector<10x16xf32>
    %114 = vector.extract_strided_slice %94 {offsets = [0, 80], sizes = [10, 16], strides = [1, 1]} : vector<10x192xf32> to vector<10x16xf32>
    %115 = vector.extract_strided_slice %94 {offsets = [0, 144], sizes = [10, 16], strides = [1, 1]} : vector<10x192xf32> to vector<10x16xf32>
    %cst_47 = arith.constant dense<0.000000e+00> : vector<10x10xf32>
    %116 = tpu.matmul %113, %114, %cst_47 {dimension_numbers = #tpu.dot_dimension_numbers<[1], [1], [0], [0], [0, 0, 1, 0], [], []>} : vector<10x16xf32>, vector<10x16xf32>, vector<10x10xf32> -> vector<10x10xf32>
    %cst_48 = arith.constant 2.500000e-01 : f32
    %117 = vector.broadcast %cst_48 : f32 to vector<10x10xf32>
    %118 = arith.mulf %116, %117 : vector<10x10xf32>
    %119 = arith.addf %118, %58 : vector<10x10xf32>
    %cst_49 = arith.constant dense<0xFF800000> : vector<10xf32>
    %120 = vector.multi_reduction <maximumf>, %119, %cst_49 [1] : vector<10x10xf32> to vector<10xf32>
    %121 = vector.shape_cast %120 : vector<10xf32> to vector<10x1xf32>
    %122 = vector.broadcast %121 : vector<10x1xf32> to vector<10x10xf32>
    %123 = arith.subf %119, %122 : vector<10x10xf32>
    %124 = math.exp %123 : vector<10x10xf32>
    %cst_50 = arith.constant dense<0.000000e+00> : vector<10xf32>
    %125 = vector.multi_reduction <add>, %124, %cst_50 [1] : vector<10x10xf32> to vector<10xf32>
    %126 = vector.shape_cast %125 : vector<10xf32> to vector<10x1xf32>
    %127 = tpu.reciprocal %126 {approx = true} : vector<10x1xf32> -> vector<10x1xf32>
    %128 = vector.broadcast %127 : vector<10x1xf32> to vector<10x10xf32>
    %129 = arith.mulf %124, %128 : vector<10x10xf32>
    %cst_51 = arith.constant dense<0.000000e+00> : vector<10x16xf32>
    %130 = tpu.matmul %129, %115, %cst_51 {dimension_numbers = #tpu.dot_dimension_numbers<[1], [0], [0], [1], [0, 0, 1, 1], [], []>} : vector<10x10xf32>, vector<10x16xf32>, vector<10x16xf32> -> vector<10x16xf32>
    %131 = vector.extract_strided_slice %94 {offsets = [0, 32], sizes = [10, 16], strides = [1, 1]} : vector<10x192xf32> to vector<10x16xf32>
    %132 = vector.extract_strided_slice %94 {offsets = [0, 96], sizes = [10, 16], strides = [1, 1]} : vector<10x192xf32> to vector<10x16xf32>
    %133 = vector.extract_strided_slice %94 {offsets = [0, 160], sizes = [10, 16], strides = [1, 1]} : vector<10x192xf32> to vector<10x16xf32>
    %cst_52 = arith.constant dense<0.000000e+00> : vector<10x10xf32>
    %134 = tpu.matmul %131, %132, %cst_52 {dimension_numbers = #tpu.dot_dimension_numbers<[1], [1], [0], [0], [0, 0, 1, 0], [], []>} : vector<10x16xf32>, vector<10x16xf32>, vector<10x10xf32> -> vector<10x10xf32>
    %cst_53 = arith.constant 2.500000e-01 : f32
    %135 = vector.broadcast %cst_53 : f32 to vector<10x10xf32>
    %136 = arith.mulf %134, %135 : vector<10x10xf32>
    %137 = arith.addf %136, %58 : vector<10x10xf32>
    %cst_54 = arith.constant dense<0xFF800000> : vector<10xf32>
    %138 = vector.multi_reduction <maximumf>, %137, %cst_54 [1] : vector<10x10xf32> to vector<10xf32>
    %139 = vector.shape_cast %138 : vector<10xf32> to vector<10x1xf32>
    %140 = vector.broadcast %139 : vector<10x1xf32> to vector<10x10xf32>
    %141 = arith.subf %137, %140 : vector<10x10xf32>
    %142 = math.exp %141 : vector<10x10xf32>
    %cst_55 = arith.constant dense<0.000000e+00> : vector<10xf32>
    %143 = vector.multi_reduction <add>, %142, %cst_55 [1] : vector<10x10xf32> to vector<10xf32>
    %144 = vector.shape_cast %143 : vector<10xf32> to vector<10x1xf32>
    %145 = tpu.reciprocal %144 {approx = true} : vector<10x1xf32> -> vector<10x1xf32>
    %146 = vector.broadcast %145 : vector<10x1xf32> to vector<10x10xf32>
    %147 = arith.mulf %142, %146 : vector<10x10xf32>
    %cst_56 = arith.constant dense<0.000000e+00> : vector<10x16xf32>
    %148 = tpu.matmul %147, %133, %cst_56 {dimension_numbers = #tpu.dot_dimension_numbers<[1], [0], [0], [1], [0, 0, 1, 1], [], []>} : vector<10x10xf32>, vector<10x16xf32>, vector<10x16xf32> -> vector<10x16xf32>
    %149 = vector.extract_strided_slice %94 {offsets = [0, 48], sizes = [10, 16], strides = [1, 1]} : vector<10x192xf32> to vector<10x16xf32>
    %150 = vector.extract_strided_slice %94 {offsets = [0, 112], sizes = [10, 16], strides = [1, 1]} : vector<10x192xf32> to vector<10x16xf32>
    %151 = vector.extract_strided_slice %94 {offsets = [0, 176], sizes = [10, 16], strides = [1, 1]} : vector<10x192xf32> to vector<10x16xf32>
    %cst_57 = arith.constant dense<0.000000e+00> : vector<10x10xf32>
    %152 = tpu.matmul %149, %150, %cst_57 {dimension_numbers = #tpu.dot_dimension_numbers<[1], [1], [0], [0], [0, 0, 1, 0], [], []>} : vector<10x16xf32>, vector<10x16xf32>, vector<10x10xf32> -> vector<10x10xf32>
    %cst_58 = arith.constant 2.500000e-01 : f32
    %153 = vector.broadcast %cst_58 : f32 to vector<10x10xf32>
    %154 = arith.mulf %152, %153 : vector<10x10xf32>
    %155 = arith.addf %154, %58 : vector<10x10xf32>
    %cst_59 = arith.constant dense<0xFF800000> : vector<10xf32>
    %156 = vector.multi_reduction <maximumf>, %155, %cst_59 [1] : vector<10x10xf32> to vector<10xf32>
    %157 = vector.shape_cast %156 : vector<10xf32> to vector<10x1xf32>
    %158 = vector.broadcast %157 : vector<10x1xf32> to vector<10x10xf32>
    %159 = arith.subf %155, %158 : vector<10x10xf32>
    %160 = math.exp %159 : vector<10x10xf32>
    %cst_60 = arith.constant dense<0.000000e+00> : vector<10xf32>
    %161 = vector.multi_reduction <add>, %160, %cst_60 [1] : vector<10x10xf32> to vector<10xf32>
    %162 = vector.shape_cast %161 : vector<10xf32> to vector<10x1xf32>
    %163 = tpu.reciprocal %162 {approx = true} : vector<10x1xf32> -> vector<10x1xf32>
    %164 = vector.broadcast %163 : vector<10x1xf32> to vector<10x10xf32>
    %165 = arith.mulf %160, %164 : vector<10x10xf32>
    %cst_61 = arith.constant dense<0.000000e+00> : vector<10x16xf32>
    %166 = tpu.matmul %165, %151, %cst_61 {dimension_numbers = #tpu.dot_dimension_numbers<[1], [0], [0], [1], [0, 0, 1, 1], [], []>} : vector<10x10xf32>, vector<10x16xf32>, vector<10x16xf32> -> vector<10x16xf32>
    %167 = tpu.concatenate %112, %130, %148, %166 in 1 : vector<10x16xf32>, vector<10x16xf32>, vector<10x16xf32>, vector<10x16xf32> -> vector<10x64xf32>
    %168 = arith.truncf %167 : vector<10x64xf32> to vector<10x64xbf16>
    %c0_62 = arith.constant 0 : index
    %c0_63 = arith.constant 0 : index
    %c0_64 = arith.constant 0 : index
    %169 = vector.load %arg7[%c0_62, %c0_63, %c0_64] : memref<2x64x64xbf16, #tpu.memory_space<vmem>>, vector<1x64x64xbf16>
    %170 = vector.shape_cast %169 : vector<1x64x64xbf16> to vector<64x64xbf16>
    %cst_65 = arith.constant dense<0.000000e+00> : vector<10x64xf32>
    %171 = tpu.matmul %168, %170, %cst_65 {dimension_numbers = #tpu.dot_dimension_numbers<[1], [0], [0], [1], [0, 0, 1, 1], [], []>} : vector<10x64xbf16>, vector<64x64xbf16>, vector<10x64xf32> -> vector<10x64xf32>
    %172 = arith.addf %28, %171 : vector<10x64xf32>
    %c0_66 = arith.constant 0 : index
    %c0_67 = arith.constant 0 : index
    %c0_68 = arith.constant 0 : index
    %173 = vector.load %arg8[%c0_66, %c0_67, %c0_68] : memref<2x1x64xf32, #tpu.memory_space<vmem>>, vector<1x1x64xf32>
    %174 = vector.shape_cast %173 : vector<1x1x64xf32> to vector<1x64xf32>
    %175 = vector.broadcast %174 : vector<1x64xf32> to vector<10x64xf32>
    %176 = arith.addf %172, %175 : vector<10x64xf32>
    %cst_69 = arith.constant dense<0.000000e+00> : vector<10xf32>
    %177 = vector.multi_reduction <add>, %176, %cst_69 [1] : vector<10x64xf32> to vector<10xf32>
    %178 = vector.shape_cast %177 : vector<10xf32> to vector<10x1xf32>
    %cst_70 = arith.constant 6.400000e+01 : f32
    %179 = vector.broadcast %cst_70 : f32 to vector<10x1xf32>
    %180 = arith.divf %178, %179 : vector<10x1xf32>
    %181 = vector.broadcast %180 : vector<10x1xf32> to vector<10x64xf32>
    %182 = arith.subf %176, %181 : vector<10x64xf32>
    %183 = arith.mulf %182, %182 : vector<10x64xf32>
    %cst_71 = arith.constant dense<0.000000e+00> : vector<10xf32>
    %184 = vector.multi_reduction <add>, %183, %cst_71 [1] : vector<10x64xf32> to vector<10xf32>
    %185 = vector.shape_cast %184 : vector<10xf32> to vector<10x1xf32>
    %cst_72 = arith.constant 6.400000e+01 : f32
    %186 = vector.broadcast %cst_72 : f32 to vector<10x1xf32>
    %187 = arith.divf %185, %186 : vector<10x1xf32>
    %cst_73 = arith.constant 9.99999974E-6 : f32
    %188 = vector.broadcast %cst_73 : f32 to vector<10x1xf32>
    %189 = arith.addf %187, %188 : vector<10x1xf32>
    %190 = math.rsqrt %189 : vector<10x1xf32>
    %191 = vector.broadcast %190 : vector<10x1xf32> to vector<10x64xf32>
    %192 = arith.mulf %182, %191 : vector<10x64xf32>
    %193 = vector.broadcast %64 : vector<1x64xf32> to vector<10x64xf32>
    %194 = arith.mulf %192, %193 : vector<10x64xf32>
    %195 = vector.broadcast %66 : vector<1x64xf32> to vector<10x64xf32>
    %196 = arith.addf %194, %195 : vector<10x64xf32>
    %197 = arith.truncf %196 : vector<10x64xf32> to vector<10x64xbf16>
    %c0_74 = arith.constant 0 : index
    %c0_75 = arith.constant 0 : index
    %c0_76 = arith.constant 0 : index
    %198 = vector.load %arg9[%c0_74, %c0_75, %c0_76] : memref<2x64x256xbf16, #tpu.memory_space<vmem>>, vector<1x64x256xbf16>
    %199 = vector.shape_cast %198 : vector<1x64x256xbf16> to vector<64x256xbf16>
    %cst_77 = arith.constant dense<0.000000e+00> : vector<10x256xf32>
    %200 = tpu.matmul %197, %199, %cst_77 {dimension_numbers = #tpu.dot_dimension_numbers<[1], [0], [0], [1], [0, 0, 1, 1], [], []>} : vector<10x64xbf16>, vector<64x256xbf16>, vector<10x256xf32> -> vector<10x256xf32>
    %c0_78 = arith.constant 0 : index
    %c0_79 = arith.constant 0 : index
    %c0_80 = arith.constant 0 : index
    %201 = vector.load %arg10[%c0_78, %c0_79, %c0_80] : memref<2x1x256xf32, #tpu.memory_space<vmem>>, vector<1x1x256xf32>
    %202 = vector.shape_cast %201 : vector<1x1x256xf32> to vector<1x256xf32>
    %203 = vector.broadcast %202 : vector<1x256xf32> to vector<10x256xf32>
    %204 = arith.addf %200, %203 : vector<10x256xf32>
    %cst_81 = arith.constant 1.702000e+00 : f32
    %205 = vector.broadcast %cst_81 : f32 to vector<10x256xf32>
    %206 = arith.mulf %205, %204 : vector<10x256xf32>
    %207 = arith.negf %206 : vector<10x256xf32>
    %208 = math.exp %207 : vector<10x256xf32>
    %cst_82 = arith.constant 1.000000e+00 : f32
    %209 = vector.broadcast %cst_82 : f32 to vector<10x256xf32>
    %210 = arith.addf %209, %208 : vector<10x256xf32>
    %211 = arith.divf %209, %210 : vector<10x256xf32>
    %212 = arith.mulf %204, %211 : vector<10x256xf32>
    %213 = arith.truncf %212 : vector<10x256xf32> to vector<10x256xbf16>
    %c0_83 = arith.constant 0 : index
    %c0_84 = arith.constant 0 : index
    %c0_85 = arith.constant 0 : index
    %214 = vector.load %arg11[%c0_83, %c0_84, %c0_85] : memref<2x256x64xbf16, #tpu.memory_space<vmem>>, vector<1x256x64xbf16>
    %215 = vector.shape_cast %214 : vector<1x256x64xbf16> to vector<256x64xbf16>
    %cst_86 = arith.constant dense<0.000000e+00> : vector<10x64xf32>
    %216 = tpu.matmul %213, %215, %cst_86 {dimension_numbers = #tpu.dot_dimension_numbers<[1], [0], [0], [1], [0, 0, 1, 1], [], []>} : vector<10x256xbf16>, vector<256x64xbf16>, vector<10x64xf32> -> vector<10x64xf32>
    %217 = arith.addf %176, %216 : vector<10x64xf32>
    %c0_87 = arith.constant 0 : index
    %c0_88 = arith.constant 0 : index
    %c0_89 = arith.constant 0 : index
    %218 = vector.load %arg12[%c0_87, %c0_88, %c0_89] : memref<2x1x64xf32, #tpu.memory_space<vmem>>, vector<1x1x64xf32>
    %219 = vector.shape_cast %218 : vector<1x1x64xf32> to vector<1x64xf32>
    %220 = vector.broadcast %219 : vector<1x64xf32> to vector<10x64xf32>
    %221 = arith.addf %217, %220 : vector<10x64xf32>
    %c6 = arith.constant 6 : index
    %c0_90 = arith.constant 0 : index
    %c0_91 = arith.constant 0 : index
    %222 = vector.load %arg4[%c6, %c0_90, %c0_91] : memref<12x1x64xf32, #tpu.memory_space<vmem>>, vector<1x1x64xf32>
    %223 = vector.shape_cast %222 : vector<1x1x64xf32> to vector<1x64xf32>
    %c7 = arith.constant 7 : index
    %c0_92 = arith.constant 0 : index
    %c0_93 = arith.constant 0 : index
    %224 = vector.load %arg4[%c7, %c0_92, %c0_93] : memref<12x1x64xf32, #tpu.memory_space<vmem>>, vector<1x1x64xf32>
    %225 = vector.shape_cast %224 : vector<1x1x64xf32> to vector<1x64xf32>
    %c8 = arith.constant 8 : index
    %c0_94 = arith.constant 0 : index
    %c0_95 = arith.constant 0 : index
    %226 = vector.load %arg4[%c8, %c0_94, %c0_95] : memref<12x1x64xf32, #tpu.memory_space<vmem>>, vector<1x1x64xf32>
    %227 = vector.shape_cast %226 : vector<1x1x64xf32> to vector<1x64xf32>
    %c9 = arith.constant 9 : index
    %c0_96 = arith.constant 0 : index
    %c0_97 = arith.constant 0 : index
    %228 = vector.load %arg4[%c9, %c0_96, %c0_97] : memref<12x1x64xf32, #tpu.memory_space<vmem>>, vector<1x1x64xf32>
    %229 = vector.shape_cast %228 : vector<1x1x64xf32> to vector<1x64xf32>
    %cst_98 = arith.constant dense<0.000000e+00> : vector<10xf32>
    %230 = vector.multi_reduction <add>, %221, %cst_98 [1] : vector<10x64xf32> to vector<10xf32>
    %231 = vector.shape_cast %230 : vector<10xf32> to vector<10x1xf32>
    %cst_99 = arith.constant 6.400000e+01 : f32
    %232 = vector.broadcast %cst_99 : f32 to vector<10x1xf32>
    %233 = arith.divf %231, %232 : vector<10x1xf32>
    %234 = vector.broadcast %233 : vector<10x1xf32> to vector<10x64xf32>
    %235 = arith.subf %221, %234 : vector<10x64xf32>
    %236 = arith.mulf %235, %235 : vector<10x64xf32>
    %cst_100 = arith.constant dense<0.000000e+00> : vector<10xf32>
    %237 = vector.multi_reduction <add>, %236, %cst_100 [1] : vector<10x64xf32> to vector<10xf32>
    %238 = vector.shape_cast %237 : vector<10xf32> to vector<10x1xf32>
    %cst_101 = arith.constant 6.400000e+01 : f32
    %239 = vector.broadcast %cst_101 : f32 to vector<10x1xf32>
    %240 = arith.divf %238, %239 : vector<10x1xf32>
    %cst_102 = arith.constant 9.99999974E-6 : f32
    %241 = vector.broadcast %cst_102 : f32 to vector<10x1xf32>
    %242 = arith.addf %240, %241 : vector<10x1xf32>
    %243 = math.rsqrt %242 : vector<10x1xf32>
    %244 = vector.broadcast %243 : vector<10x1xf32> to vector<10x64xf32>
    %245 = arith.mulf %235, %244 : vector<10x64xf32>
    %246 = vector.broadcast %223 : vector<1x64xf32> to vector<10x64xf32>
    %247 = arith.mulf %245, %246 : vector<10x64xf32>
    %248 = vector.broadcast %225 : vector<1x64xf32> to vector<10x64xf32>
    %249 = arith.addf %247, %248 : vector<10x64xf32>
    %250 = arith.truncf %249 : vector<10x64xf32> to vector<10x64xbf16>
    %c1_103 = arith.constant 1 : index
    %c0_104 = arith.constant 0 : index
    %c0_105 = arith.constant 0 : index
    %251 = vector.load %arg5[%c1_103, %c0_104, %c0_105] : memref<2x64x192xbf16, #tpu.memory_space<vmem>>, vector<1x64x192xbf16>
    %252 = vector.shape_cast %251 : vector<1x64x192xbf16> to vector<64x192xbf16>
    %cst_106 = arith.constant dense<0.000000e+00> : vector<10x192xf32>
    %253 = tpu.matmul %250, %252, %cst_106 {dimension_numbers = #tpu.dot_dimension_numbers<[1], [0], [0], [1], [0, 0, 1, 1], [], []>} : vector<10x64xbf16>, vector<64x192xbf16>, vector<10x192xf32> -> vector<10x192xf32>
    %c1_107 = arith.constant 1 : index
    %c0_108 = arith.constant 0 : index
    %c0_109 = arith.constant 0 : index
    %254 = vector.load %arg6[%c1_107, %c0_108, %c0_109] : memref<2x1x192xf32, #tpu.memory_space<vmem>>, vector<1x1x192xf32>
    %255 = vector.shape_cast %254 : vector<1x1x192xf32> to vector<1x192xf32>
    %256 = vector.broadcast %255 : vector<1x192xf32> to vector<10x192xf32>
    %257 = arith.addf %253, %256 : vector<10x192xf32>
    %258 = vector.extract_strided_slice %257 {offsets = [0, 0], sizes = [10, 16], strides = [1, 1]} : vector<10x192xf32> to vector<10x16xf32>
    %259 = vector.extract_strided_slice %257 {offsets = [0, 64], sizes = [10, 16], strides = [1, 1]} : vector<10x192xf32> to vector<10x16xf32>
    %260 = vector.extract_strided_slice %257 {offsets = [0, 128], sizes = [10, 16], strides = [1, 1]} : vector<10x192xf32> to vector<10x16xf32>
    %cst_110 = arith.constant dense<0.000000e+00> : vector<10x10xf32>
    %261 = tpu.matmul %258, %259, %cst_110 {dimension_numbers = #tpu.dot_dimension_numbers<[1], [1], [0], [0], [0, 0, 1, 0], [], []>} : vector<10x16xf32>, vector<10x16xf32>, vector<10x10xf32> -> vector<10x10xf32>
    %cst_111 = arith.constant 2.500000e-01 : f32
    %262 = vector.broadcast %cst_111 : f32 to vector<10x10xf32>
    %263 = arith.mulf %261, %262 : vector<10x10xf32>
    %264 = arith.addf %263, %58 : vector<10x10xf32>
    %cst_112 = arith.constant dense<0xFF800000> : vector<10xf32>
    %265 = vector.multi_reduction <maximumf>, %264, %cst_112 [1] : vector<10x10xf32> to vector<10xf32>
    %266 = vector.shape_cast %265 : vector<10xf32> to vector<10x1xf32>
    %267 = vector.broadcast %266 : vector<10x1xf32> to vector<10x10xf32>
    %268 = arith.subf %264, %267 : vector<10x10xf32>
    %269 = math.exp %268 : vector<10x10xf32>
    %cst_113 = arith.constant dense<0.000000e+00> : vector<10xf32>
    %270 = vector.multi_reduction <add>, %269, %cst_113 [1] : vector<10x10xf32> to vector<10xf32>
    %271 = vector.shape_cast %270 : vector<10xf32> to vector<10x1xf32>
    %272 = tpu.reciprocal %271 {approx = true} : vector<10x1xf32> -> vector<10x1xf32>
    %273 = vector.broadcast %272 : vector<10x1xf32> to vector<10x10xf32>
    %274 = arith.mulf %269, %273 : vector<10x10xf32>
    %cst_114 = arith.constant dense<0.000000e+00> : vector<10x16xf32>
    %275 = tpu.matmul %274, %260, %cst_114 {dimension_numbers = #tpu.dot_dimension_numbers<[1], [0], [0], [1], [0, 0, 1, 1], [], []>} : vector<10x10xf32>, vector<10x16xf32>, vector<10x16xf32> -> vector<10x16xf32>
    %276 = vector.extract_strided_slice %257 {offsets = [0, 16], sizes = [10, 16], strides = [1, 1]} : vector<10x192xf32> to vector<10x16xf32>
    %277 = vector.extract_strided_slice %257 {offsets = [0, 80], sizes = [10, 16], strides = [1, 1]} : vector<10x192xf32> to vector<10x16xf32>
    %278 = vector.extract_strided_slice %257 {offsets = [0, 144], sizes = [10, 16], strides = [1, 1]} : vector<10x192xf32> to vector<10x16xf32>
    %cst_115 = arith.constant dense<0.000000e+00> : vector<10x10xf32>
    %279 = tpu.matmul %276, %277, %cst_115 {dimension_numbers = #tpu.dot_dimension_numbers<[1], [1], [0], [0], [0, 0, 1, 0], [], []>} : vector<10x16xf32>, vector<10x16xf32>, vector<10x10xf32> -> vector<10x10xf32>
    %cst_116 = arith.constant 2.500000e-01 : f32
    %280 = vector.broadcast %cst_116 : f32 to vector<10x10xf32>
    %281 = arith.mulf %279, %280 : vector<10x10xf32>
    %282 = arith.addf %281, %58 : vector<10x10xf32>
    %cst_117 = arith.constant dense<0xFF800000> : vector<10xf32>
    %283 = vector.multi_reduction <maximumf>, %282, %cst_117 [1] : vector<10x10xf32> to vector<10xf32>
    %284 = vector.shape_cast %283 : vector<10xf32> to vector<10x1xf32>
    %285 = vector.broadcast %284 : vector<10x1xf32> to vector<10x10xf32>
    %286 = arith.subf %282, %285 : vector<10x10xf32>
    %287 = math.exp %286 : vector<10x10xf32>
    %cst_118 = arith.constant dense<0.000000e+00> : vector<10xf32>
    %288 = vector.multi_reduction <add>, %287, %cst_118 [1] : vector<10x10xf32> to vector<10xf32>
    %289 = vector.shape_cast %288 : vector<10xf32> to vector<10x1xf32>
    %290 = tpu.reciprocal %289 {approx = true} : vector<10x1xf32> -> vector<10x1xf32>
    %291 = vector.broadcast %290 : vector<10x1xf32> to vector<10x10xf32>
    %292 = arith.mulf %287, %291 : vector<10x10xf32>
    %cst_119 = arith.constant dense<0.000000e+00> : vector<10x16xf32>
    %293 = tpu.matmul %292, %278, %cst_119 {dimension_numbers = #tpu.dot_dimension_numbers<[1], [0], [0], [1], [0, 0, 1, 1], [], []>} : vector<10x10xf32>, vector<10x16xf32>, vector<10x16xf32> -> vector<10x16xf32>
    %294 = vector.extract_strided_slice %257 {offsets = [0, 32], sizes = [10, 16], strides = [1, 1]} : vector<10x192xf32> to vector<10x16xf32>
    %295 = vector.extract_strided_slice %257 {offsets = [0, 96], sizes = [10, 16], strides = [1, 1]} : vector<10x192xf32> to vector<10x16xf32>
    %296 = vector.extract_strided_slice %257 {offsets = [0, 160], sizes = [10, 16], strides = [1, 1]} : vector<10x192xf32> to vector<10x16xf32>
    %cst_120 = arith.constant dense<0.000000e+00> : vector<10x10xf32>
    %297 = tpu.matmul %294, %295, %cst_120 {dimension_numbers = #tpu.dot_dimension_numbers<[1], [1], [0], [0], [0, 0, 1, 0], [], []>} : vector<10x16xf32>, vector<10x16xf32>, vector<10x10xf32> -> vector<10x10xf32>
    %cst_121 = arith.constant 2.500000e-01 : f32
    %298 = vector.broadcast %cst_121 : f32 to vector<10x10xf32>
    %299 = arith.mulf %297, %298 : vector<10x10xf32>
    %300 = arith.addf %299, %58 : vector<10x10xf32>
    %cst_122 = arith.constant dense<0xFF800000> : vector<10xf32>
    %301 = vector.multi_reduction <maximumf>, %300, %cst_122 [1] : vector<10x10xf32> to vector<10xf32>
    %302 = vector.shape_cast %301 : vector<10xf32> to vector<10x1xf32>
    %303 = vector.broadcast %302 : vector<10x1xf32> to vector<10x10xf32>
    %304 = arith.subf %300, %303 : vector<10x10xf32>
    %305 = math.exp %304 : vector<10x10xf32>
    %cst_123 = arith.constant dense<0.000000e+00> : vector<10xf32>
    %306 = vector.multi_reduction <add>, %305, %cst_123 [1] : vector<10x10xf32> to vector<10xf32>
    %307 = vector.shape_cast %306 : vector<10xf32> to vector<10x1xf32>
    %308 = tpu.reciprocal %307 {approx = true} : vector<10x1xf32> -> vector<10x1xf32>
    %309 = vector.broadcast %308 : vector<10x1xf32> to vector<10x10xf32>
    %310 = arith.mulf %305, %309 : vector<10x10xf32>
    %cst_124 = arith.constant dense<0.000000e+00> : vector<10x16xf32>
    %311 = tpu.matmul %310, %296, %cst_124 {dimension_numbers = #tpu.dot_dimension_numbers<[1], [0], [0], [1], [0, 0, 1, 1], [], []>} : vector<10x10xf32>, vector<10x16xf32>, vector<10x16xf32> -> vector<10x16xf32>
    %312 = vector.extract_strided_slice %257 {offsets = [0, 48], sizes = [10, 16], strides = [1, 1]} : vector<10x192xf32> to vector<10x16xf32>
    %313 = vector.extract_strided_slice %257 {offsets = [0, 112], sizes = [10, 16], strides = [1, 1]} : vector<10x192xf32> to vector<10x16xf32>
    %314 = vector.extract_strided_slice %257 {offsets = [0, 176], sizes = [10, 16], strides = [1, 1]} : vector<10x192xf32> to vector<10x16xf32>
    %cst_125 = arith.constant dense<0.000000e+00> : vector<10x10xf32>
    %315 = tpu.matmul %312, %313, %cst_125 {dimension_numbers = #tpu.dot_dimension_numbers<[1], [1], [0], [0], [0, 0, 1, 0], [], []>} : vector<10x16xf32>, vector<10x16xf32>, vector<10x10xf32> -> vector<10x10xf32>
    %cst_126 = arith.constant 2.500000e-01 : f32
    %316 = vector.broadcast %cst_126 : f32 to vector<10x10xf32>
    %317 = arith.mulf %315, %316 : vector<10x10xf32>
    %318 = arith.addf %317, %58 : vector<10x10xf32>
    %cst_127 = arith.constant dense<0xFF800000> : vector<10xf32>
    %319 = vector.multi_reduction <maximumf>, %318, %cst_127 [1] : vector<10x10xf32> to vector<10xf32>
    %320 = vector.shape_cast %319 : vector<10xf32> to vector<10x1xf32>
    %321 = vector.broadcast %320 : vector<10x1xf32> to vector<10x10xf32>
    %322 = arith.subf %318, %321 : vector<10x10xf32>
    %323 = math.exp %322 : vector<10x10xf32>
    %cst_128 = arith.constant dense<0.000000e+00> : vector<10xf32>
    %324 = vector.multi_reduction <add>, %323, %cst_128 [1] : vector<10x10xf32> to vector<10xf32>
    %325 = vector.shape_cast %324 : vector<10xf32> to vector<10x1xf32>
    %326 = tpu.reciprocal %325 {approx = true} : vector<10x1xf32> -> vector<10x1xf32>
    %327 = vector.broadcast %326 : vector<10x1xf32> to vector<10x10xf32>
    %328 = arith.mulf %323, %327 : vector<10x10xf32>
    %cst_129 = arith.constant dense<0.000000e+00> : vector<10x16xf32>
    %329 = tpu.matmul %328, %314, %cst_129 {dimension_numbers = #tpu.dot_dimension_numbers<[1], [0], [0], [1], [0, 0, 1, 1], [], []>} : vector<10x10xf32>, vector<10x16xf32>, vector<10x16xf32> -> vector<10x16xf32>
    %330 = tpu.concatenate %275, %293, %311, %329 in 1 : vector<10x16xf32>, vector<10x16xf32>, vector<10x16xf32>, vector<10x16xf32> -> vector<10x64xf32>
    %331 = arith.truncf %330 : vector<10x64xf32> to vector<10x64xbf16>
    %c1_130 = arith.constant 1 : index
    %c0_131 = arith.constant 0 : index
    %c0_132 = arith.constant 0 : index
    %332 = vector.load %arg7[%c1_130, %c0_131, %c0_132] : memref<2x64x64xbf16, #tpu.memory_space<vmem>>, vector<1x64x64xbf16>
    %333 = vector.shape_cast %332 : vector<1x64x64xbf16> to vector<64x64xbf16>
    %cst_133 = arith.constant dense<0.000000e+00> : vector<10x64xf32>
    %334 = tpu.matmul %331, %333, %cst_133 {dimension_numbers = #tpu.dot_dimension_numbers<[1], [0], [0], [1], [0, 0, 1, 1], [], []>} : vector<10x64xbf16>, vector<64x64xbf16>, vector<10x64xf32> -> vector<10x64xf32>
    %335 = arith.addf %221, %334 : vector<10x64xf32>
    %c1_134 = arith.constant 1 : index
    %c0_135 = arith.constant 0 : index
    %c0_136 = arith.constant 0 : index
    %336 = vector.load %arg8[%c1_134, %c0_135, %c0_136] : memref<2x1x64xf32, #tpu.memory_space<vmem>>, vector<1x1x64xf32>
    %337 = vector.shape_cast %336 : vector<1x1x64xf32> to vector<1x64xf32>
    %338 = vector.broadcast %337 : vector<1x64xf32> to vector<10x64xf32>
    %339 = arith.addf %335, %338 : vector<10x64xf32>
    %cst_137 = arith.constant dense<0.000000e+00> : vector<10xf32>
    %340 = vector.multi_reduction <add>, %339, %cst_137 [1] : vector<10x64xf32> to vector<10xf32>
    %341 = vector.shape_cast %340 : vector<10xf32> to vector<10x1xf32>
    %cst_138 = arith.constant 6.400000e+01 : f32
    %342 = vector.broadcast %cst_138 : f32 to vector<10x1xf32>
    %343 = arith.divf %341, %342 : vector<10x1xf32>
    %344 = vector.broadcast %343 : vector<10x1xf32> to vector<10x64xf32>
    %345 = arith.subf %339, %344 : vector<10x64xf32>
    %346 = arith.mulf %345, %345 : vector<10x64xf32>
    %cst_139 = arith.constant dense<0.000000e+00> : vector<10xf32>
    %347 = vector.multi_reduction <add>, %346, %cst_139 [1] : vector<10x64xf32> to vector<10xf32>
    %348 = vector.shape_cast %347 : vector<10xf32> to vector<10x1xf32>
    %cst_140 = arith.constant 6.400000e+01 : f32
    %349 = vector.broadcast %cst_140 : f32 to vector<10x1xf32>
    %350 = arith.divf %348, %349 : vector<10x1xf32>
    %cst_141 = arith.constant 9.99999974E-6 : f32
    %351 = vector.broadcast %cst_141 : f32 to vector<10x1xf32>
    %352 = arith.addf %350, %351 : vector<10x1xf32>
    %353 = math.rsqrt %352 : vector<10x1xf32>
    %354 = vector.broadcast %353 : vector<10x1xf32> to vector<10x64xf32>
    %355 = arith.mulf %345, %354 : vector<10x64xf32>
    %356 = vector.broadcast %227 : vector<1x64xf32> to vector<10x64xf32>
    %357 = arith.mulf %355, %356 : vector<10x64xf32>
    %358 = vector.broadcast %229 : vector<1x64xf32> to vector<10x64xf32>
    %359 = arith.addf %357, %358 : vector<10x64xf32>
    %360 = arith.truncf %359 : vector<10x64xf32> to vector<10x64xbf16>
    %c1_142 = arith.constant 1 : index
    %c0_143 = arith.constant 0 : index
    %c0_144 = arith.constant 0 : index
    %361 = vector.load %arg9[%c1_142, %c0_143, %c0_144] : memref<2x64x256xbf16, #tpu.memory_space<vmem>>, vector<1x64x256xbf16>
    %362 = vector.shape_cast %361 : vector<1x64x256xbf16> to vector<64x256xbf16>
    %cst_145 = arith.constant dense<0.000000e+00> : vector<10x256xf32>
    %363 = tpu.matmul %360, %362, %cst_145 {dimension_numbers = #tpu.dot_dimension_numbers<[1], [0], [0], [1], [0, 0, 1, 1], [], []>} : vector<10x64xbf16>, vector<64x256xbf16>, vector<10x256xf32> -> vector<10x256xf32>
    %c1_146 = arith.constant 1 : index
    %c0_147 = arith.constant 0 : index
    %c0_148 = arith.constant 0 : index
    %364 = vector.load %arg10[%c1_146, %c0_147, %c0_148] : memref<2x1x256xf32, #tpu.memory_space<vmem>>, vector<1x1x256xf32>
    %365 = vector.shape_cast %364 : vector<1x1x256xf32> to vector<1x256xf32>
    %366 = vector.broadcast %365 : vector<1x256xf32> to vector<10x256xf32>
    %367 = arith.addf %363, %366 : vector<10x256xf32>
    %cst_149 = arith.constant 1.702000e+00 : f32
    %368 = vector.broadcast %cst_149 : f32 to vector<10x256xf32>
    %369 = arith.mulf %368, %367 : vector<10x256xf32>
    %370 = arith.negf %369 : vector<10x256xf32>
    %371 = math.exp %370 : vector<10x256xf32>
    %cst_150 = arith.constant 1.000000e+00 : f32
    %372 = vector.broadcast %cst_150 : f32 to vector<10x256xf32>
    %373 = arith.addf %372, %371 : vector<10x256xf32>
    %374 = arith.divf %372, %373 : vector<10x256xf32>
    %375 = arith.mulf %367, %374 : vector<10x256xf32>
    %376 = arith.truncf %375 : vector<10x256xf32> to vector<10x256xbf16>
    %c1_151 = arith.constant 1 : index
    %c0_152 = arith.constant 0 : index
    %c0_153 = arith.constant 0 : index
    %377 = vector.load %arg11[%c1_151, %c0_152, %c0_153] : memref<2x256x64xbf16, #tpu.memory_space<vmem>>, vector<1x256x64xbf16>
    %378 = vector.shape_cast %377 : vector<1x256x64xbf16> to vector<256x64xbf16>
    %cst_154 = arith.constant dense<0.000000e+00> : vector<10x64xf32>
    %379 = tpu.matmul %376, %378, %cst_154 {dimension_numbers = #tpu.dot_dimension_numbers<[1], [0], [0], [1], [0, 0, 1, 1], [], []>} : vector<10x256xbf16>, vector<256x64xbf16>, vector<10x64xf32> -> vector<10x64xf32>
    %380 = arith.addf %339, %379 : vector<10x64xf32>
    %c1_155 = arith.constant 1 : index
    %c0_156 = arith.constant 0 : index
    %c0_157 = arith.constant 0 : index
    %381 = vector.load %arg12[%c1_155, %c0_156, %c0_157] : memref<2x1x64xf32, #tpu.memory_space<vmem>>, vector<1x1x64xf32>
    %382 = vector.shape_cast %381 : vector<1x1x64xf32> to vector<1x64xf32>
    %383 = vector.broadcast %382 : vector<1x64xf32> to vector<10x64xf32>
    %384 = arith.addf %380, %383 : vector<10x64xf32>
    %385 = tpu.iota {dimensions = array<i32: 0>} : vector<2x10xi32>
    %386 = tpu.iota {dimensions = array<i32: 1>} : vector<2x10xi32>
    %c5_i32_158 = arith.constant 5 : i32
    %387 = vector.broadcast %c5_i32_158 : i32 to vector<2x10xi32>
    %388 = arith.muli %385, %387 : vector<2x10xi32>
    %389 = arith.cmpi eq, %386, %388 : vector<2x10xi32>
    %cst_159 = arith.constant 1.000000e+00 : f32
    %cst_160 = arith.constant 0.000000e+00 : f32
    %390 = vector.broadcast %cst_159 : f32 to vector<2x10xf32>
    %391 = vector.broadcast %cst_160 : f32 to vector<2x10xf32>
    %392 = arith.select %389, %390, %391 : vector<2x10xi1>, vector<2x10xf32>
    %cst_161 = arith.constant dense<0.000000e+00> : vector<2x64xf32>
    %393 = tpu.matmul %392, %384, %cst_161 {dimension_numbers = #tpu.dot_dimension_numbers<[1], [0], [0], [1], [0, 0, 1, 1], [], []>} : vector<2x10xf32>, vector<10x64xf32>, vector<2x64xf32> -> vector<2x64xf32>
    %c10 = arith.constant 10 : index
    %c0_162 = arith.constant 0 : index
    %c0_163 = arith.constant 0 : index
    %394 = vector.load %arg4[%c10, %c0_162, %c0_163] : memref<12x1x64xf32, #tpu.memory_space<vmem>>, vector<1x1x64xf32>
    %395 = vector.shape_cast %394 : vector<1x1x64xf32> to vector<1x64xf32>
    %c11 = arith.constant 11 : index
    %c0_164 = arith.constant 0 : index
    %c0_165 = arith.constant 0 : index
    %396 = vector.load %arg4[%c11, %c0_164, %c0_165] : memref<12x1x64xf32, #tpu.memory_space<vmem>>, vector<1x1x64xf32>
    %397 = vector.shape_cast %396 : vector<1x1x64xf32> to vector<1x64xf32>
    %cst_166 = arith.constant dense<0.000000e+00> : vector<2xf32>
    %398 = vector.multi_reduction <add>, %393, %cst_166 [1] : vector<2x64xf32> to vector<2xf32>
    %399 = vector.shape_cast %398 : vector<2xf32> to vector<2x1xf32>
    %cst_167 = arith.constant 6.400000e+01 : f32
    %400 = vector.broadcast %cst_167 : f32 to vector<2x1xf32>
    %401 = arith.divf %399, %400 : vector<2x1xf32>
    %402 = vector.broadcast %401 : vector<2x1xf32> to vector<2x64xf32>
    %403 = arith.subf %393, %402 : vector<2x64xf32>
    %404 = arith.mulf %403, %403 : vector<2x64xf32>
    %cst_168 = arith.constant dense<0.000000e+00> : vector<2xf32>
    %405 = vector.multi_reduction <add>, %404, %cst_168 [1] : vector<2x64xf32> to vector<2xf32>
    %406 = vector.shape_cast %405 : vector<2xf32> to vector<2x1xf32>
    %cst_169 = arith.constant 6.400000e+01 : f32
    %407 = vector.broadcast %cst_169 : f32 to vector<2x1xf32>
    %408 = arith.divf %406, %407 : vector<2x1xf32>
    %cst_170 = arith.constant 9.99999974E-6 : f32
    %409 = vector.broadcast %cst_170 : f32 to vector<2x1xf32>
    %410 = arith.addf %408, %409 : vector<2x1xf32>
    %411 = math.rsqrt %410 : vector<2x1xf32>
    %412 = vector.broadcast %411 : vector<2x1xf32> to vector<2x64xf32>
    %413 = arith.mulf %403, %412 : vector<2x64xf32>
    %414 = vector.broadcast %395 : vector<1x64xf32> to vector<2x64xf32>
    %415 = arith.mulf %413, %414 : vector<2x64xf32>
    %416 = vector.broadcast %397 : vector<1x64xf32> to vector<2x64xf32>
    %417 = arith.addf %415, %416 : vector<2x64xf32>
    %418 = arith.truncf %417 : vector<2x64xf32> to vector<2x64xbf16>
    %c0_171 = arith.constant 0 : index
    %c0_172 = arith.constant 0 : index
    %419 = vector.load %arg13[%c0_171, %c0_172] : memref<64x32xbf16, #tpu.memory_space<vmem>>, vector<64x32xbf16>
    %cst_173 = arith.constant dense<0.000000e+00> : vector<2x32xf32>
    %420 = tpu.matmul %418, %419, %cst_173 {dimension_numbers = #tpu.dot_dimension_numbers<[1], [0], [0], [1], [0, 0, 1, 1], [], []>} : vector<2x64xbf16>, vector<64x32xbf16>, vector<2x32xf32> -> vector<2x32xf32>
    %421 = arith.mulf %420, %420 : vector<2x32xf32>
    %cst_174 = arith.constant dense<0.000000e+00> : vector<2xf32>
    %422 = vector.multi_reduction <add>, %421, %cst_174 [1] : vector<2x32xf32> to vector<2xf32>
    %423 = vector.shape_cast %422 : vector<2xf32> to vector<2x1xf32>
    %cst_175 = arith.constant 9.99999996E-13 : f32
    %424 = vector.broadcast %cst_175 : f32 to vector<2x1xf32>
    %425 = arith.addf %423, %424 : vector<2x1xf32>
    %426 = math.rsqrt %425 : vector<2x1xf32>
    %427 = vector.broadcast %426 : vector<2x1xf32> to vector<2x32xf32>
    %428 = arith.mulf %420, %427 : vector<2x32xf32>
    %c0_176 = arith.constant 0 : index
    %c0_177 = arith.constant 0 : index
    %429 = vector.load %arg14[%c0_176, %c0_177] : memref<2x32xf32, #tpu.memory_space<vmem>>, vector<2x32xf32>
    tpu.vector_store %arg14[%c0_176, %c0_177], %428 {strides = array<i32>} : memref<2x32xf32, #tpu.memory_space<vmem>>, vector<2x32xf32>,
    return
  }
  func.func @transform_0(%arg0: i32) -> (i32, i32) {
    %c0_i32 = arith.constant 0 : i32
    %c0_i32_0 = arith.constant 0 : i32
    %c0_i32_1 = arith.constant 0 : i32
    return %c0_i32, %c0_i32_0 : i32, i32
  }
  func.func @transform_1(%arg0: i32) -> (i32, i32) {
    %c0_i32 = arith.constant 0 : i32
    %c0_i32_0 = arith.constant 0 : i32
    %c0_i32_1 = arith.constant 0 : i32
    return %c0_i32, %c0_i32_0 : i32, i32
  }
  func.func @transform_2(%arg0: i32) -> (i32, i32) {
    %c0_i32 = arith.constant 0 : i32
    %c0_i32_0 = arith.constant 0 : i32
    %c0_i32_1 = arith.constant 0 : i32
    return %c0_i32, %c0_i32_0 : i32, i32
  }
  func.func @transform_3(%arg0: i32) -> (i32, i32, i32) {
    %c0_i32 = arith.constant 0 : i32
    %c0_i32_0 = arith.constant 0 : i32
    %c0_i32_1 = arith.constant 0 : i32
    %c0_i32_2 = arith.constant 0 : i32
    return %c0_i32, %c0_i32_0, %c0_i32_1 : i32, i32, i32
  }
  func.func @transform_4(%arg0: i32) -> (i32, i32, i32) {
    %c0_i32 = arith.constant 0 : i32
    %c0_i32_0 = arith.constant 0 : i32
    %c0_i32_1 = arith.constant 0 : i32
    %c0_i32_2 = arith.constant 0 : i32
    return %c0_i32, %c0_i32_0, %c0_i32_1 : i32, i32, i32
  }
  func.func @transform_5(%arg0: i32) -> (i32, i32, i32) {
    %c0_i32 = arith.constant 0 : i32
    %c0_i32_0 = arith.constant 0 : i32
    %c0_i32_1 = arith.constant 0 : i32
    %c0_i32_2 = arith.constant 0 : i32
    return %c0_i32, %c0_i32_0, %c0_i32_1 : i32, i32, i32
  }
  func.func @transform_6(%arg0: i32) -> (i32, i32, i32) {
    %c0_i32 = arith.constant 0 : i32
    %c0_i32_0 = arith.constant 0 : i32
    %c0_i32_1 = arith.constant 0 : i32
    %c0_i32_2 = arith.constant 0 : i32
    return %c0_i32, %c0_i32_0, %c0_i32_1 : i32, i32, i32
  }
  func.func @transform_7(%arg0: i32) -> (i32, i32, i32) {
    %c0_i32 = arith.constant 0 : i32
    %c0_i32_0 = arith.constant 0 : i32
    %c0_i32_1 = arith.constant 0 : i32
    %c0_i32_2 = arith.constant 0 : i32
    return %c0_i32, %c0_i32_0, %c0_i32_1 : i32, i32, i32
  }
  func.func @transform_8(%arg0: i32) -> (i32, i32, i32) {
    %c0_i32 = arith.constant 0 : i32
    %c0_i32_0 = arith.constant 0 : i32
    %c0_i32_1 = arith.constant 0 : i32
    %c0_i32_2 = arith.constant 0 : i32
    return %c0_i32, %c0_i32_0, %c0_i32_1 : i32, i32, i32
  }
  func.func @transform_9(%arg0: i32) -> (i32, i32, i32) {
    %c0_i32 = arith.constant 0 : i32
    %c0_i32_0 = arith.constant 0 : i32
    %c0_i32_1 = arith.constant 0 : i32
    %c0_i32_2 = arith.constant 0 : i32
    return %c0_i32, %c0_i32_0, %c0_i32_1 : i32, i32, i32
  }
  func.func @transform_10(%arg0: i32) -> (i32, i32, i32) {
    %c0_i32 = arith.constant 0 : i32
    %c0_i32_0 = arith.constant 0 : i32
    %c0_i32_1 = arith.constant 0 : i32
    %c0_i32_2 = arith.constant 0 : i32
    return %c0_i32, %c0_i32_0, %c0_i32_1 : i32, i32, i32
  }
  func.func @transform_11(%arg0: i32) -> (i32, i32, i32) {
    %c0_i32 = arith.constant 0 : i32
    %c0_i32_0 = arith.constant 0 : i32
    %c0_i32_1 = arith.constant 0 : i32
    %c0_i32_2 = arith.constant 0 : i32
    return %c0_i32, %c0_i32_0, %c0_i32_1 : i32, i32, i32
  }
  func.func @transform_12(%arg0: i32) -> (i32, i32) {
    %c0_i32 = arith.constant 0 : i32
    %c0_i32_0 = arith.constant 0 : i32
    %c0_i32_1 = arith.constant 0 : i32
    return %c0_i32, %c0_i32_0 : i32, i32
  }
  func.func @transform_13(%arg0: i32) -> (i32, i32) {
    %c0_i32 = arith.constant 0 : i32
    %c0_i32_0 = arith.constant 0 : i32
    %c0_i32_1 = arith.constant 0 : i32
    return %c0_i32, %c0_i32_0 : i32, i32
  }
}

module attributes {stable_mosaic.version = 11 : i64} {
  func.func @_text_kernel(%arg0: i32, %arg1: memref<24x32xf32, #tpu.memory_space<vmem>>, %arg2: memref<24x32xf32, #tpu.memory_space<vmem>>, %arg3: memref<3x24xf32, #tpu.memory_space<vmem>>, %arg4: memref<10x1x32xf32, #tpu.memory_space<vmem>>, %arg5: memref<2x32x96xbf16, #tpu.memory_space<vmem>>, %arg6: memref<2x1x96xf32, #tpu.memory_space<vmem>>, %arg7: memref<2x32x32xbf16, #tpu.memory_space<vmem>>, %arg8: memref<2x1x32xf32, #tpu.memory_space<vmem>>, %arg9: memref<2x32x128xbf16, #tpu.memory_space<vmem>>, %arg10: memref<2x1x128xf32, #tpu.memory_space<vmem>>, %arg11: memref<2x128x32xbf16, #tpu.memory_space<vmem>>, %arg12: memref<2x1x32xf32, #tpu.memory_space<vmem>>, %arg13: memref<32x32xbf16, #tpu.memory_space<vmem>>, %arg14: memref<3x32xf32, #tpu.memory_space<vmem>>) attributes {dimension_semantics = [#tpu.dimension_semantics<arbitrary>], iteration_bounds = array<i64: 1>, scalar_prefetch = 0 : i64, scratch_operands = 0 : i64, tpu.core_type = #tpu.core_type<tc>, window_params = [{pipeline_mode = #tpu.pipeline_mode<synchronous>, transform_indices = @transform_0, window_bounds = array<i64: 24, 32>}, {pipeline_mode = #tpu.pipeline_mode<synchronous>, transform_indices = @transform_1, window_bounds = array<i64: 24, 32>}, {pipeline_mode = #tpu.pipeline_mode<synchronous>, transform_indices = @transform_2, window_bounds = array<i64: 3, 24>}, {pipeline_mode = #tpu.pipeline_mode<synchronous>, transform_indices = @transform_3, window_bounds = array<i64: 10, 1, 32>}, {pipeline_mode = #tpu.pipeline_mode<synchronous>, transform_indices = @transform_4, window_bounds = array<i64: 2, 32, 96>}, {pipeline_mode = #tpu.pipeline_mode<synchronous>, transform_indices = @transform_5, window_bounds = array<i64: 2, 1, 96>}, {pipeline_mode = #tpu.pipeline_mode<synchronous>, transform_indices = @transform_6, window_bounds = array<i64: 2, 32, 32>}, {pipeline_mode = #tpu.pipeline_mode<synchronous>, transform_indices = @transform_7, window_bounds = array<i64: 2, 1, 32>}, {pipeline_mode = #tpu.pipeline_mode<synchronous>, transform_indices = @transform_8, window_bounds = array<i64: 2, 32, 128>}, {pipeline_mode = #tpu.pipeline_mode<synchronous>, transform_indices = @transform_9, window_bounds = array<i64: 2, 1, 128>}, {pipeline_mode = #tpu.pipeline_mode<synchronous>, transform_indices = @transform_10, window_bounds = array<i64: 2, 128, 32>}, {pipeline_mode = #tpu.pipeline_mode<synchronous>, transform_indices = @transform_11, window_bounds = array<i64: 2, 1, 32>}, {pipeline_mode = #tpu.pipeline_mode<synchronous>, transform_indices = @transform_12, window_bounds = array<i64: 32, 32>}, {pipeline_mode = #tpu.pipeline_mode<synchronous>, transform_indices = @transform_13, window_bounds = array<i64: 3, 32>}]} {
    %c0 = arith.constant 0 : index
    %c0_0 = arith.constant 0 : index
    %0 = vector.load %arg1[%c0, %c0_0] : memref<24x32xf32, #tpu.memory_space<vmem>>, vector<24x32xf32>
    %c0_1 = arith.constant 0 : index
    %c0_2 = arith.constant 0 : index
    %1 = vector.load %arg2[%c0_1, %c0_2] : memref<24x32xf32, #tpu.memory_space<vmem>>, vector<24x32xf32>
    %2 = arith.addf %0, %1 : vector<24x32xf32>
    %3 = tpu.iota {dimensions = array<i32: 0>} : vector<24x24xi32>
    %4 = tpu.iota {dimensions = array<i32: 1>} : vector<24x24xi32>
    %false = arith.constant false
    %5 = vector.broadcast %false : i1 to vector<24x24xi1>
    %c0_i32 = arith.constant 0 : i32
    %6 = vector.broadcast %c0_i32 : i32 to vector<24x24xi32>
    %7 = arith.cmpi sge, %3, %6 : vector<24x24xi32>
    %c8_i32 = arith.constant 8 : i32
    %8 = vector.broadcast %c8_i32 : i32 to vector<24x24xi32>
    %9 = arith.cmpi slt, %3, %8 : vector<24x24xi32>
    %10 = arith.andi %7, %9 : vector<24x24xi1>
    %c0_i32_3 = arith.constant 0 : i32
    %11 = vector.broadcast %c0_i32_3 : i32 to vector<24x24xi32>
    %12 = arith.cmpi sge, %4, %11 : vector<24x24xi32>
    %c8_i32_4 = arith.constant 8 : i32
    %13 = vector.broadcast %c8_i32_4 : i32 to vector<24x24xi32>
    %14 = arith.cmpi slt, %4, %13 : vector<24x24xi32>
    %15 = arith.andi %12, %14 : vector<24x24xi1>
    %16 = arith.andi %10, %15 : vector<24x24xi1>
    %17 = arith.ori %5, %16 : vector<24x24xi1>
    %c8_i32_5 = arith.constant 8 : i32
    %18 = vector.broadcast %c8_i32_5 : i32 to vector<24x24xi32>
    %19 = arith.cmpi sge, %3, %18 : vector<24x24xi32>
    %c16_i32 = arith.constant 16 : i32
    %20 = vector.broadcast %c16_i32 : i32 to vector<24x24xi32>
    %21 = arith.cmpi slt, %3, %20 : vector<24x24xi32>
    %22 = arith.andi %19, %21 : vector<24x24xi1>
    %c8_i32_6 = arith.constant 8 : i32
    %23 = vector.broadcast %c8_i32_6 : i32 to vector<24x24xi32>
    %24 = arith.cmpi sge, %4, %23 : vector<24x24xi32>
    %c16_i32_7 = arith.constant 16 : i32
    %25 = vector.broadcast %c16_i32_7 : i32 to vector<24x24xi32>
    %26 = arith.cmpi slt, %4, %25 : vector<24x24xi32>
    %27 = arith.andi %24, %26 : vector<24x24xi1>
    %28 = arith.andi %22, %27 : vector<24x24xi1>
    %29 = arith.ori %17, %28 : vector<24x24xi1>
    %c16_i32_8 = arith.constant 16 : i32
    %30 = vector.broadcast %c16_i32_8 : i32 to vector<24x24xi32>
    %31 = arith.cmpi sge, %3, %30 : vector<24x24xi32>
    %c24_i32 = arith.constant 24 : i32
    %32 = vector.broadcast %c24_i32 : i32 to vector<24x24xi32>
    %33 = arith.cmpi slt, %3, %32 : vector<24x24xi32>
    %34 = arith.andi %31, %33 : vector<24x24xi1>
    %c16_i32_9 = arith.constant 16 : i32
    %35 = vector.broadcast %c16_i32_9 : i32 to vector<24x24xi32>
    %36 = arith.cmpi sge, %4, %35 : vector<24x24xi32>
    %c24_i32_10 = arith.constant 24 : i32
    %37 = vector.broadcast %c24_i32_10 : i32 to vector<24x24xi32>
    %38 = arith.cmpi slt, %4, %37 : vector<24x24xi32>
    %39 = arith.andi %36, %38 : vector<24x24xi1>
    %40 = arith.andi %34, %39 : vector<24x24xi1>
    %41 = arith.ori %29, %40 : vector<24x24xi1>
    %42 = arith.cmpi sle, %4, %3 : vector<24x24xi32>
    %43 = arith.andi %41, %42 : vector<24x24xi1>
    %cst = arith.constant 0.000000e+00 : f32
    %cst_11 = arith.constant -1.000000e+09 : f32
    %44 = vector.broadcast %cst : f32 to vector<24x24xf32>
    %45 = vector.broadcast %cst_11 : f32 to vector<24x24xf32>
    %46 = arith.select %43, %44, %45 : vector<24x24xi1>, vector<24x24xf32>
    %c0_12 = arith.constant 0 : index
    %c0_13 = arith.constant 0 : index
    %c0_14 = arith.constant 0 : index
    %47 = vector.load %arg4[%c0_12, %c0_13, %c0_14] : memref<10x1x32xf32, #tpu.memory_space<vmem>>, vector<1x1x32xf32>
    %48 = vector.shape_cast %47 : vector<1x1x32xf32> to vector<1x32xf32>
    %c1 = arith.constant 1 : index
    %c0_15 = arith.constant 0 : index
    %c0_16 = arith.constant 0 : index
    %49 = vector.load %arg4[%c1, %c0_15, %c0_16] : memref<10x1x32xf32, #tpu.memory_space<vmem>>, vector<1x1x32xf32>
    %50 = vector.shape_cast %49 : vector<1x1x32xf32> to vector<1x32xf32>
    %c2 = arith.constant 2 : index
    %c0_17 = arith.constant 0 : index
    %c0_18 = arith.constant 0 : index
    %51 = vector.load %arg4[%c2, %c0_17, %c0_18] : memref<10x1x32xf32, #tpu.memory_space<vmem>>, vector<1x1x32xf32>
    %52 = vector.shape_cast %51 : vector<1x1x32xf32> to vector<1x32xf32>
    %c3 = arith.constant 3 : index
    %c0_19 = arith.constant 0 : index
    %c0_20 = arith.constant 0 : index
    %53 = vector.load %arg4[%c3, %c0_19, %c0_20] : memref<10x1x32xf32, #tpu.memory_space<vmem>>, vector<1x1x32xf32>
    %54 = vector.shape_cast %53 : vector<1x1x32xf32> to vector<1x32xf32>
    %cst_21 = arith.constant dense<0.000000e+00> : vector<24xf32>
    %55 = vector.multi_reduction <add>, %2, %cst_21 [1] : vector<24x32xf32> to vector<24xf32>
    %56 = vector.shape_cast %55 : vector<24xf32> to vector<24x1xf32>
    %cst_22 = arith.constant 3.200000e+01 : f32
    %57 = vector.broadcast %cst_22 : f32 to vector<24x1xf32>
    %58 = arith.divf %56, %57 : vector<24x1xf32>
    %59 = vector.broadcast %58 : vector<24x1xf32> to vector<24x32xf32>
    %60 = arith.subf %2, %59 : vector<24x32xf32>
    %61 = arith.mulf %60, %60 : vector<24x32xf32>
    %cst_23 = arith.constant dense<0.000000e+00> : vector<24xf32>
    %62 = vector.multi_reduction <add>, %61, %cst_23 [1] : vector<24x32xf32> to vector<24xf32>
    %63 = vector.shape_cast %62 : vector<24xf32> to vector<24x1xf32>
    %cst_24 = arith.constant 3.200000e+01 : f32
    %64 = vector.broadcast %cst_24 : f32 to vector<24x1xf32>
    %65 = arith.divf %63, %64 : vector<24x1xf32>
    %cst_25 = arith.constant 9.99999974E-6 : f32
    %66 = vector.broadcast %cst_25 : f32 to vector<24x1xf32>
    %67 = arith.addf %65, %66 : vector<24x1xf32>
    %68 = math.rsqrt %67 : vector<24x1xf32>
    %69 = vector.broadcast %68 : vector<24x1xf32> to vector<24x32xf32>
    %70 = arith.mulf %60, %69 : vector<24x32xf32>
    %71 = vector.broadcast %48 : vector<1x32xf32> to vector<24x32xf32>
    %72 = arith.mulf %70, %71 : vector<24x32xf32>
    %73 = vector.broadcast %50 : vector<1x32xf32> to vector<24x32xf32>
    %74 = arith.addf %72, %73 : vector<24x32xf32>
    %75 = arith.truncf %74 : vector<24x32xf32> to vector<24x32xbf16>
    %c0_26 = arith.constant 0 : index
    %c0_27 = arith.constant 0 : index
    %c0_28 = arith.constant 0 : index
    %76 = vector.load %arg5[%c0_26, %c0_27, %c0_28] : memref<2x32x96xbf16, #tpu.memory_space<vmem>>, vector<1x32x96xbf16>
    %77 = vector.shape_cast %76 : vector<1x32x96xbf16> to vector<32x96xbf16>
    %cst_29 = arith.constant dense<0.000000e+00> : vector<24x96xf32>
    %78 = tpu.matmul %75, %77, %cst_29 {dimension_numbers = #tpu.dot_dimension_numbers<[1], [0], [0], [1], [0, 0, 1, 1], [], []>} : vector<24x32xbf16>, vector<32x96xbf16>, vector<24x96xf32> -> vector<24x96xf32>
    %c0_30 = arith.constant 0 : index
    %c0_31 = arith.constant 0 : index
    %c0_32 = arith.constant 0 : index
    %79 = vector.load %arg6[%c0_30, %c0_31, %c0_32] : memref<2x1x96xf32, #tpu.memory_space<vmem>>, vector<1x1x96xf32>
    %80 = vector.shape_cast %79 : vector<1x1x96xf32> to vector<1x96xf32>
    %81 = vector.broadcast %80 : vector<1x96xf32> to vector<24x96xf32>
    %82 = arith.addf %78, %81 : vector<24x96xf32>
    %83 = vector.extract_strided_slice %82 {offsets = [0, 0], sizes = [24, 8], strides = [1, 1]} : vector<24x96xf32> to vector<24x8xf32>
    %84 = vector.extract_strided_slice %82 {offsets = [0, 32], sizes = [24, 8], strides = [1, 1]} : vector<24x96xf32> to vector<24x8xf32>
    %85 = vector.extract_strided_slice %82 {offsets = [0, 64], sizes = [24, 8], strides = [1, 1]} : vector<24x96xf32> to vector<24x8xf32>
    %cst_33 = arith.constant dense<0.000000e+00> : vector<24x24xf32>
    %86 = tpu.matmul %83, %84, %cst_33 {dimension_numbers = #tpu.dot_dimension_numbers<[1], [1], [0], [0], [0, 0, 1, 0], [], []>} : vector<24x8xf32>, vector<24x8xf32>, vector<24x24xf32> -> vector<24x24xf32>
    %cst_34 = arith.constant 0.353553385 : f32
    %87 = vector.broadcast %cst_34 : f32 to vector<24x24xf32>
    %88 = arith.mulf %86, %87 : vector<24x24xf32>
    %89 = arith.addf %88, %46 : vector<24x24xf32>
    %cst_35 = arith.constant dense<0xFF800000> : vector<24xf32>
    %90 = vector.multi_reduction <maximumf>, %89, %cst_35 [1] : vector<24x24xf32> to vector<24xf32>
    %91 = vector.shape_cast %90 : vector<24xf32> to vector<24x1xf32>
    %92 = vector.broadcast %91 : vector<24x1xf32> to vector<24x24xf32>
    %93 = arith.subf %89, %92 : vector<24x24xf32>
    %94 = math.exp %93 : vector<24x24xf32>
    %cst_36 = arith.constant dense<0.000000e+00> : vector<24xf32>
    %95 = vector.multi_reduction <add>, %94, %cst_36 [1] : vector<24x24xf32> to vector<24xf32>
    %96 = vector.shape_cast %95 : vector<24xf32> to vector<24x1xf32>
    %97 = tpu.reciprocal %96 {approx = true} : vector<24x1xf32> -> vector<24x1xf32>
    %98 = vector.broadcast %97 : vector<24x1xf32> to vector<24x24xf32>
    %99 = arith.mulf %94, %98 : vector<24x24xf32>
    %cst_37 = arith.constant dense<0.000000e+00> : vector<24x8xf32>
    %100 = tpu.matmul %99, %85, %cst_37 {dimension_numbers = #tpu.dot_dimension_numbers<[1], [0], [0], [1], [0, 0, 1, 1], [], []>} : vector<24x24xf32>, vector<24x8xf32>, vector<24x8xf32> -> vector<24x8xf32>
    %101 = vector.extract_strided_slice %82 {offsets = [0, 8], sizes = [24, 8], strides = [1, 1]} : vector<24x96xf32> to vector<24x8xf32>
    %102 = vector.extract_strided_slice %82 {offsets = [0, 40], sizes = [24, 8], strides = [1, 1]} : vector<24x96xf32> to vector<24x8xf32>
    %103 = vector.extract_strided_slice %82 {offsets = [0, 72], sizes = [24, 8], strides = [1, 1]} : vector<24x96xf32> to vector<24x8xf32>
    %cst_38 = arith.constant dense<0.000000e+00> : vector<24x24xf32>
    %104 = tpu.matmul %101, %102, %cst_38 {dimension_numbers = #tpu.dot_dimension_numbers<[1], [1], [0], [0], [0, 0, 1, 0], [], []>} : vector<24x8xf32>, vector<24x8xf32>, vector<24x24xf32> -> vector<24x24xf32>
    %cst_39 = arith.constant 0.353553385 : f32
    %105 = vector.broadcast %cst_39 : f32 to vector<24x24xf32>
    %106 = arith.mulf %104, %105 : vector<24x24xf32>
    %107 = arith.addf %106, %46 : vector<24x24xf32>
    %cst_40 = arith.constant dense<0xFF800000> : vector<24xf32>
    %108 = vector.multi_reduction <maximumf>, %107, %cst_40 [1] : vector<24x24xf32> to vector<24xf32>
    %109 = vector.shape_cast %108 : vector<24xf32> to vector<24x1xf32>
    %110 = vector.broadcast %109 : vector<24x1xf32> to vector<24x24xf32>
    %111 = arith.subf %107, %110 : vector<24x24xf32>
    %112 = math.exp %111 : vector<24x24xf32>
    %cst_41 = arith.constant dense<0.000000e+00> : vector<24xf32>
    %113 = vector.multi_reduction <add>, %112, %cst_41 [1] : vector<24x24xf32> to vector<24xf32>
    %114 = vector.shape_cast %113 : vector<24xf32> to vector<24x1xf32>
    %115 = tpu.reciprocal %114 {approx = true} : vector<24x1xf32> -> vector<24x1xf32>
    %116 = vector.broadcast %115 : vector<24x1xf32> to vector<24x24xf32>
    %117 = arith.mulf %112, %116 : vector<24x24xf32>
    %cst_42 = arith.constant dense<0.000000e+00> : vector<24x8xf32>
    %118 = tpu.matmul %117, %103, %cst_42 {dimension_numbers = #tpu.dot_dimension_numbers<[1], [0], [0], [1], [0, 0, 1, 1], [], []>} : vector<24x24xf32>, vector<24x8xf32>, vector<24x8xf32> -> vector<24x8xf32>
    %119 = vector.extract_strided_slice %82 {offsets = [0, 16], sizes = [24, 8], strides = [1, 1]} : vector<24x96xf32> to vector<24x8xf32>
    %120 = vector.extract_strided_slice %82 {offsets = [0, 48], sizes = [24, 8], strides = [1, 1]} : vector<24x96xf32> to vector<24x8xf32>
    %121 = vector.extract_strided_slice %82 {offsets = [0, 80], sizes = [24, 8], strides = [1, 1]} : vector<24x96xf32> to vector<24x8xf32>
    %cst_43 = arith.constant dense<0.000000e+00> : vector<24x24xf32>
    %122 = tpu.matmul %119, %120, %cst_43 {dimension_numbers = #tpu.dot_dimension_numbers<[1], [1], [0], [0], [0, 0, 1, 0], [], []>} : vector<24x8xf32>, vector<24x8xf32>, vector<24x24xf32> -> vector<24x24xf32>
    %cst_44 = arith.constant 0.353553385 : f32
    %123 = vector.broadcast %cst_44 : f32 to vector<24x24xf32>
    %124 = arith.mulf %122, %123 : vector<24x24xf32>
    %125 = arith.addf %124, %46 : vector<24x24xf32>
    %cst_45 = arith.constant dense<0xFF800000> : vector<24xf32>
    %126 = vector.multi_reduction <maximumf>, %125, %cst_45 [1] : vector<24x24xf32> to vector<24xf32>
    %127 = vector.shape_cast %126 : vector<24xf32> to vector<24x1xf32>
    %128 = vector.broadcast %127 : vector<24x1xf32> to vector<24x24xf32>
    %129 = arith.subf %125, %128 : vector<24x24xf32>
    %130 = math.exp %129 : vector<24x24xf32>
    %cst_46 = arith.constant dense<0.000000e+00> : vector<24xf32>
    %131 = vector.multi_reduction <add>, %130, %cst_46 [1] : vector<24x24xf32> to vector<24xf32>
    %132 = vector.shape_cast %131 : vector<24xf32> to vector<24x1xf32>
    %133 = tpu.reciprocal %132 {approx = true} : vector<24x1xf32> -> vector<24x1xf32>
    %134 = vector.broadcast %133 : vector<24x1xf32> to vector<24x24xf32>
    %135 = arith.mulf %130, %134 : vector<24x24xf32>
    %cst_47 = arith.constant dense<0.000000e+00> : vector<24x8xf32>
    %136 = tpu.matmul %135, %121, %cst_47 {dimension_numbers = #tpu.dot_dimension_numbers<[1], [0], [0], [1], [0, 0, 1, 1], [], []>} : vector<24x24xf32>, vector<24x8xf32>, vector<24x8xf32> -> vector<24x8xf32>
    %137 = vector.extract_strided_slice %82 {offsets = [0, 24], sizes = [24, 8], strides = [1, 1]} : vector<24x96xf32> to vector<24x8xf32>
    %138 = vector.extract_strided_slice %82 {offsets = [0, 56], sizes = [24, 8], strides = [1, 1]} : vector<24x96xf32> to vector<24x8xf32>
    %139 = vector.extract_strided_slice %82 {offsets = [0, 88], sizes = [24, 8], strides = [1, 1]} : vector<24x96xf32> to vector<24x8xf32>
    %cst_48 = arith.constant dense<0.000000e+00> : vector<24x24xf32>
    %140 = tpu.matmul %137, %138, %cst_48 {dimension_numbers = #tpu.dot_dimension_numbers<[1], [1], [0], [0], [0, 0, 1, 0], [], []>} : vector<24x8xf32>, vector<24x8xf32>, vector<24x24xf32> -> vector<24x24xf32>
    %cst_49 = arith.constant 0.353553385 : f32
    %141 = vector.broadcast %cst_49 : f32 to vector<24x24xf32>
    %142 = arith.mulf %140, %141 : vector<24x24xf32>
    %143 = arith.addf %142, %46 : vector<24x24xf32>
    %cst_50 = arith.constant dense<0xFF800000> : vector<24xf32>
    %144 = vector.multi_reduction <maximumf>, %143, %cst_50 [1] : vector<24x24xf32> to vector<24xf32>
    %145 = vector.shape_cast %144 : vector<24xf32> to vector<24x1xf32>
    %146 = vector.broadcast %145 : vector<24x1xf32> to vector<24x24xf32>
    %147 = arith.subf %143, %146 : vector<24x24xf32>
    %148 = math.exp %147 : vector<24x24xf32>
    %cst_51 = arith.constant dense<0.000000e+00> : vector<24xf32>
    %149 = vector.multi_reduction <add>, %148, %cst_51 [1] : vector<24x24xf32> to vector<24xf32>
    %150 = vector.shape_cast %149 : vector<24xf32> to vector<24x1xf32>
    %151 = tpu.reciprocal %150 {approx = true} : vector<24x1xf32> -> vector<24x1xf32>
    %152 = vector.broadcast %151 : vector<24x1xf32> to vector<24x24xf32>
    %153 = arith.mulf %148, %152 : vector<24x24xf32>
    %cst_52 = arith.constant dense<0.000000e+00> : vector<24x8xf32>
    %154 = tpu.matmul %153, %139, %cst_52 {dimension_numbers = #tpu.dot_dimension_numbers<[1], [0], [0], [1], [0, 0, 1, 1], [], []>} : vector<24x24xf32>, vector<24x8xf32>, vector<24x8xf32> -> vector<24x8xf32>
    %155 = tpu.concatenate %100, %118, %136, %154 in 1 : vector<24x8xf32>, vector<24x8xf32>, vector<24x8xf32>, vector<24x8xf32> -> vector<24x32xf32>
    %156 = arith.truncf %155 : vector<24x32xf32> to vector<24x32xbf16>
    %c0_53 = arith.constant 0 : index
    %c0_54 = arith.constant 0 : index
    %c0_55 = arith.constant 0 : index
    %157 = vector.load %arg7[%c0_53, %c0_54, %c0_55] : memref<2x32x32xbf16, #tpu.memory_space<vmem>>, vector<1x32x32xbf16>
    %158 = vector.shape_cast %157 : vector<1x32x32xbf16> to vector<32x32xbf16>
    %cst_56 = arith.constant dense<0.000000e+00> : vector<24x32xf32>
    %159 = tpu.matmul %156, %158, %cst_56 {dimension_numbers = #tpu.dot_dimension_numbers<[1], [0], [0], [1], [0, 0, 1, 1], [], []>} : vector<24x32xbf16>, vector<32x32xbf16>, vector<24x32xf32> -> vector<24x32xf32>
    %160 = arith.addf %2, %159 : vector<24x32xf32>
    %c0_57 = arith.constant 0 : index
    %c0_58 = arith.constant 0 : index
    %c0_59 = arith.constant 0 : index
    %161 = vector.load %arg8[%c0_57, %c0_58, %c0_59] : memref<2x1x32xf32, #tpu.memory_space<vmem>>, vector<1x1x32xf32>
    %162 = vector.shape_cast %161 : vector<1x1x32xf32> to vector<1x32xf32>
    %163 = vector.broadcast %162 : vector<1x32xf32> to vector<24x32xf32>
    %164 = arith.addf %160, %163 : vector<24x32xf32>
    %cst_60 = arith.constant dense<0.000000e+00> : vector<24xf32>
    %165 = vector.multi_reduction <add>, %164, %cst_60 [1] : vector<24x32xf32> to vector<24xf32>
    %166 = vector.shape_cast %165 : vector<24xf32> to vector<24x1xf32>
    %cst_61 = arith.constant 3.200000e+01 : f32
    %167 = vector.broadcast %cst_61 : f32 to vector<24x1xf32>
    %168 = arith.divf %166, %167 : vector<24x1xf32>
    %169 = vector.broadcast %168 : vector<24x1xf32> to vector<24x32xf32>
    %170 = arith.subf %164, %169 : vector<24x32xf32>
    %171 = arith.mulf %170, %170 : vector<24x32xf32>
    %cst_62 = arith.constant dense<0.000000e+00> : vector<24xf32>
    %172 = vector.multi_reduction <add>, %171, %cst_62 [1] : vector<24x32xf32> to vector<24xf32>
    %173 = vector.shape_cast %172 : vector<24xf32> to vector<24x1xf32>
    %cst_63 = arith.constant 3.200000e+01 : f32
    %174 = vector.broadcast %cst_63 : f32 to vector<24x1xf32>
    %175 = arith.divf %173, %174 : vector<24x1xf32>
    %cst_64 = arith.constant 9.99999974E-6 : f32
    %176 = vector.broadcast %cst_64 : f32 to vector<24x1xf32>
    %177 = arith.addf %175, %176 : vector<24x1xf32>
    %178 = math.rsqrt %177 : vector<24x1xf32>
    %179 = vector.broadcast %178 : vector<24x1xf32> to vector<24x32xf32>
    %180 = arith.mulf %170, %179 : vector<24x32xf32>
    %181 = vector.broadcast %52 : vector<1x32xf32> to vector<24x32xf32>
    %182 = arith.mulf %180, %181 : vector<24x32xf32>
    %183 = vector.broadcast %54 : vector<1x32xf32> to vector<24x32xf32>
    %184 = arith.addf %182, %183 : vector<24x32xf32>
    %185 = arith.truncf %184 : vector<24x32xf32> to vector<24x32xbf16>
    %c0_65 = arith.constant 0 : index
    %c0_66 = arith.constant 0 : index
    %c0_67 = arith.constant 0 : index
    %186 = vector.load %arg9[%c0_65, %c0_66, %c0_67] : memref<2x32x128xbf16, #tpu.memory_space<vmem>>, vector<1x32x128xbf16>
    %187 = vector.shape_cast %186 : vector<1x32x128xbf16> to vector<32x128xbf16>
    %cst_68 = arith.constant dense<0.000000e+00> : vector<24x128xf32>
    %188 = tpu.matmul %185, %187, %cst_68 {dimension_numbers = #tpu.dot_dimension_numbers<[1], [0], [0], [1], [0, 0, 1, 1], [], []>} : vector<24x32xbf16>, vector<32x128xbf16>, vector<24x128xf32> -> vector<24x128xf32>
    %c0_69 = arith.constant 0 : index
    %c0_70 = arith.constant 0 : index
    %c0_71 = arith.constant 0 : index
    %189 = vector.load %arg10[%c0_69, %c0_70, %c0_71] : memref<2x1x128xf32, #tpu.memory_space<vmem>>, vector<1x1x128xf32>
    %190 = vector.shape_cast %189 : vector<1x1x128xf32> to vector<1x128xf32>
    %191 = vector.broadcast %190 : vector<1x128xf32> to vector<24x128xf32>
    %192 = arith.addf %188, %191 : vector<24x128xf32>
    %cst_72 = arith.constant 1.702000e+00 : f32
    %193 = vector.broadcast %cst_72 : f32 to vector<24x128xf32>
    %194 = arith.mulf %193, %192 : vector<24x128xf32>
    %195 = arith.negf %194 : vector<24x128xf32>
    %196 = math.exp %195 : vector<24x128xf32>
    %cst_73 = arith.constant 1.000000e+00 : f32
    %197 = vector.broadcast %cst_73 : f32 to vector<24x128xf32>
    %198 = arith.addf %197, %196 : vector<24x128xf32>
    %199 = arith.divf %197, %198 : vector<24x128xf32>
    %200 = arith.mulf %192, %199 : vector<24x128xf32>
    %201 = arith.truncf %200 : vector<24x128xf32> to vector<24x128xbf16>
    %c0_74 = arith.constant 0 : index
    %c0_75 = arith.constant 0 : index
    %c0_76 = arith.constant 0 : index
    %202 = vector.load %arg11[%c0_74, %c0_75, %c0_76] : memref<2x128x32xbf16, #tpu.memory_space<vmem>>, vector<1x128x32xbf16>
    %203 = vector.shape_cast %202 : vector<1x128x32xbf16> to vector<128x32xbf16>
    %cst_77 = arith.constant dense<0.000000e+00> : vector<24x32xf32>
    %204 = tpu.matmul %201, %203, %cst_77 {dimension_numbers = #tpu.dot_dimension_numbers<[1], [0], [0], [1], [0, 0, 1, 1], [], []>} : vector<24x128xbf16>, vector<128x32xbf16>, vector<24x32xf32> -> vector<24x32xf32>
    %205 = arith.addf %164, %204 : vector<24x32xf32>
    %c0_78 = arith.constant 0 : index
    %c0_79 = arith.constant 0 : index
    %c0_80 = arith.constant 0 : index
    %206 = vector.load %arg12[%c0_78, %c0_79, %c0_80] : memref<2x1x32xf32, #tpu.memory_space<vmem>>, vector<1x1x32xf32>
    %207 = vector.shape_cast %206 : vector<1x1x32xf32> to vector<1x32xf32>
    %208 = vector.broadcast %207 : vector<1x32xf32> to vector<24x32xf32>
    %209 = arith.addf %205, %208 : vector<24x32xf32>
    %c4 = arith.constant 4 : index
    %c0_81 = arith.constant 0 : index
    %c0_82 = arith.constant 0 : index
    %210 = vector.load %arg4[%c4, %c0_81, %c0_82] : memref<10x1x32xf32, #tpu.memory_space<vmem>>, vector<1x1x32xf32>
    %211 = vector.shape_cast %210 : vector<1x1x32xf32> to vector<1x32xf32>
    %c5 = arith.constant 5 : index
    %c0_83 = arith.constant 0 : index
    %c0_84 = arith.constant 0 : index
    %212 = vector.load %arg4[%c5, %c0_83, %c0_84] : memref<10x1x32xf32, #tpu.memory_space<vmem>>, vector<1x1x32xf32>
    %213 = vector.shape_cast %212 : vector<1x1x32xf32> to vector<1x32xf32>
    %c6 = arith.constant 6 : index
    %c0_85 = arith.constant 0 : index
    %c0_86 = arith.constant 0 : index
    %214 = vector.load %arg4[%c6, %c0_85, %c0_86] : memref<10x1x32xf32, #tpu.memory_space<vmem>>, vector<1x1x32xf32>
    %215 = vector.shape_cast %214 : vector<1x1x32xf32> to vector<1x32xf32>
    %c7 = arith.constant 7 : index
    %c0_87 = arith.constant 0 : index
    %c0_88 = arith.constant 0 : index
    %216 = vector.load %arg4[%c7, %c0_87, %c0_88] : memref<10x1x32xf32, #tpu.memory_space<vmem>>, vector<1x1x32xf32>
    %217 = vector.shape_cast %216 : vector<1x1x32xf32> to vector<1x32xf32>
    %cst_89 = arith.constant dense<0.000000e+00> : vector<24xf32>
    %218 = vector.multi_reduction <add>, %209, %cst_89 [1] : vector<24x32xf32> to vector<24xf32>
    %219 = vector.shape_cast %218 : vector<24xf32> to vector<24x1xf32>
    %cst_90 = arith.constant 3.200000e+01 : f32
    %220 = vector.broadcast %cst_90 : f32 to vector<24x1xf32>
    %221 = arith.divf %219, %220 : vector<24x1xf32>
    %222 = vector.broadcast %221 : vector<24x1xf32> to vector<24x32xf32>
    %223 = arith.subf %209, %222 : vector<24x32xf32>
    %224 = arith.mulf %223, %223 : vector<24x32xf32>
    %cst_91 = arith.constant dense<0.000000e+00> : vector<24xf32>
    %225 = vector.multi_reduction <add>, %224, %cst_91 [1] : vector<24x32xf32> to vector<24xf32>
    %226 = vector.shape_cast %225 : vector<24xf32> to vector<24x1xf32>
    %cst_92 = arith.constant 3.200000e+01 : f32
    %227 = vector.broadcast %cst_92 : f32 to vector<24x1xf32>
    %228 = arith.divf %226, %227 : vector<24x1xf32>
    %cst_93 = arith.constant 9.99999974E-6 : f32
    %229 = vector.broadcast %cst_93 : f32 to vector<24x1xf32>
    %230 = arith.addf %228, %229 : vector<24x1xf32>
    %231 = math.rsqrt %230 : vector<24x1xf32>
    %232 = vector.broadcast %231 : vector<24x1xf32> to vector<24x32xf32>
    %233 = arith.mulf %223, %232 : vector<24x32xf32>
    %234 = vector.broadcast %211 : vector<1x32xf32> to vector<24x32xf32>
    %235 = arith.mulf %233, %234 : vector<24x32xf32>
    %236 = vector.broadcast %213 : vector<1x32xf32> to vector<24x32xf32>
    %237 = arith.addf %235, %236 : vector<24x32xf32>
    %238 = arith.truncf %237 : vector<24x32xf32> to vector<24x32xbf16>
    %c1_94 = arith.constant 1 : index
    %c0_95 = arith.constant 0 : index
    %c0_96 = arith.constant 0 : index
    %239 = vector.load %arg5[%c1_94, %c0_95, %c0_96] : memref<2x32x96xbf16, #tpu.memory_space<vmem>>, vector<1x32x96xbf16>
    %240 = vector.shape_cast %239 : vector<1x32x96xbf16> to vector<32x96xbf16>
    %cst_97 = arith.constant dense<0.000000e+00> : vector<24x96xf32>
    %241 = tpu.matmul %238, %240, %cst_97 {dimension_numbers = #tpu.dot_dimension_numbers<[1], [0], [0], [1], [0, 0, 1, 1], [], []>} : vector<24x32xbf16>, vector<32x96xbf16>, vector<24x96xf32> -> vector<24x96xf32>
    %c1_98 = arith.constant 1 : index
    %c0_99 = arith.constant 0 : index
    %c0_100 = arith.constant 0 : index
    %242 = vector.load %arg6[%c1_98, %c0_99, %c0_100] : memref<2x1x96xf32, #tpu.memory_space<vmem>>, vector<1x1x96xf32>
    %243 = vector.shape_cast %242 : vector<1x1x96xf32> to vector<1x96xf32>
    %244 = vector.broadcast %243 : vector<1x96xf32> to vector<24x96xf32>
    %245 = arith.addf %241, %244 : vector<24x96xf32>
    %246 = vector.extract_strided_slice %245 {offsets = [0, 0], sizes = [24, 8], strides = [1, 1]} : vector<24x96xf32> to vector<24x8xf32>
    %247 = vector.extract_strided_slice %245 {offsets = [0, 32], sizes = [24, 8], strides = [1, 1]} : vector<24x96xf32> to vector<24x8xf32>
    %248 = vector.extract_strided_slice %245 {offsets = [0, 64], sizes = [24, 8], strides = [1, 1]} : vector<24x96xf32> to vector<24x8xf32>
    %cst_101 = arith.constant dense<0.000000e+00> : vector<24x24xf32>
    %249 = tpu.matmul %246, %247, %cst_101 {dimension_numbers = #tpu.dot_dimension_numbers<[1], [1], [0], [0], [0, 0, 1, 0], [], []>} : vector<24x8xf32>, vector<24x8xf32>, vector<24x24xf32> -> vector<24x24xf32>
    %cst_102 = arith.constant 0.353553385 : f32
    %250 = vector.broadcast %cst_102 : f32 to vector<24x24xf32>
    %251 = arith.mulf %249, %250 : vector<24x24xf32>
    %252 = arith.addf %251, %46 : vector<24x24xf32>
    %cst_103 = arith.constant dense<0xFF800000> : vector<24xf32>
    %253 = vector.multi_reduction <maximumf>, %252, %cst_103 [1] : vector<24x24xf32> to vector<24xf32>
    %254 = vector.shape_cast %253 : vector<24xf32> to vector<24x1xf32>
    %255 = vector.broadcast %254 : vector<24x1xf32> to vector<24x24xf32>
    %256 = arith.subf %252, %255 : vector<24x24xf32>
    %257 = math.exp %256 : vector<24x24xf32>
    %cst_104 = arith.constant dense<0.000000e+00> : vector<24xf32>
    %258 = vector.multi_reduction <add>, %257, %cst_104 [1] : vector<24x24xf32> to vector<24xf32>
    %259 = vector.shape_cast %258 : vector<24xf32> to vector<24x1xf32>
    %260 = tpu.reciprocal %259 {approx = true} : vector<24x1xf32> -> vector<24x1xf32>
    %261 = vector.broadcast %260 : vector<24x1xf32> to vector<24x24xf32>
    %262 = arith.mulf %257, %261 : vector<24x24xf32>
    %cst_105 = arith.constant dense<0.000000e+00> : vector<24x8xf32>
    %263 = tpu.matmul %262, %248, %cst_105 {dimension_numbers = #tpu.dot_dimension_numbers<[1], [0], [0], [1], [0, 0, 1, 1], [], []>} : vector<24x24xf32>, vector<24x8xf32>, vector<24x8xf32> -> vector<24x8xf32>
    %264 = vector.extract_strided_slice %245 {offsets = [0, 8], sizes = [24, 8], strides = [1, 1]} : vector<24x96xf32> to vector<24x8xf32>
    %265 = vector.extract_strided_slice %245 {offsets = [0, 40], sizes = [24, 8], strides = [1, 1]} : vector<24x96xf32> to vector<24x8xf32>
    %266 = vector.extract_strided_slice %245 {offsets = [0, 72], sizes = [24, 8], strides = [1, 1]} : vector<24x96xf32> to vector<24x8xf32>
    %cst_106 = arith.constant dense<0.000000e+00> : vector<24x24xf32>
    %267 = tpu.matmul %264, %265, %cst_106 {dimension_numbers = #tpu.dot_dimension_numbers<[1], [1], [0], [0], [0, 0, 1, 0], [], []>} : vector<24x8xf32>, vector<24x8xf32>, vector<24x24xf32> -> vector<24x24xf32>
    %cst_107 = arith.constant 0.353553385 : f32
    %268 = vector.broadcast %cst_107 : f32 to vector<24x24xf32>
    %269 = arith.mulf %267, %268 : vector<24x24xf32>
    %270 = arith.addf %269, %46 : vector<24x24xf32>
    %cst_108 = arith.constant dense<0xFF800000> : vector<24xf32>
    %271 = vector.multi_reduction <maximumf>, %270, %cst_108 [1] : vector<24x24xf32> to vector<24xf32>
    %272 = vector.shape_cast %271 : vector<24xf32> to vector<24x1xf32>
    %273 = vector.broadcast %272 : vector<24x1xf32> to vector<24x24xf32>
    %274 = arith.subf %270, %273 : vector<24x24xf32>
    %275 = math.exp %274 : vector<24x24xf32>
    %cst_109 = arith.constant dense<0.000000e+00> : vector<24xf32>
    %276 = vector.multi_reduction <add>, %275, %cst_109 [1] : vector<24x24xf32> to vector<24xf32>
    %277 = vector.shape_cast %276 : vector<24xf32> to vector<24x1xf32>
    %278 = tpu.reciprocal %277 {approx = true} : vector<24x1xf32> -> vector<24x1xf32>
    %279 = vector.broadcast %278 : vector<24x1xf32> to vector<24x24xf32>
    %280 = arith.mulf %275, %279 : vector<24x24xf32>
    %cst_110 = arith.constant dense<0.000000e+00> : vector<24x8xf32>
    %281 = tpu.matmul %280, %266, %cst_110 {dimension_numbers = #tpu.dot_dimension_numbers<[1], [0], [0], [1], [0, 0, 1, 1], [], []>} : vector<24x24xf32>, vector<24x8xf32>, vector<24x8xf32> -> vector<24x8xf32>
    %282 = vector.extract_strided_slice %245 {offsets = [0, 16], sizes = [24, 8], strides = [1, 1]} : vector<24x96xf32> to vector<24x8xf32>
    %283 = vector.extract_strided_slice %245 {offsets = [0, 48], sizes = [24, 8], strides = [1, 1]} : vector<24x96xf32> to vector<24x8xf32>
    %284 = vector.extract_strided_slice %245 {offsets = [0, 80], sizes = [24, 8], strides = [1, 1]} : vector<24x96xf32> to vector<24x8xf32>
    %cst_111 = arith.constant dense<0.000000e+00> : vector<24x24xf32>
    %285 = tpu.matmul %282, %283, %cst_111 {dimension_numbers = #tpu.dot_dimension_numbers<[1], [1], [0], [0], [0, 0, 1, 0], [], []>} : vector<24x8xf32>, vector<24x8xf32>, vector<24x24xf32> -> vector<24x24xf32>
    %cst_112 = arith.constant 0.353553385 : f32
    %286 = vector.broadcast %cst_112 : f32 to vector<24x24xf32>
    %287 = arith.mulf %285, %286 : vector<24x24xf32>
    %288 = arith.addf %287, %46 : vector<24x24xf32>
    %cst_113 = arith.constant dense<0xFF800000> : vector<24xf32>
    %289 = vector.multi_reduction <maximumf>, %288, %cst_113 [1] : vector<24x24xf32> to vector<24xf32>
    %290 = vector.shape_cast %289 : vector<24xf32> to vector<24x1xf32>
    %291 = vector.broadcast %290 : vector<24x1xf32> to vector<24x24xf32>
    %292 = arith.subf %288, %291 : vector<24x24xf32>
    %293 = math.exp %292 : vector<24x24xf32>
    %cst_114 = arith.constant dense<0.000000e+00> : vector<24xf32>
    %294 = vector.multi_reduction <add>, %293, %cst_114 [1] : vector<24x24xf32> to vector<24xf32>
    %295 = vector.shape_cast %294 : vector<24xf32> to vector<24x1xf32>
    %296 = tpu.reciprocal %295 {approx = true} : vector<24x1xf32> -> vector<24x1xf32>
    %297 = vector.broadcast %296 : vector<24x1xf32> to vector<24x24xf32>
    %298 = arith.mulf %293, %297 : vector<24x24xf32>
    %cst_115 = arith.constant dense<0.000000e+00> : vector<24x8xf32>
    %299 = tpu.matmul %298, %284, %cst_115 {dimension_numbers = #tpu.dot_dimension_numbers<[1], [0], [0], [1], [0, 0, 1, 1], [], []>} : vector<24x24xf32>, vector<24x8xf32>, vector<24x8xf32> -> vector<24x8xf32>
    %300 = vector.extract_strided_slice %245 {offsets = [0, 24], sizes = [24, 8], strides = [1, 1]} : vector<24x96xf32> to vector<24x8xf32>
    %301 = vector.extract_strided_slice %245 {offsets = [0, 56], sizes = [24, 8], strides = [1, 1]} : vector<24x96xf32> to vector<24x8xf32>
    %302 = vector.extract_strided_slice %245 {offsets = [0, 88], sizes = [24, 8], strides = [1, 1]} : vector<24x96xf32> to vector<24x8xf32>
    %cst_116 = arith.constant dense<0.000000e+00> : vector<24x24xf32>
    %303 = tpu.matmul %300, %301, %cst_116 {dimension_numbers = #tpu.dot_dimension_numbers<[1], [1], [0], [0], [0, 0, 1, 0], [], []>} : vector<24x8xf32>, vector<24x8xf32>, vector<24x24xf32> -> vector<24x24xf32>
    %cst_117 = arith.constant 0.353553385 : f32
    %304 = vector.broadcast %cst_117 : f32 to vector<24x24xf32>
    %305 = arith.mulf %303, %304 : vector<24x24xf32>
    %306 = arith.addf %305, %46 : vector<24x24xf32>
    %cst_118 = arith.constant dense<0xFF800000> : vector<24xf32>
    %307 = vector.multi_reduction <maximumf>, %306, %cst_118 [1] : vector<24x24xf32> to vector<24xf32>
    %308 = vector.shape_cast %307 : vector<24xf32> to vector<24x1xf32>
    %309 = vector.broadcast %308 : vector<24x1xf32> to vector<24x24xf32>
    %310 = arith.subf %306, %309 : vector<24x24xf32>
    %311 = math.exp %310 : vector<24x24xf32>
    %cst_119 = arith.constant dense<0.000000e+00> : vector<24xf32>
    %312 = vector.multi_reduction <add>, %311, %cst_119 [1] : vector<24x24xf32> to vector<24xf32>
    %313 = vector.shape_cast %312 : vector<24xf32> to vector<24x1xf32>
    %314 = tpu.reciprocal %313 {approx = true} : vector<24x1xf32> -> vector<24x1xf32>
    %315 = vector.broadcast %314 : vector<24x1xf32> to vector<24x24xf32>
    %316 = arith.mulf %311, %315 : vector<24x24xf32>
    %cst_120 = arith.constant dense<0.000000e+00> : vector<24x8xf32>
    %317 = tpu.matmul %316, %302, %cst_120 {dimension_numbers = #tpu.dot_dimension_numbers<[1], [0], [0], [1], [0, 0, 1, 1], [], []>} : vector<24x24xf32>, vector<24x8xf32>, vector<24x8xf32> -> vector<24x8xf32>
    %318 = tpu.concatenate %263, %281, %299, %317 in 1 : vector<24x8xf32>, vector<24x8xf32>, vector<24x8xf32>, vector<24x8xf32> -> vector<24x32xf32>
    %319 = arith.truncf %318 : vector<24x32xf32> to vector<24x32xbf16>
    %c1_121 = arith.constant 1 : index
    %c0_122 = arith.constant 0 : index
    %c0_123 = arith.constant 0 : index
    %320 = vector.load %arg7[%c1_121, %c0_122, %c0_123] : memref<2x32x32xbf16, #tpu.memory_space<vmem>>, vector<1x32x32xbf16>
    %321 = vector.shape_cast %320 : vector<1x32x32xbf16> to vector<32x32xbf16>
    %cst_124 = arith.constant dense<0.000000e+00> : vector<24x32xf32>
    %322 = tpu.matmul %319, %321, %cst_124 {dimension_numbers = #tpu.dot_dimension_numbers<[1], [0], [0], [1], [0, 0, 1, 1], [], []>} : vector<24x32xbf16>, vector<32x32xbf16>, vector<24x32xf32> -> vector<24x32xf32>
    %323 = arith.addf %209, %322 : vector<24x32xf32>
    %c1_125 = arith.constant 1 : index
    %c0_126 = arith.constant 0 : index
    %c0_127 = arith.constant 0 : index
    %324 = vector.load %arg8[%c1_125, %c0_126, %c0_127] : memref<2x1x32xf32, #tpu.memory_space<vmem>>, vector<1x1x32xf32>
    %325 = vector.shape_cast %324 : vector<1x1x32xf32> to vector<1x32xf32>
    %326 = vector.broadcast %325 : vector<1x32xf32> to vector<24x32xf32>
    %327 = arith.addf %323, %326 : vector<24x32xf32>
    %cst_128 = arith.constant dense<0.000000e+00> : vector<24xf32>
    %328 = vector.multi_reduction <add>, %327, %cst_128 [1] : vector<24x32xf32> to vector<24xf32>
    %329 = vector.shape_cast %328 : vector<24xf32> to vector<24x1xf32>
    %cst_129 = arith.constant 3.200000e+01 : f32
    %330 = vector.broadcast %cst_129 : f32 to vector<24x1xf32>
    %331 = arith.divf %329, %330 : vector<24x1xf32>
    %332 = vector.broadcast %331 : vector<24x1xf32> to vector<24x32xf32>
    %333 = arith.subf %327, %332 : vector<24x32xf32>
    %334 = arith.mulf %333, %333 : vector<24x32xf32>
    %cst_130 = arith.constant dense<0.000000e+00> : vector<24xf32>
    %335 = vector.multi_reduction <add>, %334, %cst_130 [1] : vector<24x32xf32> to vector<24xf32>
    %336 = vector.shape_cast %335 : vector<24xf32> to vector<24x1xf32>
    %cst_131 = arith.constant 3.200000e+01 : f32
    %337 = vector.broadcast %cst_131 : f32 to vector<24x1xf32>
    %338 = arith.divf %336, %337 : vector<24x1xf32>
    %cst_132 = arith.constant 9.99999974E-6 : f32
    %339 = vector.broadcast %cst_132 : f32 to vector<24x1xf32>
    %340 = arith.addf %338, %339 : vector<24x1xf32>
    %341 = math.rsqrt %340 : vector<24x1xf32>
    %342 = vector.broadcast %341 : vector<24x1xf32> to vector<24x32xf32>
    %343 = arith.mulf %333, %342 : vector<24x32xf32>
    %344 = vector.broadcast %215 : vector<1x32xf32> to vector<24x32xf32>
    %345 = arith.mulf %343, %344 : vector<24x32xf32>
    %346 = vector.broadcast %217 : vector<1x32xf32> to vector<24x32xf32>
    %347 = arith.addf %345, %346 : vector<24x32xf32>
    %348 = arith.truncf %347 : vector<24x32xf32> to vector<24x32xbf16>
    %c1_133 = arith.constant 1 : index
    %c0_134 = arith.constant 0 : index
    %c0_135 = arith.constant 0 : index
    %349 = vector.load %arg9[%c1_133, %c0_134, %c0_135] : memref<2x32x128xbf16, #tpu.memory_space<vmem>>, vector<1x32x128xbf16>
    %350 = vector.shape_cast %349 : vector<1x32x128xbf16> to vector<32x128xbf16>
    %cst_136 = arith.constant dense<0.000000e+00> : vector<24x128xf32>
    %351 = tpu.matmul %348, %350, %cst_136 {dimension_numbers = #tpu.dot_dimension_numbers<[1], [0], [0], [1], [0, 0, 1, 1], [], []>} : vector<24x32xbf16>, vector<32x128xbf16>, vector<24x128xf32> -> vector<24x128xf32>
    %c1_137 = arith.constant 1 : index
    %c0_138 = arith.constant 0 : index
    %c0_139 = arith.constant 0 : index
    %352 = vector.load %arg10[%c1_137, %c0_138, %c0_139] : memref<2x1x128xf32, #tpu.memory_space<vmem>>, vector<1x1x128xf32>
    %353 = vector.shape_cast %352 : vector<1x1x128xf32> to vector<1x128xf32>
    %354 = vector.broadcast %353 : vector<1x128xf32> to vector<24x128xf32>
    %355 = arith.addf %351, %354 : vector<24x128xf32>
    %cst_140 = arith.constant 1.702000e+00 : f32
    %356 = vector.broadcast %cst_140 : f32 to vector<24x128xf32>
    %357 = arith.mulf %356, %355 : vector<24x128xf32>
    %358 = arith.negf %357 : vector<24x128xf32>
    %359 = math.exp %358 : vector<24x128xf32>
    %cst_141 = arith.constant 1.000000e+00 : f32
    %360 = vector.broadcast %cst_141 : f32 to vector<24x128xf32>
    %361 = arith.addf %360, %359 : vector<24x128xf32>
    %362 = arith.divf %360, %361 : vector<24x128xf32>
    %363 = arith.mulf %355, %362 : vector<24x128xf32>
    %364 = arith.truncf %363 : vector<24x128xf32> to vector<24x128xbf16>
    %c1_142 = arith.constant 1 : index
    %c0_143 = arith.constant 0 : index
    %c0_144 = arith.constant 0 : index
    %365 = vector.load %arg11[%c1_142, %c0_143, %c0_144] : memref<2x128x32xbf16, #tpu.memory_space<vmem>>, vector<1x128x32xbf16>
    %366 = vector.shape_cast %365 : vector<1x128x32xbf16> to vector<128x32xbf16>
    %cst_145 = arith.constant dense<0.000000e+00> : vector<24x32xf32>
    %367 = tpu.matmul %364, %366, %cst_145 {dimension_numbers = #tpu.dot_dimension_numbers<[1], [0], [0], [1], [0, 0, 1, 1], [], []>} : vector<24x128xbf16>, vector<128x32xbf16>, vector<24x32xf32> -> vector<24x32xf32>
    %368 = arith.addf %327, %367 : vector<24x32xf32>
    %c1_146 = arith.constant 1 : index
    %c0_147 = arith.constant 0 : index
    %c0_148 = arith.constant 0 : index
    %369 = vector.load %arg12[%c1_146, %c0_147, %c0_148] : memref<2x1x32xf32, #tpu.memory_space<vmem>>, vector<1x1x32xf32>
    %370 = vector.shape_cast %369 : vector<1x1x32xf32> to vector<1x32xf32>
    %371 = vector.broadcast %370 : vector<1x32xf32> to vector<24x32xf32>
    %372 = arith.addf %368, %371 : vector<24x32xf32>
    %c8 = arith.constant 8 : index
    %c0_149 = arith.constant 0 : index
    %c0_150 = arith.constant 0 : index
    %373 = vector.load %arg4[%c8, %c0_149, %c0_150] : memref<10x1x32xf32, #tpu.memory_space<vmem>>, vector<1x1x32xf32>
    %374 = vector.shape_cast %373 : vector<1x1x32xf32> to vector<1x32xf32>
    %c9 = arith.constant 9 : index
    %c0_151 = arith.constant 0 : index
    %c0_152 = arith.constant 0 : index
    %375 = vector.load %arg4[%c9, %c0_151, %c0_152] : memref<10x1x32xf32, #tpu.memory_space<vmem>>, vector<1x1x32xf32>
    %376 = vector.shape_cast %375 : vector<1x1x32xf32> to vector<1x32xf32>
    %cst_153 = arith.constant dense<0.000000e+00> : vector<24xf32>
    %377 = vector.multi_reduction <add>, %372, %cst_153 [1] : vector<24x32xf32> to vector<24xf32>
    %378 = vector.shape_cast %377 : vector<24xf32> to vector<24x1xf32>
    %cst_154 = arith.constant 3.200000e+01 : f32
    %379 = vector.broadcast %cst_154 : f32 to vector<24x1xf32>
    %380 = arith.divf %378, %379 : vector<24x1xf32>
    %381 = vector.broadcast %380 : vector<24x1xf32> to vector<24x32xf32>
    %382 = arith.subf %372, %381 : vector<24x32xf32>
    %383 = arith.mulf %382, %382 : vector<24x32xf32>
    %cst_155 = arith.constant dense<0.000000e+00> : vector<24xf32>
    %384 = vector.multi_reduction <add>, %383, %cst_155 [1] : vector<24x32xf32> to vector<24xf32>
    %385 = vector.shape_cast %384 : vector<24xf32> to vector<24x1xf32>
    %cst_156 = arith.constant 3.200000e+01 : f32
    %386 = vector.broadcast %cst_156 : f32 to vector<24x1xf32>
    %387 = arith.divf %385, %386 : vector<24x1xf32>
    %cst_157 = arith.constant 9.99999974E-6 : f32
    %388 = vector.broadcast %cst_157 : f32 to vector<24x1xf32>
    %389 = arith.addf %387, %388 : vector<24x1xf32>
    %390 = math.rsqrt %389 : vector<24x1xf32>
    %391 = vector.broadcast %390 : vector<24x1xf32> to vector<24x32xf32>
    %392 = arith.mulf %382, %391 : vector<24x32xf32>
    %393 = vector.broadcast %374 : vector<1x32xf32> to vector<24x32xf32>
    %394 = arith.mulf %392, %393 : vector<24x32xf32>
    %395 = vector.broadcast %376 : vector<1x32xf32> to vector<24x32xf32>
    %396 = arith.addf %394, %395 : vector<24x32xf32>
    %c0_158 = arith.constant 0 : index
    %c0_159 = arith.constant 0 : index
    %397 = vector.load %arg3[%c0_158, %c0_159] : memref<3x24xf32, #tpu.memory_space<vmem>>, vector<3x24xf32>
    %cst_160 = arith.constant dense<0.000000e+00> : vector<3x32xf32>
    %398 = tpu.matmul %397, %396, %cst_160 {dimension_numbers = #tpu.dot_dimension_numbers<[1], [0], [0], [1], [0, 0, 1, 1], [], []>} : vector<3x24xf32>, vector<24x32xf32>, vector<3x32xf32> -> vector<3x32xf32>
    %399 = arith.truncf %398 : vector<3x32xf32> to vector<3x32xbf16>
    %c0_161 = arith.constant 0 : index
    %c0_162 = arith.constant 0 : index
    %400 = vector.load %arg13[%c0_161, %c0_162] : memref<32x32xbf16, #tpu.memory_space<vmem>>, vector<32x32xbf16>
    %cst_163 = arith.constant dense<0.000000e+00> : vector<3x32xf32>
    %401 = tpu.matmul %399, %400, %cst_163 {dimension_numbers = #tpu.dot_dimension_numbers<[1], [0], [0], [1], [0, 0, 1, 1], [], []>} : vector<3x32xbf16>, vector<32x32xbf16>, vector<3x32xf32> -> vector<3x32xf32>
    %402 = arith.mulf %401, %401 : vector<3x32xf32>
    %cst_164 = arith.constant dense<0.000000e+00> : vector<3xf32>
    %403 = vector.multi_reduction <add>, %402, %cst_164 [1] : vector<3x32xf32> to vector<3xf32>
    %404 = vector.shape_cast %403 : vector<3xf32> to vector<3x1xf32>
    %cst_165 = arith.constant 9.99999996E-13 : f32
    %405 = vector.broadcast %cst_165 : f32 to vector<3x1xf32>
    %406 = arith.addf %404, %405 : vector<3x1xf32>
    %407 = math.rsqrt %406 : vector<3x1xf32>
    %408 = vector.broadcast %407 : vector<3x1xf32> to vector<3x32xf32>
    %409 = arith.mulf %401, %408 : vector<3x32xf32>
    %c0_166 = arith.constant 0 : index
    %c0_167 = arith.constant 0 : index
    %410 = vector.load %arg14[%c0_166, %c0_167] : memref<3x32xf32, #tpu.memory_space<vmem>>, vector<3x32xf32>
    tpu.vector_store %arg14[%c0_166, %c0_167], %409 {strides = array<i32>} : memref<3x32xf32, #tpu.memory_space<vmem>>, vector<3x32xf32>,
    return
  }
  func.func @transform_0(%arg0: i32) -> (i32, i32) {
    %c0_i32 = arith.constant 0 : i32
    %c0_i32_0 = arith.constant 0 : i32
    %c0_i32_1 = arith.constant 0 : i32
    return %c0_i32, %c0_i32_0 : i32, i32
  }
  func.func @transform_1(%arg0: i32) -> (i32, i32) {
    %c0_i32 = arith.constant 0 : i32
    %c0_i32_0 = arith.constant 0 : i32
    %c0_i32_1 = arith.constant 0 : i32
    return %c0_i32, %c0_i32_0 : i32, i32
  }
  func.func @transform_2(%arg0: i32) -> (i32, i32) {
    %c0_i32 = arith.constant 0 : i32
    %c0_i32_0 = arith.constant 0 : i32
    %c0_i32_1 = arith.constant 0 : i32
    return %c0_i32, %c0_i32_0 : i32, i32
  }
  func.func @transform_3(%arg0: i32) -> (i32, i32, i32) {
    %c0_i32 = arith.constant 0 : i32
    %c0_i32_0 = arith.constant 0 : i32
    %c0_i32_1 = arith.constant 0 : i32
    %c0_i32_2 = arith.constant 0 : i32
    return %c0_i32, %c0_i32_0, %c0_i32_1 : i32, i32, i32
  }
  func.func @transform_4(%arg0: i32) -> (i32, i32, i32) {
    %c0_i32 = arith.constant 0 : i32
    %c0_i32_0 = arith.constant 0 : i32
    %c0_i32_1 = arith.constant 0 : i32
    %c0_i32_2 = arith.constant 0 : i32
    return %c0_i32, %c0_i32_0, %c0_i32_1 : i32, i32, i32
  }
  func.func @transform_5(%arg0: i32) -> (i32, i32, i32) {
    %c0_i32 = arith.constant 0 : i32
    %c0_i32_0 = arith.constant 0 : i32
    %c0_i32_1 = arith.constant 0 : i32
    %c0_i32_2 = arith.constant 0 : i32
    return %c0_i32, %c0_i32_0, %c0_i32_1 : i32, i32, i32
  }
  func.func @transform_6(%arg0: i32) -> (i32, i32, i32) {
    %c0_i32 = arith.constant 0 : i32
    %c0_i32_0 = arith.constant 0 : i32
    %c0_i32_1 = arith.constant 0 : i32
    %c0_i32_2 = arith.constant 0 : i32
    return %c0_i32, %c0_i32_0, %c0_i32_1 : i32, i32, i32
  }
  func.func @transform_7(%arg0: i32) -> (i32, i32, i32) {
    %c0_i32 = arith.constant 0 : i32
    %c0_i32_0 = arith.constant 0 : i32
    %c0_i32_1 = arith.constant 0 : i32
    %c0_i32_2 = arith.constant 0 : i32
    return %c0_i32, %c0_i32_0, %c0_i32_1 : i32, i32, i32
  }
  func.func @transform_8(%arg0: i32) -> (i32, i32, i32) {
    %c0_i32 = arith.constant 0 : i32
    %c0_i32_0 = arith.constant 0 : i32
    %c0_i32_1 = arith.constant 0 : i32
    %c0_i32_2 = arith.constant 0 : i32
    return %c0_i32, %c0_i32_0, %c0_i32_1 : i32, i32, i32
  }
  func.func @transform_9(%arg0: i32) -> (i32, i32, i32) {
    %c0_i32 = arith.constant 0 : i32
    %c0_i32_0 = arith.constant 0 : i32
    %c0_i32_1 = arith.constant 0 : i32
    %c0_i32_2 = arith.constant 0 : i32
    return %c0_i32, %c0_i32_0, %c0_i32_1 : i32, i32, i32
  }
  func.func @transform_10(%arg0: i32) -> (i32, i32, i32) {
    %c0_i32 = arith.constant 0 : i32
    %c0_i32_0 = arith.constant 0 : i32
    %c0_i32_1 = arith.constant 0 : i32
    %c0_i32_2 = arith.constant 0 : i32
    return %c0_i32, %c0_i32_0, %c0_i32_1 : i32, i32, i32
  }
  func.func @transform_11(%arg0: i32) -> (i32, i32, i32) {
    %c0_i32 = arith.constant 0 : i32
    %c0_i32_0 = arith.constant 0 : i32
    %c0_i32_1 = arith.constant 0 : i32
    %c0_i32_2 = arith.constant 0 : i32
    return %c0_i32, %c0_i32_0, %c0_i32_1 : i32, i32, i32
  }
  func.func @transform_12(%arg0: i32) -> (i32, i32) {
    %c0_i32 = arith.constant 0 : i32
    %c0_i32_0 = arith.constant 0 : i32
    %c0_i32_1 = arith.constant 0 : i32
    return %c0_i32, %c0_i32_0 : i32, i32
  }
  func.func @transform_13(%arg0: i32) -> (i32, i32) {
    %c0_i32 = arith.constant 0 : i32
    %c0_i32_0 = arith.constant 0 : i32
    %c0_i32_1 = arith.constant 0 : i32
    return %c0_i32, %c0_i32_0 : i32, i32
  }
}

</mosaic_0001>

<llo_original>
// kernel: tile.14
$region0: #{tile.14}
  %s0 = inlined_call_operand.vmem [shape: f32[2,5,64], index: 0, kind: input, shape index: {}]
  %s1 = inlined_call_operand.vmem [shape: f32[10,64], index: 1, kind: output, shape index: {}]
  %v2 = vld [vmem:[%s0] sm:$0x1f]
  %vm3 = vcmask 523264
  %4 = vst.msk [vmem:[%s1] sm:$0x1f] %vm3, %v2
  %s5 = scalar_lea.vmem %s0, 8
  %v6 = vld [vmem:[%s5] sm:$0x1f]
  %vm7 = vcmask 523264
  %s8 = scalar_lea.vmem %s1, 5
  %9 = vst.msk [vmem:[%s8] sm:$0x1f] %vm7, %v6

// kernel: clip_inference.3
$region0: #{clip_inference.3}
  #allocation0 [shape = 'u32[]', space=smem, size = 0x4, offset = 0x4, fixed_abs, tag = 'smem constant byte address 0x4 - core index']
  #allocation1 [shape = 'u32[144,128]{1,0:T(1,128)}', space=vmem, size = 0x12000, scoped, tag = 'internal scratch']
  %s0 = inlined_call_operand.vmem [shape: f32[24,32], index: 0, kind: input, shape index: {}]
  %s1 = inlined_call_operand.vmem [shape: f32[24,32], index: 1, kind: input, shape index: {}]
  %s2 = inlined_call_operand.vmem [shape: f32[3,24], index: 2, kind: input, shape index: {}]
  %s3 = inlined_call_operand.vmem [shape: f32[10,1,32], index: 3, kind: input, shape index: {}]
  %s4 = inlined_call_operand.vmem [shape: bf16[2,32,96], index: 4, kind: input, shape index: {}]
  %s5 = inlined_call_operand.vmem [shape: f32[2,1,96], index: 5, kind: input, shape index: {}]
  %s6 = inlined_call_operand.vmem [shape: bf16[2,32,32], index: 6, kind: input, shape index: {}]
  %s7 = inlined_call_operand.vmem [shape: f32[2,1,32], index: 7, kind: input, shape index: {}]
  %s8 = inlined_call_operand.vmem [shape: bf16[2,32,128], index: 8, kind: input, shape index: {}]
  %s9 = inlined_call_operand.vmem [shape: f32[2,1,128], index: 9, kind: input, shape index: {}]
  %s10 = inlined_call_operand.vmem [shape: bf16[2,128,32], index: 10, kind: input, shape index: {}]
  %s11 = inlined_call_operand.vmem [shape: f32[2,1,32], index: 11, kind: input, shape index: {}]
  %s12 = inlined_call_operand.vmem [shape: bf16[32,32], index: 12, kind: input, shape index: {}]
  %s13 = inlined_call_operand.vmem [shape: f32[3,32], index: 13, kind: output, shape index: {}]
  %s14 = sld [smem:[#allocation0]]
  $region62: #{clip_inference.3} parent=0
    _
  %s16 = ssub.s32 1, %s14
  %s17 = scalar_select 0, %s16, %s14
  // Predicated region
  $region2: #{clip_inference.3} parent=0 // pred_check
    _
  $region3: #{clip_inference.3} parent=0 // pred_check_branch
    %19 = sbr.rel (0) target = $region5
  $region4: #{clip_inference.3} parent=0 // pred_region
    _
  $region5: #{clip_inference.3} parent=0 // pred_fallthru
    _
  // Predicated region
  $region6: #{clip_inference.3} parent=0 // pred_check
    _
  $region7: #{clip_inference.3} parent=0 // pred_check_branch
    %21 = sbr.rel (0) target = $region9
  $region8: #{clip_inference.3} parent=0 // pred_region
    _
  $region9: #{clip_inference.3} parent=0 // pred_fallthru
    _
  // Predicated region
  $region10: #{clip_inference.3} parent=0 // pred_check
    _
  $region11: #{clip_inference.3} parent=0 // pred_check_branch
    %23 = sbr.rel (0) target = $region13
  $region12: #{clip_inference.3} parent=0 // pred_region
    _
  $region13: #{clip_inference.3} parent=0 // pred_fallthru
    _
  // Predicated region
  $region14: #{clip_inference.3} parent=0 // pred_check
    _
  $region15: #{clip_inference.3} parent=0 // pred_check_branch
    %25 = sbr.rel (0) target = $region17
  $region16: #{clip_inference.3} parent=0 // pred_region
    _
  $region17: #{clip_inference.3} parent=0 // pred_fallthru
    _
  // Predicated region
  $region18: #{clip_inference.3} parent=0 // pred_check
    _
  $region19: #{clip_inference.3} parent=0 // pred_check_branch
    %27 = sbr.rel (0) target = $region21
  $region20: #{clip_inference.3} parent=0 // pred_region
    _
  $region21: #{clip_inference.3} parent=0 // pred_fallthru
    _
  // Predicated region
  $region22: #{clip_inference.3} parent=0 // pred_check
    _
  $region23: #{clip_inference.3} parent=0 // pred_check_branch
    %29 = sbr.rel (0) target = $region25
  $region24: #{clip_inference.3} parent=0 // pred_region
    _
  $region25: #{clip_inference.3} parent=0 // pred_fallthru
    _
  // Predicated region
  $region26: #{clip_inference.3} parent=0 // pred_check
    _
  $region27: #{clip_inference.3} parent=0 // pred_check_branch
    %31 = sbr.rel (0) target = $region29
  $region28: #{clip_inference.3} parent=0 // pred_region
    _
  $region29: #{clip_inference.3} parent=0 // pred_fallthru
    _
  // Predicated region
  $region30: #{clip_inference.3} parent=0 // pred_check
    _
  $region31: #{clip_inference.3} parent=0 // pred_check_branch
    %33 = sbr.rel (0) target = $region33
  $region32: #{clip_inference.3} parent=0 // pred_region
    _
  $region33: #{clip_inference.3} parent=0 // pred_fallthru
    _
  // Predicated region
  $region34: #{clip_inference.3} parent=0 // pred_check
    _
  $region35: #{clip_inference.3} parent=0 // pred_check_branch
    %35 = sbr.rel (0) target = $region37
  $region36: #{clip_inference.3} parent=0 // pred_region
    _
  $region37: #{clip_inference.3} parent=0 // pred_fallthru
    _
  // Predicated region
  $region38: #{clip_inference.3} parent=0 // pred_check
    _
  $region39: #{clip_inference.3} parent=0 // pred_check_branch
    %37 = sbr.rel (0) target = $region41
  $region40: #{clip_inference.3} parent=0 // pred_region
    _
  $region41: #{clip_inference.3} parent=0 // pred_fallthru
    _
  // Predicated region
  $region42: #{clip_inference.3} parent=0 // pred_check
    _
  $region43: #{clip_inference.3} parent=0 // pred_check_branch
    %39 = sbr.rel (0) target = $region45
  $region44: #{clip_inference.3} parent=0 // pred_region
    _
  $region45: #{clip_inference.3} parent=0 // pred_fallthru
    _
  // Predicated region
  $region46: #{clip_inference.3} parent=0 // pred_check
    _
  $region47: #{clip_inference.3} parent=0 // pred_check_branch
    %41 = sbr.rel (0) target = $region49
  $region48: #{clip_inference.3} parent=0 // pred_region
    _
  $region49: #{clip_inference.3} parent=0 // pred_fallthru
    _
  // Predicated region
  $region50: #{clip_inference.3} parent=0 // pred_check
    _
  $region51: #{clip_inference.3} parent=0 // pred_check_branch
    %43 = sbr.rel (0) target = $region53
  $region52: #{clip_inference.3} parent=0 // pred_region
    _
  $region53: #{clip_inference.3} parent=0 // pred_fallthru
    _
  %v45 = vld [vmem:[%s0] sm:$0xff]
  %v46 = vld [vmem:[%s0 + $0x8] sm:$0xff]
  %v47 = vld [vmem:[%s0 + $0x10] sm:$0xff]
  %v48 = vld [vmem:[%s1] sm:$0xff]
  %v49 = vld [vmem:[%s1 + $0x8] sm:$0xff]
  %v50 = vld [vmem:[%s1 + $0x10] sm:$0xff]
  %v51 = vadd.f32 %v45, %v48
  %v52 = vadd.f32 %v46, %v49
  %v53 = vadd.f32 %v47, %v50
  %v54 = vlaneseq
  %v55 = vshrl.u32 %v54, 7
  %v56 = vadd.s32 %v55, 8
  %v57 = vadd.s32 %v55, 16
  %v58 = vlaneseq
  %v59 = vand.u32 %v58, 127
  %vm60 = vcmp.ge.s32.totalorder %v55, 0
  %vm61 = vcmp.ge.s32.totalorder %v56, 0
  %vm62 = vcmp.ge.s32.totalorder %v57, 0
  %vm63 = vcmp.lt.s32.totalorder %v55, 8
  %vm64 = vcmp.lt.s32.totalorder %v56, 8
  %vm65 = vcmp.lt.s32.totalorder %v57, 8
  %vm66 = vmand %vm60, %vm63
  %vm67 = vmand %vm61, %vm64
  %vm68 = vmand %vm62, %vm65
  %vm69 = vcmp.ge.s32.totalorder %v59, 0
  %vm70 = vcmp.lt.s32.totalorder %v59, 8
  %vm71 = vmand %vm69, %vm70
  %vm72 = vmand %vm66, %vm71
  %vm73 = vmand %vm67, %vm71
  %vm74 = vmand %vm68, %vm71
  %vm75 = vcmp.ge.s32.totalorder %v55, 8
  %vm76 = vcmp.ge.s32.totalorder %v56, 8
  %vm77 = vcmp.ge.s32.totalorder %v57, 8
  %vm78 = vcmp.lt.s32.totalorder %v55, 16
  %vm79 = vcmp.lt.s32.totalorder %v56, 16
  %vm80 = vcmp.lt.s32.totalorder %v57, 16
  %vm81 = vmand %vm75, %vm78
  %vm82 = vmand %vm76, %vm79
  %vm83 = vmand %vm77, %vm80
  %vm84 = vcmp.ge.s32.totalorder %v59, 8
  %vm85 = vcmp.lt.s32.totalorder %v59, 16
  %vm86 = vmand %vm84, %vm85
  %vm87 = vmand %vm81, %vm86
  %vm88 = vmand %vm82, %vm86
  %vm89 = vmand %vm83, %vm86
  %vm90 = vmor %vm72, %vm87
  %vm91 = vmor %vm73, %vm88
  %vm92 = vmor %vm74, %vm89
  %vm93 = vcmp.ge.s32.totalorder %v55, 16
  %vm94 = vcmp.ge.s32.totalorder %v56, 16
  %vm95 = vcmp.ge.s32.totalorder %v57, 16
  %vm96 = vcmp.lt.s32.totalorder %v55, 24
  %vm97 = vcmp.lt.s32.totalorder %v56, 24
  %vm98 = vcmp.lt.s32.totalorder %v57, 24
  %vm99 = vmand %vm93, %vm96
  %vm100 = vmand %vm94, %vm97
  %vm101 = vmand %vm95, %vm98
  %vm102 = vcmp.ge.s32.totalorder %v59, 16
  %vm103 = vcmp.lt.s32.totalorder %v59, 24
  %vm104 = vmand %vm102, %vm103
  %vm105 = vmand %vm99, %vm104
  %vm106 = vmand %vm100, %vm104
  %vm107 = vmand %vm101, %vm104
  %vm108 = vmor %vm90, %vm105
  %vm109 = vmor %vm91, %vm106
  %vm110 = vmor %vm92, %vm107
  %vm111 = vcmp.le.s32.totalorder %v59, %v55
  %vm112 = vcmp.le.s32.totalorder %v59, %v56
  %vm113 = vcmp.le.s32.totalorder %v59, %v57
  %vm114 = vmand %vm108, %vm111
  %vm115 = vmand %vm109, %vm112
  %vm116 = vmand %vm110, %vm113
  %v117 = vsel %vm114, 0.0, -1e+09
  %v118 = vsel %vm115, 0.0, -1e+09
  %v119 = vsel %vm116, 0.0, -1e+09
  %v120 = vld [vmem:[%s3] sm:$0x1]
  %s121 = scalar_lea.vmem %s3, 1
  %v122 = vld [vmem:[%s121] sm:$0x1]
  %s123 = scalar_lea.vmem %s3, 2
  %v124 = vld [vmem:[%s123] sm:$0x1]
  %s125 = scalar_lea.vmem %s3, 3
  %v126 = vld [vmem:[%s125] sm:$0x1]
  %vm127 = vcmask 261120
  %v128 = vsel %vm127, %v51, 0.0
  %129 = vadd.xlane.f32.xlu0 %v128
  %v130 = vpop.xlane.xlu0 %129
  %v131 = vsel %vm127, %v52, 0.0
  %132 = vadd.xlane.f32.xlu0 %v131
  %v133 = vpop.xlane.xlu0 %132
  %v134 = vsel %vm127, %v53, 0.0
  %135 = vadd.xlane.f32.xlu0 %v134
  %v136 = vpop.xlane.xlu0 %135
  %v137 = vrcp.pop 32.0
  %v138 = vmul.f32 %v130, %v137
  %v139 = vmul.f32 %v133, %v137
  %v140 = vmul.f32 %v136, %v137
  %v141 = vsub.f32 %v51, %v138
  %v142 = vsub.f32 %v52, %v139
  %v143 = vsub.f32 %v53, %v140
  %v144 = vmul.f32 %v141, %v141
  %v145 = vmul.f32 %v142, %v142
  %v146 = vmul.f32 %v143, %v143
  %v147 = vsel %vm127, %v144, 0.0
  %148 = vadd.xlane.f32.xlu0 %v147
  %v149 = vpop.xlane.xlu0 %148
  %v150 = vsel %vm127, %v145, 0.0
  %151 = vadd.xlane.f32.xlu0 %v150
  %v152 = vpop.xlane.xlu0 %151
  %v153 = vsel %vm127, %v146, 0.0
  %154 = vadd.xlane.f32.xlu0 %v153
  %v155 = vpop.xlane.xlu0 %154
  %v156 = vmul.f32 %v149, %v137
  %v157 = vmul.f32 %v152, %v137
  %v158 = vmul.f32 %v155, %v137
  %v159 = vadd.f32 %v156, 1e-05
  %v160 = vadd.f32 %v157, 1e-05
  %v161 = vadd.f32 %v158, 1e-05
  %v162 = vrsqrt.pop %v159
  %v163 = vrsqrt.pop %v160
  %v164 = vrsqrt.pop %v161
  %v165 = vmul.f32 %v141, %v162
  %v166 = vmul.f32 %v142, %v163
  %v167 = vmul.f32 %v143, %v164
  %v169 = vlaneseq
  %v170 = vshrl.u32 %v169, 7
  %v171 = vsub.s32 0, %v170
  %v172 = vrot.slane %v120, %v171
  %v174 = vmul.f32 %v165, %v172
  %v175 = vmul.f32 %v166, %v172
  %v176 = vmul.f32 %v167, %v172
  %v178 = vlaneseq
  %v179 = vshrl.u32 %v178, 7
  %v180 = vsub.s32 0, %v179
  %v181 = vrot.slane %v122, %v180
  %v183 = vadd.f32 %v174, %v181
  %v184 = vadd.f32 %v175, %v181
  %v185 = vadd.f32 %v176, %v181
  %v186 = vpack.c.bf16 %v184, %v183
  %v187 = vpack.c.bf16 %v185, %v185
  %v188 = vld [vmem:[%s4] sm:$0xf]
  %v189 = vld [vmem:[%s4 + $0x4] sm:$0xf]
  %v190 = vld [vmem:[%s4 + $0x8] sm:$0xf]
  %v191 = vld [vmem:[%s4 + $0xc] sm:$0xf]
  %v192 = vld [vmem:[%s5] sm:$0x1]
  %v194 = vlaneseq
  %v195 = vshrl.u32 %v194, 7
  %v196 = vsub.s32 0, %v195
  %v197 = vrot.slane %v192, %v196
  %v203 = vunpack.c.l.b16 %v188
  %v204 = vunpack.c.l.b16 %v189
  %v205 = vunpack.c.l.b16 %v190
  %v206 = vunpack.c.l.b16 %v191
  %v207 = vpack.c.b16 %v204, %v203
  %v208 = vpack.c.b16 %v206, %v205
  %v212 = vsel %vm127, %v186, 0
  %v215 = vsel %vm127, %v187, 0
  %217 = vmatprep.subr.bf16.mxu0 0
  %218 = vmatpush1.bf16.msra.mxu0 0
  %219 = vmatprep.subr.bf16.mxu0 0
  %220 = vmatpush1.bf16.msra.mxu0 0
  %221 = vmatprep.subr.bf16.mxu0 0
  %222 = vmatpush1.bf16.msra.mxu0 0
  %223 = vmatprep.subr.bf16.mxu0 0
  %224 = vmatpush1.bf16.msra.mxu0 0
  %225 = vmatprep.subr.bf16.mxu0 0
  %226 = vmatpush1.bf16.msra.mxu0 0
  %227 = vmatprep.subr.bf16.mxu0 0
  %228 = vmatpush1.bf16.msra.mxu0 0
  %229 = vmatprep.subr.bf16.mxu0 0
  %230 = vmatpush1.bf16.msra.mxu0 %v208
  %231 = vmatprep.subr.bf16.mxu0 0
  %232 = vmatpush1.bf16.msra.mxu0 %v207
  %233 = vmatprep.subr.bf16.mxu0 0
  %234 = vmatpush2.bf16.msra.mxu0 0
  %235 = vmatprep.subr.bf16.mxu0 0
  %236 = vmatpush2.bf16.msra.mxu0 0
  %237 = vmatprep.subr.bf16.mxu0 0
  %238 = vmatpush2.bf16.msra.mxu0 0
  %239 = vmatprep.subr.bf16.mxu0 0
  %240 = vmatpush2.bf16.msra.mxu0 0
  %241 = vmatprep.subr.bf16.mxu0 0
  %242 = vmatpush2.bf16.msra.mxu0 0
  %243 = vmatprep.subr.bf16.mxu0 0
  %244 = vmatpush2.bf16.msra.mxu0 0
  %245 = vmatprep.subr.bf16.mxu0 0
  %246 = vmatpush2.bf16.msra.mxu0 0
  %247 = vmatprep.subr.bf16.mxu0 0
  %248 = vmatpush2.bf16.msra.mxu0 0
  %249 = vmatprep.mubr.bf16.mxu0 0
  %250 = vmatmul.mubr.bf16.gmra.mxu0 %v212
  %v251 = vpop.f32.mrf.mxu0
  %v252 = vadd.f32 %v197, %v251
  %v253 = vpop.f32.mrf.mxu0
  %v254 = vpop.f32.mrf.mxu0
  %v255 = vadd.f32 %v197, %v254
  %v256 = vpop.f32.mrf.mxu0
  %257 = vmatprep.mubr.bf16.mxu0 0
  %258 = vmatmul.mubr.bf16.gmra.mxu0 %v215
  %v259 = vpop.f32.mrf.mxu0
  %v260 = vadd.f32 %v197, %v259
  %v261 = vpop.f32.mrf.mxu0
  %v262 = vpop.f32.mrf.mxu0
  %v263 = vpop.f32.mrf.mxu0
  %264 = vdwg.mxu0
  %268 = vrot.lane.b32.xlu0 %v252, 96
  %v269 = vpop.permute.xlu0 %268
  %270 = vrot.lane.b32.xlu0 %v255, 96
  %v271 = vpop.permute.xlu0 %270
  %272 = vrot.lane.b32.xlu0 %v260, 96
  %v273 = vpop.permute.xlu0 %272
  %vm274 = vcmask 64512
  %v275 = vsel %vm274, %v252, 0
  %v277 = vsel %vm274, %v255, 0
  %v279 = vsel %vm274, %v260, 0
  %v281 = vsel %vm274, %v269, 0
  %v283 = vsel %vm274, %v271, 0
  %v285 = vsel %vm274, %v273, 0
  %287 = vmatprep.subr.mxu0 0.0
  %288 = vmatpush1.xpose.msra.mxu0 0.0
  %289 = vmatprep.subr.mxu0 0.0
  %290 = vmatpush1.xpose.msra.mxu0 0.0
  %291 = vmatprep.subr.mxu0 0.0
  %292 = vmatpush1.xpose.msra.mxu0 0.0
  %293 = vmatprep.subr.mxu0 0.0
  %294 = vmatpush1.xpose.msra.mxu0 0.0
  %295 = vmatprep.subr.mxu0 0.0
  %296 = vmatpush1.xpose.msra.mxu0 0.0
  %297 = vmatprep.subr.mxu0 0.0
  %298 = vmatpush1.xpose.msra.mxu0 0.0
  %299 = vmatprep.subr.mxu0 0.0
  %300 = vmatpush1.xpose.msra.mxu0 0.0
  %301 = vmatprep.subr.mxu0 0.0
  %302 = vmatpush1.xpose.msra.mxu0 0.0
  %303 = vmatprep.subr.mxu0 0.0
  %304 = vmatpush1.xpose.msra.mxu0 0.0
  %305 = vmatprep.subr.mxu0 0.0
  %306 = vmatpush1.xpose.msra.mxu0 0.0
  %307 = vmatprep.subr.mxu0 0.0
  %308 = vmatpush1.xpose.msra.mxu0 0.0
  %309 = vmatprep.subr.mxu0 0.0
  %310 = vmatpush1.xpose.msra.mxu0 0.0
  %311 = vmatprep.subr.mxu0 0.0
  %312 = vmatpush1.xpose.msra.mxu0 0.0
  %313 = vmatprep.subr.mxu0 0.0
  %314 = vmatpush1.xpose.msra.mxu0 %v285
  %315 = vmatprep.subr.mxu0 0.0
  %316 = vmatpush1.xpose.msra.mxu0 %v283
  %317 = vmatprep.subr.mxu0 0.0
  %318 = vmatpush1.xpose.msra.mxu0 %v281
  %319 = vmatprep.subr.mxu0 0.0
  %320 = vmatpush2.xpose.msra.mxu0 0.0
  %321 = vmatprep.subr.mxu0 0.0
  %322 = vmatpush2.xpose.msra.mxu0 0.0
  %323 = vmatprep.subr.mxu0 0.0
  %324 = vmatpush2.xpose.msra.mxu0 0.0
  %325 = vmatprep.subr.mxu0 0.0
  %326 = vmatpush2.xpose.msra.mxu0 0.0
  %327 = vmatprep.subr.mxu0 0.0
  %328 = vmatpush2.xpose.msra.mxu0 0.0
  %329 = vmatprep.subr.mxu0 0.0
  %330 = vmatpush2.xpose.msra.mxu0 0.0
  %331 = vmatprep.subr.mxu0 0.0
  %332 = vmatpush2.xpose.msra.mxu0 0.0
  %333 = vmatprep.subr.mxu0 0.0
  %334 = vmatpush2.xpose.msra.mxu0 0.0
  %335 = vmatprep.subr.mxu0 0.0
  %336 = vmatpush2.xpose.msra.mxu0 0.0
  %337 = vmatprep.subr.mxu0 0.0
  %338 = vmatpush2.xpose.msra.mxu0 0.0
  %339 = vmatprep.subr.mxu0 0.0
  %340 = vmatpush2.xpose.msra.mxu0 0.0
  %341 = vmatprep.subr.mxu0 0.0
  %342 = vmatpush2.xpose.msra.mxu0 0.0
  %343 = vmatprep.subr.mxu0 0.0
  %344 = vmatpush2.xpose.msra.mxu0 0.0
  %345 = vmatprep.subr.mxu0 0.0
  %346 = vmatpush2.xpose.msra.mxu0 0.0
  %347 = vmatprep.subr.mxu0 0.0
  %348 = vmatpush2.xpose.msra.mxu0 0.0
  %349 = vmatprep.subr.mxu0 0.0
  %350 = vmatpush2.xpose.msra.mxu0 0.0
  %351 = vmatprep.mubr.f32.mxu0 0.0
  %352 = vmatmul.mubr.f32.gmra.mxu0 %v275
  %v353 = vpop.f32.mrf.mxu0
  %v354 = vadd.f32 0.0, %v353
  %v355 = vpop.f32.mrf.mxu0
  %356 = vmatprep.mubr.f32.mxu0 0.0
  %357 = vmatmul.mubr.f32.gmra.mxu0 %v277
  %v358 = vpop.f32.mrf.mxu0
  %v359 = vadd.f32 0.0, %v358
  %v360 = vpop.f32.mrf.mxu0
  %361 = vmatprep.mubr.f32.mxu0 0.0
  %362 = vmatmul.mubr.f32.gmra.mxu0 %v279
  %v363 = vpop.f32.mrf.mxu0
  %v364 = vadd.f32 0.0, %v363
  %v365 = vpop.f32.mrf.mxu0
  %366 = vdwg.mxu0
  %v367 = vmul.f32 %v354, 0.35355338
  %v368 = vmul.f32 %v359, 0.35355338
  %v369 = vmul.f32 %v364, 0.35355338
  %v370 = vadd.f32 %v367, %v117
  %v371 = vadd.f32 %v368, %v118
  %v372 = vadd.f32 %v369, %v119
  %vm373 = vcmask 195584
  %v374 = vsel %vm373, %v370, -inf
  %375 = vmax.xlane.f32.xlu0 %v374
  %v376 = vpop.xlane.xlu0 %375
  %v377 = vsel %vm373, %v371, -inf
  %378 = vmax.xlane.f32.xlu0 %v377
  %v379 = vpop.xlane.xlu0 %378
  %v380 = vsel %vm373, %v372, -inf
  %381 = vmax.xlane.f32.xlu0 %v380
  %v382 = vpop.xlane.xlu0 %381
  %v383 = vsub.f32 %v370, %v376
  %v384 = vsub.f32 %v371, %v379
  %v385 = vsub.f32 %v372, %v382
  %v386 = vmul.f32 %v383, 1.442695
  %v387 = vpow.pop %v386
  %v388 = vmul.f32 %v384, 1.442695
  %v389 = vpow.pop %v388
  %v390 = vmul.f32 %v385, 1.442695
  %v391 = vpow.pop %v390
  %v392 = vsel %vm373, %v387, 0.0
  %393 = vadd.xlane.f32.xlu0 %v392
  %v394 = vpop.xlane.xlu0 %393
  %v395 = vsel %vm373, %v389, 0.0
  %396 = vadd.xlane.f32.xlu0 %v395
  %v397 = vpop.xlane.xlu0 %396
  %v398 = vsel %vm373, %v391, 0.0
  %399 = vadd.xlane.f32.xlu0 %v398
  %v400 = vpop.xlane.xlu0 %399
  %v401 = vrcp.pop %v394
  %v402 = vrcp.pop %v397
  %v403 = vrcp.pop %v400
  %v404 = vmul.f32 %v387, %v401
  %v405 = vmul.f32 %v389, %v402
  %v406 = vmul.f32 %v391, %v403
  %407 = vrot.lane.b32.xlu0 %v252, 64
  %v408 = vpop.permute.xlu0 %407
  %409 = vrot.lane.b32.xlu0 %v255, 64
  %v410 = vpop.permute.xlu0 %409
  %411 = vrot.lane.b32.xlu0 %v260, 64
  %v412 = vpop.permute.xlu0 %411
  %v417 = vsel %vm373, %v404, 0
  %v420 = vsel %vm373, %v405, 0
  %v423 = vsel %vm373, %v406, 0
  %425 = vmatprep.subr.mxu0 0.0
  %426 = vmatpush1.msra.mxu0 0.0
  %427 = vmatprep.subr.mxu0 0.0
  %428 = vmatpush1.msra.mxu0 0.0
  %429 = vmatprep.subr.mxu0 0.0
  %430 = vmatpush1.msra.mxu0 0.0
  %431 = vmatprep.subr.mxu0 0.0
  %432 = vmatpush1.msra.mxu0 0.0
  %433 = vmatprep.subr.mxu0 0.0
  %434 = vmatpush1.msra.mxu0 0.0
  %435 = vmatprep.subr.mxu0 0.0
  %436 = vmatpush1.msra.mxu0 0.0
  %437 = vmatprep.subr.mxu0 0.0
  %438 = vmatpush1.msra.mxu0 0.0
  %439 = vmatprep.subr.mxu0 0.0
  %440 = vmatpush1.msra.mxu0 0.0
  %441 = vmatprep.subr.mxu0 0.0
  %442 = vmatpush1.msra.mxu0 0.0
  %443 = vmatprep.subr.mxu0 0.0
  %444 = vmatpush1.msra.mxu0 0.0
  %445 = vmatprep.subr.mxu0 0.0
  %446 = vmatpush1.msra.mxu0 0.0
  %447 = vmatprep.subr.mxu0 0.0
  %448 = vmatpush1.msra.mxu0 0.0
  %449 = vmatprep.subr.mxu0 0.0
  %450 = vmatpush1.msra.mxu0 0.0
  %451 = vmatprep.subr.mxu0 0.0
  %452 = vmatpush1.msra.mxu0 %v412
  %453 = vmatprep.subr.mxu0 0.0
  %454 = vmatpush1.msra.mxu0 %v410
  %455 = vmatprep.subr.mxu0 0.0
  %456 = vmatpush1.msra.mxu0 %v408
  %457 = vmatprep.subr.mxu0 0.0
  %458 = vmatpush2.msra.mxu0 0.0
  %459 = vmatprep.subr.mxu0 0.0
  %460 = vmatpush2.msra.mxu0 0.0
  %461 = vmatprep.subr.mxu0 0.0
  %462 = vmatpush2.msra.mxu0 0.0
  %463 = vmatprep.subr.mxu0 0.0
  %464 = vmatpush2.msra.mxu0 0.0
  %465 = vmatprep.subr.mxu0 0.0
  %466 = vmatpush2.msra.mxu0 0.0
  %467 = vmatprep.subr.mxu0 0.0
  %468 = vmatpush2.msra.mxu0 0.0
  %469 = vmatprep.subr.mxu0 0.0
  %470 = vmatpush2.msra.mxu0 0.0
  %471 = vmatprep.subr.mxu0 0.0
  %472 = vmatpush2.msra.mxu0 0.0
  %473 = vmatprep.subr.mxu0 0.0
  %474 = vmatpush2.msra.mxu0 0.0
  %475 = vmatprep.subr.mxu0 0.0
  %476 = vmatpush2.msra.mxu0 0.0
  %477 = vmatprep.subr.mxu0 0.0
  %478 = vmatpush2.msra.mxu0 0.0
  %479 = vmatprep.subr.mxu0 0.0
  %480 = vmatpush2.msra.mxu0 0.0
  %481 = vmatprep.subr.mxu0 0.0
  %482 = vmatpush2.msra.mxu0 0.0
  %483 = vmatprep.subr.mxu0 0.0
  %484 = vmatpush2.msra.mxu0 0.0
  %485 = vmatprep.subr.mxu0 0.0
  %486 = vmatpush2.msra.mxu0 0.0
  %487 = vmatprep.subr.mxu0 0.0
  %488 = vmatpush2.msra.mxu0 0.0
  %489 = vmatprep.mubr.f32.mxu0 0.0
  %490 = vmatmul.mubr.f32.gmra.mxu0 %v417
  %v491 = vpop.f32.mrf.mxu0
  %v492 = vadd.f32 0.0, %v491
  %v493 = vpop.f32.mrf.mxu0
  %494 = vmatprep.mubr.f32.mxu0 0.0
  %495 = vmatmul.mubr.f32.gmra.mxu0 %v420
  %v496 = vpop.f32.mrf.mxu0
  %v497 = vadd.f32 0.0, %v496
  %v498 = vpop.f32.mrf.mxu0
  %499 = vmatprep.mubr.f32.mxu0 0.0
  %500 = vmatmul.mubr.f32.gmra.mxu0 %v423
  %v501 = vpop.f32.mrf.mxu0
  %v502 = vadd.f32 0.0, %v501
  %v503 = vpop.f32.mrf.mxu0
  %504 = vdwg.mxu0
  %505 = vrot.lane.b32.xlu0 %v252, 120
  %v506 = vpop.permute.xlu0 %505
  %507 = vrot.lane.b32.xlu0 %v255, 120
  %v508 = vpop.permute.xlu0 %507
  %509 = vrot.lane.b32.xlu0 %v260, 120
  %v510 = vpop.permute.xlu0 %509
  %511 = vrot.lane.b32.xlu0 %v252, 88
  %v512 = vpop.permute.xlu0 %511
  %513 = vrot.lane.b32.xlu0 %v255, 88
  %v514 = vpop.permute.xlu0 %513
  %515 = vrot.lane.b32.xlu0 %v260, 88
  %v516 = vpop.permute.xlu0 %515
  %v517 = vsel %vm274, %v506, 0
  %v519 = vsel %vm274, %v508, 0
  %v521 = vsel %vm274, %v510, 0
  %v523 = vsel %vm274, %v512, 0
  %v525 = vsel %vm274, %v514, 0
  %v527 = vsel %vm274, %v516, 0
  %529 = vmatprep.subr.mxu0 0.0
  %530 = vmatpush1.xpose.msra.mxu0 0.0
  %531 = vmatprep.subr.mxu0 0.0
  %532 = vmatpush1.xpose.msra.mxu0 0.0
  %533 = vmatprep.subr.mxu0 0.0
  %534 = vmatpush1.xpose.msra.mxu0 0.0
  %535 = vmatprep.subr.mxu0 0.0
  %536 = vmatpush1.xpose.msra.mxu0 0.0
  %537 = vmatprep.subr.mxu0 0.0
  %538 = vmatpush1.xpose.msra.mxu0 0.0
  %539 = vmatprep.subr.mxu0 0.0
  %540 = vmatpush1.xpose.msra.mxu0 0.0
  %541 = vmatprep.subr.mxu0 0.0
  %542 = vmatpush1.xpose.msra.mxu0 0.0
  %543 = vmatprep.subr.mxu0 0.0
  %544 = vmatpush1.xpose.msra.mxu0 0.0
  %545 = vmatprep.subr.mxu0 0.0
  %546 = vmatpush1.xpose.msra.mxu0 0.0
  %547 = vmatprep.subr.mxu0 0.0
  %548 = vmatpush1.xpose.msra.mxu0 0.0
  %549 = vmatprep.subr.mxu0 0.0
  %550 = vmatpush1.xpose.msra.mxu0 0.0
  %551 = vmatprep.subr.mxu0 0.0
  %552 = vmatpush1.xpose.msra.mxu0 0.0
  %553 = vmatprep.subr.mxu0 0.0
  %554 = vmatpush1.xpose.msra.mxu0 0.0
  %555 = vmatprep.subr.mxu0 0.0
  %556 = vmatpush1.xpose.msra.mxu0 %v527
  %557 = vmatprep.subr.mxu0 0.0
  %558 = vmatpush1.xpose.msra.mxu0 %v525
  %559 = vmatprep.subr.mxu0 0.0
  %560 = vmatpush1.xpose.msra.mxu0 %v523
  %561 = vmatprep.subr.mxu0 0.0
  %562 = vmatpush2.xpose.msra.mxu0 0.0
  %563 = vmatprep.subr.mxu0 0.0
  %564 = vmatpush2.xpose.msra.mxu0 0.0
  %565 = vmatprep.subr.mxu0 0.0
  %566 = vmatpush2.xpose.msra.mxu0 0.0
  %567 = vmatprep.subr.mxu0 0.0
  %568 = vmatpush2.xpose.msra.mxu0 0.0
  %569 = vmatprep.subr.mxu0 0.0
  %570 = vmatpush2.xpose.msra.mxu0 0.0
  %571 = vmatprep.subr.mxu0 0.0
  %572 = vmatpush2.xpose.msra.mxu0 0.0
  %573 = vmatprep.subr.mxu0 0.0
  %574 = vmatpush2.xpose.msra.mxu0 0.0
  %575 = vmatprep.subr.mxu0 0.0
  %576 = vmatpush2.xpose.msra.mxu0 0.0
  %577 = vmatprep.subr.mxu0 0.0
  %578 = vmatpush2.xpose.msra.mxu0 0.0
  %579 = vmatprep.subr.mxu0 0.0
  %580 = vmatpush2.xpose.msra.mxu0 0.0
  %581 = vmatprep.subr.mxu0 0.0
  %582 = vmatpush2.xpose.msra.mxu0 0.0
  %583 = vmatprep.subr.mxu0 0.0
  %584 = vmatpush2.xpose.msra.mxu0 0.0
  %585 = vmatprep.subr.mxu0 0.0
  %586 = vmatpush2.xpose.msra.mxu0 0.0
  %587 = vmatprep.subr.mxu0 0.0
  %588 = vmatpush2.xpose.msra.mxu0 0.0
  %589 = vmatprep.subr.mxu0 0.0
  %590 = vmatpush2.xpose.msra.mxu0 0.0
  %591 = vmatprep.subr.mxu0 0.0
  %592 = vmatpush2.xpose.msra.mxu0 0.0
  %593 = vmatprep.mubr.f32.mxu0 0.0
  %594 = vmatmul.mubr.f32.gmra.mxu0 %v517
  %v595 = vpop.f32.mrf.mxu0
  %v596 = vadd.f32 0.0, %v595
  %v597 = vpop.f32.mrf.mxu0
  %598 = vmatprep.mubr.f32.mxu0 0.0
  %599 = vmatmul.mubr.f32.gmra.mxu0 %v519
  %v600 = vpop.f32.mrf.mxu0
  %v601 = vadd.f32 0.0, %v600
  %v602 = vpop.f32.mrf.mxu0
  %603 = vmatprep.mubr.f32.mxu0 0.0
  %604 = vmatmul.mubr.f32.gmra.mxu0 %v521
  %v605 = vpop.f32.mrf.mxu0
  %v606 = vadd.f32 0.0, %v605
  %v607 = vpop.f32.mrf.mxu0
  %608 = vdwg.mxu0
  %v609 = vmul.f32 %v596, 0.35355338
  %v610 = vmul.f32 %v601, 0.35355338
  %v611 = vmul.f32 %v606, 0.35355338
  %v612 = vadd.f32 %v609, %v117
  %v613 = vadd.f32 %v610, %v118
  %v614 = vadd.f32 %v611, %v119
  %v615 = vsel %vm373, %v612, -inf
  %616 = vmax.xlane.f32.xlu0 %v615
  %v617 = vpop.xlane.xlu0 %616
  %v618 = vsel %vm373, %v613, -inf
  %619 = vmax.xlane.f32.xlu0 %v618
  %v620 = vpop.xlane.xlu0 %619
  %v621 = vsel %vm373, %v614, -inf
  %622 = vmax.xlane.f32.xlu0 %v621
  %v623 = vpop.xlane.xlu0 %622
  %v624 = vsub.f32 %v612, %v617
  %v625 = vsub.f32 %v613, %v620
  %v626 = vsub.f32 %v614, %v623
  %v627 = vmul.f32 %v624, 1.442695
  %v628 = vpow.pop %v627
  %v629 = vmul.f32 %v625, 1.442695
  %v630 = vpow.pop %v629
  %v631 = vmul.f32 %v626, 1.442695
  %v632 = vpow.pop %v631
  %v633 = vsel %vm373, %v628, 0.0
  %634 = vadd.xlane.f32.xlu0 %v633
  %v635 = vpop.xlane.xlu0 %634
  %v636 = vsel %vm373, %v630, 0.0
  %637 = vadd.xlane.f32.xlu0 %v636
  %v638 = vpop.xlane.xlu0 %637
  %v639 = vsel %vm373, %v632, 0.0
  %640 = vadd.xlane.f32.xlu0 %v639
  %v641 = vpop.xlane.xlu0 %640
  %v642 = vrcp.pop %v635
  %v643 = vrcp.pop %v638
  %v644 = vrcp.pop %v641
  %v645 = vmul.f32 %v628, %v642
  %v646 = vmul.f32 %v630, %v643
  %v647 = vmul.f32 %v632, %v644
  %648 = vrot.lane.b32.xlu0 %v252, 56
  %v649 = vpop.permute.xlu0 %648
  %650 = vrot.lane.b32.xlu0 %v255, 56
  %v651 = vpop.permute.xlu0 %650
  %652 = vrot.lane.b32.xlu0 %v260, 56
  %v653 = vpop.permute.xlu0 %652
  %v658 = vsel %vm373, %v645, 0
  %v661 = vsel %vm373, %v646, 0
  %v664 = vsel %vm373, %v647, 0
  %666 = vmatprep.subr.mxu0 0.0
  %667 = vmatpush1.msra.mxu0 0.0
  %668 = vmatprep.subr.mxu0 0.0
  %669 = vmatpush1.msra.mxu0 0.0
  %670 = vmatprep.subr.mxu0 0.0
  %671 = vmatpush1.msra.mxu0 0.0
  %672 = vmatprep.subr.mxu0 0.0
  %673 = vmatpush1.msra.mxu0 0.0
  %674 = vmatprep.subr.mxu0 0.0
  %675 = vmatpush1.msra.mxu0 0.0
  %676 = vmatprep.subr.mxu0 0.0
  %677 = vmatpush1.msra.mxu0 0.0
  %678 = vmatprep.subr.mxu0 0.0
  %679 = vmatpush1.msra.mxu0 0.0
  %680 = vmatprep.subr.mxu0 0.0
  %681 = vmatpush1.msra.mxu0 0.0
  %682 = vmatprep.subr.mxu0 0.0
  %683 = vmatpush1.msra.mxu0 0.0
  %684 = vmatprep.subr.mxu0 0.0
  %685 = vmatpush1.msra.mxu0 0.0
  %686 = vmatprep.subr.mxu0 0.0
  %687 = vmatpush1.msra.mxu0 0.0
  %688 = vmatprep.subr.mxu0 0.0
  %689 = vmatpush1.msra.mxu0 0.0
  %690 = vmatprep.subr.mxu0 0.0
  %691 = vmatpush1.msra.mxu0 0.0
  %692 = vmatprep.subr.mxu0 0.0
  %693 = vmatpush1.msra.mxu0 %v653
  %694 = vmatprep.subr.mxu0 0.0
  %695 = vmatpush1.msra.mxu0 %v651
  %696 = vmatprep.subr.mxu0 0.0
  %697 = vmatpush1.msra.mxu0 %v649
  %698 = vmatprep.subr.mxu0 0.0
  %699 = vmatpush2.msra.mxu0 0.0
  %700 = vmatprep.subr.mxu0 0.0
  %701 = vmatpush2.msra.mxu0 0.0
  %702 = vmatprep.subr.mxu0 0.0
  %703 = vmatpush2.msra.mxu0 0.0
  %704 = vmatprep.subr.mxu0 0.0
  %705 = vmatpush2.msra.mxu0 0.0
  %706 = vmatprep.subr.mxu0 0.0
  %707 = vmatpush2.msra.mxu0 0.0
  %708 = vmatprep.subr.mxu0 0.0
  %709 = vmatpush2.msra.mxu0 0.0
  %710 = vmatprep.subr.mxu0 0.0
  %711 = vmatpush2.msra.mxu0 0.0
  %712 = vmatprep.subr.mxu0 0.0
  %713 = vmatpush2.msra.mxu0 0.0
  %714 = vmatprep.subr.mxu0 0.0
  %715 = vmatpush2.msra.mxu0 0.0
  %716 = vmatprep.subr.mxu0 0.0
  %717 = vmatpush2.msra.mxu0 0.0
  %718 = vmatprep.subr.mxu0 0.0
  %719 = vmatpush2.msra.mxu0 0.0
  %720 = vmatprep.subr.mxu0 0.0
  %721 = vmatpush2.msra.mxu0 0.0
  %722 = vmatprep.subr.mxu0 0.0
  %723 = vmatpush2.msra.mxu0 0.0
  %724 = vmatprep.subr.mxu0 0.0
  %725 = vmatpush2.msra.mxu0 0.0
  %726 = vmatprep.subr.mxu0 0.0
  %727 = vmatpush2.msra.mxu0 0.0
  %728 = vmatprep.subr.mxu0 0.0
  %729 = vmatpush2.msra.mxu0 0.0
  %730 = vmatprep.mubr.f32.mxu0 0.0
  %731 = vmatmul.mubr.f32.gmra.mxu0 %v658
  %v732 = vpop.f32.mrf.mxu0
  %v733 = vadd.f32 0.0, %v732
  %v734 = vpop.f32.mrf.mxu0
  %735 = vmatprep.mubr.f32.mxu0 0.0
  %736 = vmatmul.mubr.f32.gmra.mxu0 %v661
  %v737 = vpop.f32.mrf.mxu0
  %v738 = vadd.f32 0.0, %v737
  %v739 = vpop.f32.mrf.mxu0
  %740 = vmatprep.mubr.f32.mxu0 0.0
  %741 = vmatmul.mubr.f32.gmra.mxu0 %v664
  %v742 = vpop.f32.mrf.mxu0
  %v743 = vadd.f32 0.0, %v742
  %v744 = vpop.f32.mrf.mxu0
  %745 = vdwg.mxu0
  %746 = vrot.lane.b32.xlu0 %v252, 112
  %v747 = vpop.permute.xlu0 %746
  %748 = vrot.lane.b32.xlu0 %v255, 112
  %v749 = vpop.permute.xlu0 %748
  %750 = vrot.lane.b32.xlu0 %v260, 112
  %v751 = vpop.permute.xlu0 %750
  %752 = vrot.lane.b32.xlu0 %v252, 80
  %v753 = vpop.permute.xlu0 %752
  %754 = vrot.lane.b32.xlu0 %v255, 80
  %v755 = vpop.permute.xlu0 %754
  %756 = vrot.lane.b32.xlu0 %v260, 80
  %v757 = vpop.permute.xlu0 %756
  %v758 = vsel %vm274, %v747, 0
  %v760 = vsel %vm274, %v749, 0
  %v762 = vsel %vm274, %v751, 0
  %v764 = vsel %vm274, %v753, 0
  %v766 = vsel %vm274, %v755, 0
  %v768 = vsel %vm274, %v757, 0
  %770 = vmatprep.subr.mxu0 0.0
  %771 = vmatpush1.xpose.msra.mxu0 0.0
  %772 = vmatprep.subr.mxu0 0.0
  %773 = vmatpush1.xpose.msra.mxu0 0.0
  %774 = vmatprep.subr.mxu0 0.0
  %775 = vmatpush1.xpose.msra.mxu0 0.0
  %776 = vmatprep.subr.mxu0 0.0
  %777 = vmatpush1.xpose.msra.mxu0 0.0
  %778 = vmatprep.subr.mxu0 0.0
  %779 = vmatpush1.xpose.msra.mxu0 0.0
  %780 = vmatprep.subr.mxu0 0.0
  %781 = vmatpush1.xpose.msra.mxu0 0.0
  %782 = vmatprep.subr.mxu0 0.0
  %783 = vmatpush1.xpose.msra.mxu0 0.0
  %784 = vmatprep.subr.mxu0 0.0
  %785 = vmatpush1.xpose.msra.mxu0 0.0
  %786 = vmatprep.subr.mxu0 0.0
  %787 = vmatpush1.xpose.msra.mxu0 0.0
  %788 = vmatprep.subr.mxu0 0.0
  %789 = vmatpush1.xpose.msra.mxu0 0.0
  %790 = vmatprep.subr.mxu0 0.0
  %791 = vmatpush1.xpose.msra.mxu0 0.0
  %792 = vmatprep.subr.mxu0 0.0
  %793 = vmatpush1.xpose.msra.mxu0 0.0
  %794 = vmatprep.subr.mxu0 0.0
  %795 = vmatpush1.xpose.msra.mxu0 0.0
  %796 = vmatprep.subr.mxu0 0.0
  %797 = vmatpush1.xpose.msra.mxu0 %v768
  %798 = vmatprep.subr.mxu0 0.0
  %799 = vmatpush1.xpose.msra.mxu0 %v766
  %800 = vmatprep.subr.mxu0 0.0
  %801 = vmatpush1.xpose.msra.mxu0 %v764
  %802 = vmatprep.subr.mxu0 0.0
  %803 = vmatpush2.xpose.msra.mxu0 0.0
  %804 = vmatprep.subr.mxu0 0.0
  %805 = vmatpush2.xpose.msra.mxu0 0.0
  %806 = vmatprep.subr.mxu0 0.0
  %807 = vmatpush2.xpose.msra.mxu0 0.0
  %808 = vmatprep.subr.mxu0 0.0
  %809 = vmatpush2.xpose.msra.mxu0 0.0
  %810 = vmatprep.subr.mxu0 0.0
  %811 = vmatpush2.xpose.msra.mxu0 0.0
  %812 = vmatprep.subr.mxu0 0.0
  %813 = vmatpush2.xpose.msra.mxu0 0.0
  %814 = vmatprep.subr.mxu0 0.0
  %815 = vmatpush2.xpose.msra.mxu0 0.0
  %816 = vmatprep.subr.mxu0 0.0
  %817 = vmatpush2.xpose.msra.mxu0 0.0
  %818 = vmatprep.subr.mxu0 0.0
  %819 = vmatpush2.xpose.msra.mxu0 0.0
  %820 = vmatprep.subr.mxu0 0.0
  %821 = vmatpush2.xpose.msra.mxu0 0.0
  %822 = vmatprep.subr.mxu0 0.0
  %823 = vmatpush2.xpose.msra.mxu0 0.0
  %824 = vmatprep.subr.mxu0 0.0
  %825 = vmatpush2.xpose.msra.mxu0 0.0
  %826 = vmatprep.subr.mxu0 0.0
  %827 = vmatpush2.xpose.msra.mxu0 0.0
  %828 = vmatprep.subr.mxu0 0.0
  %829 = vmatpush2.xpose.msra.mxu0 0.0
  %830 = vmatprep.subr.mxu0 0.0
  %831 = vmatpush2.xpose.msra.mxu0 0.0
  %832 = vmatprep.subr.mxu0 0.0
  %833 = vmatpush2.xpose.msra.mxu0 0.0
  %834 = vmatprep.mubr.f32.mxu0 0.0
  %835 = vmatmul.mubr.f32.gmra.mxu0 %v758
  %v836 = vpop.f32.mrf.mxu0
  %v837 = vadd.f32 0.0, %v836
  %v838 = vpop.f32.mrf.mxu0
  %839 = vmatprep.mubr.f32.mxu0 0.0
  %840 = vmatmul.mubr.f32.gmra.mxu0 %v760
  %v841 = vpop.f32.mrf.mxu0
  %v842 = vadd.f32 0.0, %v841
  %v843 = vpop.f32.mrf.mxu0
  %844 = vmatprep.mubr.f32.mxu0 0.0
  %845 = vmatmul.mubr.f32.gmra.mxu0 %v762
  %v846 = vpop.f32.mrf.mxu0
  %v847 = vadd.f32 0.0, %v846
  %v848 = vpop.f32.mrf.mxu0
  %849 = vdwg.mxu0
  %v850 = vmul.f32 %v837, 0.35355338
  %v851 = vmul.f32 %v842, 0.35355338
  %v852 = vmul.f32 %v847, 0.35355338
  %v853 = vadd.f32 %v850, %v117
  %v854 = vadd.f32 %v851, %v118
  %v855 = vadd.f32 %v852, %v119
  %v856 = vsel %vm373, %v853, -inf
  %857 = vmax.xlane.f32.xlu0 %v856
  %v858 = vpop.xlane.xlu0 %857
  %v859 = vsel %vm373, %v854, -inf
  %860 = vmax.xlane.f32.xlu0 %v859
  %v861 = vpop.xlane.xlu0 %860
  %v862 = vsel %vm373, %v855, -inf
  %863 = vmax.xlane.f32.xlu0 %v862
  %v864 = vpop.xlane.xlu0 %863
  %v865 = vsub.f32 %v853, %v858
  %v866 = vsub.f32 %v854, %v861
  %v867 = vsub.f32 %v855, %v864
  %v868 = vmul.f32 %v865, 1.442695
  %v869 = vpow.pop %v868
  %v870 = vmul.f32 %v866, 1.442695
  %v871 = vpow.pop %v870
  %v872 = vmul.f32 %v867, 1.442695
  %v873 = vpow.pop %v872
  %v874 = vsel %vm373, %v869, 0.0
  %875 = vadd.xlane.f32.xlu0 %v874
  %v876 = vpop.xlane.xlu0 %875
  %v877 = vsel %vm373, %v871, 0.0
  %878 = vadd.xlane.f32.xlu0 %v877
  %v879 = vpop.xlane.xlu0 %878
  %v880 = vsel %vm373, %v873, 0.0
  %881 = vadd.xlane.f32.xlu0 %v880
  %v882 = vpop.xlane.xlu0 %881
  %v883 = vrcp.pop %v876
  %v884 = vrcp.pop %v879
  %v885 = vrcp.pop %v882
  %v886 = vmul.f32 %v869, %v883
  %v887 = vmul.f32 %v871, %v884
  %v888 = vmul.f32 %v873, %v885
  %889 = vrot.lane.b32.xlu0 %v252, 48
  %v890 = vpop.permute.xlu0 %889
  %891 = vrot.lane.b32.xlu0 %v255, 48
  %v892 = vpop.permute.xlu0 %891
  %893 = vrot.lane.b32.xlu0 %v260, 48
  %v894 = vpop.permute.xlu0 %893
  %v899 = vsel %vm373, %v886, 0
  %v902 = vsel %vm373, %v887, 0
  %v905 = vsel %vm373, %v888, 0
  %907 = vmatprep.subr.mxu0 0.0
  %908 = vmatpush1.msra.mxu0 0.0
  %909 = vmatprep.subr.mxu0 0.0
  %910 = vmatpush1.msra.mxu0 0.0
  %911 = vmatprep.subr.mxu0 0.0
  %912 = vmatpush1.msra.mxu0 0.0
  %913 = vmatprep.subr.mxu0 0.0
  %914 = vmatpush1.msra.mxu0 0.0
  %915 = vmatprep.subr.mxu0 0.0
  %916 = vmatpush1.msra.mxu0 0.0
  %917 = vmatprep.subr.mxu0 0.0
  %918 = vmatpush1.msra.mxu0 0.0
  %919 = vmatprep.subr.mxu0 0.0
  %920 = vmatpush1.msra.mxu0 0.0
  %921 = vmatprep.subr.mxu0 0.0
  %922 = vmatpush1.msra.mxu0 0.0
  %923 = vmatprep.subr.mxu0 0.0
  %924 = vmatpush1.msra.mxu0 0.0
  %925 = vmatprep.subr.mxu0 0.0
  %926 = vmatpush1.msra.mxu0 0.0
  %927 = vmatprep.subr.mxu0 0.0
  %928 = vmatpush1.msra.mxu0 0.0
  %929 = vmatprep.subr.mxu0 0.0
  %930 = vmatpush1.msra.mxu0 0.0
  %931 = vmatprep.subr.mxu0 0.0
  %932 = vmatpush1.msra.mxu0 0.0
  %933 = vmatprep.subr.mxu0 0.0
  %934 = vmatpush1.msra.mxu0 %v894
  %935 = vmatprep.subr.mxu0 0.0
  %936 = vmatpush1.msra.mxu0 %v892
  %937 = vmatprep.subr.mxu0 0.0
  %938 = vmatpush1.msra.mxu0 %v890
  %939 = vmatprep.subr.mxu0 0.0
  %940 = vmatpush2.msra.mxu0 0.0
  %941 = vmatprep.subr.mxu0 0.0
  %942 = vmatpush2.msra.mxu0 0.0
  %943 = vmatprep.subr.mxu0 0.0
  %944 = vmatpush2.msra.mxu0 0.0
  %945 = vmatprep.subr.mxu0 0.0
  %946 = vmatpush2.msra.mxu0 0.0
  %947 = vmatprep.subr.mxu0 0.0
  %948 = vmatpush2.msra.mxu0 0.0
  %949 = vmatprep.subr.mxu0 0.0
  %950 = vmatpush2.msra.mxu0 0.0
  %951 = vmatprep.subr.mxu0 0.0
  %952 = vmatpush2.msra.mxu0 0.0
  %953 = vmatprep.subr.mxu0 0.0
  %954 = vmatpush2.msra.mxu0 0.0
  %955 = vmatprep.subr.mxu0 0.0
  %956 = vmatpush2.msra.mxu0 0.0
  %957 = vmatprep.subr.mxu0 0.0
  %958 = vmatpush2.msra.mxu0 0.0
  %959 = vmatprep.subr.mxu0 0.0
  %960 = vmatpush2.msra.mxu0 0.0
  %961 = vmatprep.subr.mxu0 0.0
  %962 = vmatpush2.msra.mxu0 0.0
  %963 = vmatprep.subr.mxu0 0.0
  %964 = vmatpush2.msra.mxu0 0.0
  %965 = vmatprep.subr.mxu0 0.0
  %966 = vmatpush2.msra.mxu0 0.0
  %967 = vmatprep.subr.mxu0 0.0
  %968 = vmatpush2.msra.mxu0 0.0
  %969 = vmatprep.subr.mxu0 0.0
  %970 = vmatpush2.msra.mxu0 0.0
  %971 = vmatprep.mubr.f32.mxu0 0.0
  %972 = vmatmul.mubr.f32.gmra.mxu0 %v899
  %v973 = vpop.f32.mrf.mxu0
  %v974 = vadd.f32 0.0, %v973
  %v975 = vpop.f32.mrf.mxu0
  %976 = vmatprep.mubr.f32.mxu0 0.0
  %977 = vmatmul.mubr.f32.gmra.mxu0 %v902
  %v978 = vpop.f32.mrf.mxu0
  %v979 = vadd.f32 0.0, %v978
  %v980 = vpop.f32.mrf.mxu0
  %981 = vmatprep.mubr.f32.mxu0 0.0
  %982 = vmatmul.mubr.f32.gmra.mxu0 %v905
  %v983 = vpop.f32.mrf.mxu0
  %v984 = vadd.f32 0.0, %v983
  %v985 = vpop.f32.mrf.mxu0
  %986 = vdwg.mxu0
  %987 = vrot.lane.b32.xlu0 %v252, 104
  %v988 = vpop.permute.xlu0 %987
  %989 = vrot.lane.b32.xlu0 %v255, 104
  %v990 = vpop.permute.xlu0 %989
  %991 = vrot.lane.b32.xlu0 %v260, 104
  %v992 = vpop.permute.xlu0 %991
  %993 = vrot.lane.b32.xlu0 %v252, 72
  %v994 = vpop.permute.xlu0 %993
  %995 = vrot.lane.b32.xlu0 %v255, 72
  %v996 = vpop.permute.xlu0 %995
  %997 = vrot.lane.b32.xlu0 %v260, 72
  %v998 = vpop.permute.xlu0 %997
  %v999 = vsel %vm274, %v988, 0
  %v1001 = vsel %vm274, %v990, 0
  %v1003 = vsel %vm274, %v992, 0
  %v1005 = vsel %vm274, %v994, 0
  %v1007 = vsel %vm274, %v996, 0
  %v1009 = vsel %vm274, %v998, 0
  %1011 = vmatprep.subr.mxu0 0.0
  %1012 = vmatpush1.xpose.msra.mxu0 0.0
  %1013 = vmatprep.subr.mxu0 0.0
  %1014 = vmatpush1.xpose.msra.mxu0 0.0
  %1015 = vmatprep.subr.mxu0 0.0
  %1016 = vmatpush1.xpose.msra.mxu0 0.0
  %1017 = vmatprep.subr.mxu0 0.0
  %1018 = vmatpush1.xpose.msra.mxu0 0.0
  %1019 = vmatprep.subr.mxu0 0.0
  %1020 = vmatpush1.xpose.msra.mxu0 0.0
  %1021 = vmatprep.subr.mxu0 0.0
  %1022 = vmatpush1.xpose.msra.mxu0 0.0
  %1023 = vmatprep.subr.mxu0 0.0
  %1024 = vmatpush1.xpose.msra.mxu0 0.0
  %1025 = vmatprep.subr.mxu0 0.0
  %1026 = vmatpush1.xpose.msra.mxu0 0.0
  %1027 = vmatprep.subr.mxu0 0.0
  %1028 = vmatpush1.xpose.msra.mxu0 0.0
  %1029 = vmatprep.subr.mxu0 0.0
  %1030 = vmatpush1.xpose.msra.mxu0 0.0
  %1031 = vmatprep.subr.mxu0 0.0
  %1032 = vmatpush1.xpose.msra.mxu0 0.0
  %1033 = vmatprep.subr.mxu0 0.0
  %1034 = vmatpush1.xpose.msra.mxu0 0.0
  %1035 = vmatprep.subr.mxu0 0.0
  %1036 = vmatpush1.xpose.msra.mxu0 0.0
  %1037 = vmatprep.subr.mxu0 0.0
  %1038 = vmatpush1.xpose.msra.mxu0 %v1009
  %1039 = vmatprep.subr.mxu0 0.0
  %1040 = vmatpush1.xpose.msra.mxu0 %v1007
  %1041 = vmatprep.subr.mxu0 0.0
  %1042 = vmatpush1.xpose.msra.mxu0 %v1005
  %1043 = vmatprep.subr.mxu0 0.0
  %1044 = vmatpush2.xpose.msra.mxu0 0.0
  %1045 = vmatprep.subr.mxu0 0.0
  %1046 = vmatpush2.xpose.msra.mxu0 0.0
  %1047 = vmatprep.subr.mxu0 0.0
  %1048 = vmatpush2.xpose.msra.mxu0 0.0
  %1049 = vmatprep.subr.mxu0 0.0
  %1050 = vmatpush2.xpose.msra.mxu0 0.0
  %1051 = vmatprep.subr.mxu0 0.0
  %1052 = vmatpush2.xpose.msra.mxu0 0.0
  %1053 = vmatprep.subr.mxu0 0.0
  %1054 = vmatpush2.xpose.msra.mxu0 0.0
  %1055 = vmatprep.subr.mxu0 0.0
  %1056 = vmatpush2.xpose.msra.mxu0 0.0
  %1057 = vmatprep.subr.mxu0 0.0
  %1058 = vmatpush2.xpose.msra.mxu0 0.0
  %1059 = vmatprep.subr.mxu0 0.0
  %1060 = vmatpush2.xpose.msra.mxu0 0.0
  %1061 = vmatprep.subr.mxu0 0.0
  %1062 = vmatpush2.xpose.msra.mxu0 0.0
  %1063 = vmatprep.subr.mxu0 0.0
  %1064 = vmatpush2.xpose.msra.mxu0 0.0
  %1065 = vmatprep.subr.mxu0 0.0
  %1066 = vmatpush2.xpose.msra.mxu0 0.0
  %1067 = vmatprep.subr.mxu0 0.0
  %1068 = vmatpush2.xpose.msra.mxu0 0.0
  %1069 = vmatprep.subr.mxu0 0.0
  %1070 = vmatpush2.xpose.msra.mxu0 0.0
  %1071 = vmatprep.subr.mxu0 0.0
  %1072 = vmatpush2.xpose.msra.mxu0 0.0
  %1073 = vmatprep.subr.mxu0 0.0
  %1074 = vmatpush2.xpose.msra.mxu0 0.0
  %1075 = vmatprep.mubr.f32.mxu0 0.0
  %1076 = vmatmul.mubr.f32.gmra.mxu0 %v999
  %v1077 = vpop.f32.mrf.mxu0
  %v1078 = vadd.f32 0.0, %v1077
  %v1079 = vpop.f32.mrf.mxu0
  %1080 = vmatprep.mubr.f32.mxu0 0.0
  %1081 = vmatmul.mubr.f32.gmra.mxu0 %v1001
  %v1082 = vpop.f32.mrf.mxu0
  %v1083 = vadd.f32 0.0, %v1082
  %v1084 = vpop.f32.mrf.mxu0
  %1085 = vmatprep.mubr.f32.mxu0 0.0
  %1086 = vmatmul.mubr.f32.gmra.mxu0 %v1003
  %v1087 = vpop.f32.mrf.mxu0
  %v1088 = vadd.f32 0.0, %v1087
  %v1089 = vpop.f32.mrf.mxu0
  %1090 = vdwg.mxu0
  %v1091 = vmul.f32 %v1078, 0.35355338
  %v1092 = vmul.f32 %v1083, 0.35355338
  %v1093 = vmul.f32 %v1088, 0.35355338
  %v1094 = vadd.f32 %v1091, %v117
  %v1095 = vadd.f32 %v1092, %v118
  %v1096 = vadd.f32 %v1093, %v119
  %v1097 = vsel %vm373, %v1094, -inf
  %1098 = vmax.xlane.f32.xlu0 %v1097
  %v1099 = vpop.xlane.xlu0 %1098
  %v1100 = vsel %vm373, %v1095, -inf
  %1101 = vmax.xlane.f32.xlu0 %v1100
  %v1102 = vpop.xlane.xlu0 %1101
  %v1103 = vsel %vm373, %v1096, -inf
  %1104 = vmax.xlane.f32.xlu0 %v1103
  %v1105 = vpop.xlane.xlu0 %1104
  %v1106 = vsub.f32 %v1094, %v1099
  %v1107 = vsub.f32 %v1095, %v1102
  %v1108 = vsub.f32 %v1096, %v1105
  %v1109 = vmul.f32 %v1106, 1.442695
  %v1110 = vpow.pop %v1109
  %v1111 = vmul.f32 %v1107, 1.442695
  %v1112 = vpow.pop %v1111
  %v1113 = vmul.f32 %v1108, 1.442695
  %v1114 = vpow.pop %v1113
  %v1115 = vsel %vm373, %v1110, 0.0
  %1116 = vadd.xlane.f32.xlu0 %v1115
  %v1117 = vpop.xlane.xlu0 %1116
  %v1118 = vsel %vm373, %v1112, 0.0
  %1119 = vadd.xlane.f32.xlu0 %v1118
  %v1120 = vpop.xlane.xlu0 %1119
  %v1121 = vsel %vm373, %v1114, 0.0
  %1122 = vadd.xlane.f32.xlu0 %v1121
  %v1123 = vpop.xlane.xlu0 %1122
  %v1124 = vrcp.pop %v1117
  %v1125 = vrcp.pop %v1120
  %v1126 = vrcp.pop %v1123
  %v1127 = vmul.f32 %v1110, %v1124
  %v1128 = vmul.f32 %v1112, %v1125
  %v1129 = vmul.f32 %v1114, %v1126
  %1130 = vrot.lane.b32.xlu0 %v252, 40
  %v1131 = vpop.permute.xlu0 %1130
  %1132 = vrot.lane.b32.xlu0 %v255, 40
  %v1133 = vpop.permute.xlu0 %1132
  %1134 = vrot.lane.b32.xlu0 %v260, 40
  %v1135 = vpop.permute.xlu0 %1134
  %v1140 = vsel %vm373, %v1127, 0
  %v1143 = vsel %vm373, %v1128, 0
  %v1146 = vsel %vm373, %v1129, 0
  %1148 = vmatprep.subr.mxu0 0.0
  %1149 = vmatpush1.msra.mxu0 0.0
  %1150 = vmatprep.subr.mxu0 0.0
  %1151 = vmatpush1.msra.mxu0 0.0
  %1152 = vmatprep.subr.mxu0 0.0
  %1153 = vmatpush1.msra.mxu0 0.0
  %1154 = vmatprep.subr.mxu0 0.0
  %1155 = vmatpush1.msra.mxu0 0.0
  %1156 = vmatprep.subr.mxu0 0.0
  %1157 = vmatpush1.msra.mxu0 0.0
  %1158 = vmatprep.subr.mxu0 0.0
  %1159 = vmatpush1.msra.mxu0 0.0
  %1160 = vmatprep.subr.mxu0 0.0
  %1161 = vmatpush1.msra.mxu0 0.0
  %1162 = vmatprep.subr.mxu0 0.0
  %1163 = vmatpush1.msra.mxu0 0.0
  %1164 = vmatprep.subr.mxu0 0.0
  %1165 = vmatpush1.msra.mxu0 0.0
  %1166 = vmatprep.subr.mxu0 0.0
  %1167 = vmatpush1.msra.mxu0 0.0
  %1168 = vmatprep.subr.mxu0 0.0
  %1169 = vmatpush1.msra.mxu0 0.0
  %1170 = vmatprep.subr.mxu0 0.0
  %1171 = vmatpush1.msra.mxu0 0.0
  %1172 = vmatprep.subr.mxu0 0.0
  %1173 = vmatpush1.msra.mxu0 0.0
  %1174 = vmatprep.subr.mxu0 0.0
  %1175 = vmatpush1.msra.mxu0 %v1135
  %1176 = vmatprep.subr.mxu0 0.0
  %1177 = vmatpush1.msra.mxu0 %v1133
  %1178 = vmatprep.subr.mxu0 0.0
  %1179 = vmatpush1.msra.mxu0 %v1131
  %1180 = vmatprep.subr.mxu0 0.0
  %1181 = vmatpush2.msra.mxu0 0.0
  %1182 = vmatprep.subr.mxu0 0.0
  %1183 = vmatpush2.msra.mxu0 0.0
  %1184 = vmatprep.subr.mxu0 0.0
  %1185 = vmatpush2.msra.mxu0 0.0
  %1186 = vmatprep.subr.mxu0 0.0
  %1187 = vmatpush2.msra.mxu0 0.0
  %1188 = vmatprep.subr.mxu0 0.0
  %1189 = vmatpush2.msra.mxu0 0.0
  %1190 = vmatprep.subr.mxu0 0.0
  %1191 = vmatpush2.msra.mxu0 0.0
  %1192 = vmatprep.subr.mxu0 0.0
  %1193 = vmatpush2.msra.mxu0 0.0
  %1194 = vmatprep.subr.mxu0 0.0
  %1195 = vmatpush2.msra.mxu0 0.0
  %1196 = vmatprep.subr.mxu0 0.0
  %1197 = vmatpush2.msra.mxu0 0.0
  %1198 = vmatprep.subr.mxu0 0.0
  %1199 = vmatpush2.msra.mxu0 0.0
  %1200 = vmatprep.subr.mxu0 0.0
  %1201 = vmatpush2.msra.mxu0 0.0
  %1202 = vmatprep.subr.mxu0 0.0
  %1203 = vmatpush2.msra.mxu0 0.0
  %1204 = vmatprep.subr.mxu0 0.0
  %1205 = vmatpush2.msra.mxu0 0.0
  %1206 = vmatprep.subr.mxu0 0.0
  %1207 = vmatpush2.msra.mxu0 0.0
  %1208 = vmatprep.subr.mxu0 0.0
  %1209 = vmatpush2.msra.mxu0 0.0
  %1210 = vmatprep.subr.mxu0 0.0
  %1211 = vmatpush2.msra.mxu0 0.0
  %1212 = vmatprep.mubr.f32.mxu0 0.0
  %1213 = vmatmul.mubr.f32.gmra.mxu0 %v1140
  %v1214 = vpop.f32.mrf.mxu0
  %v1215 = vadd.f32 0.0, %v1214
  %v1216 = vpop.f32.mrf.mxu0
  %1217 = vmatprep.mubr.f32.mxu0 0.0
  %1218 = vmatmul.mubr.f32.gmra.mxu0 %v1143
  %v1219 = vpop.f32.mrf.mxu0
  %v1220 = vadd.f32 0.0, %v1219
  %v1221 = vpop.f32.mrf.mxu0
  %1222 = vmatprep.mubr.f32.mxu0 0.0
  %1223 = vmatmul.mubr.f32.gmra.mxu0 %v1146
  %v1224 = vpop.f32.mrf.mxu0
  %v1225 = vadd.f32 0.0, %v1224
  %v1226 = vpop.f32.mrf.mxu0
  %1227 = vdwg.mxu0
  %1231 = vrot.lane.b32.xlu0 %v733, 8
  %v1232 = vpop.permute.xlu0 %1231
  %1233 = vrot.lane.b32.xlu0 %v738, 8
  %v1234 = vpop.permute.xlu0 %1233
  %1235 = vrot.lane.b32.xlu0 %v743, 8
  %v1236 = vpop.permute.xlu0 %1235
  %1243 = vrot.lane.b32.xlu0 %v974, 16
  %v1244 = vpop.permute.xlu0 %1243
  %1245 = vrot.lane.b32.xlu0 %v979, 16
  %v1246 = vpop.permute.xlu0 %1245
  %1247 = vrot.lane.b32.xlu0 %v984, 16
  %v1248 = vpop.permute.xlu0 %1247
  %1255 = vrot.lane.b32.xlu0 %v1215, 24
  %v1256 = vpop.permute.xlu0 %1255
  %1257 = vrot.lane.b32.xlu0 %v1220, 24
  %v1258 = vpop.permute.xlu0 %1257
  %1259 = vrot.lane.b32.xlu0 %v1225, 24
  %v1260 = vpop.permute.xlu0 %1259
  %v1264 = vsel %vm274, %v492, %v1232
  %v1265 = vsel %vm274, %v497, %v1234
  %v1266 = vsel %vm274, %v502, %v1236
  %vm1267 = vcmask 130048
  %v1268 = vsel %vm1267, %v1264, %v1244
  %v1269 = vsel %vm1267, %v1265, %v1246
  %v1270 = vsel %vm1267, %v1266, %v1248
  %v1271 = vsel %vm373, %v1268, %v1256
  %v1272 = vsel %vm373, %v1269, %v1258
  %v1273 = vsel %vm373, %v1270, %v1260
  %v1274 = vpack.c.bf16 %v1272, %v1271
  %v1275 = vpack.c.bf16 %v1273, %v1273
  %v1276 = vld [vmem:[%s6] sm:$0xf]
  %v1277 = vld [vmem:[%s6 + $0x4] sm:$0xf]
  %v1278 = vld [vmem:[%s6 + $0x8] sm:$0xf]
  %v1279 = vld [vmem:[%s6 + $0xc] sm:$0xf]
  %v1284 = vunpack.c.l.b16 %v1276
  %v1285 = vunpack.c.l.b16 %v1277
  %v1286 = vunpack.c.l.b16 %v1278
  %v1287 = vunpack.c.l.b16 %v1279
  %v1288 = vpack.c.b16 %v1285, %v1284
  %v1289 = vpack.c.b16 %v1287, %v1286
  %v1293 = vsel %vm127, %v1274, 0
  %v1296 = vsel %vm127, %v1275, 0
  %1298 = vmatprep.subr.bf16.mxu0 0
  %1299 = vmatpush1.bf16.msra.mxu0 0
  %1300 = vmatprep.subr.bf16.mxu0 0
  %1301 = vmatpush1.bf16.msra.mxu0 0
  %1302 = vmatprep.subr.bf16.mxu0 0
  %1303 = vmatpush1.bf16.msra.mxu0 0
  %1304 = vmatprep.subr.bf16.mxu0 0
  %1305 = vmatpush1.bf16.msra.mxu0 0
  %1306 = vmatprep.subr.bf16.mxu0 0
  %1307 = vmatpush1.bf16.msra.mxu0 0
  %1308 = vmatprep.subr.bf16.mxu0 0
  %1309 = vmatpush1.bf16.msra.mxu0 0
  %1310 = vmatprep.subr.bf16.mxu0 0
  %1311 = vmatpush1.bf16.msra.mxu0 %v1289
  %1312 = vmatprep.subr.bf16.mxu0 0
  %1313 = vmatpush1.bf16.msra.mxu0 %v1288
  %1314 = vmatprep.subr.bf16.mxu0 0
  %1315 = vmatpush2.bf16.msra.mxu0 0
  %1316 = vmatprep.subr.bf16.mxu0 0
  %1317 = vmatpush2.bf16.msra.mxu0 0
  %1318 = vmatprep.subr.bf16.mxu0 0
  %1319 = vmatpush2.bf16.msra.mxu0 0
  %1320 = vmatprep.subr.bf16.mxu0 0
  %1321 = vmatpush2.bf16.msra.mxu0 0
  %1322 = vmatprep.subr.bf16.mxu0 0
  %1323 = vmatpush2.bf16.msra.mxu0 0
  %1324 = vmatprep.subr.bf16.mxu0 0
  %1325 = vmatpush2.bf16.msra.mxu0 0
  %1326 = vmatprep.subr.bf16.mxu0 0
  %1327 = vmatpush2.bf16.msra.mxu0 0
  %1328 = vmatprep.subr.bf16.mxu0 0
  %1329 = vmatpush2.bf16.msra.mxu0 0
  %1330 = vmatprep.mubr.bf16.mxu0 0
  %1331 = vmatmul.mubr.bf16.gmra.mxu0 %v1293
  %v1332 = vpop.f32.mrf.mxu0
  %v1333 = vadd.f32 0.0, %v1332
  %v1334 = vpop.f32.mrf.mxu0
  %v1335 = vpop.f32.mrf.mxu0
  %v1336 = vadd.f32 0.0, %v1335
  %v1337 = vpop.f32.mrf.mxu0
  %1338 = vmatprep.mubr.bf16.mxu0 0
  %1339 = vmatmul.mubr.bf16.gmra.mxu0 %v1296
  %v1340 = vpop.f32.mrf.mxu0
  %v1341 = vadd.f32 0.0, %v1340
  %v1342 = vpop.f32.mrf.mxu0
  %v1343 = vpop.f32.mrf.mxu0
  %v1344 = vpop.f32.mrf.mxu0
  %1345 = vdwg.mxu0
  %v1346 = vadd.f32 %v51, %v1333
  %v1347 = vadd.f32 %v52, %v1336
  %v1348 = vadd.f32 %v53, %v1341
  %v1349 = vld [vmem:[%s7] sm:$0x1]
  %v1351 = vlaneseq
  %v1352 = vshrl.u32 %v1351, 7
  %v1353 = vsub.s32 0, %v1352
  %v1354 = vrot.slane %v1349, %v1353
  %v1356 = vadd.f32 %v1346, %v1354
  %v1357 = vadd.f32 %v1347, %v1354
  %v1358 = vadd.f32 %v1348, %v1354
  %v1359 = vsel %vm127, %v1356, 0.0
  %1360 = vadd.xlane.f32.xlu0 %v1359
  %v1361 = vpop.xlane.xlu0 %1360
  %v1362 = vsel %vm127, %v1357, 0.0
  %1363 = vadd.xlane.f32.xlu0 %v1362
  %v1364 = vpop.xlane.xlu0 %1363
  %v1365 = vsel %vm127, %v1358, 0.0
  %1366 = vadd.xlane.f32.xlu0 %v1365
  %v1367 = vpop.xlane.xlu0 %1366
  %v1368 = vmul.f32 %v1361, %v137
  %v1369 = vmul.f32 %v1364, %v137
  %v1370 = vmul.f32 %v1367, %v137
  %v1371 = vsub.f32 %v1356, %v1368
  %v1372 = vsub.f32 %v1357, %v1369
  %v1373 = vsub.f32 %v1358, %v1370
  %v1374 = vmul.f32 %v1371, %v1371
  %v1375 = vmul.f32 %v1372, %v1372
  %v1376 = vmul.f32 %v1373, %v1373
  %v1377 = vsel %vm127, %v1374, 0.0
  %1378 = vadd.xlane.f32.xlu0 %v1377
  %v1379 = vpop.xlane.xlu0 %1378
  %v1380 = vsel %vm127, %v1375, 0.0
  %1381 = vadd.xlane.f32.xlu0 %v1380
  %v1382 = vpop.xlane.xlu0 %1381
  %v1383 = vsel %vm127, %v1376, 0.0
  %1384 = vadd.xlane.f32.xlu0 %v1383
  %v1385 = vpop.xlane.xlu0 %1384
  %v1386 = vmul.f32 %v1379, %v137
  %v1387 = vmul.f32 %v1382, %v137
  %v1388 = vmul.f32 %v1385, %v137
  %v1389 = vadd.f32 %v1386, 1e-05
  %v1390 = vadd.f32 %v1387, 1e-05
  %v1391 = vadd.f32 %v1388, 1e-05
  %v1392 = vrsqrt.pop %v1389
  %v1393 = vrsqrt.pop %v1390
  %v1394 = vrsqrt.pop %v1391
  %v1395 = vmul.f32 %v1371, %v1392
  %v1396 = vmul.f32 %v1372, %v1393
  %v1397 = vmul.f32 %v1373, %v1394
  %v1399 = vlaneseq
  %v1400 = vshrl.u32 %v1399, 7
  %v1401 = vsub.s32 0, %v1400
  %v1402 = vrot.slane %v124, %v1401
  %v1404 = vmul.f32 %v1395, %v1402
  %v1405 = vmul.f32 %v1396, %v1402
  %v1406 = vmul.f32 %v1397, %v1402
  %v1408 = vlaneseq
  %v1409 = vshrl.u32 %v1408, 7
  %v1410 = vsub.s32 0, %v1409
  %v1411 = vrot.slane %v126, %v1410
  %v1413 = vadd.f32 %v1404, %v1411
  %v1414 = vadd.f32 %v1405, %v1411
  %v1415 = vadd.f32 %v1406, %v1411
  %v1416 = vpack.c.bf16 %v1414, %v1413
  %v1417 = vpack.c.bf16 %v1415, %v1415
  %v1418 = vld [vmem:[%s8] sm:$0xf]
  %v1419 = vld [vmem:[%s8 + $0x4] sm:$0xf]
  %v1420 = vld [vmem:[%s8 + $0x8] sm:$0xf]
  %v1421 = vld [vmem:[%s8 + $0xc] sm:$0xf]
  %v1422 = vld [vmem:[%s9] sm:$0x1]
  %v1424 = vlaneseq
  %v1425 = vshrl.u32 %v1424, 7
  %v1426 = vsub.s32 0, %v1425
  %v1427 = vrot.slane %v1422, %v1426
  %v1433 = vunpack.c.l.b16 %v1418
  %v1434 = vunpack.c.l.b16 %v1419
  %v1435 = vunpack.c.l.b16 %v1420
  %v1436 = vunpack.c.l.b16 %v1421
  %v1437 = vpack.c.b16 %v1434, %v1433
  %v1438 = vpack.c.b16 %v1436, %v1435
  %v1442 = vsel %vm127, %v1416, 0
  %v1445 = vsel %vm127, %v1417, 0
  %1447 = vmatprep.subr.bf16.mxu0 0
  %1448 = vmatpush1.bf16.msra.mxu0 0
  %1449 = vmatprep.subr.bf16.mxu0 0
  %1450 = vmatpush1.bf16.msra.mxu0 0
  %1451 = vmatprep.subr.bf16.mxu0 0
  %1452 = vmatpush1.bf16.msra.mxu0 0
  %1453 = vmatprep.subr.bf16.mxu0 0
  %1454 = vmatpush1.bf16.msra.mxu0 0
  %1455 = vmatprep.subr.bf16.mxu0 0
  %1456 = vmatpush1.bf16.msra.mxu0 0
  %1457 = vmatprep.subr.bf16.mxu0 0
  %1458 = vmatpush1.bf16.msra.mxu0 0
  %1459 = vmatprep.subr.bf16.mxu0 0
  %1460 = vmatpush1.bf16.msra.mxu0 %v1438
  %1461 = vmatprep.subr.bf16.mxu0 0
  %1462 = vmatpush1.bf16.msra.mxu0 %v1437
  %1463 = vmatprep.subr.bf16.mxu0 0
  %1464 = vmatpush2.bf16.msra.mxu0 0
  %1465 = vmatprep.subr.bf16.mxu0 0
  %1466 = vmatpush2.bf16.msra.mxu0 0
  %1467 = vmatprep.subr.bf16.mxu0 0
  %1468 = vmatpush2.bf16.msra.mxu0 0
  %1469 = vmatprep.subr.bf16.mxu0 0
  %1470 = vmatpush2.bf16.msra.mxu0 0
  %1471 = vmatprep.subr.bf16.mxu0 0
  %1472 = vmatpush2.bf16.msra.mxu0 0
  %1473 = vmatprep.subr.bf16.mxu0 0
  %1474 = vmatpush2.bf16.msra.mxu0 0
  %1475 = vmatprep.subr.bf16.mxu0 0
  %1476 = vmatpush2.bf16.msra.mxu0 0
  %1477 = vmatprep.subr.bf16.mxu0 0
  %1478 = vmatpush2.bf16.msra.mxu0 0
  %1479 = vmatprep.mubr.bf16.mxu0 0
  %1480 = vmatmul.mubr.bf16.gmra.mxu0 %v1442
  %v1481 = vpop.f32.mrf.mxu0
  %v1482 = vadd.f32 %v1427, %v1481
  %v1483 = vpop.f32.mrf.mxu0
  %v1484 = vpop.f32.mrf.mxu0
  %v1485 = vadd.f32 %v1427, %v1484
  %v1486 = vpop.f32.mrf.mxu0
  %1487 = vmatprep.mubr.bf16.mxu0 0
  %1488 = vmatmul.mubr.bf16.gmra.mxu0 %v1445
  %v1489 = vpop.f32.mrf.mxu0
  %v1490 = vadd.f32 %v1427, %v1489
  %v1491 = vpop.f32.mrf.mxu0
  %v1492 = vpop.f32.mrf.mxu0
  %v1493 = vpop.f32.mrf.mxu0
  %1494 = vdwg.mxu0
  %v1495 = vmul.f32 %v1482, 1.702
  %v1496 = vmul.f32 %v1485, 1.702
  %v1497 = vmul.f32 %v1490, 1.702
  %v1498 = vxor.u32 %v1495, 2147483648
  %v1499 = vxor.u32 %v1496, 2147483648
  %v1500 = vxor.u32 %v1497, 2147483648
  %v1501 = vmul.f32 %v1498, 1.442695
  %v1502 = vpow.pop %v1501
  %v1503 = vmul.f32 %v1499, 1.442695
  %v1504 = vpow.pop %v1503
  %v1505 = vmul.f32 %v1500, 1.442695
  %v1506 = vpow.pop %v1505
  %v1507 = vadd.f32 %v1502, 1.0
  %v1508 = vadd.f32 %v1504, 1.0
  %v1509 = vadd.f32 %v1506, 1.0
  %v1510 = vrcp.pop %v1507
  %v1511 = vmul.f32 1.0, %v1510
  %v1512 = vrcp.pop %v1508
  %v1513 = vmul.f32 1.0, %v1512
  %v1514 = vrcp.pop %v1509
  %v1515 = vmul.f32 1.0, %v1514
  %v1516 = vmul.f32 %v1482, %v1511
  %v1517 = vmul.f32 %v1485, %v1513
  %v1518 = vmul.f32 %v1490, %v1515
  %v1519 = vpack.c.bf16 %v1517, %v1516
  %v1520 = vpack.c.bf16 %v1518, %v1518
  %v1521 = vld [vmem:[%s10] sm:$0xf]
  %v1522 = vld [vmem:[%s10 + $0x4] sm:$0xf]
  %v1523 = vld [vmem:[%s10 + $0x8] sm:$0xf]
  %v1524 = vld [vmem:[%s10 + $0xc] sm:$0xf]
  %v1525 = vld [vmem:[%s10 + $0x10] sm:$0xf]
  %v1526 = vld [vmem:[%s10 + $0x14] sm:$0xf]
  %v1527 = vld [vmem:[%s10 + $0x18] sm:$0xf]
  %v1528 = vld [vmem:[%s10 + $0x1c] sm:$0xf]
  %v1529 = vld [vmem:[%s10 + $0x20] sm:$0xf]
  %v1530 = vld [vmem:[%s10 + $0x24] sm:$0xf]
  %v1531 = vld [vmem:[%s10 + $0x28] sm:$0xf]
  %v1532 = vld [vmem:[%s10 + $0x2c] sm:$0xf]
  %v1533 = vld [vmem:[%s10 + $0x30] sm:$0xf]
  %v1534 = vld [vmem:[%s10 + $0x34] sm:$0xf]
  %v1535 = vld [vmem:[%s10 + $0x38] sm:$0xf]
  %v1536 = vld [vmem:[%s10 + $0x3c] sm:$0xf]
  %v1553 = vunpack.c.l.b16 %v1521
  %v1554 = vunpack.c.l.b16 %v1522
  %v1555 = vunpack.c.l.b16 %v1523
  %v1556 = vunpack.c.l.b16 %v1524
  %v1557 = vunpack.c.l.b16 %v1525
  %v1558 = vunpack.c.l.b16 %v1526
  %v1559 = vunpack.c.l.b16 %v1527
  %v1560 = vunpack.c.l.b16 %v1528
  %v1561 = vunpack.c.l.b16 %v1529
  %v1562 = vunpack.c.l.b16 %v1530
  %v1563 = vunpack.c.l.b16 %v1531
  %v1564 = vunpack.c.l.b16 %v1532
  %v1565 = vunpack.c.l.b16 %v1533
  %v1566 = vunpack.c.l.b16 %v1534
  %v1567 = vunpack.c.l.b16 %v1535
  %v1568 = vunpack.c.l.b16 %v1536
  %v1569 = vpack.c.b16 %v1554, %v1553
  %v1570 = vpack.c.b16 %v1556, %v1555
  %v1571 = vpack.c.b16 %v1558, %v1557
  %v1572 = vpack.c.b16 %v1560, %v1559
  %v1573 = vpack.c.b16 %v1562, %v1561
  %v1574 = vpack.c.b16 %v1564, %v1563
  %v1575 = vpack.c.b16 %v1566, %v1565
  %v1576 = vpack.c.b16 %v1568, %v1567
  %1585 = vmatprep.subr.bf16.mxu0 0
  %1586 = vmatpush1.bf16.msra.mxu0 %v1576
  %1587 = vmatprep.subr.bf16.mxu0 0
  %1588 = vmatpush1.bf16.msra.mxu0 %v1575
  %1589 = vmatprep.subr.bf16.mxu0 0
  %1590 = vmatpush1.bf16.msra.mxu0 %v1574
  %1591 = vmatprep.subr.bf16.mxu0 0
  %1592 = vmatpush1.bf16.msra.mxu0 %v1573
  %1593 = vmatprep.subr.bf16.mxu0 0
  %1594 = vmatpush1.bf16.msra.mxu0 %v1572
  %1595 = vmatprep.subr.bf16.mxu0 0
  %1596 = vmatpush1.bf16.msra.mxu0 %v1571
  %1597 = vmatprep.subr.bf16.mxu0 0
  %1598 = vmatpush1.bf16.msra.mxu0 %v1570
  %1599 = vmatprep.subr.bf16.mxu0 0
  %1600 = vmatpush1.bf16.msra.mxu0 %v1569
  %1601 = vmatprep.subr.bf16.mxu0 0
  %1602 = vmatpush2.bf16.msra.mxu0 0
  %1603 = vmatprep.subr.bf16.mxu0 0
  %1604 = vmatpush2.bf16.msra.mxu0 0
  %1605 = vmatprep.subr.bf16.mxu0 0
  %1606 = vmatpush2.bf16.msra.mxu0 0
  %1607 = vmatprep.subr.bf16.mxu0 0
  %1608 = vmatpush2.bf16.msra.mxu0 0
  %1609 = vmatprep.subr.bf16.mxu0 0
  %1610 = vmatpush2.bf16.msra.mxu0 0
  %1611 = vmatprep.subr.bf16.mxu0 0
  %1612 = vmatpush2.bf16.msra.mxu0 0
  %1613 = vmatprep.subr.bf16.mxu0 0
  %1614 = vmatpush2.bf16.msra.mxu0 0
  %1615 = vmatprep.subr.bf16.mxu0 0
  %1616 = vmatpush2.bf16.msra.mxu0 0
  %1617 = vmatprep.mubr.bf16.mxu0 0
  %1618 = vmatmul.mubr.bf16.gmra.mxu0 %v1519
  %v1619 = vpop.f32.mrf.mxu0
  %v1620 = vadd.f32 0.0, %v1619
  %v1621 = vpop.f32.mrf.mxu0
  %v1622 = vpop.f32.mrf.mxu0
  %v1623 = vadd.f32 0.0, %v1622
  %v1624 = vpop.f32.mrf.mxu0
  %1625 = vmatprep.mubr.bf16.mxu0 0
  %1626 = vmatmul.mubr.bf16.gmra.mxu0 %v1520
  %v1627 = vpop.f32.mrf.mxu0
  %v1628 = vadd.f32 0.0, %v1627
  %v1629 = vpop.f32.mrf.mxu0
  %v1630 = vpop.f32.mrf.mxu0
  %v1631 = vpop.f32.mrf.mxu0
  %1632 = vdwg.mxu0
  %v1633 = vadd.f32 %v1356, %v1620
  %v1634 = vadd.f32 %v1357, %v1623
  %v1635 = vadd.f32 %v1358, %v1628
  %v1636 = vld [vmem:[%s11] sm:$0x1]
  %v1638 = vlaneseq
  %v1639 = vshrl.u32 %v1638, 7
  %v1640 = vsub.s32 0, %v1639
  %v1641 = vrot.slane %v1636, %v1640
  %v1643 = vadd.f32 %v1633, %v1641
  %v1644 = vadd.f32 %v1634, %v1641
  %v1645 = vadd.f32 %v1635, %v1641
  %s1646 = scalar_lea.vmem %s3, 4
  %v1647 = vld [vmem:[%s1646] sm:$0x1]
  %s1648 = scalar_lea.vmem %s3, 5
  %v1649 = vld [vmem:[%s1648] sm:$0x1]
  %s1650 = scalar_lea.vmem %s3, 6
  %v1651 = vld [vmem:[%s1650] sm:$0x1]
  %s1652 = scalar_lea.vmem %s3, 7
  %v1653 = vld [vmem:[%s1652] sm:$0x1]
  %v1654 = vsel %vm127, %v1643, 0.0
  %1655 = vadd.xlane.f32.xlu0 %v1654
  %v1656 = vpop.xlane.xlu0 %1655
  %v1657 = vsel %vm127, %v1644, 0.0
  %1658 = vadd.xlane.f32.xlu0 %v1657
  %v1659 = vpop.xlane.xlu0 %1658
  %v1660 = vsel %vm127, %v1645, 0.0
  %1661 = vadd.xlane.f32.xlu0 %v1660
  %v1662 = vpop.xlane.xlu0 %1661
  %v1663 = vmul.f32 %v1656, %v137
  %v1664 = vmul.f32 %v1659, %v137
  %v1665 = vmul.f32 %v1662, %v137
  %v1666 = vsub.f32 %v1643, %v1663
  %v1667 = vsub.f32 %v1644, %v1664
  %v1668 = vsub.f32 %v1645, %v1665
  %v1669 = vmul.f32 %v1666, %v1666
  %v1670 = vmul.f32 %v1667, %v1667
  %v1671 = vmul.f32 %v1668, %v1668
  %v1672 = vsel %vm127, %v1669, 0.0
  %1673 = vadd.xlane.f32.xlu0 %v1672
  %v1674 = vpop.xlane.xlu0 %1673
  %v1675 = vsel %vm127, %v1670, 0.0
  %1676 = vadd.xlane.f32.xlu0 %v1675
  %v1677 = vpop.xlane.xlu0 %1676
  %v1678 = vsel %vm127, %v1671, 0.0
  %1679 = vadd.xlane.f32.xlu0 %v1678
  %v1680 = vpop.xlane.xlu0 %1679
  %v1681 = vmul.f32 %v1674, %v137
  %v1682 = vmul.f32 %v1677, %v137
  %v1683 = vmul.f32 %v1680, %v137
  %v1684 = vadd.f32 %v1681, 1e-05
  %v1685 = vadd.f32 %v1682, 1e-05
  %v1686 = vadd.f32 %v1683, 1e-05
  %v1687 = vrsqrt.pop %v1684
  %v1688 = vrsqrt.pop %v1685
  %v1689 = vrsqrt.pop %v1686
  %v1690 = vmul.f32 %v1666, %v1687
  %v1691 = vmul.f32 %v1667, %v1688
  %v1692 = vmul.f32 %v1668, %v1689
  %v1694 = vlaneseq
  %v1695 = vshrl.u32 %v1694, 7
  %v1696 = vsub.s32 0, %v1695
  %v1697 = vrot.slane %v1647, %v1696
  %v1699 = vmul.f32 %v1690, %v1697
  %v1700 = vmul.f32 %v1691, %v1697
  %v1701 = vmul.f32 %v1692, %v1697
  %v1703 = vlaneseq
  %v1704 = vshrl.u32 %v1703, 7
  %v1705 = vsub.s32 0, %v1704
  %v1706 = vrot.slane %v1649, %v1705
  %v1708 = vadd.f32 %v1699, %v1706
  %v1709 = vadd.f32 %v1700, %v1706
  %v1710 = vadd.f32 %v1701, %v1706
  %v1711 = vpack.c.bf16 %v1709, %v1708
  %v1712 = vpack.c.bf16 %v1710, %v1710
  %s1713 = scalar_lea.vmem %s4, 16
  %v1714 = vld [vmem:[%s1713] sm:$0xf]
  %v1715 = vld [vmem:[%s1713 + $0x4] sm:$0xf]
  %v1716 = vld [vmem:[%s1713 + $0x8] sm:$0xf]
  %v1717 = vld [vmem:[%s1713 + $0xc] sm:$0xf]
  %s1718 = scalar_lea.vmem %s5, 1
  %v1719 = vld [vmem:[%s1718] sm:$0x1]
  %v1721 = vlaneseq
  %v1722 = vshrl.u32 %v1721, 7
  %v1723 = vsub.s32 0, %v1722
  %v1724 = vrot.slane %v1719, %v1723
  %v1730 = vunpack.c.l.b16 %v1714
  %v1731 = vunpack.c.l.b16 %v1715
  %v1732 = vunpack.c.l.b16 %v1716
  %v1733 = vunpack.c.l.b16 %v1717
  %v1734 = vpack.c.b16 %v1731, %v1730
  %v1735 = vpack.c.b16 %v1733, %v1732
  %v1739 = vsel %vm127, %v1711, 0
  %v1742 = vsel %vm127, %v1712, 0
  %1744 = vmatprep.subr.bf16.mxu0 0
  %1745 = vmatpush1.bf16.msra.mxu0 0
  %1746 = vmatprep.subr.bf16.mxu0 0
  %1747 = vmatpush1.bf16.msra.mxu0 0
  %1748 = vmatprep.subr.bf16.mxu0 0
  %1749 = vmatpush1.bf16.msra.mxu0 0
  %1750 = vmatprep.subr.bf16.mxu0 0
  %1751 = vmatpush1.bf16.msra.mxu0 0
  %1752 = vmatprep.subr.bf16.mxu0 0
  %1753 = vmatpush1.bf16.msra.mxu0 0
  %1754 = vmatprep.subr.bf16.mxu0 0
  %1755 = vmatpush1.bf16.msra.mxu0 0
  %1756 = vmatprep.subr.bf16.mxu0 0
  %1757 = vmatpush1.bf16.msra.mxu0 %v1735
  %1758 = vmatprep.subr.bf16.mxu0 0
  %1759 = vmatpush1.bf16.msra.mxu0 %v1734
  %1760 = vmatprep.subr.bf16.mxu0 0
  %1761 = vmatpush2.bf16.msra.mxu0 0
  %1762 = vmatprep.subr.bf16.mxu0 0
  %1763 = vmatpush2.bf16.msra.mxu0 0
  %1764 = vmatprep.subr.bf16.mxu0 0
  %1765 = vmatpush2.bf16.msra.mxu0 0
  %1766 = vmatprep.subr.bf16.mxu0 0
  %1767 = vmatpush2.bf16.msra.mxu0 0
  %1768 = vmatprep.subr.bf16.mxu0 0
  %1769 = vmatpush2.bf16.msra.mxu0 0
  %1770 = vmatprep.subr.bf16.mxu0 0
  %1771 = vmatpush2.bf16.msra.mxu0 0
  %1772 = vmatprep.subr.bf16.mxu0 0
  %1773 = vmatpush2.bf16.msra.mxu0 0
  %1774 = vmatprep.subr.bf16.mxu0 0
  %1775 = vmatpush2.bf16.msra.mxu0 0
  %1776 = vmatprep.mubr.bf16.mxu0 0
  %1777 = vmatmul.mubr.bf16.gmra.mxu0 %v1739
  %v1778 = vpop.f32.mrf.mxu0
  %v1779 = vadd.f32 %v1724, %v1778
  %v1780 = vpop.f32.mrf.mxu0
  %v1781 = vpop.f32.mrf.mxu0
  %v1782 = vadd.f32 %v1724, %v1781
  %v1783 = vpop.f32.mrf.mxu0
  %1784 = vmatprep.mubr.bf16.mxu0 0
  %1785 = vmatmul.mubr.bf16.gmra.mxu0 %v1742
  %v1786 = vpop.f32.mrf.mxu0
  %v1787 = vadd.f32 %v1724, %v1786
  %v1788 = vpop.f32.mrf.mxu0
  %v1789 = vpop.f32.mrf.mxu0
  %v1790 = vpop.f32.mrf.mxu0
  %1791 = vdwg.mxu0
  %1795 = vrot.lane.b32.xlu0 %v1779, 96
  %v1796 = vpop.permute.xlu0 %1795
  %1797 = vrot.lane.b32.xlu0 %v1782, 96
  %v1798 = vpop.permute.xlu0 %1797
  %1799 = vrot.lane.b32.xlu0 %v1787, 96
  %v1800 = vpop.permute.xlu0 %1799
  %v1801 = vsel %vm274, %v1779, 0
  %v1803 = vsel %vm274, %v1782, 0
  %v1805 = vsel %vm274, %v1787, 0
  %v1807 = vsel %vm274, %v1796, 0
  %v1809 = vsel %vm274, %v1798, 0
  %v1811 = vsel %vm274, %v1800, 0
  %1813 = vmatprep.subr.mxu0 0.0
  %1814 = vmatpush1.xpose.msra.mxu0 0.0
  %1815 = vmatprep.subr.mxu0 0.0
  %1816 = vmatpush1.xpose.msra.mxu0 0.0
  %1817 = vmatprep.subr.mxu0 0.0
  %1818 = vmatpush1.xpose.msra.mxu0 0.0
  %1819 = vmatprep.subr.mxu0 0.0
  %1820 = vmatpush1.xpose.msra.mxu0 0.0
  %1821 = vmatprep.subr.mxu0 0.0
  %1822 = vmatpush1.xpose.msra.mxu0 0.0
  %1823 = vmatprep.subr.mxu0 0.0
  %1824 = vmatpush1.xpose.msra.mxu0 0.0
  %1825 = vmatprep.subr.mxu0 0.0
  %1826 = vmatpush1.xpose.msra.mxu0 0.0
  %1827 = vmatprep.subr.mxu0 0.0
  %1828 = vmatpush1.xpose.msra.mxu0 0.0
  %1829 = vmatprep.subr.mxu0 0.0
  %1830 = vmatpush1.xpose.msra.mxu0 0.0
  %1831 = vmatprep.subr.mxu0 0.0
  %1832 = vmatpush1.xpose.msra.mxu0 0.0
  %1833 = vmatprep.subr.mxu0 0.0
  %1834 = vmatpush1.xpose.msra.mxu0 0.0
  %1835 = vmatprep.subr.mxu0 0.0
  %1836 = vmatpush1.xpose.msra.mxu0 0.0
  %1837 = vmatprep.subr.mxu0 0.0
  %1838 = vmatpush1.xpose.msra.mxu0 0.0
  %1839 = vmatprep.subr.mxu0 0.0
  %1840 = vmatpush1.xpose.msra.mxu0 %v1811
  %1841 = vmatprep.subr.mxu0 0.0
  %1842 = vmatpush1.xpose.msra.mxu0 %v1809
  %1843 = vmatprep.subr.mxu0 0.0
  %1844 = vmatpush1.xpose.msra.mxu0 %v1807
  %1845 = vmatprep.subr.mxu0 0.0
  %1846 = vmatpush2.xpose.msra.mxu0 0.0
  %1847 = vmatprep.subr.mxu0 0.0
  %1848 = vmatpush2.xpose.msra.mxu0 0.0
  %1849 = vmatprep.subr.mxu0 0.0
  %1850 = vmatpush2.xpose.msra.mxu0 0.0
  %1851 = vmatprep.subr.mxu0 0.0
  %1852 = vmatpush2.xpose.msra.mxu0 0.0
  %1853 = vmatprep.subr.mxu0 0.0
  %1854 = vmatpush2.xpose.msra.mxu0 0.0
  %1855 = vmatprep.subr.mxu0 0.0
  %1856 = vmatpush2.xpose.msra.mxu0 0.0
  %1857 = vmatprep.subr.mxu0 0.0
  %1858 = vmatpush2.xpose.msra.mxu0 0.0
  %1859 = vmatprep.subr.mxu0 0.0
  %1860 = vmatpush2.xpose.msra.mxu0 0.0
  %1861 = vmatprep.subr.mxu0 0.0
  %1862 = vmatpush2.xpose.msra.mxu0 0.0
  %1863 = vmatprep.subr.mxu0 0.0
  %1864 = vmatpush2.xpose.msra.mxu0 0.0
  %1865 = vmatprep.subr.mxu0 0.0
  %1866 = vmatpush2.xpose.msra.mxu0 0.0
  %1867 = vmatprep.subr.mxu0 0.0
  %1868 = vmatpush2.xpose.msra.mxu0 0.0
  %1869 = vmatprep.subr.mxu0 0.0
  %1870 = vmatpush2.xpose.msra.mxu0 0.0
  %1871 = vmatprep.subr.mxu0 0.0
  %1872 = vmatpush2.xpose.msra.mxu0 0.0
  %1873 = vmatprep.subr.mxu0 0.0
  %1874 = vmatpush2.xpose.msra.mxu0 0.0
  %1875 = vmatprep.subr.mxu0 0.0
  %1876 = vmatpush2.xpose.msra.mxu0 0.0
  %1877 = vmatprep.mubr.f32.mxu0 0.0
  %1878 = vmatmul.mubr.f32.gmra.mxu0 %v1801
  %v1879 = vpop.f32.mrf.mxu0
  %v1880 = vadd.f32 0.0, %v1879
  %v1881 = vpop.f32.mrf.mxu0
  %1882 = vmatprep.mubr.f32.mxu0 0.0
  %1883 = vmatmul.mubr.f32.gmra.mxu0 %v1803
  %v1884 = vpop.f32.mrf.mxu0
  %v1885 = vadd.f32 0.0, %v1884
  %v1886 = vpop.f32.mrf.mxu0
  %1887 = vmatprep.mubr.f32.mxu0 0.0
  %1888 = vmatmul.mubr.f32.gmra.mxu0 %v1805
  %v1889 = vpop.f32.mrf.mxu0
  %v1890 = vadd.f32 0.0, %v1889
  %v1891 = vpop.f32.mrf.mxu0
  %1892 = vdwg.mxu0
  %v1893 = vmul.f32 %v1880, 0.35355338
  %v1894 = vmul.f32 %v1885, 0.35355338
  %v1895 = vmul.f32 %v1890, 0.35355338
  %v1896 = vadd.f32 %v1893, %v117
  %v1897 = vadd.f32 %v1894, %v118
  %v1898 = vadd.f32 %v1895, %v119
  %v1899 = vsel %vm373, %v1896, -inf
  %1900 = vmax.xlane.f32.xlu0 %v1899
  %v1901 = vpop.xlane.xlu0 %1900
  %v1902 = vsel %vm373, %v1897, -inf
  %1903 = vmax.xlane.f32.xlu0 %v1902
  %v1904 = vpop.xlane.xlu0 %1903
  %v1905 = vsel %vm373, %v1898, -inf
  %1906 = vmax.xlane.f32.xlu0 %v1905
  %v1907 = vpop.xlane.xlu0 %1906
  %v1908 = vsub.f32 %v1896, %v1901
  %v1909 = vsub.f32 %v1897, %v1904
  %v1910 = vsub.f32 %v1898, %v1907
  %v1911 = vmul.f32 %v1908, 1.442695
  %v1912 = vpow.pop %v1911
  %v1913 = vmul.f32 %v1909, 1.442695
  %v1914 = vpow.pop %v1913
  %v1915 = vmul.f32 %v1910, 1.442695
  %v1916 = vpow.pop %v1915
  %v1917 = vsel %vm373, %v1912, 0.0
  %1918 = vadd.xlane.f32.xlu0 %v1917
  %v1919 = vpop.xlane.xlu0 %1918
  %v1920 = vsel %vm373, %v1914, 0.0
  %1921 = vadd.xlane.f32.xlu0 %v1920
  %v1922 = vpop.xlane.xlu0 %1921
  %v1923 = vsel %vm373, %v1916, 0.0
  %1924 = vadd.xlane.f32.xlu0 %v1923
  %v1925 = vpop.xlane.xlu0 %1924
  %v1926 = vrcp.pop %v1919
  %v1927 = vrcp.pop %v1922
  %v1928 = vrcp.pop %v1925
  %v1929 = vmul.f32 %v1912, %v1926
  %v1930 = vmul.f32 %v1914, %v1927
  %v1931 = vmul.f32 %v1916, %v1928
  %1932 = vrot.lane.b32.xlu0 %v1779, 64
  %v1933 = vpop.permute.xlu0 %1932
  %1934 = vrot.lane.b32.xlu0 %v1782, 64
  %v1935 = vpop.permute.xlu0 %1934
  %1936 = vrot.lane.b32.xlu0 %v1787, 64
  %v1937 = vpop.permute.xlu0 %1936
  %v1942 = vsel %vm373, %v1929, 0
  %v1945 = vsel %vm373, %v1930, 0
  %v1948 = vsel %vm373, %v1931, 0
  %1950 = vmatprep.subr.mxu0 0.0
  %1951 = vmatpush1.msra.mxu0 0.0
  %1952 = vmatprep.subr.mxu0 0.0
  %1953 = vmatpush1.msra.mxu0 0.0
  %1954 = vmatprep.subr.mxu0 0.0
  %1955 = vmatpush1.msra.mxu0 0.0
  %1956 = vmatprep.subr.mxu0 0.0
  %1957 = vmatpush1.msra.mxu0 0.0
  %1958 = vmatprep.subr.mxu0 0.0
  %1959 = vmatpush1.msra.mxu0 0.0
  %1960 = vmatprep.subr.mxu0 0.0
  %1961 = vmatpush1.msra.mxu0 0.0
  %1962 = vmatprep.subr.mxu0 0.0
  %1963 = vmatpush1.msra.mxu0 0.0
  %1964 = vmatprep.subr.mxu0 0.0
  %1965 = vmatpush1.msra.mxu0 0.0
  %1966 = vmatprep.subr.mxu0 0.0
  %1967 = vmatpush1.msra.mxu0 0.0
  %1968 = vmatprep.subr.mxu0 0.0
  %1969 = vmatpush1.msra.mxu0 0.0
  %1970 = vmatprep.subr.mxu0 0.0
  %1971 = vmatpush1.msra.mxu0 0.0
  %1972 = vmatprep.subr.mxu0 0.0
  %1973 = vmatpush1.msra.mxu0 0.0
  %1974 = vmatprep.subr.mxu0 0.0
  %1975 = vmatpush1.msra.mxu0 0.0
  %1976 = vmatprep.subr.mxu0 0.0
  %1977 = vmatpush1.msra.mxu0 %v1937
  %1978 = vmatprep.subr.mxu0 0.0
  %1979 = vmatpush1.msra.mxu0 %v1935
  %1980 = vmatprep.subr.mxu0 0.0
  %1981 = vmatpush1.msra.mxu0 %v1933
  %1982 = vmatprep.subr.mxu0 0.0
  %1983 = vmatpush2.msra.mxu0 0.0
  %1984 = vmatprep.subr.mxu0 0.0
  %1985 = vmatpush2.msra.mxu0 0.0
  %1986 = vmatprep.subr.mxu0 0.0
  %1987 = vmatpush2.msra.mxu0 0.0
  %1988 = vmatprep.subr.mxu0 0.0
  %1989 = vmatpush2.msra.mxu0 0.0
  %1990 = vmatprep.subr.mxu0 0.0
  %1991 = vmatpush2.msra.mxu0 0.0
  %1992 = vmatprep.subr.mxu0 0.0
  %1993 = vmatpush2.msra.mxu0 0.0
  %1994 = vmatprep.subr.mxu0 0.0
  %1995 = vmatpush2.msra.mxu0 0.0
  %1996 = vmatprep.subr.mxu0 0.0
  %1997 = vmatpush2.msra.mxu0 0.0
  %1998 = vmatprep.subr.mxu0 0.0
  %1999 = vmatpush2.msra.mxu0 0.0
  %2000 = vmatprep.subr.mxu0 0.0
  %2001 = vmatpush2.msra.mxu0 0.0
  %2002 = vmatprep.subr.mxu0 0.0
  %2003 = vmatpush2.msra.mxu0 0.0
  %2004 = vmatprep.subr.mxu0 0.0
  %2005 = vmatpush2.msra.mxu0 0.0
  %2006 = vmatprep.subr.mxu0 0.0
  %2007 = vmatpush2.msra.mxu0 0.0
  %2008 = vmatprep.subr.mxu0 0.0
  %2009 = vmatpush2.msra.mxu0 0.0
  %2010 = vmatprep.subr.mxu0 0.0
  %2011 = vmatpush2.msra.mxu0 0.0
  %2012 = vmatprep.subr.mxu0 0.0
  %2013 = vmatpush2.msra.mxu0 0.0
  %2014 = vmatprep.mubr.f32.mxu0 0.0
  %2015 = vmatmul.mubr.f32.gmra.mxu0 %v1942
  %v2016 = vpop.f32.mrf.mxu0
  %v2017 = vadd.f32 0.0, %v2016
  %v2018 = vpop.f32.mrf.mxu0
  %2019 = vmatprep.mubr.f32.mxu0 0.0
  %2020 = vmatmul.mubr.f32.gmra.mxu0 %v1945
  %v2021 = vpop.f32.mrf.mxu0
  %v2022 = vadd.f32 0.0, %v2021
  %v2023 = vpop.f32.mrf.mxu0
  %2024 = vmatprep.mubr.f32.mxu0 0.0
  %2025 = vmatmul.mubr.f32.gmra.mxu0 %v1948
  %v2026 = vpop.f32.mrf.mxu0
  %v2027 = vadd.f32 0.0, %v2026
  %v2028 = vpop.f32.mrf.mxu0
  %2029 = vdwg.mxu0
  %2030 = vrot.lane.b32.xlu0 %v1779, 120
  %v2031 = vpop.permute.xlu0 %2030
  %2032 = vrot.lane.b32.xlu0 %v1782, 120
  %v2033 = vpop.permute.xlu0 %2032
  %2034 = vrot.lane.b32.xlu0 %v1787, 120
  %v2035 = vpop.permute.xlu0 %2034
  %2036 = vrot.lane.b32.xlu0 %v1779, 88
  %v2037 = vpop.permute.xlu0 %2036
  %2038 = vrot.lane.b32.xlu0 %v1782, 88
  %v2039 = vpop.permute.xlu0 %2038
  %2040 = vrot.lane.b32.xlu0 %v1787, 88
  %v2041 = vpop.permute.xlu0 %2040
  %v2042 = vsel %vm274, %v2031, 0
  %v2044 = vsel %vm274, %v2033, 0
  %v2046 = vsel %vm274, %v2035, 0
  %v2048 = vsel %vm274, %v2037, 0
  %v2050 = vsel %vm274, %v2039, 0
  %v2052 = vsel %vm274, %v2041, 0
  %2054 = vmatprep.subr.mxu0 0.0
  %2055 = vmatpush1.xpose.msra.mxu0 0.0
  %2056 = vmatprep.subr.mxu0 0.0
  %2057 = vmatpush1.xpose.msra.mxu0 0.0
  %2058 = vmatprep.subr.mxu0 0.0
  %2059 = vmatpush1.xpose.msra.mxu0 0.0
  %2060 = vmatprep.subr.mxu0 0.0
  %2061 = vmatpush1.xpose.msra.mxu0 0.0
  %2062 = vmatprep.subr.mxu0 0.0
  %2063 = vmatpush1.xpose.msra.mxu0 0.0
  %2064 = vmatprep.subr.mxu0 0.0
  %2065 = vmatpush1.xpose.msra.mxu0 0.0
  %2066 = vmatprep.subr.mxu0 0.0
  %2067 = vmatpush1.xpose.msra.mxu0 0.0
  %2068 = vmatprep.subr.mxu0 0.0
  %2069 = vmatpush1.xpose.msra.mxu0 0.0
  %2070 = vmatprep.subr.mxu0 0.0
  %2071 = vmatpush1.xpose.msra.mxu0 0.0
  %2072 = vmatprep.subr.mxu0 0.0
  %2073 = vmatpush1.xpose.msra.mxu0 0.0
  %2074 = vmatprep.subr.mxu0 0.0
  %2075 = vmatpush1.xpose.msra.mxu0 0.0
  %2076 = vmatprep.subr.mxu0 0.0
  %2077 = vmatpush1.xpose.msra.mxu0 0.0
  %2078 = vmatprep.subr.mxu0 0.0
  %2079 = vmatpush1.xpose.msra.mxu0 0.0
  %2080 = vmatprep.subr.mxu0 0.0
  %2081 = vmatpush1.xpose.msra.mxu0 %v2052
  %2082 = vmatprep.subr.mxu0 0.0
  %2083 = vmatpush1.xpose.msra.mxu0 %v2050
  %2084 = vmatprep.subr.mxu0 0.0
  %2085 = vmatpush1.xpose.msra.mxu0 %v2048
  %2086 = vmatprep.subr.mxu0 0.0
  %2087 = vmatpush2.xpose.msra.mxu0 0.0
  %2088 = vmatprep.subr.mxu0 0.0
  %2089 = vmatpush2.xpose.msra.mxu0 0.0
  %2090 = vmatprep.subr.mxu0 0.0
  %2091 = vmatpush2.xpose.msra.mxu0 0.0
  %2092 = vmatprep.subr.mxu0 0.0
  %2093 = vmatpush2.xpose.msra.mxu0 0.0
  %2094 = vmatprep.subr.mxu0 0.0
  %2095 = vmatpush2.xpose.msra.mxu0 0.0
  %2096 = vmatprep.subr.mxu0 0.0
  %2097 = vmatpush2.xpose.msra.mxu0 0.0
  %2098 = vmatprep.subr.mxu0 0.0
  %2099 = vmatpush2.xpose.msra.mxu0 0.0
  %2100 = vmatprep.subr.mxu0 0.0
  %2101 = vmatpush2.xpose.msra.mxu0 0.0
  %2102 = vmatprep.subr.mxu0 0.0
  %2103 = vmatpush2.xpose.msra.mxu0 0.0
  %2104 = vmatprep.subr.mxu0 0.0
  %2105 = vmatpush2.xpose.msra.mxu0 0.0
  %2106 = vmatprep.subr.mxu0 0.0
  %2107 = vmatpush2.xpose.msra.mxu0 0.0
  %2108 = vmatprep.subr.mxu0 0.0
  %2109 = vmatpush2.xpose.msra.mxu0 0.0
  %2110 = vmatprep.subr.mxu0 0.0
  %2111 = vmatpush2.xpose.msra.mxu0 0.0
  %2112 = vmatprep.subr.mxu0 0.0
  %2113 = vmatpush2.xpose.msra.mxu0 0.0
  %2114 = vmatprep.subr.mxu0 0.0
  %2115 = vmatpush2.xpose.msra.mxu0 0.0
  %2116 = vmatprep.subr.mxu0 0.0
  %2117 = vmatpush2.xpose.msra.mxu0 0.0
  %2118 = vmatprep.mubr.f32.mxu0 0.0
  %2119 = vmatmul.mubr.f32.gmra.mxu0 %v2042
  %v2120 = vpop.f32.mrf.mxu0
  %v2121 = vadd.f32 0.0, %v2120
  %v2122 = vpop.f32.mrf.mxu0
  %2123 = vmatprep.mubr.f32.mxu0 0.0
  %2124 = vmatmul.mubr.f32.gmra.mxu0 %v2044
  %v2125 = vpop.f32.mrf.mxu0
  %v2126 = vadd.f32 0.0, %v2125
  %v2127 = vpop.f32.mrf.mxu0
  %2128 = vmatprep.mubr.f32.mxu0 0.0
  %2129 = vmatmul.mubr.f32.gmra.mxu0 %v2046
  %v2130 = vpop.f32.mrf.mxu0
  %v2131 = vadd.f32 0.0, %v2130
  %v2132 = vpop.f32.mrf.mxu0
  %2133 = vdwg.mxu0
  %v2134 = vmul.f32 %v2121, 0.35355338
  %v2135 = vmul.f32 %v2126, 0.35355338
  %v2136 = vmul.f32 %v2131, 0.35355338
  %v2137 = vadd.f32 %v2134, %v117
  %v2138 = vadd.f32 %v2135, %v118
  %v2139 = vadd.f32 %v2136, %v119
  %v2140 = vsel %vm373, %v2137, -inf
  %2141 = vmax.xlane.f32.xlu0 %v2140
  %v2142 = vpop.xlane.xlu0 %2141
  %v2143 = vsel %vm373, %v2138, -inf
  %2144 = vmax.xlane.f32.xlu0 %v2143
  %v2145 = vpop.xlane.xlu0 %2144
  %v2146 = vsel %vm373, %v2139, -inf
  %2147 = vmax.xlane.f32.xlu0 %v2146
  %v2148 = vpop.xlane.xlu0 %2147
  %v2149 = vsub.f32 %v2137, %v2142
  %v2150 = vsub.f32 %v2138, %v2145
  %v2151 = vsub.f32 %v2139, %v2148
  %v2152 = vmul.f32 %v2149, 1.442695
  %v2153 = vpow.pop %v2152
  %v2154 = vmul.f32 %v2150, 1.442695
  %v2155 = vpow.pop %v2154
  %v2156 = vmul.f32 %v2151, 1.442695
  %v2157 = vpow.pop %v2156
  %v2158 = vsel %vm373, %v2153, 0.0
  %2159 = vadd.xlane.f32.xlu0 %v2158
  %v2160 = vpop.xlane.xlu0 %2159
  %v2161 = vsel %vm373, %v2155, 0.0
  %2162 = vadd.xlane.f32.xlu0 %v2161
  %v2163 = vpop.xlane.xlu0 %2162
  %v2164 = vsel %vm373, %v2157, 0.0
  %2165 = vadd.xlane.f32.xlu0 %v2164
  %v2166 = vpop.xlane.xlu0 %2165
  %v2167 = vrcp.pop %v2160
  %v2168 = vrcp.pop %v2163
  %v2169 = vrcp.pop %v2166
  %v2170 = vmul.f32 %v2153, %v2167
  %v2171 = vmul.f32 %v2155, %v2168
  %v2172 = vmul.f32 %v2157, %v2169
  %2173 = vrot.lane.b32.xlu0 %v1779, 56
  %v2174 = vpop.permute.xlu0 %2173
  %2175 = vrot.lane.b32.xlu0 %v1782, 56
  %v2176 = vpop.permute.xlu0 %2175
  %2177 = vrot.lane.b32.xlu0 %v1787, 56
  %v2178 = vpop.permute.xlu0 %2177
  %v2183 = vsel %vm373, %v2170, 0
  %v2186 = vsel %vm373, %v2171, 0
  %v2189 = vsel %vm373, %v2172, 0
  %2191 = vmatprep.subr.mxu0 0.0
  %2192 = vmatpush1.msra.mxu0 0.0
  %2193 = vmatprep.subr.mxu0 0.0
  %2194 = vmatpush1.msra.mxu0 0.0
  %2195 = vmatprep.subr.mxu0 0.0
  %2196 = vmatpush1.msra.mxu0 0.0
  %2197 = vmatprep.subr.mxu0 0.0
  %2198 = vmatpush1.msra.mxu0 0.0
  %2199 = vmatprep.subr.mxu0 0.0
  %2200 = vmatpush1.msra.mxu0 0.0
  %2201 = vmatprep.subr.mxu0 0.0
  %2202 = vmatpush1.msra.mxu0 0.0
  %2203 = vmatprep.subr.mxu0 0.0
  %2204 = vmatpush1.msra.mxu0 0.0
  %2205 = vmatprep.subr.mxu0 0.0
  %2206 = vmatpush1.msra.mxu0 0.0
  %2207 = vmatprep.subr.mxu0 0.0
  %2208 = vmatpush1.msra.mxu0 0.0
  %2209 = vmatprep.subr.mxu0 0.0
  %2210 = vmatpush1.msra.mxu0 0.0
  %2211 = vmatprep.subr.mxu0 0.0
  %2212 = vmatpush1.msra.mxu0 0.0
  %2213 = vmatprep.subr.mxu0 0.0
  %2214 = vmatpush1.msra.mxu0 0.0
  %2215 = vmatprep.subr.mxu0 0.0
  %2216 = vmatpush1.msra.mxu0 0.0
  %2217 = vmatprep.subr.mxu0 0.0
  %2218 = vmatpush1.msra.mxu0 %v2178
  %2219 = vmatprep.subr.mxu0 0.0
  %2220 = vmatpush1.msra.mxu0 %v2176
  %2221 = vmatprep.subr.mxu0 0.0
  %2222 = vmatpush1.msra.mxu0 %v2174
  %2223 = vmatprep.subr.mxu0 0.0
  %2224 = vmatpush2.msra.mxu0 0.0
  %2225 = vmatprep.subr.mxu0 0.0
  %2226 = vmatpush2.msra.mxu0 0.0
  %2227 = vmatprep.subr.mxu0 0.0
  %2228 = vmatpush2.msra.mxu0 0.0
  %2229 = vmatprep.subr.mxu0 0.0
  %2230 = vmatpush2.msra.mxu0 0.0
  %2231 = vmatprep.subr.mxu0 0.0
  %2232 = vmatpush2.msra.mxu0 0.0
  %2233 = vmatprep.subr.mxu0 0.0
  %2234 = vmatpush2.msra.mxu0 0.0
  %2235 = vmatprep.subr.mxu0 0.0
  %2236 = vmatpush2.msra.mxu0 0.0
  %2237 = vmatprep.subr.mxu0 0.0
  %2238 = vmatpush2.msra.mxu0 0.0
  %2239 = vmatprep.subr.mxu0 0.0
  %2240 = vmatpush2.msra.mxu0 0.0
  %2241 = vmatprep.subr.mxu0 0.0
  %2242 = vmatpush2.msra.mxu0 0.0
  %2243 = vmatprep.subr.mxu0 0.0
  %2244 = vmatpush2.msra.mxu0 0.0
  %2245 = vmatprep.subr.mxu0 0.0
  %2246 = vmatpush2.msra.mxu0 0.0
  %2247 = vmatprep.subr.mxu0 0.0
  %2248 = vmatpush2.msra.mxu0 0.0
  %2249 = vmatprep.subr.mxu0 0.0
  %2250 = vmatpush2.msra.mxu0 0.0
  %2251 = vmatprep.subr.mxu0 0.0
  %2252 = vmatpush2.msra.mxu0 0.0
  %2253 = vmatprep.subr.mxu0 0.0
  %2254 = vmatpush2.msra.mxu0 0.0
  %2255 = vmatprep.mubr.f32.mxu0 0.0
  %2256 = vmatmul.mubr.f32.gmra.mxu0 %v2183
  %v2257 = vpop.f32.mrf.mxu0
  %v2258 = vadd.f32 0.0, %v2257
  %v2259 = vpop.f32.mrf.mxu0
  %2260 = vmatprep.mubr.f32.mxu0 0.0
  %2261 = vmatmul.mubr.f32.gmra.mxu0 %v2186
  %v2262 = vpop.f32.mrf.mxu0
  %v2263 = vadd.f32 0.0, %v2262
  %v2264 = vpop.f32.mrf.mxu0
  %2265 = vmatprep.mubr.f32.mxu0 0.0
  %2266 = vmatmul.mubr.f32.gmra.mxu0 %v2189
  %v2267 = vpop.f32.mrf.mxu0
  %v2268 = vadd.f32 0.0, %v2267
  %v2269 = vpop.f32.mrf.mxu0
  %2270 = vdwg.mxu0
  %2271 = vrot.lane.b32.xlu0 %v1779, 112
  %v2272 = vpop.permute.xlu0 %2271
  %2273 = vrot.lane.b32.xlu0 %v1782, 112
  %v2274 = vpop.permute.xlu0 %2273
  %2275 = vrot.lane.b32.xlu0 %v1787, 112
  %v2276 = vpop.permute.xlu0 %2275
  %2277 = vrot.lane.b32.xlu0 %v1779, 80
  %v2278 = vpop.permute.xlu0 %2277
  %2279 = vrot.lane.b32.xlu0 %v1782, 80
  %v2280 = vpop.permute.xlu0 %2279
  %2281 = vrot.lane.b32.xlu0 %v1787, 80
  %v2282 = vpop.permute.xlu0 %2281
  %v2283 = vsel %vm274, %v2272, 0
  %v2285 = vsel %vm274, %v2274, 0
  %v2287 = vsel %vm274, %v2276, 0
  %v2289 = vsel %vm274, %v2278, 0
  %v2291 = vsel %vm274, %v2280, 0
  %v2293 = vsel %vm274, %v2282, 0
  %2295 = vmatprep.subr.mxu0 0.0
  %2296 = vmatpush1.xpose.msra.mxu0 0.0
  %2297 = vmatprep.subr.mxu0 0.0
  %2298 = vmatpush1.xpose.msra.mxu0 0.0
  %2299 = vmatprep.subr.mxu0 0.0
  %2300 = vmatpush1.xpose.msra.mxu0 0.0
  %2301 = vmatprep.subr.mxu0 0.0
  %2302 = vmatpush1.xpose.msra.mxu0 0.0
  %2303 = vmatprep.subr.mxu0 0.0
  %2304 = vmatpush1.xpose.msra.mxu0 0.0
  %2305 = vmatprep.subr.mxu0 0.0
  %2306 = vmatpush1.xpose.msra.mxu0 0.0
  %2307 = vmatprep.subr.mxu0 0.0
  %2308 = vmatpush1.xpose.msra.mxu0 0.0
  %2309 = vmatprep.subr.mxu0 0.0
  %2310 = vmatpush1.xpose.msra.mxu0 0.0
  %2311 = vmatprep.subr.mxu0 0.0
  %2312 = vmatpush1.xpose.msra.mxu0 0.0
  %2313 = vmatprep.subr.mxu0 0.0
  %2314 = vmatpush1.xpose.msra.mxu0 0.0
  %2315 = vmatprep.subr.mxu0 0.0
  %2316 = vmatpush1.xpose.msra.mxu0 0.0
  %2317 = vmatprep.subr.mxu0 0.0
  %2318 = vmatpush1.xpose.msra.mxu0 0.0
  %2319 = vmatprep.subr.mxu0 0.0
  %2320 = vmatpush1.xpose.msra.mxu0 0.0
  %2321 = vmatprep.subr.mxu0 0.0
  %2322 = vmatpush1.xpose.msra.mxu0 %v2293
  %2323 = vmatprep.subr.mxu0 0.0
  %2324 = vmatpush1.xpose.msra.mxu0 %v2291
  %2325 = vmatprep.subr.mxu0 0.0
  %2326 = vmatpush1.xpose.msra.mxu0 %v2289
  %2327 = vmatprep.subr.mxu0 0.0
  %2328 = vmatpush2.xpose.msra.mxu0 0.0
  %2329 = vmatprep.subr.mxu0 0.0
  %2330 = vmatpush2.xpose.msra.mxu0 0.0
  %2331 = vmatprep.subr.mxu0 0.0
  %2332 = vmatpush2.xpose.msra.mxu0 0.0
  %2333 = vmatprep.subr.mxu0 0.0
  %2334 = vmatpush2.xpose.msra.mxu0 0.0
  %2335 = vmatprep.subr.mxu0 0.0
  %2336 = vmatpush2.xpose.msra.mxu0 0.0
  %2337 = vmatprep.subr.mxu0 0.0
  %2338 = vmatpush2.xpose.msra.mxu0 0.0
  %2339 = vmatprep.subr.mxu0 0.0
  %2340 = vmatpush2.xpose.msra.mxu0 0.0
  %2341 = vmatprep.subr.mxu0 0.0
  %2342 = vmatpush2.xpose.msra.mxu0 0.0
  %2343 = vmatprep.subr.mxu0 0.0
  %2344 = vmatpush2.xpose.msra.mxu0 0.0
  %2345 = vmatprep.subr.mxu0 0.0
  %2346 = vmatpush2.xpose.msra.mxu0 0.0
  %2347 = vmatprep.subr.mxu0 0.0
  %2348 = vmatpush2.xpose.msra.mxu0 0.0
  %2349 = vmatprep.subr.mxu0 0.0
  %2350 = vmatpush2.xpose.msra.mxu0 0.0
  %2351 = vmatprep.subr.mxu0 0.0
  %2352 = vmatpush2.xpose.msra.mxu0 0.0
  %2353 = vmatprep.subr.mxu0 0.0
  %2354 = vmatpush2.xpose.msra.mxu0 0.0
  %2355 = vmatprep.subr.mxu0 0.0
  %2356 = vmatpush2.xpose.msra.mxu0 0.0
  %2357 = vmatprep.subr.mxu0 0.0
  %2358 = vmatpush2.xpose.msra.mxu0 0.0
  %2359 = vmatprep.mubr.f32.mxu0 0.0
  %2360 = vmatmul.mubr.f32.gmra.mxu0 %v2283
  %v2361 = vpop.f32.mrf.mxu0
  %v2362 = vadd.f32 0.0, %v2361
  %v2363 = vpop.f32.mrf.mxu0
  %2364 = vmatprep.mubr.f32.mxu0 0.0
  %2365 = vmatmul.mubr.f32.gmra.mxu0 %v2285
  %v2366 = vpop.f32.mrf.mxu0
  %v2367 = vadd.f32 0.0, %v2366
  %v2368 = vpop.f32.mrf.mxu0
  %2369 = vmatprep.mubr.f32.mxu0 0.0
  %2370 = vmatmul.mubr.f32.gmra.mxu0 %v2287
  %v2371 = vpop.f32.mrf.mxu0
  %v2372 = vadd.f32 0.0, %v2371
  %v2373 = vpop.f32.mrf.mxu0
  %2374 = vdwg.mxu0
  %v2375 = vmul.f32 %v2362, 0.35355338
  %v2376 = vmul.f32 %v2367, 0.35355338
  %v2377 = vmul.f32 %v2372, 0.35355338
  %v2378 = vadd.f32 %v2375, %v117
  %v2379 = vadd.f32 %v2376, %v118
  %v2380 = vadd.f32 %v2377, %v119
  %v2381 = vsel %vm373, %v2378, -inf
  %2382 = vmax.xlane.f32.xlu0 %v2381
  %v2383 = vpop.xlane.xlu0 %2382
  %v2384 = vsel %vm373, %v2379, -inf
  %2385 = vmax.xlane.f32.xlu0 %v2384
  %v2386 = vpop.xlane.xlu0 %2385
  %v2387 = vsel %vm373, %v2380, -inf
  %2388 = vmax.xlane.f32.xlu0 %v2387
  %v2389 = vpop.xlane.xlu0 %2388
  %v2390 = vsub.f32 %v2378, %v2383
  %v2391 = vsub.f32 %v2379, %v2386
  %v2392 = vsub.f32 %v2380, %v2389
  %v2393 = vmul.f32 %v2390, 1.442695
  %v2394 = vpow.pop %v2393
  %v2395 = vmul.f32 %v2391, 1.442695
  %v2396 = vpow.pop %v2395
  %v2397 = vmul.f32 %v2392, 1.442695
  %v2398 = vpow.pop %v2397
  %v2399 = vsel %vm373, %v2394, 0.0
  %2400 = vadd.xlane.f32.xlu0 %v2399
  %v2401 = vpop.xlane.xlu0 %2400
  %v2402 = vsel %vm373, %v2396, 0.0
  %2403 = vadd.xlane.f32.xlu0 %v2402
  %v2404 = vpop.xlane.xlu0 %2403
  %v2405 = vsel %vm373, %v2398, 0.0
  %2406 = vadd.xlane.f32.xlu0 %v2405
  %v2407 = vpop.xlane.xlu0 %2406
  %v2408 = vrcp.pop %v2401
  %v2409 = vrcp.pop %v2404
  %v2410 = vrcp.pop %v2407
  %v2411 = vmul.f32 %v2394, %v2408
  %v2412 = vmul.f32 %v2396, %v2409
  %v2413 = vmul.f32 %v2398, %v2410
  %2414 = vrot.lane.b32.xlu0 %v1779, 48
  %v2415 = vpop.permute.xlu0 %2414
  %2416 = vrot.lane.b32.xlu0 %v1782, 48
  %v2417 = vpop.permute.xlu0 %2416
  %2418 = vrot.lane.b32.xlu0 %v1787, 48
  %v2419 = vpop.permute.xlu0 %2418
  %v2424 = vsel %vm373, %v2411, 0
  %v2427 = vsel %vm373, %v2412, 0
  %v2430 = vsel %vm373, %v2413, 0
  %2432 = vmatprep.subr.mxu0 0.0
  %2433 = vmatpush1.msra.mxu0 0.0
  %2434 = vmatprep.subr.mxu0 0.0
  %2435 = vmatpush1.msra.mxu0 0.0
  %2436 = vmatprep.subr.mxu0 0.0
  %2437 = vmatpush1.msra.mxu0 0.0
  %2438 = vmatprep.subr.mxu0 0.0
  %2439 = vmatpush1.msra.mxu0 0.0
  %2440 = vmatprep.subr.mxu0 0.0
  %2441 = vmatpush1.msra.mxu0 0.0
  %2442 = vmatprep.subr.mxu0 0.0
  %2443 = vmatpush1.msra.mxu0 0.0
  %2444 = vmatprep.subr.mxu0 0.0
  %2445 = vmatpush1.msra.mxu0 0.0
  %2446 = vmatprep.subr.mxu0 0.0
  %2447 = vmatpush1.msra.mxu0 0.0
  %2448 = vmatprep.subr.mxu0 0.0
  %2449 = vmatpush1.msra.mxu0 0.0
  %2450 = vmatprep.subr.mxu0 0.0
  %2451 = vmatpush1.msra.mxu0 0.0
  %2452 = vmatprep.subr.mxu0 0.0
  %2453 = vmatpush1.msra.mxu0 0.0
  %2454 = vmatprep.subr.mxu0 0.0
  %2455 = vmatpush1.msra.mxu0 0.0
  %2456 = vmatprep.subr.mxu0 0.0
  %2457 = vmatpush1.msra.mxu0 0.0
  %2458 = vmatprep.subr.mxu0 0.0
  %2459 = vmatpush1.msra.mxu0 %v2419
  %2460 = vmatprep.subr.mxu0 0.0
  %2461 = vmatpush1.msra.mxu0 %v2417
  %2462 = vmatprep.subr.mxu0 0.0
  %2463 = vmatpush1.msra.mxu0 %v2415
  %2464 = vmatprep.subr.mxu0 0.0
  %2465 = vmatpush2.msra.mxu0 0.0
  %2466 = vmatprep.subr.mxu0 0.0
  %2467 = vmatpush2.msra.mxu0 0.0
  %2468 = vmatprep.subr.mxu0 0.0
  %2469 = vmatpush2.msra.mxu0 0.0
  %2470 = vmatprep.subr.mxu0 0.0
  %2471 = vmatpush2.msra.mxu0 0.0
  %2472 = vmatprep.subr.mxu0 0.0
  %2473 = vmatpush2.msra.mxu0 0.0
  %2474 = vmatprep.subr.mxu0 0.0
  %2475 = vmatpush2.msra.mxu0 0.0
  %2476 = vmatprep.subr.mxu0 0.0
  %2477 = vmatpush2.msra.mxu0 0.0
  %2478 = vmatprep.subr.mxu0 0.0
  %2479 = vmatpush2.msra.mxu0 0.0
  %2480 = vmatprep.subr.mxu0 0.0
  %2481 = vmatpush2.msra.mxu0 0.0
  %2482 = vmatprep.subr.mxu0 0.0
  %2483 = vmatpush2.msra.mxu0 0.0
  %2484 = vmatprep.subr.mxu0 0.0
  %2485 = vmatpush2.msra.mxu0 0.0
  %2486 = vmatprep.subr.mxu0 0.0
  %2487 = vmatpush2.msra.mxu0 0.0
  %2488 = vmatprep.subr.mxu0 0.0
  %2489 = vmatpush2.msra.mxu0 0.0
  %2490 = vmatprep.subr.mxu0 0.0
  %2491 = vmatpush2.msra.mxu0 0.0
  %2492 = vmatprep.subr.mxu0 0.0
  %2493 = vmatpush2.msra.mxu0 0.0
  %2494 = vmatprep.subr.mxu0 0.0
  %2495 = vmatpush2.msra.mxu0 0.0
  %2496 = vmatprep.mubr.f32.mxu0 0.0
  %2497 = vmatmul.mubr.f32.gmra.mxu0 %v2424
  %v2498 = vpop.f32.mrf.mxu0
  %v2499 = vadd.f32 0.0, %v2498
  %v2500 = vpop.f32.mrf.mxu0
  %2501 = vmatprep.mubr.f32.mxu0 0.0
  %2502 = vmatmul.mubr.f32.gmra.mxu0 %v2427
  %v2503 = vpop.f32.mrf.mxu0
  %v2504 = vadd.f32 0.0, %v2503
  %v2505 = vpop.f32.mrf.mxu0
  %2506 = vmatprep.mubr.f32.mxu0 0.0
  %2507 = vmatmul.mubr.f32.gmra.mxu0 %v2430
  %v2508 = vpop.f32.mrf.mxu0
  %v2509 = vadd.f32 0.0, %v2508
  %v2510 = vpop.f32.mrf.mxu0
  %2511 = vdwg.mxu0
  %2512 = vrot.lane.b32.xlu0 %v1779, 104
  %v2513 = vpop.permute.xlu0 %2512
  %2514 = vrot.lane.b32.xlu0 %v1782, 104
  %v2515 = vpop.permute.xlu0 %2514
  %2516 = vrot.lane.b32.xlu0 %v1787, 104
  %v2517 = vpop.permute.xlu0 %2516
  %2518 = vrot.lane.b32.xlu0 %v1779, 72
  %v2519 = vpop.permute.xlu0 %2518
  %2520 = vrot.lane.b32.xlu0 %v1782, 72
  %v2521 = vpop.permute.xlu0 %2520
  %2522 = vrot.lane.b32.xlu0 %v1787, 72
  %v2523 = vpop.permute.xlu0 %2522
  %v2524 = vsel %vm274, %v2513, 0
  %v2526 = vsel %vm274, %v2515, 0
  %v2528 = vsel %vm274, %v2517, 0
  %v2530 = vsel %vm274, %v2519, 0
  %v2532 = vsel %vm274, %v2521, 0
  %v2534 = vsel %vm274, %v2523, 0
  %2536 = vmatprep.subr.mxu0 0.0
  %2537 = vmatpush1.xpose.msra.mxu0 0.0
  %2538 = vmatprep.subr.mxu0 0.0
  %2539 = vmatpush1.xpose.msra.mxu0 0.0
  %2540 = vmatprep.subr.mxu0 0.0
  %2541 = vmatpush1.xpose.msra.mxu0 0.0
  %2542 = vmatprep.subr.mxu0 0.0
  %2543 = vmatpush1.xpose.msra.mxu0 0.0
  %2544 = vmatprep.subr.mxu0 0.0
  %2545 = vmatpush1.xpose.msra.mxu0 0.0
  %2546 = vmatprep.subr.mxu0 0.0
  %2547 = vmatpush1.xpose.msra.mxu0 0.0
  %2548 = vmatprep.subr.mxu0 0.0
  %2549 = vmatpush1.xpose.msra.mxu0 0.0
  %2550 = vmatprep.subr.mxu0 0.0
  %2551 = vmatpush1.xpose.msra.mxu0 0.0
  %2552 = vmatprep.subr.mxu0 0.0
  %2553 = vmatpush1.xpose.msra.mxu0 0.0
  %2554 = vmatprep.subr.mxu0 0.0
  %2555 = vmatpush1.xpose.msra.mxu0 0.0
  %2556 = vmatprep.subr.mxu0 0.0
  %2557 = vmatpush1.xpose.msra.mxu0 0.0
  %2558 = vmatprep.subr.mxu0 0.0
  %2559 = vmatpush1.xpose.msra.mxu0 0.0
  %2560 = vmatprep.subr.mxu0 0.0
  %2561 = vmatpush1.xpose.msra.mxu0 0.0
  %2562 = vmatprep.subr.mxu0 0.0
  %2563 = vmatpush1.xpose.msra.mxu0 %v2534
  %2564 = vmatprep.subr.mxu0 0.0
  %2565 = vmatpush1.xpose.msra.mxu0 %v2532
  %2566 = vmatprep.subr.mxu0 0.0
  %2567 = vmatpush1.xpose.msra.mxu0 %v2530
  %2568 = vmatprep.subr.mxu0 0.0
  %2569 = vmatpush2.xpose.msra.mxu0 0.0
  %2570 = vmatprep.subr.mxu0 0.0
  %2571 = vmatpush2.xpose.msra.mxu0 0.0
  %2572 = vmatprep.subr.mxu0 0.0
  %2573 = vmatpush2.xpose.msra.mxu0 0.0
  %2574 = vmatprep.subr.mxu0 0.0
  %2575 = vmatpush2.xpose.msra.mxu0 0.0
  %2576 = vmatprep.subr.mxu0 0.0
  %2577 = vmatpush2.xpose.msra.mxu0 0.0
  %2578 = vmatprep.subr.mxu0 0.0
  %2579 = vmatpush2.xpose.msra.mxu0 0.0
  %2580 = vmatprep.subr.mxu0 0.0
  %2581 = vmatpush2.xpose.msra.mxu0 0.0
  %2582 = vmatprep.subr.mxu0 0.0
  %2583 = vmatpush2.xpose.msra.mxu0 0.0
  %2584 = vmatprep.subr.mxu0 0.0
  %2585 = vmatpush2.xpose.msra.mxu0 0.0
  %2586 = vmatprep.subr.mxu0 0.0
  %2587 = vmatpush2.xpose.msra.mxu0 0.0
  %2588 = vmatprep.subr.mxu0 0.0
  %2589 = vmatpush2.xpose.msra.mxu0 0.0
  %2590 = vmatprep.subr.mxu0 0.0
  %2591 = vmatpush2.xpose.msra.mxu0 0.0
  %2592 = vmatprep.subr.mxu0 0.0
  %2593 = vmatpush2.xpose.msra.mxu0 0.0
  %2594 = vmatprep.subr.mxu0 0.0
  %2595 = vmatpush2.xpose.msra.mxu0 0.0
  %2596 = vmatprep.subr.mxu0 0.0
  %2597 = vmatpush2.xpose.msra.mxu0 0.0
  %2598 = vmatprep.subr.mxu0 0.0
  %2599 = vmatpush2.xpose.msra.mxu0 0.0
  %2600 = vmatprep.mubr.f32.mxu0 0.0
  %2601 = vmatmul.mubr.f32.gmra.mxu0 %v2524
  %v2602 = vpop.f32.mrf.mxu0
  %v2603 = vadd.f32 0.0, %v2602
  %v2604 = vpop.f32.mrf.mxu0
  %2605 = vmatprep.mubr.f32.mxu0 0.0
  %2606 = vmatmul.mubr.f32.gmra.mxu0 %v2526
  %v2607 = vpop.f32.mrf.mxu0
  %v2608 = vadd.f32 0.0, %v2607
  %v2609 = vpop.f32.mrf.mxu0
  %2610 = vmatprep.mubr.f32.mxu0 0.0
  %2611 = vmatmul.mubr.f32.gmra.mxu0 %v2528
  %v2612 = vpop.f32.mrf.mxu0
  %v2613 = vadd.f32 0.0, %v2612
  %v2614 = vpop.f32.mrf.mxu0
  %2615 = vdwg.mxu0
  %v2616 = vmul.f32 %v2603, 0.35355338
  %v2617 = vmul.f32 %v2608, 0.35355338
  %v2618 = vmul.f32 %v2613, 0.35355338
  %v2619 = vadd.f32 %v2616, %v117
  %v2620 = vadd.f32 %v2617, %v118
  %v2621 = vadd.f32 %v2618, %v119
  %v2622 = vsel %vm373, %v2619, -inf
  %2623 = vmax.xlane.f32.xlu0 %v2622
  %v2624 = vpop.xlane.xlu0 %2623
  %v2625 = vsel %vm373, %v2620, -inf
  %2626 = vmax.xlane.f32.xlu0 %v2625
  %v2627 = vpop.xlane.xlu0 %2626
  %v2628 = vsel %vm373, %v2621, -inf
  %2629 = vmax.xlane.f32.xlu0 %v2628
  %v2630 = vpop.xlane.xlu0 %2629
  %v2631 = vsub.f32 %v2619, %v2624
  %v2632 = vsub.f32 %v2620, %v2627
  %v2633 = vsub.f32 %v2621, %v2630
  %v2634 = vmul.f32 %v2631, 1.442695
  %v2635 = vpow.pop %v2634
  %v2636 = vmul.f32 %v2632, 1.442695
  %v2637 = vpow.pop %v2636
  %v2638 = vmul.f32 %v2633, 1.442695
  %v2639 = vpow.pop %v2638
  %v2640 = vsel %vm373, %v2635, 0.0
  %2641 = vadd.xlane.f32.xlu0 %v2640
  %v2642 = vpop.xlane.xlu0 %2641
  %v2643 = vsel %vm373, %v2637, 0.0
  %2644 = vadd.xlane.f32.xlu0 %v2643
  %v2645 = vpop.xlane.xlu0 %2644
  %v2646 = vsel %vm373, %v2639, 0.0
  %2647 = vadd.xlane.f32.xlu0 %v2646
  %v2648 = vpop.xlane.xlu0 %2647
  %v2649 = vrcp.pop %v2642
  %v2650 = vrcp.pop %v2645
  %v2651 = vrcp.pop %v2648
  %v2652 = vmul.f32 %v2635, %v2649
  %v2653 = vmul.f32 %v2637, %v2650
  %v2654 = vmul.f32 %v2639, %v2651
  %2655 = vrot.lane.b32.xlu0 %v1779, 40
  %v2656 = vpop.permute.xlu0 %2655
  %2657 = vrot.lane.b32.xlu0 %v1782, 40
  %v2658 = vpop.permute.xlu0 %2657
  %2659 = vrot.lane.b32.xlu0 %v1787, 40
  %v2660 = vpop.permute.xlu0 %2659
  %v2665 = vsel %vm373, %v2652, 0
  %v2668 = vsel %vm373, %v2653, 0
  %v2671 = vsel %vm373, %v2654, 0
  %2673 = vmatprep.subr.mxu0 0.0
  %2674 = vmatpush1.msra.mxu0 0.0
  %2675 = vmatprep.subr.mxu0 0.0
  %2676 = vmatpush1.msra.mxu0 0.0
  %2677 = vmatprep.subr.mxu0 0.0
  %2678 = vmatpush1.msra.mxu0 0.0
  %2679 = vmatprep.subr.mxu0 0.0
  %2680 = vmatpush1.msra.mxu0 0.0
  %2681 = vmatprep.subr.mxu0 0.0
  %2682 = vmatpush1.msra.mxu0 0.0
  %2683 = vmatprep.subr.mxu0 0.0
  %2684 = vmatpush1.msra.mxu0 0.0
  %2685 = vmatprep.subr.mxu0 0.0
  %2686 = vmatpush1.msra.mxu0 0.0
  %2687 = vmatprep.subr.mxu0 0.0
  %2688 = vmatpush1.msra.mxu0 0.0
  %2689 = vmatprep.subr.mxu0 0.0
  %2690 = vmatpush1.msra.mxu0 0.0
  %2691 = vmatprep.subr.mxu0 0.0
  %2692 = vmatpush1.msra.mxu0 0.0
  %2693 = vmatprep.subr.mxu0 0.0
  %2694 = vmatpush1.msra.mxu0 0.0
  %2695 = vmatprep.subr.mxu0 0.0
  %2696 = vmatpush1.msra.mxu0 0.0
  %2697 = vmatprep.subr.mxu0 0.0
  %2698 = vmatpush1.msra.mxu0 0.0
  %2699 = vmatprep.subr.mxu0 0.0
  %2700 = vmatpush1.msra.mxu0 %v2660
  %2701 = vmatprep.subr.mxu0 0.0
  %2702 = vmatpush1.msra.mxu0 %v2658
  %2703 = vmatprep.subr.mxu0 0.0
  %2704 = vmatpush1.msra.mxu0 %v2656
  %2705 = vmatprep.subr.mxu0 0.0
  %2706 = vmatpush2.msra.mxu0 0.0
  %2707 = vmatprep.subr.mxu0 0.0
  %2708 = vmatpush2.msra.mxu0 0.0
  %2709 = vmatprep.subr.mxu0 0.0
  %2710 = vmatpush2.msra.mxu0 0.0
  %2711 = vmatprep.subr.mxu0 0.0
  %2712 = vmatpush2.msra.mxu0 0.0
  %2713 = vmatprep.subr.mxu0 0.0
  %2714 = vmatpush2.msra.mxu0 0.0
  %2715 = vmatprep.subr.mxu0 0.0
  %2716 = vmatpush2.msra.mxu0 0.0
  %2717 = vmatprep.subr.mxu0 0.0
  %2718 = vmatpush2.msra.mxu0 0.0
  %2719 = vmatprep.subr.mxu0 0.0
  %2720 = vmatpush2.msra.mxu0 0.0
  %2721 = vmatprep.subr.mxu0 0.0
  %2722 = vmatpush2.msra.mxu0 0.0
  %2723 = vmatprep.subr.mxu0 0.0
  %2724 = vmatpush2.msra.mxu0 0.0
  %2725 = vmatprep.subr.mxu0 0.0
  %2726 = vmatpush2.msra.mxu0 0.0
  %2727 = vmatprep.subr.mxu0 0.0
  %2728 = vmatpush2.msra.mxu0 0.0
  %2729 = vmatprep.subr.mxu0 0.0
  %2730 = vmatpush2.msra.mxu0 0.0
  %2731 = vmatprep.subr.mxu0 0.0
  %2732 = vmatpush2.msra.mxu0 0.0
  %2733 = vmatprep.subr.mxu0 0.0
  %2734 = vmatpush2.msra.mxu0 0.0
  %2735 = vmatprep.subr.mxu0 0.0
  %2736 = vmatpush2.msra.mxu0 0.0
  %2737 = vmatprep.mubr.f32.mxu0 0.0
  %2738 = vmatmul.mubr.f32.gmra.mxu0 %v2665
  %v2739 = vpop.f32.mrf.mxu0
  %v2740 = vadd.f32 0.0, %v2739
  %v2741 = vpop.f32.mrf.mxu0
  %2742 = vmatprep.mubr.f32.mxu0 0.0
  %2743 = vmatmul.mubr.f32.gmra.mxu0 %v2668
  %v2744 = vpop.f32.mrf.mxu0
  %v2745 = vadd.f32 0.0, %v2744
  %v2746 = vpop.f32.mrf.mxu0
  %2747 = vmatprep.mubr.f32.mxu0 0.0
  %2748 = vmatmul.mubr.f32.gmra.mxu0 %v2671
  %v2749 = vpop.f32.mrf.mxu0
  %v2750 = vadd.f32 0.0, %v2749
  %v2751 = vpop.f32.mrf.mxu0
  %2752 = vdwg.mxu0
  %2756 = vrot.lane.b32.xlu0 %v2258, 8
  %v2757 = vpop.permute.xlu0 %2756
  %2758 = vrot.lane.b32.xlu0 %v2263, 8
  %v2759 = vpop.permute.xlu0 %2758
  %2760 = vrot.lane.b32.xlu0 %v2268, 8
  %v2761 = vpop.permute.xlu0 %2760
  %2768 = vrot.lane.b32.xlu0 %v2499, 16
  %v2769 = vpop.permute.xlu0 %2768
  %2770 = vrot.lane.b32.xlu0 %v2504, 16
  %v2771 = vpop.permute.xlu0 %2770
  %2772 = vrot.lane.b32.xlu0 %v2509, 16
  %v2773 = vpop.permute.xlu0 %2772
  %2780 = vrot.lane.b32.xlu0 %v2740, 24
  %v2781 = vpop.permute.xlu0 %2780
  %2782 = vrot.lane.b32.xlu0 %v2745, 24
  %v2783 = vpop.permute.xlu0 %2782
  %2784 = vrot.lane.b32.xlu0 %v2750, 24
  %v2785 = vpop.permute.xlu0 %2784
  %v2789 = vsel %vm274, %v2017, %v2757
  %v2790 = vsel %vm274, %v2022, %v2759
  %v2791 = vsel %vm274, %v2027, %v2761
  %v2792 = vsel %vm1267, %v2789, %v2769
  %v2793 = vsel %vm1267, %v2790, %v2771
  %v2794 = vsel %vm1267, %v2791, %v2773
  %v2795 = vsel %vm373, %v2792, %v2781
  %v2796 = vsel %vm373, %v2793, %v2783
  %v2797 = vsel %vm373, %v2794, %v2785
  %v2798 = vpack.c.bf16 %v2796, %v2795
  %v2799 = vpack.c.bf16 %v2797, %v2797
  %s2800 = scalar_lea.vmem %s6, 16
  %v2801 = vld [vmem:[%s2800] sm:$0xf]
  %v2802 = vld [vmem:[%s2800 + $0x4] sm:$0xf]
  %v2803 = vld [vmem:[%s2800 + $0x8] sm:$0xf]
  %v2804 = vld [vmem:[%s2800 + $0xc] sm:$0xf]
  %v2809 = vunpack.c.l.b16 %v2801
  %v2810 = vunpack.c.l.b16 %v2802
  %v2811 = vunpack.c.l.b16 %v2803
  %v2812 = vunpack.c.l.b16 %v2804
  %v2813 = vpack.c.b16 %v2810, %v2809
  %v2814 = vpack.c.b16 %v2812, %v2811
  %v2818 = vsel %vm127, %v2798, 0
  %v2821 = vsel %vm127, %v2799, 0
  %2823 = vmatprep.subr.bf16.mxu0 0
  %2824 = vmatpush1.bf16.msra.mxu0 0
  %2825 = vmatprep.subr.bf16.mxu0 0
  %2826 = vmatpush1.bf16.msra.mxu0 0
  %2827 = vmatprep.subr.bf16.mxu0 0
  %2828 = vmatpush1.bf16.msra.mxu0 0
  %2829 = vmatprep.subr.bf16.mxu0 0
  %2830 = vmatpush1.bf16.msra.mxu0 0
  %2831 = vmatprep.subr.bf16.mxu0 0
  %2832 = vmatpush1.bf16.msra.mxu0 0
  %2833 = vmatprep.subr.bf16.mxu0 0
  %2834 = vmatpush1.bf16.msra.mxu0 0
  %2835 = vmatprep.subr.bf16.mxu0 0
  %2836 = vmatpush1.bf16.msra.mxu0 %v2814
  %2837 = vmatprep.subr.bf16.mxu0 0
  %2838 = vmatpush1.bf16.msra.mxu0 %v2813
  %2839 = vmatprep.subr.bf16.mxu0 0
  %2840 = vmatpush2.bf16.msra.mxu0 0
  %2841 = vmatprep.subr.bf16.mxu0 0
  %2842 = vmatpush2.bf16.msra.mxu0 0
  %2843 = vmatprep.subr.bf16.mxu0 0
  %2844 = vmatpush2.bf16.msra.mxu0 0
  %2845 = vmatprep.subr.bf16.mxu0 0
  %2846 = vmatpush2.bf16.msra.mxu0 0
  %2847 = vmatprep.subr.bf16.mxu0 0
  %2848 = vmatpush2.bf16.msra.mxu0 0
  %2849 = vmatprep.subr.bf16.mxu0 0
  %2850 = vmatpush2.bf16.msra.mxu0 0
  %2851 = vmatprep.subr.bf16.mxu0 0
  %2852 = vmatpush2.bf16.msra.mxu0 0
  %2853 = vmatprep.subr.bf16.mxu0 0
  %2854 = vmatpush2.bf16.msra.mxu0 0
  %2855 = vmatprep.mubr.bf16.mxu0 0
  %2856 = vmatmul.mubr.bf16.gmra.mxu0 %v2818
  %v2857 = vpop.f32.mrf.mxu0
  %v2858 = vadd.f32 0.0, %v2857
  %v2859 = vpop.f32.mrf.mxu0
  %v2860 = vpop.f32.mrf.mxu0
  %v2861 = vadd.f32 0.0, %v2860
  %v2862 = vpop.f32.mrf.mxu0
  %2863 = vmatprep.mubr.bf16.mxu0 0
  %2864 = vmatmul.mubr.bf16.gmra.mxu0 %v2821
  %v2865 = vpop.f32.mrf.mxu0
  %v2866 = vadd.f32 0.0, %v2865
  %v2867 = vpop.f32.mrf.mxu0
  %v2868 = vpop.f32.mrf.mxu0
  %v2869 = vpop.f32.mrf.mxu0
  %2870 = vdwg.mxu0
  %v2871 = vadd.f32 %v1643, %v2858
  %v2872 = vadd.f32 %v1644, %v2861
  %v2873 = vadd.f32 %v1645, %v2866
  %s2874 = scalar_lea.vmem %s7, 1
  %v2875 = vld [vmem:[%s2874] sm:$0x1]
  %v2877 = vlaneseq
  %v2878 = vshrl.u32 %v2877, 7
  %v2879 = vsub.s32 0, %v2878
  %v2880 = vrot.slane %v2875, %v2879
  %v2882 = vadd.f32 %v2871, %v2880
  %v2883 = vadd.f32 %v2872, %v2880
  %v2884 = vadd.f32 %v2873, %v2880
  %v2885 = vsel %vm127, %v2882, 0.0
  %2886 = vadd.xlane.f32.xlu0 %v2885
  %v2887 = vpop.xlane.xlu0 %2886
  %v2888 = vsel %vm127, %v2883, 0.0
  %2889 = vadd.xlane.f32.xlu0 %v2888
  %v2890 = vpop.xlane.xlu0 %2889
  %v2891 = vsel %vm127, %v2884, 0.0
  %2892 = vadd.xlane.f32.xlu0 %v2891
  %v2893 = vpop.xlane.xlu0 %2892
  %v2894 = vmul.f32 %v2887, %v137
  %v2895 = vmul.f32 %v2890, %v137
  %v2896 = vmul.f32 %v2893, %v137
  %v2897 = vsub.f32 %v2882, %v2894
  %v2898 = vsub.f32 %v2883, %v2895
  %v2899 = vsub.f32 %v2884, %v2896
  %v2900 = vmul.f32 %v2897, %v2897
  %v2901 = vmul.f32 %v2898, %v2898
  %v2902 = vmul.f32 %v2899, %v2899
  %v2903 = vsel %vm127, %v2900, 0.0
  %2904 = vadd.xlane.f32.xlu0 %v2903
  %v2905 = vpop.xlane.xlu0 %2904
  %v2906 = vsel %vm127, %v2901, 0.0
  %2907 = vadd.xlane.f32.xlu0 %v2906
  %v2908 = vpop.xlane.xlu0 %2907
  %v2909 = vsel %vm127, %v2902, 0.0
  %2910 = vadd.xlane.f32.xlu0 %v2909
  %v2911 = vpop.xlane.xlu0 %2910
  %v2912 = vmul.f32 %v2905, %v137
  %v2913 = vmul.f32 %v2908, %v137
  %v2914 = vmul.f32 %v2911, %v137
  %v2915 = vadd.f32 %v2912, 1e-05
  %v2916 = vadd.f32 %v2913, 1e-05
  %v2917 = vadd.f32 %v2914, 1e-05
  %v2918 = vrsqrt.pop %v2915
  %v2919 = vrsqrt.pop %v2916
  %v2920 = vrsqrt.pop %v2917
  %v2921 = vmul.f32 %v2897, %v2918
  %v2922 = vmul.f32 %v2898, %v2919
  %v2923 = vmul.f32 %v2899, %v2920
  %v2925 = vlaneseq
  %v2926 = vshrl.u32 %v2925, 7
  %v2927 = vsub.s32 0, %v2926
  %v2928 = vrot.slane %v1651, %v2927
  %v2930 = vmul.f32 %v2921, %v2928
  %v2931 = vmul.f32 %v2922, %v2928
  %v2932 = vmul.f32 %v2923, %v2928
  %v2934 = vlaneseq
  %v2935 = vshrl.u32 %v2934, 7
  %v2936 = vsub.s32 0, %v2935
  %v2937 = vrot.slane %v1653, %v2936
  %v2939 = vadd.f32 %v2930, %v2937
  %v2940 = vadd.f32 %v2931, %v2937
  %v2941 = vadd.f32 %v2932, %v2937
  %v2942 = vpack.c.bf16 %v2940, %v2939
  %v2943 = vpack.c.bf16 %v2941, %v2941
  %s2944 = scalar_lea.vmem %s8, 16
  %v2945 = vld [vmem:[%s2944] sm:$0xf]
  %v2946 = vld [vmem:[%s2944 + $0x4] sm:$0xf]
  %v2947 = vld [vmem:[%s2944 + $0x8] sm:$0xf]
  %v2948 = vld [vmem:[%s2944 + $0xc] sm:$0xf]
  %s2949 = scalar_lea.vmem %s9, 1
  %v2950 = vld [vmem:[%s2949] sm:$0x1]
  %v2952 = vlaneseq
  %v2953 = vshrl.u32 %v2952, 7
  %v2954 = vsub.s32 0, %v2953
  %v2955 = vrot.slane %v2950, %v2954
  %v2961 = vunpack.c.l.b16 %v2945
  %v2962 = vunpack.c.l.b16 %v2946
  %v2963 = vunpack.c.l.b16 %v2947
  %v2964 = vunpack.c.l.b16 %v2948
  %v2965 = vpack.c.b16 %v2962, %v2961
  %v2966 = vpack.c.b16 %v2964, %v2963
  %v2970 = vsel %vm127, %v2942, 0
  %v2973 = vsel %vm127, %v2943, 0
  %2975 = vmatprep.subr.bf16.mxu0 0
  %2976 = vmatpush1.bf16.msra.mxu0 0
  %2977 = vmatprep.subr.bf16.mxu0 0
  %2978 = vmatpush1.bf16.msra.mxu0 0
  %2979 = vmatprep.subr.bf16.mxu0 0
  %2980 = vmatpush1.bf16.msra.mxu0 0
  %2981 = vmatprep.subr.bf16.mxu0 0
  %2982 = vmatpush1.bf16.msra.mxu0 0
  %2983 = vmatprep.subr.bf16.mxu0 0
  %2984 = vmatpush1.bf16.msra.mxu0 0
  %2985 = vmatprep.subr.bf16.mxu0 0
  %2986 = vmatpush1.bf16.msra.mxu0 0
  %2987 = vmatprep.subr.bf16.mxu0 0
  %2988 = vmatpush1.bf16.msra.mxu0 %v2966
  %2989 = vmatprep.subr.bf16.mxu0 0
  %2990 = vmatpush1.bf16.msra.mxu0 %v2965
  %2991 = vmatprep.subr.bf16.mxu0 0
  %2992 = vmatpush2.bf16.msra.mxu0 0
  %2993 = vmatprep.subr.bf16.mxu0 0
  %2994 = vmatpush2.bf16.msra.mxu0 0
  %2995 = vmatprep.subr.bf16.mxu0 0
  %2996 = vmatpush2.bf16.msra.mxu0 0
  %2997 = vmatprep.subr.bf16.mxu0 0
  %2998 = vmatpush2.bf16.msra.mxu0 0
  %2999 = vmatprep.subr.bf16.mxu0 0
  %3000 = vmatpush2.bf16.msra.mxu0 0
  %3001 = vmatprep.subr.bf16.mxu0 0
  %3002 = vmatpush2.bf16.msra.mxu0 0
  %3003 = vmatprep.subr.bf16.mxu0 0
  %3004 = vmatpush2.bf16.msra.mxu0 0
  %3005 = vmatprep.subr.bf16.mxu0 0
  %3006 = vmatpush2.bf16.msra.mxu0 0
  %3007 = vmatprep.mubr.bf16.mxu0 0
  %3008 = vmatmul.mubr.bf16.gmra.mxu0 %v2970
  %v3009 = vpop.f32.mrf.mxu0
  %v3010 = vadd.f32 %v2955, %v3009
  %v3011 = vpop.f32.mrf.mxu0
  %v3012 = vpop.f32.mrf.mxu0
  %v3013 = vadd.f32 %v2955, %v3012
  %v3014 = vpop.f32.mrf.mxu0
  %3015 = vmatprep.mubr.bf16.mxu0 0
  %3016 = vmatmul.mubr.bf16.gmra.mxu0 %v2973
  %v3017 = vpop.f32.mrf.mxu0
  %v3018 = vadd.f32 %v2955, %v3017
  %v3019 = vpop.f32.mrf.mxu0
  %v3020 = vpop.f32.mrf.mxu0
  %v3021 = vpop.f32.mrf.mxu0
  %3022 = vdwg.mxu0
  %v3023 = vmul.f32 %v3010, 1.702
  %v3024 = vmul.f32 %v3013, 1.702
  %v3025 = vmul.f32 %v3018, 1.702
  %v3026 = vxor.u32 %v3023, 2147483648
  %v3027 = vxor.u32 %v3024, 2147483648
  %v3028 = vxor.u32 %v3025, 2147483648
  %v3029 = vmul.f32 %v3026, 1.442695
  %v3030 = vpow.pop %v3029
  %v3031 = vmul.f32 %v3027, 1.442695
  %v3032 = vpow.pop %v3031
  %v3033 = vmul.f32 %v3028, 1.442695
  %v3034 = vpow.pop %v3033
  %v3035 = vadd.f32 %v3030, 1.0
  %v3036 = vadd.f32 %v3032, 1.0
  %v3037 = vadd.f32 %v3034, 1.0
  %v3038 = vrcp.pop %v3035
  %v3039 = vmul.f32 1.0, %v3038
  %v3040 = vrcp.pop %v3036
  %v3041 = vmul.f32 1.0, %v3040
  %v3042 = vrcp.pop %v3037
  %v3043 = vmul.f32 1.0, %v3042
  %v3044 = vmul.f32 %v3010, %v3039
  %v3045 = vmul.f32 %v3013, %v3041
  %v3046 = vmul.f32 %v3018, %v3043
  %v3047 = vpack.c.bf16 %v3045, %v3044
  %v3048 = vpack.c.bf16 %v3046, %v3046
  %s3049 = scalar_lea.vmem %s10, 64
  %v3050 = vld [vmem:[%s3049] sm:$0xf]
  %v3051 = vld [vmem:[%s3049 + $0x4] sm:$0xf]
  %v3052 = vld [vmem:[%s3049 + $0x8] sm:$0xf]
  %v3053 = vld [vmem:[%s3049 + $0xc] sm:$0xf]
  %v3054 = vld [vmem:[%s3049 + $0x10] sm:$0xf]
  %v3055 = vld [vmem:[%s3049 + $0x14] sm:$0xf]
  %v3056 = vld [vmem:[%s3049 + $0x18] sm:$0xf]
  %v3057 = vld [vmem:[%s3049 + $0x1c] sm:$0xf]
  %v3058 = vld [vmem:[%s3049 + $0x20] sm:$0xf]
  %v3059 = vld [vmem:[%s3049 + $0x24] sm:$0xf]
  %v3060 = vld [vmem:[%s3049 + $0x28] sm:$0xf]
  %v3061 = vld [vmem:[%s3049 + $0x2c] sm:$0xf]
  %v3062 = vld [vmem:[%s3049 + $0x30] sm:$0xf]
  %v3063 = vld [vmem:[%s3049 + $0x34] sm:$0xf]
  %v3064 = vld [vmem:[%s3049 + $0x38] sm:$0xf]
  %v3065 = vld [vmem:[%s3049 + $0x3c] sm:$0xf]
  %v3082 = vunpack.c.l.b16 %v3050
  %v3083 = vunpack.c.l.b16 %v3051
  %v3084 = vunpack.c.l.b16 %v3052
  %v3085 = vunpack.c.l.b16 %v3053
  %v3086 = vunpack.c.l.b16 %v3054
  %v3087 = vunpack.c.l.b16 %v3055
  %v3088 = vunpack.c.l.b16 %v3056
  %v3089 = vunpack.c.l.b16 %v3057
  %v3090 = vunpack.c.l.b16 %v3058
  %v3091 = vunpack.c.l.b16 %v3059
  %v3092 = vunpack.c.l.b16 %v3060
  %v3093 = vunpack.c.l.b16 %v3061
  %v3094 = vunpack.c.l.b16 %v3062
  %v3095 = vunpack.c.l.b16 %v3063
  %v3096 = vunpack.c.l.b16 %v3064
  %v3097 = vunpack.c.l.b16 %v3065
  %v3098 = vpack.c.b16 %v3083, %v3082
  %v3099 = vpack.c.b16 %v3085, %v3084
  %v3100 = vpack.c.b16 %v3087, %v3086
  %v3101 = vpack.c.b16 %v3089, %v3088
  %v3102 = vpack.c.b16 %v3091, %v3090
  %v3103 = vpack.c.b16 %v3093, %v3092
  %v3104 = vpack.c.b16 %v3095, %v3094
  %v3105 = vpack.c.b16 %v3097, %v3096
  %3114 = vmatprep.subr.bf16.mxu0 0
  %3115 = vmatpush1.bf16.msra.mxu0 %v3105
  %3116 = vmatprep.subr.bf16.mxu0 0
  %3117 = vmatpush1.bf16.msra.mxu0 %v3104
  %3118 = vmatprep.subr.bf16.mxu0 0
  %3119 = vmatpush1.bf16.msra.mxu0 %v3103
  %3120 = vmatprep.subr.bf16.mxu0 0
  %3121 = vmatpush1.bf16.msra.mxu0 %v3102
  %3122 = vmatprep.subr.bf16.mxu0 0
  %3123 = vmatpush1.bf16.msra.mxu0 %v3101
  %3124 = vmatprep.subr.bf16.mxu0 0
  %3125 = vmatpush1.bf16.msra.mxu0 %v3100
  %3126 = vmatprep.subr.bf16.mxu0 0
  %3127 = vmatpush1.bf16.msra.mxu0 %v3099
  %3128 = vmatprep.subr.bf16.mxu0 0
  %3129 = vmatpush1.bf16.msra.mxu0 %v3098
  %3130 = vmatprep.subr.bf16.mxu0 0
  %3131 = vmatpush2.bf16.msra.mxu0 0
  %3132 = vmatprep.subr.bf16.mxu0 0
  %3133 = vmatpush2.bf16.msra.mxu0 0
  %3134 = vmatprep.subr.bf16.mxu0 0
  %3135 = vmatpush2.bf16.msra.mxu0 0
  %3136 = vmatprep.subr.bf16.mxu0 0
  %3137 = vmatpush2.bf16.msra.mxu0 0
  %3138 = vmatprep.subr.bf16.mxu0 0
  %3139 = vmatpush2.bf16.msra.mxu0 0
  %3140 = vmatprep.subr.bf16.mxu0 0
  %3141 = vmatpush2.bf16.msra.mxu0 0
  %3142 = vmatprep.subr.bf16.mxu0 0
  %3143 = vmatpush2.bf16.msra.mxu0 0
  %3144 = vmatprep.subr.bf16.mxu0 0
  %3145 = vmatpush2.bf16.msra.mxu0 0
  %3146 = vmatprep.mubr.bf16.mxu0 0
  %3147 = vmatmul.mubr.bf16.gmra.mxu0 %v3047
  %v3148 = vpop.f32.mrf.mxu0
  %v3149 = vadd.f32 0.0, %v3148
  %v3150 = vpop.f32.mrf.mxu0
  %v3151 = vpop.f32.mrf.mxu0
  %v3152 = vadd.f32 0.0, %v3151
  %v3153 = vpop.f32.mrf.mxu0
  %3154 = vmatprep.mubr.bf16.mxu0 0
  %3155 = vmatmul.mubr.bf16.gmra.mxu0 %v3048
  %v3156 = vpop.f32.mrf.mxu0
  %v3157 = vadd.f32 0.0, %v3156
  %v3158 = vpop.f32.mrf.mxu0
  %v3159 = vpop.f32.mrf.mxu0
  %v3160 = vpop.f32.mrf.mxu0
  %3161 = vdwg.mxu0
  %v3162 = vadd.f32 %v2882, %v3149
  %v3163 = vadd.f32 %v2883, %v3152
  %v3164 = vadd.f32 %v2884, %v3157
  %s3165 = scalar_lea.vmem %s11, 1
  %v3166 = vld [vmem:[%s3165] sm:$0x1]
  %v3168 = vlaneseq
  %v3169 = vshrl.u32 %v3168, 7
  %v3170 = vsub.s32 0, %v3169
  %v3171 = vrot.slane %v3166, %v3170
  %v3173 = vadd.f32 %v3162, %v3171
  %v3174 = vadd.f32 %v3163, %v3171
  %v3175 = vadd.f32 %v3164, %v3171
  %s3176 = scalar_lea.vmem %s3, 8
  %v3177 = vld [vmem:[%s3176] sm:$0x1]
  %s3178 = scalar_lea.vmem %s3, 9
  %v3179 = vld [vmem:[%s3178] sm:$0x1]
  %v3180 = vsel %vm127, %v3173, 0.0
  %3181 = vadd.xlane.f32.xlu0 %v3180
  %v3182 = vpop.xlane.xlu0 %3181
  %v3183 = vsel %vm127, %v3174, 0.0
  %3184 = vadd.xlane.f32.xlu0 %v3183
  %v3185 = vpop.xlane.xlu0 %3184
  %v3186 = vsel %vm127, %v3175, 0.0
  %3187 = vadd.xlane.f32.xlu0 %v3186
  %v3188 = vpop.xlane.xlu0 %3187
  %v3189 = vmul.f32 %v3182, %v137
  %v3190 = vmul.f32 %v3185, %v137
  %v3191 = vmul.f32 %v3188, %v137
  %v3192 = vsub.f32 %v3173, %v3189
  %v3193 = vsub.f32 %v3174, %v3190
  %v3194 = vsub.f32 %v3175, %v3191
  %v3195 = vmul.f32 %v3192, %v3192
  %v3196 = vmul.f32 %v3193, %v3193
  %v3197 = vmul.f32 %v3194, %v3194
  %v3198 = vsel %vm127, %v3195, 0.0
  %3199 = vadd.xlane.f32.xlu0 %v3198
  %v3200 = vpop.xlane.xlu0 %3199
  %v3201 = vsel %vm127, %v3196, 0.0
  %3202 = vadd.xlane.f32.xlu0 %v3201
  %v3203 = vpop.xlane.xlu0 %3202
  %v3204 = vsel %vm127, %v3197, 0.0
  %3205 = vadd.xlane.f32.xlu0 %v3204
  %v3206 = vpop.xlane.xlu0 %3205
  %v3207 = vmul.f32 %v3200, %v137
  %v3208 = vmul.f32 %v3203, %v137
  %v3209 = vmul.f32 %v3206, %v137
  %v3210 = vadd.f32 %v3207, 1e-05
  %v3211 = vadd.f32 %v3208, 1e-05
  %v3212 = vadd.f32 %v3209, 1e-05
  %v3213 = vrsqrt.pop %v3210
  %v3214 = vrsqrt.pop %v3211
  %v3215 = vrsqrt.pop %v3212
  %v3216 = vmul.f32 %v3192, %v3213
  %v3217 = vmul.f32 %v3193, %v3214
  %v3218 = vmul.f32 %v3194, %v3215
  %v3220 = vlaneseq
  %v3221 = vshrl.u32 %v3220, 7
  %v3222 = vsub.s32 0, %v3221
  %v3223 = vrot.slane %v3177, %v3222
  %v3225 = vmul.f32 %v3216, %v3223
  %v3226 = vmul.f32 %v3217, %v3223
  %v3227 = vmul.f32 %v3218, %v3223
  %v3229 = vlaneseq
  %v3230 = vshrl.u32 %v3229, 7
  %v3231 = vsub.s32 0, %v3230
  %v3232 = vrot.slane %v3179, %v3231
  %v3234 = vadd.f32 %v3225, %v3232
  %v3235 = vadd.f32 %v3226, %v3232
  %v3236 = vadd.f32 %v3227, %v3232
  %v3237 = vld [vmem:[%s2] sm:$0x7]
  %v3239 = vsel %vm373, %v3237, 0
  %3241 = vmatprep.subr.mxu0 0.0
  %3242 = vmatpush1.msra.mxu0 0.0
  %3243 = vmatprep.subr.mxu0 0.0
  %3244 = vmatpush1.msra.mxu0 0.0
  %3245 = vmatprep.subr.mxu0 0.0
  %3246 = vmatpush1.msra.mxu0 0.0
  %3247 = vmatprep.subr.mxu0 0.0
  %3248 = vmatpush1.msra.mxu0 0.0
  %3249 = vmatprep.subr.mxu0 0.0
  %3250 = vmatpush1.msra.mxu0 0.0
  %3251 = vmatprep.subr.mxu0 0.0
  %3252 = vmatpush1.msra.mxu0 0.0
  %3253 = vmatprep.subr.mxu0 0.0
  %3254 = vmatpush1.msra.mxu0 0.0
  %3255 = vmatprep.subr.mxu0 0.0
  %3256 = vmatpush1.msra.mxu0 0.0
  %3257 = vmatprep.subr.mxu0 0.0
  %3258 = vmatpush1.msra.mxu0 0.0
  %3259 = vmatprep.subr.mxu0 0.0
  %3260 = vmatpush1.msra.mxu0 0.0
  %3261 = vmatprep.subr.mxu0 0.0
  %3262 = vmatpush1.msra.mxu0 0.0
  %3263 = vmatprep.subr.mxu0 0.0
  %3264 = vmatpush1.msra.mxu0 0.0
  %3265 = vmatprep.subr.mxu0 0.0
  %3266 = vmatpush1.msra.mxu0 0.0
  %3267 = vmatprep.subr.mxu0 0.0
  %3268 = vmatpush1.msra.mxu0 %v3236
  %3269 = vmatprep.subr.mxu0 0.0
  %3270 = vmatpush1.msra.mxu0 %v3235
  %3271 = vmatprep.subr.mxu0 0.0
  %3272 = vmatpush1.msra.mxu0 %v3234
  %3273 = vmatprep.subr.mxu0 0.0
  %3274 = vmatpush2.msra.mxu0 0.0
  %3275 = vmatprep.subr.mxu0 0.0
  %3276 = vmatpush2.msra.mxu0 0.0
  %3277 = vmatprep.subr.mxu0 0.0
  %3278 = vmatpush2.msra.mxu0 0.0
  %3279 = vmatprep.subr.mxu0 0.0
  %3280 = vmatpush2.msra.mxu0 0.0
  %3281 = vmatprep.subr.mxu0 0.0
  %3282 = vmatpush2.msra.mxu0 0.0
  %3283 = vmatprep.subr.mxu0 0.0
  %3284 = vmatpush2.msra.mxu0 0.0
  %3285 = vmatprep.subr.mxu0 0.0
  %3286 = vmatpush2.msra.mxu0 0.0
  %3287 = vmatprep.subr.mxu0 0.0
  %3288 = vmatpush2.msra.mxu0 0.0
  %3289 = vmatprep.subr.mxu0 0.0
  %3290 = vmatpush2.msra.mxu0 0.0
  %3291 = vmatprep.subr.mxu0 0.0
  %3292 = vmatpush2.msra.mxu0 0.0
  %3293 = vmatprep.subr.mxu0 0.0
  %3294 = vmatpush2.msra.mxu0 0.0
  %3295 = vmatprep.subr.mxu0 0.0
  %3296 = vmatpush2.msra.mxu0 0.0
  %3297 = vmatprep.subr.mxu0 0.0
  %3298 = vmatpush2.msra.mxu0 0.0
  %3299 = vmatprep.subr.mxu0 0.0
  %3300 = vmatpush2.msra.mxu0 0.0
  %3301 = vmatprep.subr.mxu0 0.0
  %3302 = vmatpush2.msra.mxu0 0.0
  %3303 = vmatprep.subr.mxu0 0.0
  %3304 = vmatpush2.msra.mxu0 0.0
  %3305 = vmatprep.mubr.f32.mxu0 0.0
  %3306 = vmatmul.mubr.f32.gmra.mxu0 %v3239
  %v3307 = vpop.f32.mrf.mxu0
  %v3308 = vadd.f32 0.0, %v3307
  %v3309 = vpop.f32.mrf.mxu0
  %3310 = vdwg.mxu0
  %v3311 = vpack.c.bf16 %v3308, %v3308
  %v3312 = vld [vmem:[%s12] sm:$0xf]
  %v3313 = vld [vmem:[%s12 + $0x4] sm:$0xf]
  %v3314 = vld [vmem:[%s12 + $0x8] sm:$0xf]
  %v3315 = vld [vmem:[%s12 + $0xc] sm:$0xf]
  %v3320 = vunpack.c.l.b16 %v3312
  %v3321 = vunpack.c.l.b16 %v3313
  %v3322 = vunpack.c.l.b16 %v3314
  %v3323 = vunpack.c.l.b16 %v3315
  %v3324 = vpack.c.b16 %v3321, %v3320
  %v3325 = vpack.c.b16 %v3323, %v3322
  %v3329 = vsel %vm127, %v3311, 0
  %3331 = vmatprep.subr.bf16.mxu0 0
  %3332 = vmatpush1.bf16.msra.mxu0 0
  %3333 = vmatprep.subr.bf16.mxu0 0
  %3334 = vmatpush1.bf16.msra.mxu0 0
  %3335 = vmatprep.subr.bf16.mxu0 0
  %3336 = vmatpush1.bf16.msra.mxu0 0
  %3337 = vmatprep.subr.bf16.mxu0 0
  %3338 = vmatpush1.bf16.msra.mxu0 0
  %3339 = vmatprep.subr.bf16.mxu0 0
  %3340 = vmatpush1.bf16.msra.mxu0 0
  %3341 = vmatprep.subr.bf16.mxu0 0
  %3342 = vmatpush1.bf16.msra.mxu0 0
  %3343 = vmatprep.subr.bf16.mxu0 0
  %3344 = vmatpush1.bf16.msra.mxu0 %v3325
  %3345 = vmatprep.subr.bf16.mxu0 0
  %3346 = vmatpush1.bf16.msra.mxu0 %v3324
  %3347 = vmatprep.subr.bf16.mxu0 0
  %3348 = vmatpush2.bf16.msra.mxu0 0
  %3349 = vmatprep.subr.bf16.mxu0 0
  %3350 = vmatpush2.bf16.msra.mxu0 0
  %3351 = vmatprep.subr.bf16.mxu0 0
  %3352 = vmatpush2.bf16.msra.mxu0 0
  %3353 = vmatprep.subr.bf16.mxu0 0
  %3354 = vmatpush2.bf16.msra.mxu0 0
  %3355 = vmatprep.subr.bf16.mxu0 0
  %3356 = vmatpush2.bf16.msra.mxu0 0
  %3357 = vmatprep.subr.bf16.mxu0 0
  %3358 = vmatpush2.bf16.msra.mxu0 0
  %3359 = vmatprep.subr.bf16.mxu0 0
  %3360 = vmatpush2.bf16.msra.mxu0 0
  %3361 = vmatprep.subr.bf16.mxu0 0
  %3362 = vmatpush2.bf16.msra.mxu0 0
  %3363 = vmatprep.mubr.bf16.mxu0 0
  %3364 = vmatmul.mubr.bf16.gmra.mxu0 %v3329
  %v3365 = vpop.f32.mrf.mxu0
  %v3366 = vadd.f32 0.0, %v3365
  %v3367 = vpop.f32.mrf.mxu0
  %v3368 = vpop.f32.mrf.mxu0
  %v3369 = vpop.f32.mrf.mxu0
  %3370 = vdwg.mxu0
  %v3371 = vmul.f32 %v3366, %v3366
  %vm3372 = vcmask 256000
  %v3373 = vsel %vm3372, %v3371, 0.0
  %3374 = vadd.xlane.f32.xlu0 %v3373
  %v3375 = vpop.xlane.xlu0 %3374
  %v3376 = vadd.f32 %v3375, 1e-12
  %v3377 = vrsqrt.pop %v3376
  %v3378 = vmul.f32 %v3366, %v3377
  %3379 = vst.msk [vmem:[%s13] sm:$0x7] %vm3372, %v3378
  // Predicated region
  $region54: #{clip_inference.3} parent=0 // pred_check
    _
  $region55: #{clip_inference.3} parent=0 // pred_check_branch
    %3381 = sbr.rel (0) target = $region57
  $region56: #{clip_inference.3} parent=0 // pred_region
    _
  $region57: #{clip_inference.3} parent=0 // pred_fallthru
    _
  // Predicated region
  $region58: #{clip_inference.3} parent=0 // pred_check
    _
  $region59: #{clip_inference.3} parent=0 // pred_check_branch
    %3383 = sbr.rel (0) target = $region61
  $region60: #{clip_inference.3} parent=0 // pred_region
    _
  $region61: #{clip_inference.3} parent=0 // pred_fallthru
    _

// kernel: clip_inference.2
$region0: #{clip_inference.2}
  #allocation0 [shape = 'u32[]', space=smem, size = 0x4, offset = 0x4, fixed_abs, tag = 'smem constant byte address 0x4 - core index']
  #allocation1 [shape = 'u32[144,128]{1,0:T(1,128)}', space=vmem, size = 0x12000, scoped, tag = 'internal scratch']
  %s0 = inlined_call_operand.vmem [shape: bf16[10,768], index: 0, kind: input, shape index: {}]
  %s1 = inlined_call_operand.vmem [shape: bf16[768,64], index: 1, kind: input, shape index: {}]
  %s2 = inlined_call_operand.vmem [shape: f32[10,64], index: 2, kind: input, shape index: {}]
  %s3 = inlined_call_operand.vmem [shape: f32[12,1,64], index: 3, kind: input, shape index: {}]
  %s4 = inlined_call_operand.vmem [shape: bf16[2,64,192], index: 4, kind: input, shape index: {}]
  %s5 = inlined_call_operand.vmem [shape: f32[2,1,192], index: 5, kind: input, shape index: {}]
  %s6 = inlined_call_operand.vmem [shape: bf16[2,64,64], index: 6, kind: input, shape index: {}]
  %s7 = inlined_call_operand.vmem [shape: f32[2,1,64], index: 7, kind: input, shape index: {}]
  %s8 = inlined_call_operand.vmem [shape: bf16[2,64,256], index: 8, kind: input, shape index: {}]
  %s9 = inlined_call_operand.vmem [shape: f32[2,1,256], index: 9, kind: input, shape index: {}]
  %s10 = inlined_call_operand.vmem [shape: bf16[2,256,64], index: 10, kind: input, shape index: {}]
  %s11 = inlined_call_operand.vmem [shape: f32[2,1,64], index: 11, kind: input, shape index: {}]
  %s12 = inlined_call_operand.vmem [shape: bf16[64,32], index: 12, kind: input, shape index: {}]
  %s13 = inlined_call_operand.vmem [shape: f32[2,32], index: 13, kind: output, shape index: {}]
  %s14 = sld [smem:[#allocation0]]
  $region62: #{clip_inference.2} parent=0
    _
  %s16 = ssub.s32 1, %s14
  %s17 = scalar_select 0, %s16, %s14
  // Predicated region
  $region2: #{clip_inference.2} parent=0 // pred_check
    _
  $region3: #{clip_inference.2} parent=0 // pred_check_branch
    %19 = sbr.rel (0) target = $region5
  $region4: #{clip_inference.2} parent=0 // pred_region
    _
  $region5: #{clip_inference.2} parent=0 // pred_fallthru
    _
  // Predicated region
  $region6: #{clip_inference.2} parent=0 // pred_check
    _
  $region7: #{clip_inference.2} parent=0 // pred_check_branch
    %21 = sbr.rel (0) target = $region9
  $region8: #{clip_inference.2} parent=0 // pred_region
    _
  $region9: #{clip_inference.2} parent=0 // pred_fallthru
    _
  // Predicated region
  $region10: #{clip_inference.2} parent=0 // pred_check
    _
  $region11: #{clip_inference.2} parent=0 // pred_check_branch
    %23 = sbr.rel (0) target = $region13
  $region12: #{clip_inference.2} parent=0 // pred_region
    _
  $region13: #{clip_inference.2} parent=0 // pred_fallthru
    _
  // Predicated region
  $region14: #{clip_inference.2} parent=0 // pred_check
    _
  $region15: #{clip_inference.2} parent=0 // pred_check_branch
    %25 = sbr.rel (0) target = $region17
  $region16: #{clip_inference.2} parent=0 // pred_region
    _
  $region17: #{clip_inference.2} parent=0 // pred_fallthru
    _
  // Predicated region
  $region18: #{clip_inference.2} parent=0 // pred_check
    _
  $region19: #{clip_inference.2} parent=0 // pred_check_branch
    %27 = sbr.rel (0) target = $region21
  $region20: #{clip_inference.2} parent=0 // pred_region
    _
  $region21: #{clip_inference.2} parent=0 // pred_fallthru
    _
  // Predicated region
  $region22: #{clip_inference.2} parent=0 // pred_check
    _
  $region23: #{clip_inference.2} parent=0 // pred_check_branch
    %29 = sbr.rel (0) target = $region25
  $region24: #{clip_inference.2} parent=0 // pred_region
    _
  $region25: #{clip_inference.2} parent=0 // pred_fallthru
    _
  // Predicated region
  $region26: #{clip_inference.2} parent=0 // pred_check
    _
  $region27: #{clip_inference.2} parent=0 // pred_check_branch
    %31 = sbr.rel (0) target = $region29
  $region28: #{clip_inference.2} parent=0 // pred_region
    _
  $region29: #{clip_inference.2} parent=0 // pred_fallthru
    _
  // Predicated region
  $region30: #{clip_inference.2} parent=0 // pred_check
    _
  $region31: #{clip_inference.2} parent=0 // pred_check_branch
    %33 = sbr.rel (0) target = $region33
  $region32: #{clip_inference.2} parent=0 // pred_region
    _
  $region33: #{clip_inference.2} parent=0 // pred_fallthru
    _
  // Predicated region
  $region34: #{clip_inference.2} parent=0 // pred_check
    _
  $region35: #{clip_inference.2} parent=0 // pred_check_branch
    %35 = sbr.rel (0) target = $region37
  $region36: #{clip_inference.2} parent=0 // pred_region
    _
  $region37: #{clip_inference.2} parent=0 // pred_fallthru
    _
  // Predicated region
  $region38: #{clip_inference.2} parent=0 // pred_check
    _
  $region39: #{clip_inference.2} parent=0 // pred_check_branch
    %37 = sbr.rel (0) target = $region41
  $region40: #{clip_inference.2} parent=0 // pred_region
    _
  $region41: #{clip_inference.2} parent=0 // pred_fallthru
    _
  // Predicated region
  $region42: #{clip_inference.2} parent=0 // pred_check
    _
  $region43: #{clip_inference.2} parent=0 // pred_check_branch
    %39 = sbr.rel (0) target = $region45
  $region44: #{clip_inference.2} parent=0 // pred_region
    _
  $region45: #{clip_inference.2} parent=0 // pred_fallthru
    _
  // Predicated region
  $region46: #{clip_inference.2} parent=0 // pred_check
    _
  $region47: #{clip_inference.2} parent=0 // pred_check_branch
    %41 = sbr.rel (0) target = $region49
  $region48: #{clip_inference.2} parent=0 // pred_region
    _
  $region49: #{clip_inference.2} parent=0 // pred_fallthru
    _
  // Predicated region
  $region50: #{clip_inference.2} parent=0 // pred_check
    _
  $region51: #{clip_inference.2} parent=0 // pred_check_branch
    %43 = sbr.rel (0) target = $region53
  $region52: #{clip_inference.2} parent=0 // pred_region
    _
  $region53: #{clip_inference.2} parent=0 // pred_fallthru
    _
  %v45 = vld [vmem:[%s0] sm:$0xff]
  %v46 = vld [vmem:[%s0 + $0x8] sm:$0xff]
  %v47 = vld [vmem:[%s0 + $0x10] sm:$0xff]
  %v48 = vld [vmem:[%s0 + $0x18] sm:$0x11]
  %v49 = vld [vmem:[%s0 + $0x20] sm:$0x11]
  %v50 = vld [vmem:[%s0 + $0x28] sm:$0x11]
  %v51 = vld [vmem:[%s1] sm:$0xf]
  %v52 = vld [vmem:[%s1 + $0x4] sm:$0xf]
  %v53 = vld [vmem:[%s1 + $0x8] sm:$0xf]
  %v54 = vld [vmem:[%s1 + $0xc] sm:$0xf]
  %v55 = vld [vmem:[%s1 + $0x10] sm:$0xf]
  %v56 = vld [vmem:[%s1 + $0x14] sm:$0xf]
  %v57 = vld [vmem:[%s1 + $0x18] sm:$0xf]
  %v58 = vld [vmem:[%s1 + $0x1c] sm:$0xf]
  %v59 = vld [vmem:[%s1 + $0x20] sm:$0xf]
  %v60 = vld [vmem:[%s1 + $0x24] sm:$0xf]
  %v61 = vld [vmem:[%s1 + $0x28] sm:$0xf]
  %v62 = vld [vmem:[%s1 + $0x2c] sm:$0xf]
  %v63 = vld [vmem:[%s1 + $0x30] sm:$0xf]
  %v64 = vld [vmem:[%s1 + $0x34] sm:$0xf]
  %v65 = vld [vmem:[%s1 + $0x38] sm:$0xf]
  %v66 = vld [vmem:[%s1 + $0x3c] sm:$0xf]
  %v67 = vld [vmem:[%s1 + $0x40] sm:$0xf]
  %v68 = vld [vmem:[%s1 + $0x44] sm:$0xf]
  %v69 = vld [vmem:[%s1 + $0x48] sm:$0xf]
  %v70 = vld [vmem:[%s1 + $0x4c] sm:$0xf]
  %v71 = vld [vmem:[%s1 + $0x50] sm:$0xf]
  %v72 = vld [vmem:[%s1 + $0x54] sm:$0xf]
  %v73 = vld [vmem:[%s1 + $0x58] sm:$0xf]
  %v74 = vld [vmem:[%s1 + $0x5c] sm:$0xf]
  %v75 = vld [vmem:[%s1 + $0x60] sm:$0xf]
  %v76 = vld [vmem:[%s1 + $0x64] sm:$0xf]
  %v77 = vld [vmem:[%s1 + $0x68] sm:$0xf]
  %v78 = vld [vmem:[%s1 + $0x6c] sm:$0xf]
  %v79 = vld [vmem:[%s1 + $0x70] sm:$0xf]
  %v80 = vld [vmem:[%s1 + $0x74] sm:$0xf]
  %v81 = vld [vmem:[%s1 + $0x78] sm:$0xf]
  %v82 = vld [vmem:[%s1 + $0x7c] sm:$0xf]
  %v83 = vld [vmem:[%s1 + $0x80] sm:$0xf]
  %v84 = vld [vmem:[%s1 + $0x84] sm:$0xf]
  %v85 = vld [vmem:[%s1 + $0x88] sm:$0xf]
  %v86 = vld [vmem:[%s1 + $0x8c] sm:$0xf]
  %v87 = vld [vmem:[%s1 + $0x90] sm:$0xf]
  %v88 = vld [vmem:[%s1 + $0x94] sm:$0xf]
  %v89 = vld [vmem:[%s1 + $0x98] sm:$0xf]
  %v90 = vld [vmem:[%s1 + $0x9c] sm:$0xf]
  %v91 = vld [vmem:[%s1 + $0xa0] sm:$0xf]
  %v92 = vld [vmem:[%s1 + $0xa4] sm:$0xf]
  %v93 = vld [vmem:[%s1 + $0xa8] sm:$0xf]
  %v94 = vld [vmem:[%s1 + $0xac] sm:$0xf]
  %v95 = vld [vmem:[%s1 + $0xb0] sm:$0xf]
  %v96 = vld [vmem:[%s1 + $0xb4] sm:$0xf]
  %v97 = vld [vmem:[%s1 + $0xb8] sm:$0xf]
  %v98 = vld [vmem:[%s1 + $0xbc] sm:$0xf]
  %v99 = vld [vmem:[%s1 + $0xc0] sm:$0xf]
  %v100 = vld [vmem:[%s1 + $0xc4] sm:$0xf]
  %v101 = vld [vmem:[%s1 + $0xc8] sm:$0xf]
  %v102 = vld [vmem:[%s1 + $0xcc] sm:$0xf]
  %v103 = vld [vmem:[%s1 + $0xd0] sm:$0xf]
  %v104 = vld [vmem:[%s1 + $0xd4] sm:$0xf]
  %v105 = vld [vmem:[%s1 + $0xd8] sm:$0xf]
  %v106 = vld [vmem:[%s1 + $0xdc] sm:$0xf]
  %v107 = vld [vmem:[%s1 + $0xe0] sm:$0xf]
  %v108 = vld [vmem:[%s1 + $0xe4] sm:$0xf]
  %v109 = vld [vmem:[%s1 + $0xe8] sm:$0xf]
  %v110 = vld [vmem:[%s1 + $0xec] sm:$0xf]
  %v111 = vld [vmem:[%s1 + $0xf0] sm:$0xf]
  %v112 = vld [vmem:[%s1 + $0xf4] sm:$0xf]
  %v113 = vld [vmem:[%s1 + $0xf8] sm:$0xf]
  %v114 = vld [vmem:[%s1 + $0xfc] sm:$0xf]
  %v115 = vld [vmem:[%s1 + $0x100] sm:$0xf]
  %v116 = vld [vmem:[%s1 + $0x104] sm:$0xf]
  %v117 = vld [vmem:[%s1 + $0x108] sm:$0xf]
  %v118 = vld [vmem:[%s1 + $0x10c] sm:$0xf]
  %v119 = vld [vmem:[%s1 + $0x110] sm:$0xf]
  %v120 = vld [vmem:[%s1 + $0x114] sm:$0xf]
  %v121 = vld [vmem:[%s1 + $0x118] sm:$0xf]
  %v122 = vld [vmem:[%s1 + $0x11c] sm:$0xf]
  %v123 = vld [vmem:[%s1 + $0x120] sm:$0xf]
  %v124 = vld [vmem:[%s1 + $0x124] sm:$0xf]
  %v125 = vld [vmem:[%s1 + $0x128] sm:$0xf]
  %v126 = vld [vmem:[%s1 + $0x12c] sm:$0xf]
  %v127 = vld [vmem:[%s1 + $0x130] sm:$0xf]
  %v128 = vld [vmem:[%s1 + $0x134] sm:$0xf]
  %v129 = vld [vmem:[%s1 + $0x138] sm:$0xf]
  %v130 = vld [vmem:[%s1 + $0x13c] sm:$0xf]
  %v131 = vld [vmem:[%s1 + $0x140] sm:$0xf]
  %v132 = vld [vmem:[%s1 + $0x144] sm:$0xf]
  %v133 = vld [vmem:[%s1 + $0x148] sm:$0xf]
  %v134 = vld [vmem:[%s1 + $0x14c] sm:$0xf]
  %v135 = vld [vmem:[%s1 + $0x150] sm:$0xf]
  %v136 = vld [vmem:[%s1 + $0x154] sm:$0xf]
  %v137 = vld [vmem:[%s1 + $0x158] sm:$0xf]
  %v138 = vld [vmem:[%s1 + $0x15c] sm:$0xf]
  %v139 = vld [vmem:[%s1 + $0x160] sm:$0xf]
  %v140 = vld [vmem:[%s1 + $0x164] sm:$0xf]
  %v141 = vld [vmem:[%s1 + $0x168] sm:$0xf]
  %v142 = vld [vmem:[%s1 + $0x16c] sm:$0xf]
  %v143 = vld [vmem:[%s1 + $0x170] sm:$0xf]
  %v144 = vld [vmem:[%s1 + $0x174] sm:$0xf]
  %v145 = vld [vmem:[%s1 + $0x178] sm:$0xf]
  %v146 = vld [vmem:[%s1 + $0x17c] sm:$0xf]
  %v147 = vld [vmem:[%s2] sm:$0xff]
  %v148 = vld [vmem:[%s2 + $0x8] sm:$0x3]
  %v155 = vunpack.c.l.b16 %v45
  %v156 = vunpack.c.h.b16 %v45
  %v157 = vunpack.c.l.b16 %v46
  %v158 = vunpack.c.h.b16 %v46
  %v159 = vunpack.c.l.b16 %v47
  %v160 = vunpack.c.h.b16 %v47
  %v161 = vunpack.c.l.b16 %v48
  %v162 = vunpack.c.h.b16 %v48
  %v163 = vunpack.c.l.b16 %v49
  %v164 = vunpack.c.h.b16 %v49
  %v165 = vunpack.c.l.b16 %v50
  %v166 = vunpack.c.h.b16 %v50
  %v167 = vpack.c.b16 %v161, %v155
  %v168 = vpack.c.b16 %v162, %v156
  %v169 = vpack.c.b16 %v163, %v157
  %v170 = vpack.c.b16 %v164, %v158
  %v171 = vpack.c.b16 %v165, %v159
  %v172 = vpack.c.b16 %v166, %v160
  %v275 = vunpack.c.l.b16 %v51
  %v276 = vunpack.c.l.b16 %v52
  %v277 = vunpack.c.l.b16 %v53
  %v278 = vunpack.c.l.b16 %v54
  %v279 = vunpack.c.l.b16 %v55
  %v280 = vunpack.c.l.b16 %v56
  %v281 = vunpack.c.l.b16 %v57
  %v282 = vunpack.c.l.b16 %v58
  %v283 = vunpack.c.l.b16 %v59
  %v284 = vunpack.c.l.b16 %v60
  %v285 = vunpack.c.l.b16 %v61
  %v286 = vunpack.c.l.b16 %v62
  %v287 = vunpack.c.l.b16 %v63
  %v288 = vunpack.c.l.b16 %v64
  %v289 = vunpack.c.l.b16 %v65
  %v290 = vunpack.c.l.b16 %v66
  %v291 = vunpack.c.l.b16 %v67
  %v292 = vunpack.c.l.b16 %v68
  %v293 = vunpack.c.l.b16 %v69
  %v294 = vunpack.c.l.b16 %v70
  %v295 = vunpack.c.l.b16 %v71
  %v296 = vunpack.c.l.b16 %v72
  %v297 = vunpack.c.l.b16 %v73
  %v298 = vunpack.c.l.b16 %v74
  %v299 = vunpack.c.l.b16 %v75
  %v300 = vunpack.c.l.b16 %v76
  %v301 = vunpack.c.l.b16 %v77
  %v302 = vunpack.c.l.b16 %v78
  %v303 = vunpack.c.l.b16 %v79
  %v304 = vunpack.c.l.b16 %v80
  %v305 = vunpack.c.l.b16 %v81
  %v306 = vunpack.c.l.b16 %v82
  %v307 = vunpack.c.l.b16 %v83
  %v308 = vunpack.c.l.b16 %v84
  %v309 = vunpack.c.l.b16 %v85
  %v310 = vunpack.c.l.b16 %v86
  %v311 = vunpack.c.l.b16 %v87
  %v312 = vunpack.c.l.b16 %v88
  %v313 = vunpack.c.l.b16 %v89
  %v314 = vunpack.c.l.b16 %v90
  %v315 = vunpack.c.l.b16 %v91
  %v316 = vunpack.c.l.b16 %v92
  %v317 = vunpack.c.l.b16 %v93
  %v318 = vunpack.c.l.b16 %v94
  %v319 = vunpack.c.l.b16 %v95
  %v320 = vunpack.c.l.b16 %v96
  %v321 = vunpack.c.l.b16 %v97
  %v322 = vunpack.c.l.b16 %v98
  %v323 = vunpack.c.l.b16 %v99
  %v324 = vunpack.c.l.b16 %v100
  %v325 = vunpack.c.l.b16 %v101
  %v326 = vunpack.c.l.b16 %v102
  %v327 = vunpack.c.l.b16 %v103
  %v328 = vunpack.c.l.b16 %v104
  %v329 = vunpack.c.l.b16 %v105
  %v330 = vunpack.c.l.b16 %v106
  %v331 = vunpack.c.l.b16 %v107
  %v332 = vunpack.c.l.b16 %v108
  %v333 = vunpack.c.l.b16 %v109
  %v334 = vunpack.c.l.b16 %v110
  %v335 = vunpack.c.l.b16 %v111
  %v336 = vunpack.c.l.b16 %v112
  %v337 = vunpack.c.l.b16 %v113
  %v338 = vunpack.c.l.b16 %v114
  %v339 = vunpack.c.l.b16 %v115
  %v340 = vunpack.c.l.b16 %v116
  %v341 = vunpack.c.l.b16 %v117
  %v342 = vunpack.c.l.b16 %v118
  %v343 = vunpack.c.l.b16 %v119
  %v344 = vunpack.c.l.b16 %v120
  %v345 = vunpack.c.l.b16 %v121
  %v346 = vunpack.c.l.b16 %v122
  %v347 = vunpack.c.l.b16 %v123
  %v348 = vunpack.c.l.b16 %v124
  %v349 = vunpack.c.l.b16 %v125
  %v350 = vunpack.c.l.b16 %v126
  %v351 = vunpack.c.l.b16 %v127
  %v352 = vunpack.c.l.b16 %v128
  %v353 = vunpack.c.l.b16 %v129
  %v354 = vunpack.c.l.b16 %v130
  %v355 = vunpack.c.l.b16 %v131
  %v356 = vunpack.c.l.b16 %v132
  %v357 = vunpack.c.l.b16 %v133
  %v358 = vunpack.c.l.b16 %v134
  %v359 = vunpack.c.l.b16 %v135
  %v360 = vunpack.c.l.b16 %v136
  %v361 = vunpack.c.l.b16 %v137
  %v362 = vunpack.c.l.b16 %v138
  %v363 = vunpack.c.l.b16 %v139
  %v364 = vunpack.c.l.b16 %v140
  %v365 = vunpack.c.l.b16 %v141
  %v366 = vunpack.c.l.b16 %v142
  %v367 = vunpack.c.l.b16 %v143
  %v368 = vunpack.c.l.b16 %v144
  %v369 = vunpack.c.l.b16 %v145
  %v370 = vunpack.c.l.b16 %v146
  %v371 = vpack.c.b16 %v276, %v275
  %v372 = vpack.c.b16 %v278, %v277
  %v373 = vpack.c.b16 %v280, %v279
  %v374 = vpack.c.b16 %v282, %v281
  %v375 = vpack.c.b16 %v284, %v283
  %v376 = vpack.c.b16 %v286, %v285
  %v377 = vpack.c.b16 %v288, %v287
  %v378 = vpack.c.b16 %v290, %v289
  %v379 = vpack.c.b16 %v292, %v291
  %v380 = vpack.c.b16 %v294, %v293
  %v381 = vpack.c.b16 %v296, %v295
  %v382 = vpack.c.b16 %v298, %v297
  %v383 = vpack.c.b16 %v300, %v299
  %v384 = vpack.c.b16 %v302, %v301
  %v385 = vpack.c.b16 %v304, %v303
  %v386 = vpack.c.b16 %v306, %v305
  %v387 = vpack.c.b16 %v308, %v307
  %v388 = vpack.c.b16 %v310, %v309
  %v389 = vpack.c.b16 %v312, %v311
  %v390 = vpack.c.b16 %v314, %v313
  %v391 = vpack.c.b16 %v316, %v315
  %v392 = vpack.c.b16 %v318, %v317
  %v393 = vpack.c.b16 %v320, %v319
  %v394 = vpack.c.b16 %v322, %v321
  %v395 = vpack.c.b16 %v324, %v323
  %v396 = vpack.c.b16 %v326, %v325
  %v397 = vpack.c.b16 %v328, %v327
  %v398 = vpack.c.b16 %v330, %v329
  %v399 = vpack.c.b16 %v332, %v331
  %v400 = vpack.c.b16 %v334, %v333
  %v401 = vpack.c.b16 %v336, %v335
  %v402 = vpack.c.b16 %v338, %v337
  %v403 = vpack.c.b16 %v340, %v339
  %v404 = vpack.c.b16 %v342, %v341
  %v405 = vpack.c.b16 %v344, %v343
  %v406 = vpack.c.b16 %v346, %v345
  %v407 = vpack.c.b16 %v348, %v347
  %v408 = vpack.c.b16 %v350, %v349
  %v409 = vpack.c.b16 %v352, %v351
  %v410 = vpack.c.b16 %v354, %v353
  %v411 = vpack.c.b16 %v356, %v355
  %v412 = vpack.c.b16 %v358, %v357
  %v413 = vpack.c.b16 %v360, %v359
  %v414 = vpack.c.b16 %v362, %v361
  %v415 = vpack.c.b16 %v364, %v363
  %v416 = vpack.c.b16 %v366, %v365
  %v417 = vpack.c.b16 %v368, %v367
  %v418 = vpack.c.b16 %v370, %v369
  %467 = vmatprep.subr.bf16.mxu0 0
  %468 = vmatpush1.bf16.msra.mxu0 %v378
  %469 = vmatprep.subr.bf16.mxu0 0
  %470 = vmatpush1.bf16.msra.mxu0 %v377
  %471 = vmatprep.subr.bf16.mxu0 0
  %472 = vmatpush1.bf16.msra.mxu0 %v376
  %473 = vmatprep.subr.bf16.mxu0 0
  %474 = vmatpush1.bf16.msra.mxu0 %v375
  %475 = vmatprep.subr.bf16.mxu0 0
  %476 = vmatpush1.bf16.msra.mxu0 %v374
  %477 = vmatprep.subr.bf16.mxu0 0
  %478 = vmatpush1.bf16.msra.mxu0 %v373
  %479 = vmatprep.subr.bf16.mxu0 0
  %480 = vmatpush1.bf16.msra.mxu0 %v372
  %481 = vmatprep.subr.bf16.mxu0 0
  %482 = vmatpush1.bf16.msra.mxu0 %v371
  %483 = vmatprep.subr.bf16.mxu0 0
  %484 = vmatpush2.bf16.msra.mxu0 %v386
  %485 = vmatprep.subr.bf16.mxu0 0
  %486 = vmatpush2.bf16.msra.mxu0 %v385
  %487 = vmatprep.subr.bf16.mxu0 0
  %488 = vmatpush2.bf16.msra.mxu0 %v384
  %489 = vmatprep.subr.bf16.mxu0 0
  %490 = vmatpush2.bf16.msra.mxu0 %v383
  %491 = vmatprep.subr.bf16.mxu0 0
  %492 = vmatpush2.bf16.msra.mxu0 %v382
  %493 = vmatprep.subr.bf16.mxu0 0
  %494 = vmatpush2.bf16.msra.mxu0 %v381
  %495 = vmatprep.subr.bf16.mxu0 0
  %496 = vmatpush2.bf16.msra.mxu0 %v380
  %497 = vmatprep.subr.bf16.mxu0 0
  %498 = vmatpush2.bf16.msra.mxu0 %v379
  %499 = vmatprep.mubr.bf16.mxu0 %v168
  %500 = vmatmul.mubr.bf16.gmra.mxu0 %v167
  %v501 = vpop.f32.mrf.mxu0
  %v502 = vadd.f32 %v147, %v501
  %v503 = vpop.f32.mrf.mxu0
  %v504 = vpop.f32.mrf.mxu0
  %v505 = vadd.f32 %v148, %v504
  %v506 = vpop.f32.mrf.mxu0
  %507 = vdwg.mxu0
  %508 = vmatprep.subr.bf16.mxu0 0
  %509 = vmatpush1.bf16.msra.mxu0 %v394
  %510 = vmatprep.subr.bf16.mxu0 0
  %511 = vmatpush1.bf16.msra.mxu0 %v393
  %512 = vmatprep.subr.bf16.mxu0 0
  %513 = vmatpush1.bf16.msra.mxu0 %v392
  %514 = vmatprep.subr.bf16.mxu0 0
  %515 = vmatpush1.bf16.msra.mxu0 %v391
  %516 = vmatprep.subr.bf16.mxu0 0
  %517 = vmatpush1.bf16.msra.mxu0 %v390
  %518 = vmatprep.subr.bf16.mxu0 0
  %519 = vmatpush1.bf16.msra.mxu0 %v389
  %520 = vmatprep.subr.bf16.mxu0 0
  %521 = vmatpush1.bf16.msra.mxu0 %v388
  %522 = vmatprep.subr.bf16.mxu0 0
  %523 = vmatpush1.bf16.msra.mxu0 %v387
  %524 = vmatprep.subr.bf16.mxu0 0
  %525 = vmatpush2.bf16.msra.mxu0 %v402
  %526 = vmatprep.subr.bf16.mxu0 0
  %527 = vmatpush2.bf16.msra.mxu0 %v401
  %528 = vmatprep.subr.bf16.mxu0 0
  %529 = vmatpush2.bf16.msra.mxu0 %v400
  %530 = vmatprep.subr.bf16.mxu0 0
  %531 = vmatpush2.bf16.msra.mxu0 %v399
  %532 = vmatprep.subr.bf16.mxu0 0
  %533 = vmatpush2.bf16.msra.mxu0 %v398
  %534 = vmatprep.subr.bf16.mxu0 0
  %535 = vmatpush2.bf16.msra.mxu0 %v397
  %536 = vmatprep.subr.bf16.mxu0 0
  %537 = vmatpush2.bf16.msra.mxu0 %v396
  %538 = vmatprep.subr.bf16.mxu0 0
  %539 = vmatpush2.bf16.msra.mxu0 %v395
  %540 = vmatprep.mubr.bf16.mxu0 %v170
  %541 = vmatmul.mubr.bf16.gmra.mxu0 %v169
  %v542 = vpop.f32.mrf.mxu0
  %v543 = vadd.f32 %v502, %v542
  %v544 = vpop.f32.mrf.mxu0
  %v545 = vpop.f32.mrf.mxu0
  %v546 = vadd.f32 %v505, %v545
  %v547 = vpop.f32.mrf.mxu0
  %548 = vdwg.mxu0
  %549 = vmatprep.subr.bf16.mxu0 0
  %550 = vmatpush1.bf16.msra.mxu0 %v410
  %551 = vmatprep.subr.bf16.mxu0 0
  %552 = vmatpush1.bf16.msra.mxu0 %v409
  %553 = vmatprep.subr.bf16.mxu0 0
  %554 = vmatpush1.bf16.msra.mxu0 %v408
  %555 = vmatprep.subr.bf16.mxu0 0
  %556 = vmatpush1.bf16.msra.mxu0 %v407
  %557 = vmatprep.subr.bf16.mxu0 0
  %558 = vmatpush1.bf16.msra.mxu0 %v406
  %559 = vmatprep.subr.bf16.mxu0 0
  %560 = vmatpush1.bf16.msra.mxu0 %v405
  %561 = vmatprep.subr.bf16.mxu0 0
  %562 = vmatpush1.bf16.msra.mxu0 %v404
  %563 = vmatprep.subr.bf16.mxu0 0
  %564 = vmatpush1.bf16.msra.mxu0 %v403
  %565 = vmatprep.subr.bf16.mxu0 0
  %566 = vmatpush2.bf16.msra.mxu0 %v418
  %567 = vmatprep.subr.bf16.mxu0 0
  %568 = vmatpush2.bf16.msra.mxu0 %v417
  %569 = vmatprep.subr.bf16.mxu0 0
  %570 = vmatpush2.bf16.msra.mxu0 %v416
  %571 = vmatprep.subr.bf16.mxu0 0
  %572 = vmatpush2.bf16.msra.mxu0 %v415
  %573 = vmatprep.subr.bf16.mxu0 0
  %574 = vmatpush2.bf16.msra.mxu0 %v414
  %575 = vmatprep.subr.bf16.mxu0 0
  %576 = vmatpush2.bf16.msra.mxu0 %v413
  %577 = vmatprep.subr.bf16.mxu0 0
  %578 = vmatpush2.bf16.msra.mxu0 %v412
  %579 = vmatprep.subr.bf16.mxu0 0
  %580 = vmatpush2.bf16.msra.mxu0 %v411
  %581 = vmatprep.mubr.bf16.mxu0 %v172
  %582 = vmatmul.mubr.bf16.gmra.mxu0 %v171
  %v583 = vpop.f32.mrf.mxu0
  %v584 = vadd.f32 %v543, %v583
  %v585 = vpop.f32.mrf.mxu0
  %v586 = vpop.f32.mrf.mxu0
  %v587 = vadd.f32 %v546, %v586
  %v588 = vpop.f32.mrf.mxu0
  %589 = vdwg.mxu0
  %v590 = vld [vmem:[%s3] sm:$0x1]
  %s591 = scalar_lea.vmem %s3, 1
  %v592 = vld [vmem:[%s591] sm:$0x1]
  %vm593 = vcmask 523264
  %v594 = vsel %vm593, %v584, 0.0
  %595 = vadd.xlane.f32.xlu0 %v594
  %v596 = vpop.xlane.xlu0 %595
  %vm597 = vcmask 517120
  %v598 = vsel %vm597, %v587, 0.0
  %599 = vadd.xlane.f32.xlu0 %v598
  %v600 = vpop.xlane.xlu0 %599
  %v601 = vrcp.pop 64.0
  %v602 = vmul.f32 %v596, %v601
  %v603 = vmul.f32 %v600, %v601
  %v604 = vsub.f32 %v584, %v602
  %v605 = vsub.f32 %v587, %v603
  %v606 = vmul.f32 %v604, %v604
  %v607 = vmul.f32 %v605, %v605
  %v608 = vsel %vm593, %v606, 0.0
  %609 = vadd.xlane.f32.xlu0 %v608
  %v610 = vpop.xlane.xlu0 %609
  %v611 = vsel %vm597, %v607, 0.0
  %612 = vadd.xlane.f32.xlu0 %v611
  %v613 = vpop.xlane.xlu0 %612
  %v614 = vmul.f32 %v610, %v601
  %v615 = vmul.f32 %v613, %v601
  %v616 = vadd.f32 %v614, 1e-05
  %v617 = vadd.f32 %v615, 1e-05
  %v618 = vrsqrt.pop %v616
  %v619 = vrsqrt.pop %v617
  %v620 = vmul.f32 %v604, %v618
  %v621 = vmul.f32 %v605, %v619
  %v623 = vlaneseq
  %v624 = vshrl.u32 %v623, 7
  %v625 = vsub.s32 0, %v624
  %v626 = vrot.slane %v590, %v625
  %v628 = vmul.f32 %v620, %v626
  %v629 = vmul.f32 %v621, %v626
  %v631 = vlaneseq
  %v632 = vshrl.u32 %v631, 7
  %v633 = vsub.s32 0, %v632
  %v634 = vrot.slane %v592, %v633
  %v636 = vadd.f32 %v628, %v634
  %v637 = vadd.f32 %v629, %v634
  %v638 = vlaneseq
  %v639 = vshrl.u32 %v638, 7
  %v640 = vadd.s32 %v639, 8
  %v641 = vlaneseq
  %v642 = vand.u32 %v641, 127
  %vm643 = vcmp.ge.s32.totalorder %v639, 0
  %vm644 = vcmp.ge.s32.totalorder %v640, 0
  %vm645 = vcmp.lt.s32.totalorder %v639, 5
  %vm646 = vcmp.lt.s32.totalorder %v640, 5
  %vm647 = vmand %vm643, %vm645
  %vm648 = vmand %vm644, %vm646
  %vm649 = vcmp.ge.s32.totalorder %v642, 0
  %vm650 = vcmp.lt.s32.totalorder %v642, 5
  %vm651 = vmand %vm649, %vm650
  %vm652 = vmand %vm647, %vm651
  %vm653 = vmand %vm648, %vm651
  %vm654 = vcmp.ge.s32.totalorder %v639, 5
  %vm655 = vcmp.ge.s32.totalorder %v640, 5
  %vm656 = vcmp.lt.s32.totalorder %v639, 10
  %vm657 = vcmp.lt.s32.totalorder %v640, 10
  %vm658 = vmand %vm654, %vm656
  %vm659 = vmand %vm655, %vm657
  %vm660 = vcmp.ge.s32.totalorder %v642, 5
  %vm661 = vcmp.lt.s32.totalorder %v642, 10
  %vm662 = vmand %vm660, %vm661
  %vm663 = vmand %vm658, %vm662
  %vm664 = vmand %vm659, %vm662
  %vm665 = vmor %vm652, %vm663
  %vm666 = vmor %vm653, %vm664
  %v667 = vsel %vm665, 0.0, -1e+09
  %v668 = vsel %vm666, 0.0, -1e+09
  %s669 = scalar_lea.vmem %s3, 2
  %v670 = vld [vmem:[%s669] sm:$0x1]
  %s671 = scalar_lea.vmem %s3, 3
  %v672 = vld [vmem:[%s671] sm:$0x1]
  %s673 = scalar_lea.vmem %s3, 4
  %v674 = vld [vmem:[%s673] sm:$0x1]
  %s675 = scalar_lea.vmem %s3, 5
  %v676 = vld [vmem:[%s675] sm:$0x1]
  %v677 = vsel %vm593, %v636, 0.0
  %678 = vadd.xlane.f32.xlu0 %v677
  %v679 = vpop.xlane.xlu0 %678
  %v680 = vsel %vm597, %v637, 0.0
  %681 = vadd.xlane.f32.xlu0 %v680
  %v682 = vpop.xlane.xlu0 %681
  %v683 = vmul.f32 %v679, %v601
  %v684 = vmul.f32 %v682, %v601
  %v685 = vsub.f32 %v636, %v683
  %v686 = vsub.f32 %v637, %v684
  %v687 = vmul.f32 %v685, %v685
  %v688 = vmul.f32 %v686, %v686
  %v689 = vsel %vm593, %v687, 0.0
  %690 = vadd.xlane.f32.xlu0 %v689
  %v691 = vpop.xlane.xlu0 %690
  %v692 = vsel %vm597, %v688, 0.0
  %693 = vadd.xlane.f32.xlu0 %v692
  %v694 = vpop.xlane.xlu0 %693
  %v695 = vmul.f32 %v691, %v601
  %v696 = vmul.f32 %v694, %v601
  %v697 = vadd.f32 %v695, 1e-05
  %v698 = vadd.f32 %v696, 1e-05
  %v699 = vrsqrt.pop %v697
  %v700 = vrsqrt.pop %v698
  %v701 = vmul.f32 %v685, %v699
  %v702 = vmul.f32 %v686, %v700
  %v704 = vlaneseq
  %v705 = vshrl.u32 %v704, 7
  %v706 = vsub.s32 0, %v705
  %v707 = vrot.slane %v670, %v706
  %v709 = vmul.f32 %v701, %v707
  %v710 = vmul.f32 %v702, %v707
  %v712 = vlaneseq
  %v713 = vshrl.u32 %v712, 7
  %v714 = vsub.s32 0, %v713
  %v715 = vrot.slane %v672, %v714
  %v717 = vadd.f32 %v709, %v715
  %v718 = vadd.f32 %v710, %v715
  %v719 = vpack.c.bf16 %v718, %v717
  %v720 = vld [vmem:[%s4] sm:$0xff]
  %v721 = vld [vmem:[%s4 + $0x8] sm:$0xff]
  %v722 = vld [vmem:[%s4 + $0x10] sm:$0xff]
  %v723 = vld [vmem:[%s4 + $0x18] sm:$0xff]
  %v724 = vld [vmem:[%s4 + $0x20] sm:$0xff]
  %v725 = vld [vmem:[%s4 + $0x28] sm:$0xff]
  %v726 = vld [vmem:[%s4 + $0x30] sm:$0xff]
  %v727 = vld [vmem:[%s4 + $0x38] sm:$0xff]
  %v728 = vld [vmem:[%s5] sm:$0x3]
  %v730 = vlaneseq
  %v731 = vshrl.u32 %v730, 7
  %v732 = vsub.s32 0, %v731
  %v733 = vrot.slane %v728, %v732
  %v734 = vlaneseq
  %v735 = vshrl.u32 %v734, 7
  %v736 = vsub.s32 1, %v735
  %v737 = vrot.slane %v728, %v736
  %v748 = vunpack.c.l.b16 %v720
  %v749 = vunpack.c.h.b16 %v720
  %v750 = vunpack.c.l.b16 %v721
  %v751 = vunpack.c.h.b16 %v721
  %v752 = vunpack.c.l.b16 %v722
  %v753 = vunpack.c.h.b16 %v722
  %v754 = vunpack.c.l.b16 %v723
  %v755 = vunpack.c.h.b16 %v723
  %v756 = vunpack.c.l.b16 %v724
  %v757 = vunpack.c.h.b16 %v724
  %v758 = vunpack.c.l.b16 %v725
  %v759 = vunpack.c.h.b16 %v725
  %v760 = vunpack.c.l.b16 %v726
  %v761 = vunpack.c.h.b16 %v726
  %v762 = vunpack.c.l.b16 %v727
  %v763 = vunpack.c.h.b16 %v727
  %v764 = vpack.c.b16 %v750, %v748
  %v765 = vpack.c.b16 %v751, %v749
  %v766 = vpack.c.b16 %v754, %v752
  %v767 = vpack.c.b16 %v755, %v753
  %v768 = vpack.c.b16 %v758, %v756
  %v769 = vpack.c.b16 %v759, %v757
  %v770 = vpack.c.b16 %v762, %v760
  %v771 = vpack.c.b16 %v763, %v761
  %v781 = vsel %vm593, %v719, 0
  %783 = vmatprep.subr.bf16.mxu0 0
  %784 = vmatpush1.bf16.msra.mxu0 0
  %785 = vmatprep.subr.bf16.mxu0 0
  %786 = vmatpush1.bf16.msra.mxu0 0
  %787 = vmatprep.subr.bf16.mxu0 0
  %788 = vmatpush1.bf16.msra.mxu0 0
  %789 = vmatprep.subr.bf16.mxu0 0
  %790 = vmatpush1.bf16.msra.mxu0 0
  %791 = vmatprep.subr.bf16.mxu0 %v771
  %792 = vmatpush1.bf16.msra.mxu0 %v770
  %793 = vmatprep.subr.bf16.mxu0 %v769
  %794 = vmatpush1.bf16.msra.mxu0 %v768
  %795 = vmatprep.subr.bf16.mxu0 %v767
  %796 = vmatpush1.bf16.msra.mxu0 %v766
  %797 = vmatprep.subr.bf16.mxu0 %v765
  %798 = vmatpush1.bf16.msra.mxu0 %v764
  %799 = vmatprep.subr.bf16.mxu0 0
  %800 = vmatpush2.bf16.msra.mxu0 0
  %801 = vmatprep.subr.bf16.mxu0 0
  %802 = vmatpush2.bf16.msra.mxu0 0
  %803 = vmatprep.subr.bf16.mxu0 0
  %804 = vmatpush2.bf16.msra.mxu0 0
  %805 = vmatprep.subr.bf16.mxu0 0
  %806 = vmatpush2.bf16.msra.mxu0 0
  %807 = vmatprep.subr.bf16.mxu0 0
  %808 = vmatpush2.bf16.msra.mxu0 0
  %809 = vmatprep.subr.bf16.mxu0 0
  %810 = vmatpush2.bf16.msra.mxu0 0
  %811 = vmatprep.subr.bf16.mxu0 0
  %812 = vmatpush2.bf16.msra.mxu0 0
  %813 = vmatprep.subr.bf16.mxu0 0
  %814 = vmatpush2.bf16.msra.mxu0 0
  %815 = vmatprep.mubr.bf16.mxu0 0
  %816 = vmatmul.mubr.bf16.gmra.mxu0 %v781
  %v817 = vpop.f32.mrf.mxu0
  %v818 = vadd.f32 %v733, %v817
  %v819 = vpop.f32.mrf.mxu0
  %v820 = vadd.f32 %v737, %v819
  %v821 = vpop.f32.mrf.mxu0
  %v822 = vadd.f32 %v733, %v821
  %v823 = vpop.f32.mrf.mxu0
  %v824 = vadd.f32 %v737, %v823
  %825 = vdwg.mxu0
  %828 = vrot.lane.b32.xlu0 %v818, 64
  %v829 = vpop.permute.xlu0 %828
  %830 = vrot.lane.b32.xlu0 %v822, 64
  %v831 = vpop.permute.xlu0 %830
  %vm832 = vcmask 130048
  %v833 = vsel %vm832, %v818, 0
  %v835 = vsel %vm832, %v822, 0
  %v837 = vsel %vm832, %v829, 0
  %v839 = vsel %vm832, %v831, 0
  %841 = vmatprep.subr.mxu0 0.0
  %842 = vmatpush1.xpose.msra.mxu0 0.0
  %843 = vmatprep.subr.mxu0 0.0
  %844 = vmatpush1.xpose.msra.mxu0 0.0
  %845 = vmatprep.subr.mxu0 0.0
  %846 = vmatpush1.xpose.msra.mxu0 0.0
  %847 = vmatprep.subr.mxu0 0.0
  %848 = vmatpush1.xpose.msra.mxu0 0.0
  %849 = vmatprep.subr.mxu0 0.0
  %850 = vmatpush1.xpose.msra.mxu0 0.0
  %851 = vmatprep.subr.mxu0 0.0
  %852 = vmatpush1.xpose.msra.mxu0 0.0
  %853 = vmatprep.subr.mxu0 0.0
  %854 = vmatpush1.xpose.msra.mxu0 0.0
  %855 = vmatprep.subr.mxu0 0.0
  %856 = vmatpush1.xpose.msra.mxu0 0.0
  %857 = vmatprep.subr.mxu0 0.0
  %858 = vmatpush1.xpose.msra.mxu0 0.0
  %859 = vmatprep.subr.mxu0 0.0
  %860 = vmatpush1.xpose.msra.mxu0 0.0
  %861 = vmatprep.subr.mxu0 0.0
  %862 = vmatpush1.xpose.msra.mxu0 0.0
  %863 = vmatprep.subr.mxu0 0.0
  %864 = vmatpush1.xpose.msra.mxu0 0.0
  %865 = vmatprep.subr.mxu0 0.0
  %866 = vmatpush1.xpose.msra.mxu0 0.0
  %867 = vmatprep.subr.mxu0 0.0
  %868 = vmatpush1.xpose.msra.mxu0 0.0
  %869 = vmatprep.subr.mxu0 0.0
  %870 = vmatpush1.xpose.msra.mxu0 %v839
  %871 = vmatprep.subr.mxu0 0.0
  %872 = vmatpush1.xpose.msra.mxu0 %v837
  %873 = vmatprep.subr.mxu0 0.0
  %874 = vmatpush2.xpose.msra.mxu0 0.0
  %875 = vmatprep.subr.mxu0 0.0
  %876 = vmatpush2.xpose.msra.mxu0 0.0
  %877 = vmatprep.subr.mxu0 0.0
  %878 = vmatpush2.xpose.msra.mxu0 0.0
  %879 = vmatprep.subr.mxu0 0.0
  %880 = vmatpush2.xpose.msra.mxu0 0.0
  %881 = vmatprep.subr.mxu0 0.0
  %882 = vmatpush2.xpose.msra.mxu0 0.0
  %883 = vmatprep.subr.mxu0 0.0
  %884 = vmatpush2.xpose.msra.mxu0 0.0
  %885 = vmatprep.subr.mxu0 0.0
  %886 = vmatpush2.xpose.msra.mxu0 0.0
  %887 = vmatprep.subr.mxu0 0.0
  %888 = vmatpush2.xpose.msra.mxu0 0.0
  %889 = vmatprep.subr.mxu0 0.0
  %890 = vmatpush2.xpose.msra.mxu0 0.0
  %891 = vmatprep.subr.mxu0 0.0
  %892 = vmatpush2.xpose.msra.mxu0 0.0
  %893 = vmatprep.subr.mxu0 0.0
  %894 = vmatpush2.xpose.msra.mxu0 0.0
  %895 = vmatprep.subr.mxu0 0.0
  %896 = vmatpush2.xpose.msra.mxu0 0.0
  %897 = vmatprep.subr.mxu0 0.0
  %898 = vmatpush2.xpose.msra.mxu0 0.0
  %899 = vmatprep.subr.mxu0 0.0
  %900 = vmatpush2.xpose.msra.mxu0 0.0
  %901 = vmatprep.subr.mxu0 0.0
  %902 = vmatpush2.xpose.msra.mxu0 0.0
  %903 = vmatprep.subr.mxu0 0.0
  %904 = vmatpush2.xpose.msra.mxu0 0.0
  %905 = vmatprep.mubr.f32.mxu0 0.0
  %906 = vmatmul.mubr.f32.gmra.mxu0 %v833
  %v907 = vpop.f32.mrf.mxu0
  %v908 = vadd.f32 0.0, %v907
  %v909 = vpop.f32.mrf.mxu0
  %910 = vmatprep.mubr.f32.mxu0 0.0
  %911 = vmatmul.mubr.f32.gmra.mxu0 %v835
  %v912 = vpop.f32.mrf.mxu0
  %v913 = vadd.f32 0.0, %v912
  %v914 = vpop.f32.mrf.mxu0
  %915 = vdwg.mxu0
  %v916 = vmul.f32 %v908, 0.25
  %v917 = vmul.f32 %v913, 0.25
  %v918 = vadd.f32 %v916, %v667
  %v919 = vadd.f32 %v917, %v668
  %vm920 = vcmask 80896
  %v921 = vsel %vm920, %v918, -inf
  %922 = vmax.xlane.f32.xlu0 %v921
  %v923 = vpop.xlane.xlu0 %922
  %vm924 = vcmask 74752
  %v925 = vsel %vm924, %v919, -inf
  %926 = vmax.xlane.f32.xlu0 %v925
  %v927 = vpop.xlane.xlu0 %926
  %v928 = vsub.f32 %v918, %v923
  %v929 = vsub.f32 %v919, %v927
  %v930 = vmul.f32 %v928, 1.442695
  %v931 = vpow.pop %v930
  %v932 = vmul.f32 %v929, 1.442695
  %v933 = vpow.pop %v932
  %v934 = vsel %vm920, %v931, 0.0
  %935 = vadd.xlane.f32.xlu0 %v934
  %v936 = vpop.xlane.xlu0 %935
  %v937 = vsel %vm924, %v933, 0.0
  %938 = vadd.xlane.f32.xlu0 %v937
  %v939 = vpop.xlane.xlu0 %938
  %v940 = vrcp.pop %v936
  %v941 = vrcp.pop %v939
  %v942 = vmul.f32 %v931, %v940
  %v943 = vmul.f32 %v933, %v941
  %v945 = vsel %vm920, %v942, 0
  %v948 = vsel %vm920, %v943, 0
  %vm950 = vcmask 1041408
  %v952 = vsel %vm950, %v824, 0
  %954 = vmatprep.subr.mxu0 0.0
  %955 = vmatpush1.msra.mxu0 0.0
  %956 = vmatprep.subr.mxu0 0.0
  %957 = vmatpush1.msra.mxu0 0.0
  %958 = vmatprep.subr.mxu0 0.0
  %959 = vmatpush1.msra.mxu0 0.0
  %960 = vmatprep.subr.mxu0 0.0
  %961 = vmatpush1.msra.mxu0 0.0
  %962 = vmatprep.subr.mxu0 0.0
  %963 = vmatpush1.msra.mxu0 0.0
  %964 = vmatprep.subr.mxu0 0.0
  %965 = vmatpush1.msra.mxu0 0.0
  %966 = vmatprep.subr.mxu0 0.0
  %967 = vmatpush1.msra.mxu0 0.0
  %968 = vmatprep.subr.mxu0 0.0
  %969 = vmatpush1.msra.mxu0 0.0
  %970 = vmatprep.subr.mxu0 0.0
  %971 = vmatpush1.msra.mxu0 0.0
  %972 = vmatprep.subr.mxu0 0.0
  %973 = vmatpush1.msra.mxu0 0.0
  %974 = vmatprep.subr.mxu0 0.0
  %975 = vmatpush1.msra.mxu0 0.0
  %976 = vmatprep.subr.mxu0 0.0
  %977 = vmatpush1.msra.mxu0 0.0
  %978 = vmatprep.subr.mxu0 0.0
  %979 = vmatpush1.msra.mxu0 0.0
  %980 = vmatprep.subr.mxu0 0.0
  %981 = vmatpush1.msra.mxu0 0.0
  %982 = vmatprep.subr.mxu0 0.0
  %983 = vmatpush1.msra.mxu0 %v952
  %984 = vmatprep.subr.mxu0 0.0
  %985 = vmatpush1.msra.mxu0 %v820
  %986 = vmatprep.subr.mxu0 0.0
  %987 = vmatpush2.msra.mxu0 0.0
  %988 = vmatprep.subr.mxu0 0.0
  %989 = vmatpush2.msra.mxu0 0.0
  %990 = vmatprep.subr.mxu0 0.0
  %991 = vmatpush2.msra.mxu0 0.0
  %992 = vmatprep.subr.mxu0 0.0
  %993 = vmatpush2.msra.mxu0 0.0
  %994 = vmatprep.subr.mxu0 0.0
  %995 = vmatpush2.msra.mxu0 0.0
  %996 = vmatprep.subr.mxu0 0.0
  %997 = vmatpush2.msra.mxu0 0.0
  %998 = vmatprep.subr.mxu0 0.0
  %999 = vmatpush2.msra.mxu0 0.0
  %1000 = vmatprep.subr.mxu0 0.0
  %1001 = vmatpush2.msra.mxu0 0.0
  %1002 = vmatprep.subr.mxu0 0.0
  %1003 = vmatpush2.msra.mxu0 0.0
  %1004 = vmatprep.subr.mxu0 0.0
  %1005 = vmatpush2.msra.mxu0 0.0
  %1006 = vmatprep.subr.mxu0 0.0
  %1007 = vmatpush2.msra.mxu0 0.0
  %1008 = vmatprep.subr.mxu0 0.0
  %1009 = vmatpush2.msra.mxu0 0.0
  %1010 = vmatprep.subr.mxu0 0.0
  %1011 = vmatpush2.msra.mxu0 0.0
  %1012 = vmatprep.subr.mxu0 0.0
  %1013 = vmatpush2.msra.mxu0 0.0
  %1014 = vmatprep.subr.mxu0 0.0
  %1015 = vmatpush2.msra.mxu0 0.0
  %1016 = vmatprep.subr.mxu0 0.0
  %1017 = vmatpush2.msra.mxu0 0.0
  %1018 = vmatprep.mubr.f32.mxu0 0.0
  %1019 = vmatmul.mubr.f32.gmra.mxu0 %v945
  %v1020 = vpop.f32.mrf.mxu0
  %v1021 = vadd.f32 0.0, %v1020
  %v1022 = vpop.f32.mrf.mxu0
  %1023 = vmatprep.mubr.f32.mxu0 0.0
  %1024 = vmatmul.mubr.f32.gmra.mxu0 %v948
  %v1025 = vpop.f32.mrf.mxu0
  %v1026 = vadd.f32 0.0, %v1025
  %v1027 = vpop.f32.mrf.mxu0
  %1028 = vdwg.mxu0
  %1029 = vrot.lane.b32.xlu0 %v818, 112
  %v1030 = vpop.permute.xlu0 %1029
  %1031 = vrot.lane.b32.xlu0 %v822, 112
  %v1032 = vpop.permute.xlu0 %1031
  %1033 = vrot.lane.b32.xlu0 %v818, 48
  %v1034 = vpop.permute.xlu0 %1033
  %1035 = vrot.lane.b32.xlu0 %v822, 48
  %v1036 = vpop.permute.xlu0 %1035
  %v1037 = vsel %vm832, %v1030, 0
  %v1039 = vsel %vm832, %v1032, 0
  %v1041 = vsel %vm832, %v1034, 0
  %v1043 = vsel %vm832, %v1036, 0
  %1045 = vmatprep.subr.mxu0 0.0
  %1046 = vmatpush1.xpose.msra.mxu0 0.0
  %1047 = vmatprep.subr.mxu0 0.0
  %1048 = vmatpush1.xpose.msra.mxu0 0.0
  %1049 = vmatprep.subr.mxu0 0.0
  %1050 = vmatpush1.xpose.msra.mxu0 0.0
  %1051 = vmatprep.subr.mxu0 0.0
  %1052 = vmatpush1.xpose.msra.mxu0 0.0
  %1053 = vmatprep.subr.mxu0 0.0
  %1054 = vmatpush1.xpose.msra.mxu0 0.0
  %1055 = vmatprep.subr.mxu0 0.0
  %1056 = vmatpush1.xpose.msra.mxu0 0.0
  %1057 = vmatprep.subr.mxu0 0.0
  %1058 = vmatpush1.xpose.msra.mxu0 0.0
  %1059 = vmatprep.subr.mxu0 0.0
  %1060 = vmatpush1.xpose.msra.mxu0 0.0
  %1061 = vmatprep.subr.mxu0 0.0
  %1062 = vmatpush1.xpose.msra.mxu0 0.0
  %1063 = vmatprep.subr.mxu0 0.0
  %1064 = vmatpush1.xpose.msra.mxu0 0.0
  %1065 = vmatprep.subr.mxu0 0.0
  %1066 = vmatpush1.xpose.msra.mxu0 0.0
  %1067 = vmatprep.subr.mxu0 0.0
  %1068 = vmatpush1.xpose.msra.mxu0 0.0
  %1069 = vmatprep.subr.mxu0 0.0
  %1070 = vmatpush1.xpose.msra.mxu0 0.0
  %1071 = vmatprep.subr.mxu0 0.0
  %1072 = vmatpush1.xpose.msra.mxu0 0.0
  %1073 = vmatprep.subr.mxu0 0.0
  %1074 = vmatpush1.xpose.msra.mxu0 %v1043
  %1075 = vmatprep.subr.mxu0 0.0
  %1076 = vmatpush1.xpose.msra.mxu0 %v1041
  %1077 = vmatprep.subr.mxu0 0.0
  %1078 = vmatpush2.xpose.msra.mxu0 0.0
  %1079 = vmatprep.subr.mxu0 0.0
  %1080 = vmatpush2.xpose.msra.mxu0 0.0
  %1081 = vmatprep.subr.mxu0 0.0
  %1082 = vmatpush2.xpose.msra.mxu0 0.0
  %1083 = vmatprep.subr.mxu0 0.0
  %1084 = vmatpush2.xpose.msra.mxu0 0.0
  %1085 = vmatprep.subr.mxu0 0.0
  %1086 = vmatpush2.xpose.msra.mxu0 0.0
  %1087 = vmatprep.subr.mxu0 0.0
  %1088 = vmatpush2.xpose.msra.mxu0 0.0
  %1089 = vmatprep.subr.mxu0 0.0
  %1090 = vmatpush2.xpose.msra.mxu0 0.0
  %1091 = vmatprep.subr.mxu0 0.0
  %1092 = vmatpush2.xpose.msra.mxu0 0.0
  %1093 = vmatprep.subr.mxu0 0.0
  %1094 = vmatpush2.xpose.msra.mxu0 0.0
  %1095 = vmatprep.subr.mxu0 0.0
  %1096 = vmatpush2.xpose.msra.mxu0 0.0
  %1097 = vmatprep.subr.mxu0 0.0
  %1098 = vmatpush2.xpose.msra.mxu0 0.0
  %1099 = vmatprep.subr.mxu0 0.0
  %1100 = vmatpush2.xpose.msra.mxu0 0.0
  %1101 = vmatprep.subr.mxu0 0.0
  %1102 = vmatpush2.xpose.msra.mxu0 0.0
  %1103 = vmatprep.subr.mxu0 0.0
  %1104 = vmatpush2.xpose.msra.mxu0 0.0
  %1105 = vmatprep.subr.mxu0 0.0
  %1106 = vmatpush2.xpose.msra.mxu0 0.0
  %1107 = vmatprep.subr.mxu0 0.0
  %1108 = vmatpush2.xpose.msra.mxu0 0.0
  %1109 = vmatprep.mubr.f32.mxu0 0.0
  %1110 = vmatmul.mubr.f32.gmra.mxu0 %v1037
  %v1111 = vpop.f32.mrf.mxu0
  %v1112 = vadd.f32 0.0, %v1111
  %v1113 = vpop.f32.mrf.mxu0
  %1114 = vmatprep.mubr.f32.mxu0 0.0
  %1115 = vmatmul.mubr.f32.gmra.mxu0 %v1039
  %v1116 = vpop.f32.mrf.mxu0
  %v1117 = vadd.f32 0.0, %v1116
  %v1118 = vpop.f32.mrf.mxu0
  %1119 = vdwg.mxu0
  %v1120 = vmul.f32 %v1112, 0.25
  %v1121 = vmul.f32 %v1117, 0.25
  %v1122 = vadd.f32 %v1120, %v667
  %v1123 = vadd.f32 %v1121, %v668
  %v1124 = vsel %vm920, %v1122, -inf
  %1125 = vmax.xlane.f32.xlu0 %v1124
  %v1126 = vpop.xlane.xlu0 %1125
  %v1127 = vsel %vm924, %v1123, -inf
  %1128 = vmax.xlane.f32.xlu0 %v1127
  %v1129 = vpop.xlane.xlu0 %1128
  %v1130 = vsub.f32 %v1122, %v1126
  %v1131 = vsub.f32 %v1123, %v1129
  %v1132 = vmul.f32 %v1130, 1.442695
  %v1133 = vpow.pop %v1132
  %v1134 = vmul.f32 %v1131, 1.442695
  %v1135 = vpow.pop %v1134
  %v1136 = vsel %vm920, %v1133, 0.0
  %1137 = vadd.xlane.f32.xlu0 %v1136
  %v1138 = vpop.xlane.xlu0 %1137
  %v1139 = vsel %vm924, %v1135, 0.0
  %1140 = vadd.xlane.f32.xlu0 %v1139
  %v1141 = vpop.xlane.xlu0 %1140
  %v1142 = vrcp.pop %v1138
  %v1143 = vrcp.pop %v1141
  %v1144 = vmul.f32 %v1133, %v1142
  %v1145 = vmul.f32 %v1135, %v1143
  %1147 = vrot.lane.b32.xlu0 %v820, 112
  %v1148 = vpop.permute.xlu0 %1147
  %1149 = vrot.lane.b32.xlu0 %v824, 112
  %v1150 = vpop.permute.xlu0 %1149
  %v1153 = vsel %vm920, %v1144, 0
  %v1156 = vsel %vm920, %v1145, 0
  %v1158 = vsel %vm950, %v1150, 0
  %1160 = vmatprep.subr.mxu0 0.0
  %1161 = vmatpush1.msra.mxu0 0.0
  %1162 = vmatprep.subr.mxu0 0.0
  %1163 = vmatpush1.msra.mxu0 0.0
  %1164 = vmatprep.subr.mxu0 0.0
  %1165 = vmatpush1.msra.mxu0 0.0
  %1166 = vmatprep.subr.mxu0 0.0
  %1167 = vmatpush1.msra.mxu0 0.0
  %1168 = vmatprep.subr.mxu0 0.0
  %1169 = vmatpush1.msra.mxu0 0.0
  %1170 = vmatprep.subr.mxu0 0.0
  %1171 = vmatpush1.msra.mxu0 0.0
  %1172 = vmatprep.subr.mxu0 0.0
  %1173 = vmatpush1.msra.mxu0 0.0
  %1174 = vmatprep.subr.mxu0 0.0
  %1175 = vmatpush1.msra.mxu0 0.0
  %1176 = vmatprep.subr.mxu0 0.0
  %1177 = vmatpush1.msra.mxu0 0.0
  %1178 = vmatprep.subr.mxu0 0.0
  %1179 = vmatpush1.msra.mxu0 0.0
  %1180 = vmatprep.subr.mxu0 0.0
  %1181 = vmatpush1.msra.mxu0 0.0
  %1182 = vmatprep.subr.mxu0 0.0
  %1183 = vmatpush1.msra.mxu0 0.0
  %1184 = vmatprep.subr.mxu0 0.0
  %1185 = vmatpush1.msra.mxu0 0.0
  %1186 = vmatprep.subr.mxu0 0.0
  %1187 = vmatpush1.msra.mxu0 0.0
  %1188 = vmatprep.subr.mxu0 0.0
  %1189 = vmatpush1.msra.mxu0 %v1158
  %1190 = vmatprep.subr.mxu0 0.0
  %1191 = vmatpush1.msra.mxu0 %v1148
  %1192 = vmatprep.subr.mxu0 0.0
  %1193 = vmatpush2.msra.mxu0 0.0
  %1194 = vmatprep.subr.mxu0 0.0
  %1195 = vmatpush2.msra.mxu0 0.0
  %1196 = vmatprep.subr.mxu0 0.0
  %1197 = vmatpush2.msra.mxu0 0.0
  %1198 = vmatprep.subr.mxu0 0.0
  %1199 = vmatpush2.msra.mxu0 0.0
  %1200 = vmatprep.subr.mxu0 0.0
  %1201 = vmatpush2.msra.mxu0 0.0
  %1202 = vmatprep.subr.mxu0 0.0
  %1203 = vmatpush2.msra.mxu0 0.0
  %1204 = vmatprep.subr.mxu0 0.0
  %1205 = vmatpush2.msra.mxu0 0.0
  %1206 = vmatprep.subr.mxu0 0.0
  %1207 = vmatpush2.msra.mxu0 0.0
  %1208 = vmatprep.subr.mxu0 0.0
  %1209 = vmatpush2.msra.mxu0 0.0
  %1210 = vmatprep.subr.mxu0 0.0
  %1211 = vmatpush2.msra.mxu0 0.0
  %1212 = vmatprep.subr.mxu0 0.0
  %1213 = vmatpush2.msra.mxu0 0.0
  %1214 = vmatprep.subr.mxu0 0.0
  %1215 = vmatpush2.msra.mxu0 0.0
  %1216 = vmatprep.subr.mxu0 0.0
  %1217 = vmatpush2.msra.mxu0 0.0
  %1218 = vmatprep.subr.mxu0 0.0
  %1219 = vmatpush2.msra.mxu0 0.0
  %1220 = vmatprep.subr.mxu0 0.0
  %1221 = vmatpush2.msra.mxu0 0.0
  %1222 = vmatprep.subr.mxu0 0.0
  %1223 = vmatpush2.msra.mxu0 0.0
  %1224 = vmatprep.mubr.f32.mxu0 0.0
  %1225 = vmatmul.mubr.f32.gmra.mxu0 %v1153
  %v1226 = vpop.f32.mrf.mxu0
  %v1227 = vadd.f32 0.0, %v1226
  %v1228 = vpop.f32.mrf.mxu0
  %1229 = vmatprep.mubr.f32.mxu0 0.0
  %1230 = vmatmul.mubr.f32.gmra.mxu0 %v1156
  %v1231 = vpop.f32.mrf.mxu0
  %v1232 = vadd.f32 0.0, %v1231
  %v1233 = vpop.f32.mrf.mxu0
  %1234 = vdwg.mxu0
  %1235 = vrot.lane.b32.xlu0 %v818, 96
  %v1236 = vpop.permute.xlu0 %1235
  %1237 = vrot.lane.b32.xlu0 %v822, 96
  %v1238 = vpop.permute.xlu0 %1237
  %1239 = vrot.lane.b32.xlu0 %v818, 32
  %v1240 = vpop.permute.xlu0 %1239
  %1241 = vrot.lane.b32.xlu0 %v822, 32
  %v1242 = vpop.permute.xlu0 %1241
  %v1243 = vsel %vm832, %v1236, 0
  %v1245 = vsel %vm832, %v1238, 0
  %v1247 = vsel %vm832, %v1240, 0
  %v1249 = vsel %vm832, %v1242, 0
  %1251 = vmatprep.subr.mxu0 0.0
  %1252 = vmatpush1.xpose.msra.mxu0 0.0
  %1253 = vmatprep.subr.mxu0 0.0
  %1254 = vmatpush1.xpose.msra.mxu0 0.0
  %1255 = vmatprep.subr.mxu0 0.0
  %1256 = vmatpush1.xpose.msra.mxu0 0.0
  %1257 = vmatprep.subr.mxu0 0.0
  %1258 = vmatpush1.xpose.msra.mxu0 0.0
  %1259 = vmatprep.subr.mxu0 0.0
  %1260 = vmatpush1.xpose.msra.mxu0 0.0
  %1261 = vmatprep.subr.mxu0 0.0
  %1262 = vmatpush1.xpose.msra.mxu0 0.0
  %1263 = vmatprep.subr.mxu0 0.0
  %1264 = vmatpush1.xpose.msra.mxu0 0.0
  %1265 = vmatprep.subr.mxu0 0.0
  %1266 = vmatpush1.xpose.msra.mxu0 0.0
  %1267 = vmatprep.subr.mxu0 0.0
  %1268 = vmatpush1.xpose.msra.mxu0 0.0
  %1269 = vmatprep.subr.mxu0 0.0
  %1270 = vmatpush1.xpose.msra.mxu0 0.0
  %1271 = vmatprep.subr.mxu0 0.0
  %1272 = vmatpush1.xpose.msra.mxu0 0.0
  %1273 = vmatprep.subr.mxu0 0.0
  %1274 = vmatpush1.xpose.msra.mxu0 0.0
  %1275 = vmatprep.subr.mxu0 0.0
  %1276 = vmatpush1.xpose.msra.mxu0 0.0
  %1277 = vmatprep.subr.mxu0 0.0
  %1278 = vmatpush1.xpose.msra.mxu0 0.0
  %1279 = vmatprep.subr.mxu0 0.0
  %1280 = vmatpush1.xpose.msra.mxu0 %v1249
  %1281 = vmatprep.subr.mxu0 0.0
  %1282 = vmatpush1.xpose.msra.mxu0 %v1247
  %1283 = vmatprep.subr.mxu0 0.0
  %1284 = vmatpush2.xpose.msra.mxu0 0.0
  %1285 = vmatprep.subr.mxu0 0.0
  %1286 = vmatpush2.xpose.msra.mxu0 0.0
  %1287 = vmatprep.subr.mxu0 0.0
  %1288 = vmatpush2.xpose.msra.mxu0 0.0
  %1289 = vmatprep.subr.mxu0 0.0
  %1290 = vmatpush2.xpose.msra.mxu0 0.0
  %1291 = vmatprep.subr.mxu0 0.0
  %1292 = vmatpush2.xpose.msra.mxu0 0.0
  %1293 = vmatprep.subr.mxu0 0.0
  %1294 = vmatpush2.xpose.msra.mxu0 0.0
  %1295 = vmatprep.subr.mxu0 0.0
  %1296 = vmatpush2.xpose.msra.mxu0 0.0
  %1297 = vmatprep.subr.mxu0 0.0
  %1298 = vmatpush2.xpose.msra.mxu0 0.0
  %1299 = vmatprep.subr.mxu0 0.0
  %1300 = vmatpush2.xpose.msra.mxu0 0.0
  %1301 = vmatprep.subr.mxu0 0.0
  %1302 = vmatpush2.xpose.msra.mxu0 0.0
  %1303 = vmatprep.subr.mxu0 0.0
  %1304 = vmatpush2.xpose.msra.mxu0 0.0
  %1305 = vmatprep.subr.mxu0 0.0
  %1306 = vmatpush2.xpose.msra.mxu0 0.0
  %1307 = vmatprep.subr.mxu0 0.0
  %1308 = vmatpush2.xpose.msra.mxu0 0.0
  %1309 = vmatprep.subr.mxu0 0.0
  %1310 = vmatpush2.xpose.msra.mxu0 0.0
  %1311 = vmatprep.subr.mxu0 0.0
  %1312 = vmatpush2.xpose.msra.mxu0 0.0
  %1313 = vmatprep.subr.mxu0 0.0
  %1314 = vmatpush2.xpose.msra.mxu0 0.0
  %1315 = vmatprep.mubr.f32.mxu0 0.0
  %1316 = vmatmul.mubr.f32.gmra.mxu0 %v1243
  %v1317 = vpop.f32.mrf.mxu0
  %v1318 = vadd.f32 0.0, %v1317
  %v1319 = vpop.f32.mrf.mxu0
  %1320 = vmatprep.mubr.f32.mxu0 0.0
  %1321 = vmatmul.mubr.f32.gmra.mxu0 %v1245
  %v1322 = vpop.f32.mrf.mxu0
  %v1323 = vadd.f32 0.0, %v1322
  %v1324 = vpop.f32.mrf.mxu0
  %1325 = vdwg.mxu0
  %v1326 = vmul.f32 %v1318, 0.25
  %v1327 = vmul.f32 %v1323, 0.25
  %v1328 = vadd.f32 %v1326, %v667
  %v1329 = vadd.f32 %v1327, %v668
  %v1330 = vsel %vm920, %v1328, -inf
  %1331 = vmax.xlane.f32.xlu0 %v1330
  %v1332 = vpop.xlane.xlu0 %1331
  %v1333 = vsel %vm924, %v1329, -inf
  %1334 = vmax.xlane.f32.xlu0 %v1333
  %v1335 = vpop.xlane.xlu0 %1334
  %v1336 = vsub.f32 %v1328, %v1332
  %v1337 = vsub.f32 %v1329, %v1335
  %v1338 = vmul.f32 %v1336, 1.442695
  %v1339 = vpow.pop %v1338
  %v1340 = vmul.f32 %v1337, 1.442695
  %v1341 = vpow.pop %v1340
  %v1342 = vsel %vm920, %v1339, 0.0
  %1343 = vadd.xlane.f32.xlu0 %v1342
  %v1344 = vpop.xlane.xlu0 %1343
  %v1345 = vsel %vm924, %v1341, 0.0
  %1346 = vadd.xlane.f32.xlu0 %v1345
  %v1347 = vpop.xlane.xlu0 %1346
  %v1348 = vrcp.pop %v1344
  %v1349 = vrcp.pop %v1347
  %v1350 = vmul.f32 %v1339, %v1348
  %v1351 = vmul.f32 %v1341, %v1349
  %1352 = vrot.lane.b32.xlu0 %v820, 96
  %v1353 = vpop.permute.xlu0 %1352
  %1354 = vrot.lane.b32.xlu0 %v824, 96
  %v1355 = vpop.permute.xlu0 %1354
  %v1358 = vsel %vm920, %v1350, 0
  %v1361 = vsel %vm920, %v1351, 0
  %v1363 = vsel %vm950, %v1355, 0
  %1365 = vmatprep.subr.mxu0 0.0
  %1366 = vmatpush1.msra.mxu0 0.0
  %1367 = vmatprep.subr.mxu0 0.0
  %1368 = vmatpush1.msra.mxu0 0.0
  %1369 = vmatprep.subr.mxu0 0.0
  %1370 = vmatpush1.msra.mxu0 0.0
  %1371 = vmatprep.subr.mxu0 0.0
  %1372 = vmatpush1.msra.mxu0 0.0
  %1373 = vmatprep.subr.mxu0 0.0
  %1374 = vmatpush1.msra.mxu0 0.0
  %1375 = vmatprep.subr.mxu0 0.0
  %1376 = vmatpush1.msra.mxu0 0.0
  %1377 = vmatprep.subr.mxu0 0.0
  %1378 = vmatpush1.msra.mxu0 0.0
  %1379 = vmatprep.subr.mxu0 0.0
  %1380 = vmatpush1.msra.mxu0 0.0
  %1381 = vmatprep.subr.mxu0 0.0
  %1382 = vmatpush1.msra.mxu0 0.0
  %1383 = vmatprep.subr.mxu0 0.0
  %1384 = vmatpush1.msra.mxu0 0.0
  %1385 = vmatprep.subr.mxu0 0.0
  %1386 = vmatpush1.msra.mxu0 0.0
  %1387 = vmatprep.subr.mxu0 0.0
  %1388 = vmatpush1.msra.mxu0 0.0
  %1389 = vmatprep.subr.mxu0 0.0
  %1390 = vmatpush1.msra.mxu0 0.0
  %1391 = vmatprep.subr.mxu0 0.0
  %1392 = vmatpush1.msra.mxu0 0.0
  %1393 = vmatprep.subr.mxu0 0.0
  %1394 = vmatpush1.msra.mxu0 %v1363
  %1395 = vmatprep.subr.mxu0 0.0
  %1396 = vmatpush1.msra.mxu0 %v1353
  %1397 = vmatprep.subr.mxu0 0.0
  %1398 = vmatpush2.msra.mxu0 0.0
  %1399 = vmatprep.subr.mxu0 0.0
  %1400 = vmatpush2.msra.mxu0 0.0
  %1401 = vmatprep.subr.mxu0 0.0
  %1402 = vmatpush2.msra.mxu0 0.0
  %1403 = vmatprep.subr.mxu0 0.0
  %1404 = vmatpush2.msra.mxu0 0.0
  %1405 = vmatprep.subr.mxu0 0.0
  %1406 = vmatpush2.msra.mxu0 0.0
  %1407 = vmatprep.subr.mxu0 0.0
  %1408 = vmatpush2.msra.mxu0 0.0
  %1409 = vmatprep.subr.mxu0 0.0
  %1410 = vmatpush2.msra.mxu0 0.0
  %1411 = vmatprep.subr.mxu0 0.0
  %1412 = vmatpush2.msra.mxu0 0.0
  %1413 = vmatprep.subr.mxu0 0.0
  %1414 = vmatpush2.msra.mxu0 0.0
  %1415 = vmatprep.subr.mxu0 0.0
  %1416 = vmatpush2.msra.mxu0 0.0
  %1417 = vmatprep.subr.mxu0 0.0
  %1418 = vmatpush2.msra.mxu0 0.0
  %1419 = vmatprep.subr.mxu0 0.0
  %1420 = vmatpush2.msra.mxu0 0.0
  %1421 = vmatprep.subr.mxu0 0.0
  %1422 = vmatpush2.msra.mxu0 0.0
  %1423 = vmatprep.subr.mxu0 0.0
  %1424 = vmatpush2.msra.mxu0 0.0
  %1425 = vmatprep.subr.mxu0 0.0
  %1426 = vmatpush2.msra.mxu0 0.0
  %1427 = vmatprep.subr.mxu0 0.0
  %1428 = vmatpush2.msra.mxu0 0.0
  %1429 = vmatprep.mubr.f32.mxu0 0.0
  %1430 = vmatmul.mubr.f32.gmra.mxu0 %v1358
  %v1431 = vpop.f32.mrf.mxu0
  %v1432 = vadd.f32 0.0, %v1431
  %v1433 = vpop.f32.mrf.mxu0
  %1434 = vmatprep.mubr.f32.mxu0 0.0
  %1435 = vmatmul.mubr.f32.gmra.mxu0 %v1361
  %v1436 = vpop.f32.mrf.mxu0
  %v1437 = vadd.f32 0.0, %v1436
  %v1438 = vpop.f32.mrf.mxu0
  %1439 = vdwg.mxu0
  %1440 = vrot.lane.b32.xlu0 %v818, 80
  %v1441 = vpop.permute.xlu0 %1440
  %1442 = vrot.lane.b32.xlu0 %v822, 80
  %v1443 = vpop.permute.xlu0 %1442
  %1444 = vrot.lane.b32.xlu0 %v818, 16
  %v1445 = vpop.permute.xlu0 %1444
  %1446 = vrot.lane.b32.xlu0 %v822, 16
  %v1447 = vpop.permute.xlu0 %1446
  %v1448 = vsel %vm832, %v1441, 0
  %v1450 = vsel %vm832, %v1443, 0
  %v1452 = vsel %vm832, %v1445, 0
  %v1454 = vsel %vm832, %v1447, 0
  %1456 = vmatprep.subr.mxu0 0.0
  %1457 = vmatpush1.xpose.msra.mxu0 0.0
  %1458 = vmatprep.subr.mxu0 0.0
  %1459 = vmatpush1.xpose.msra.mxu0 0.0
  %1460 = vmatprep.subr.mxu0 0.0
  %1461 = vmatpush1.xpose.msra.mxu0 0.0
  %1462 = vmatprep.subr.mxu0 0.0
  %1463 = vmatpush1.xpose.msra.mxu0 0.0
  %1464 = vmatprep.subr.mxu0 0.0
  %1465 = vmatpush1.xpose.msra.mxu0 0.0
  %1466 = vmatprep.subr.mxu0 0.0
  %1467 = vmatpush1.xpose.msra.mxu0 0.0
  %1468 = vmatprep.subr.mxu0 0.0
  %1469 = vmatpush1.xpose.msra.mxu0 0.0
  %1470 = vmatprep.subr.mxu0 0.0
  %1471 = vmatpush1.xpose.msra.mxu0 0.0
  %1472 = vmatprep.subr.mxu0 0.0
  %1473 = vmatpush1.xpose.msra.mxu0 0.0
  %1474 = vmatprep.subr.mxu0 0.0
  %1475 = vmatpush1.xpose.msra.mxu0 0.0
  %1476 = vmatprep.subr.mxu0 0.0
  %1477 = vmatpush1.xpose.msra.mxu0 0.0
  %1478 = vmatprep.subr.mxu0 0.0
  %1479 = vmatpush1.xpose.msra.mxu0 0.0
  %1480 = vmatprep.subr.mxu0 0.0
  %1481 = vmatpush1.xpose.msra.mxu0 0.0
  %1482 = vmatprep.subr.mxu0 0.0
  %1483 = vmatpush1.xpose.msra.mxu0 0.0
  %1484 = vmatprep.subr.mxu0 0.0
  %1485 = vmatpush1.xpose.msra.mxu0 %v1454
  %1486 = vmatprep.subr.mxu0 0.0
  %1487 = vmatpush1.xpose.msra.mxu0 %v1452
  %1488 = vmatprep.subr.mxu0 0.0
  %1489 = vmatpush2.xpose.msra.mxu0 0.0
  %1490 = vmatprep.subr.mxu0 0.0
  %1491 = vmatpush2.xpose.msra.mxu0 0.0
  %1492 = vmatprep.subr.mxu0 0.0
  %1493 = vmatpush2.xpose.msra.mxu0 0.0
  %1494 = vmatprep.subr.mxu0 0.0
  %1495 = vmatpush2.xpose.msra.mxu0 0.0
  %1496 = vmatprep.subr.mxu0 0.0
  %1497 = vmatpush2.xpose.msra.mxu0 0.0
  %1498 = vmatprep.subr.mxu0 0.0
  %1499 = vmatpush2.xpose.msra.mxu0 0.0
  %1500 = vmatprep.subr.mxu0 0.0
  %1501 = vmatpush2.xpose.msra.mxu0 0.0
  %1502 = vmatprep.subr.mxu0 0.0
  %1503 = vmatpush2.xpose.msra.mxu0 0.0
  %1504 = vmatprep.subr.mxu0 0.0
  %1505 = vmatpush2.xpose.msra.mxu0 0.0
  %1506 = vmatprep.subr.mxu0 0.0
  %1507 = vmatpush2.xpose.msra.mxu0 0.0
  %1508 = vmatprep.subr.mxu0 0.0
  %1509 = vmatpush2.xpose.msra.mxu0 0.0
  %1510 = vmatprep.subr.mxu0 0.0
  %1511 = vmatpush2.xpose.msra.mxu0 0.0
  %1512 = vmatprep.subr.mxu0 0.0
  %1513 = vmatpush2.xpose.msra.mxu0 0.0
  %1514 = vmatprep.subr.mxu0 0.0
  %1515 = vmatpush2.xpose.msra.mxu0 0.0
  %1516 = vmatprep.subr.mxu0 0.0
  %1517 = vmatpush2.xpose.msra.mxu0 0.0
  %1518 = vmatprep.subr.mxu0 0.0
  %1519 = vmatpush2.xpose.msra.mxu0 0.0
  %1520 = vmatprep.mubr.f32.mxu0 0.0
  %1521 = vmatmul.mubr.f32.gmra.mxu0 %v1448
  %v1522 = vpop.f32.mrf.mxu0
  %v1523 = vadd.f32 0.0, %v1522
  %v1524 = vpop.f32.mrf.mxu0
  %1525 = vmatprep.mubr.f32.mxu0 0.0
  %1526 = vmatmul.mubr.f32.gmra.mxu0 %v1450
  %v1527 = vpop.f32.mrf.mxu0
  %v1528 = vadd.f32 0.0, %v1527
  %v1529 = vpop.f32.mrf.mxu0
  %1530 = vdwg.mxu0
  %v1531 = vmul.f32 %v1523, 0.25
  %v1532 = vmul.f32 %v1528, 0.25
  %v1533 = vadd.f32 %v1531, %v667
  %v1534 = vadd.f32 %v1532, %v668
  %v1535 = vsel %vm920, %v1533, -inf
  %1536 = vmax.xlane.f32.xlu0 %v1535
  %v1537 = vpop.xlane.xlu0 %1536
  %v1538 = vsel %vm924, %v1534, -inf
  %1539 = vmax.xlane.f32.xlu0 %v1538
  %v1540 = vpop.xlane.xlu0 %1539
  %v1541 = vsub.f32 %v1533, %v1537
  %v1542 = vsub.f32 %v1534, %v1540
  %v1543 = vmul.f32 %v1541, 1.442695
  %v1544 = vpow.pop %v1543
  %v1545 = vmul.f32 %v1542, 1.442695
  %v1546 = vpow.pop %v1545
  %v1547 = vsel %vm920, %v1544, 0.0
  %1548 = vadd.xlane.f32.xlu0 %v1547
  %v1549 = vpop.xlane.xlu0 %1548
  %v1550 = vsel %vm924, %v1546, 0.0
  %1551 = vadd.xlane.f32.xlu0 %v1550
  %v1552 = vpop.xlane.xlu0 %1551
  %v1553 = vrcp.pop %v1549
  %v1554 = vrcp.pop %v1552
  %v1555 = vmul.f32 %v1544, %v1553
  %v1556 = vmul.f32 %v1546, %v1554
  %1557 = vrot.lane.b32.xlu0 %v820, 80
  %v1558 = vpop.permute.xlu0 %1557
  %1559 = vrot.lane.b32.xlu0 %v824, 80
  %v1560 = vpop.permute.xlu0 %1559
  %v1563 = vsel %vm920, %v1555, 0
  %v1566 = vsel %vm920, %v1556, 0
  %v1568 = vsel %vm950, %v1560, 0
  %1570 = vmatprep.subr.mxu0 0.0
  %1571 = vmatpush1.msra.mxu0 0.0
  %1572 = vmatprep.subr.mxu0 0.0
  %1573 = vmatpush1.msra.mxu0 0.0
  %1574 = vmatprep.subr.mxu0 0.0
  %1575 = vmatpush1.msra.mxu0 0.0
  %1576 = vmatprep.subr.mxu0 0.0
  %1577 = vmatpush1.msra.mxu0 0.0
  %1578 = vmatprep.subr.mxu0 0.0
  %1579 = vmatpush1.msra.mxu0 0.0
  %1580 = vmatprep.subr.mxu0 0.0
  %1581 = vmatpush1.msra.mxu0 0.0
  %1582 = vmatprep.subr.mxu0 0.0
  %1583 = vmatpush1.msra.mxu0 0.0
  %1584 = vmatprep.subr.mxu0 0.0
  %1585 = vmatpush1.msra.mxu0 0.0
  %1586 = vmatprep.subr.mxu0 0.0
  %1587 = vmatpush1.msra.mxu0 0.0
  %1588 = vmatprep.subr.mxu0 0.0
  %1589 = vmatpush1.msra.mxu0 0.0
  %1590 = vmatprep.subr.mxu0 0.0
  %1591 = vmatpush1.msra.mxu0 0.0
  %1592 = vmatprep.subr.mxu0 0.0
  %1593 = vmatpush1.msra.mxu0 0.0
  %1594 = vmatprep.subr.mxu0 0.0
  %1595 = vmatpush1.msra.mxu0 0.0
  %1596 = vmatprep.subr.mxu0 0.0
  %1597 = vmatpush1.msra.mxu0 0.0
  %1598 = vmatprep.subr.mxu0 0.0
  %1599 = vmatpush1.msra.mxu0 %v1568
  %1600 = vmatprep.subr.mxu0 0.0
  %1601 = vmatpush1.msra.mxu0 %v1558
  %1602 = vmatprep.subr.mxu0 0.0
  %1603 = vmatpush2.msra.mxu0 0.0
  %1604 = vmatprep.subr.mxu0 0.0
  %1605 = vmatpush2.msra.mxu0 0.0
  %1606 = vmatprep.subr.mxu0 0.0
  %1607 = vmatpush2.msra.mxu0 0.0
  %1608 = vmatprep.subr.mxu0 0.0
  %1609 = vmatpush2.msra.mxu0 0.0
  %1610 = vmatprep.subr.mxu0 0.0
  %1611 = vmatpush2.msra.mxu0 0.0
  %1612 = vmatprep.subr.mxu0 0.0
  %1613 = vmatpush2.msra.mxu0 0.0
  %1614 = vmatprep.subr.mxu0 0.0
  %1615 = vmatpush2.msra.mxu0 0.0
  %1616 = vmatprep.subr.mxu0 0.0
  %1617 = vmatpush2.msra.mxu0 0.0
  %1618 = vmatprep.subr.mxu0 0.0
  %1619 = vmatpush2.msra.mxu0 0.0
  %1620 = vmatprep.subr.mxu0 0.0
  %1621 = vmatpush2.msra.mxu0 0.0
  %1622 = vmatprep.subr.mxu0 0.0
  %1623 = vmatpush2.msra.mxu0 0.0
  %1624 = vmatprep.subr.mxu0 0.0
  %1625 = vmatpush2.msra.mxu0 0.0
  %1626 = vmatprep.subr.mxu0 0.0
  %1627 = vmatpush2.msra.mxu0 0.0
  %1628 = vmatprep.subr.mxu0 0.0
  %1629 = vmatpush2.msra.mxu0 0.0
  %1630 = vmatprep.subr.mxu0 0.0
  %1631 = vmatpush2.msra.mxu0 0.0
  %1632 = vmatprep.subr.mxu0 0.0
  %1633 = vmatpush2.msra.mxu0 0.0
  %1634 = vmatprep.mubr.f32.mxu0 0.0
  %1635 = vmatmul.mubr.f32.gmra.mxu0 %v1563
  %v1636 = vpop.f32.mrf.mxu0
  %v1637 = vadd.f32 0.0, %v1636
  %v1638 = vpop.f32.mrf.mxu0
  %1639 = vmatprep.mubr.f32.mxu0 0.0
  %1640 = vmatmul.mubr.f32.gmra.mxu0 %v1566
  %v1641 = vpop.f32.mrf.mxu0
  %v1642 = vadd.f32 0.0, %v1641
  %v1643 = vpop.f32.mrf.mxu0
  %1644 = vdwg.mxu0
  %1647 = vrot.lane.b32.xlu0 %v1227, 16
  %v1648 = vpop.permute.xlu0 %1647
  %1649 = vrot.lane.b32.xlu0 %v1232, 16
  %v1650 = vpop.permute.xlu0 %1649
  %1655 = vrot.lane.b32.xlu0 %v1432, 32
  %v1656 = vpop.permute.xlu0 %1655
  %1657 = vrot.lane.b32.xlu0 %v1437, 32
  %v1658 = vpop.permute.xlu0 %1657
  %1663 = vrot.lane.b32.xlu0 %v1637, 48
  %v1664 = vpop.permute.xlu0 %1663
  %1665 = vrot.lane.b32.xlu0 %v1642, 48
  %v1666 = vpop.permute.xlu0 %1665
  %v1669 = vsel %vm832, %v1021, %v1648
  %v1670 = vsel %vm832, %v1026, %v1650
  %vm1671 = vcmask 261120
  %v1672 = vsel %vm1671, %v1669, %v1656
  %v1673 = vsel %vm1671, %v1670, %v1658
  %vm1674 = vcmask 392192
  %v1675 = vsel %vm1674, %v1672, %v1664
  %v1676 = vsel %vm1674, %v1673, %v1666
  %v1677 = vpack.c.bf16 %v1676, %v1675
  %v1678 = vld [vmem:[%s6] sm:$0xf]
  %v1679 = vld [vmem:[%s6 + $0x4] sm:$0xf]
  %v1680 = vld [vmem:[%s6 + $0x8] sm:$0xf]
  %v1681 = vld [vmem:[%s6 + $0xc] sm:$0xf]
  %v1682 = vld [vmem:[%s6 + $0x10] sm:$0xf]
  %v1683 = vld [vmem:[%s6 + $0x14] sm:$0xf]
  %v1684 = vld [vmem:[%s6 + $0x18] sm:$0xf]
  %v1685 = vld [vmem:[%s6 + $0x1c] sm:$0xf]
  %v1694 = vunpack.c.l.b16 %v1678
  %v1695 = vunpack.c.l.b16 %v1679
  %v1696 = vunpack.c.l.b16 %v1680
  %v1697 = vunpack.c.l.b16 %v1681
  %v1698 = vunpack.c.l.b16 %v1682
  %v1699 = vunpack.c.l.b16 %v1683
  %v1700 = vunpack.c.l.b16 %v1684
  %v1701 = vunpack.c.l.b16 %v1685
  %v1702 = vpack.c.b16 %v1695, %v1694
  %v1703 = vpack.c.b16 %v1697, %v1696
  %v1704 = vpack.c.b16 %v1699, %v1698
  %v1705 = vpack.c.b16 %v1701, %v1700
  %v1711 = vsel %vm593, %v1677, 0
  %1713 = vmatprep.subr.bf16.mxu0 0
  %1714 = vmatpush1.bf16.msra.mxu0 0
  %1715 = vmatprep.subr.bf16.mxu0 0
  %1716 = vmatpush1.bf16.msra.mxu0 0
  %1717 = vmatprep.subr.bf16.mxu0 0
  %1718 = vmatpush1.bf16.msra.mxu0 0
  %1719 = vmatprep.subr.bf16.mxu0 0
  %1720 = vmatpush1.bf16.msra.mxu0 0
  %1721 = vmatprep.subr.bf16.mxu0 0
  %1722 = vmatpush1.bf16.msra.mxu0 %v1705
  %1723 = vmatprep.subr.bf16.mxu0 0
  %1724 = vmatpush1.bf16.msra.mxu0 %v1704
  %1725 = vmatprep.subr.bf16.mxu0 0
  %1726 = vmatpush1.bf16.msra.mxu0 %v1703
  %1727 = vmatprep.subr.bf16.mxu0 0
  %1728 = vmatpush1.bf16.msra.mxu0 %v1702
  %1729 = vmatprep.subr.bf16.mxu0 0
  %1730 = vmatpush2.bf16.msra.mxu0 0
  %1731 = vmatprep.subr.bf16.mxu0 0
  %1732 = vmatpush2.bf16.msra.mxu0 0
  %1733 = vmatprep.subr.bf16.mxu0 0
  %1734 = vmatpush2.bf16.msra.mxu0 0
  %1735 = vmatprep.subr.bf16.mxu0 0
  %1736 = vmatpush2.bf16.msra.mxu0 0
  %1737 = vmatprep.subr.bf16.mxu0 0
  %1738 = vmatpush2.bf16.msra.mxu0 0
  %1739 = vmatprep.subr.bf16.mxu0 0
  %1740 = vmatpush2.bf16.msra.mxu0 0
  %1741 = vmatprep.subr.bf16.mxu0 0
  %1742 = vmatpush2.bf16.msra.mxu0 0
  %1743 = vmatprep.subr.bf16.mxu0 0
  %1744 = vmatpush2.bf16.msra.mxu0 0
  %1745 = vmatprep.mubr.bf16.mxu0 0
  %1746 = vmatmul.mubr.bf16.gmra.mxu0 %v1711
  %v1747 = vpop.f32.mrf.mxu0
  %v1748 = vadd.f32 0.0, %v1747
  %v1749 = vpop.f32.mrf.mxu0
  %v1750 = vpop.f32.mrf.mxu0
  %v1751 = vadd.f32 0.0, %v1750
  %v1752 = vpop.f32.mrf.mxu0
  %1753 = vdwg.mxu0
  %v1754 = vadd.f32 %v636, %v1748
  %v1755 = vadd.f32 %v637, %v1751
  %v1756 = vld [vmem:[%s7] sm:$0x1]
  %v1758 = vlaneseq
  %v1759 = vshrl.u32 %v1758, 7
  %v1760 = vsub.s32 0, %v1759
  %v1761 = vrot.slane %v1756, %v1760
  %v1763 = vadd.f32 %v1754, %v1761
  %v1764 = vadd.f32 %v1755, %v1761
  %v1765 = vsel %vm593, %v1763, 0.0
  %1766 = vadd.xlane.f32.xlu0 %v1765
  %v1767 = vpop.xlane.xlu0 %1766
  %v1768 = vsel %vm597, %v1764, 0.0
  %1769 = vadd.xlane.f32.xlu0 %v1768
  %v1770 = vpop.xlane.xlu0 %1769
  %v1771 = vmul.f32 %v1767, %v601
  %v1772 = vmul.f32 %v1770, %v601
  %v1773 = vsub.f32 %v1763, %v1771
  %v1774 = vsub.f32 %v1764, %v1772
  %v1775 = vmul.f32 %v1773, %v1773
  %v1776 = vmul.f32 %v1774, %v1774
  %v1777 = vsel %vm593, %v1775, 0.0
  %1778 = vadd.xlane.f32.xlu0 %v1777
  %v1779 = vpop.xlane.xlu0 %1778
  %v1780 = vsel %vm597, %v1776, 0.0
  %1781 = vadd.xlane.f32.xlu0 %v1780
  %v1782 = vpop.xlane.xlu0 %1781
  %v1783 = vmul.f32 %v1779, %v601
  %v1784 = vmul.f32 %v1782, %v601
  %v1785 = vadd.f32 %v1783, 1e-05
  %v1786 = vadd.f32 %v1784, 1e-05
  %v1787 = vrsqrt.pop %v1785
  %v1788 = vrsqrt.pop %v1786
  %v1789 = vmul.f32 %v1773, %v1787
  %v1790 = vmul.f32 %v1774, %v1788
  %v1792 = vlaneseq
  %v1793 = vshrl.u32 %v1792, 7
  %v1794 = vsub.s32 0, %v1793
  %v1795 = vrot.slane %v674, %v1794
  %v1797 = vmul.f32 %v1789, %v1795
  %v1798 = vmul.f32 %v1790, %v1795
  %v1800 = vlaneseq
  %v1801 = vshrl.u32 %v1800, 7
  %v1802 = vsub.s32 0, %v1801
  %v1803 = vrot.slane %v676, %v1802
  %v1805 = vadd.f32 %v1797, %v1803
  %v1806 = vadd.f32 %v1798, %v1803
  %v1807 = vpack.c.bf16 %v1806, %v1805
  %v1808 = vld [vmem:[%s8] sm:$0xff]
  %v1809 = vld [vmem:[%s8 + $0x8] sm:$0xff]
  %v1810 = vld [vmem:[%s8 + $0x10] sm:$0xff]
  %v1811 = vld [vmem:[%s8 + $0x18] sm:$0xff]
  %v1812 = vld [vmem:[%s8 + $0x20] sm:$0xff]
  %v1813 = vld [vmem:[%s8 + $0x28] sm:$0xff]
  %v1814 = vld [vmem:[%s8 + $0x30] sm:$0xff]
  %v1815 = vld [vmem:[%s8 + $0x38] sm:$0xff]
  %v1816 = vld [vmem:[%s9] sm:$0x3]
  %v1818 = vlaneseq
  %v1819 = vshrl.u32 %v1818, 7
  %v1820 = vsub.s32 0, %v1819
  %v1821 = vrot.slane %v1816, %v1820
  %v1822 = vlaneseq
  %v1823 = vshrl.u32 %v1822, 7
  %v1824 = vsub.s32 1, %v1823
  %v1825 = vrot.slane %v1816, %v1824
  %v1836 = vunpack.c.l.b16 %v1808
  %v1837 = vunpack.c.h.b16 %v1808
  %v1838 = vunpack.c.l.b16 %v1809
  %v1839 = vunpack.c.h.b16 %v1809
  %v1840 = vunpack.c.l.b16 %v1810
  %v1841 = vunpack.c.h.b16 %v1810
  %v1842 = vunpack.c.l.b16 %v1811
  %v1843 = vunpack.c.h.b16 %v1811
  %v1844 = vunpack.c.l.b16 %v1812
  %v1845 = vunpack.c.h.b16 %v1812
  %v1846 = vunpack.c.l.b16 %v1813
  %v1847 = vunpack.c.h.b16 %v1813
  %v1848 = vunpack.c.l.b16 %v1814
  %v1849 = vunpack.c.h.b16 %v1814
  %v1850 = vunpack.c.l.b16 %v1815
  %v1851 = vunpack.c.h.b16 %v1815
  %v1852 = vpack.c.b16 %v1838, %v1836
  %v1853 = vpack.c.b16 %v1839, %v1837
  %v1854 = vpack.c.b16 %v1842, %v1840
  %v1855 = vpack.c.b16 %v1843, %v1841
  %v1856 = vpack.c.b16 %v1846, %v1844
  %v1857 = vpack.c.b16 %v1847, %v1845
  %v1858 = vpack.c.b16 %v1850, %v1848
  %v1859 = vpack.c.b16 %v1851, %v1849
  %v1869 = vsel %vm593, %v1807, 0
  %1871 = vmatprep.subr.bf16.mxu0 0
  %1872 = vmatpush1.bf16.msra.mxu0 0
  %1873 = vmatprep.subr.bf16.mxu0 0
  %1874 = vmatpush1.bf16.msra.mxu0 0
  %1875 = vmatprep.subr.bf16.mxu0 0
  %1876 = vmatpush1.bf16.msra.mxu0 0
  %1877 = vmatprep.subr.bf16.mxu0 0
  %1878 = vmatpush1.bf16.msra.mxu0 0
  %1879 = vmatprep.subr.bf16.mxu0 %v1859
  %1880 = vmatpush1.bf16.msra.mxu0 %v1858
  %1881 = vmatprep.subr.bf16.mxu0 %v1857
  %1882 = vmatpush1.bf16.msra.mxu0 %v1856
  %1883 = vmatprep.subr.bf16.mxu0 %v1855
  %1884 = vmatpush1.bf16.msra.mxu0 %v1854
  %1885 = vmatprep.subr.bf16.mxu0 %v1853
  %1886 = vmatpush1.bf16.msra.mxu0 %v1852
  %1887 = vmatprep.subr.bf16.mxu0 0
  %1888 = vmatpush2.bf16.msra.mxu0 0
  %1889 = vmatprep.subr.bf16.mxu0 0
  %1890 = vmatpush2.bf16.msra.mxu0 0
  %1891 = vmatprep.subr.bf16.mxu0 0
  %1892 = vmatpush2.bf16.msra.mxu0 0
  %1893 = vmatprep.subr.bf16.mxu0 0
  %1894 = vmatpush2.bf16.msra.mxu0 0
  %1895 = vmatprep.subr.bf16.mxu0 0
  %1896 = vmatpush2.bf16.msra.mxu0 0
  %1897 = vmatprep.subr.bf16.mxu0 0
  %1898 = vmatpush2.bf16.msra.mxu0 0
  %1899 = vmatprep.subr.bf16.mxu0 0
  %1900 = vmatpush2.bf16.msra.mxu0 0
  %1901 = vmatprep.subr.bf16.mxu0 0
  %1902 = vmatpush2.bf16.msra.mxu0 0
  %1903 = vmatprep.mubr.bf16.mxu0 0
  %1904 = vmatmul.mubr.bf16.gmra.mxu0 %v1869
  %v1905 = vpop.f32.mrf.mxu0
  %v1906 = vadd.f32 %v1821, %v1905
  %v1907 = vpop.f32.mrf.mxu0
  %v1908 = vadd.f32 %v1825, %v1907
  %v1909 = vpop.f32.mrf.mxu0
  %v1910 = vadd.f32 %v1821, %v1909
  %v1911 = vpop.f32.mrf.mxu0
  %v1912 = vadd.f32 %v1825, %v1911
  %1913 = vdwg.mxu0
  %v1914 = vmul.f32 %v1906, 1.702
  %v1915 = vmul.f32 %v1908, 1.702
  %v1916 = vmul.f32 %v1910, 1.702
  %v1917 = vmul.f32 %v1912, 1.702
  %v1918 = vxor.u32 %v1914, 2147483648
  %v1919 = vxor.u32 %v1915, 2147483648
  %v1920 = vxor.u32 %v1916, 2147483648
  %v1921 = vxor.u32 %v1917, 2147483648
  %v1922 = vmul.f32 %v1918, 1.442695
  %v1923 = vpow.pop %v1922
  %v1924 = vmul.f32 %v1919, 1.442695
  %v1925 = vpow.pop %v1924
  %v1926 = vmul.f32 %v1920, 1.442695
  %v1927 = vpow.pop %v1926
  %v1928 = vmul.f32 %v1921, 1.442695
  %v1929 = vpow.pop %v1928
  %v1930 = vadd.f32 %v1923, 1.0
  %v1931 = vadd.f32 %v1925, 1.0
  %v1932 = vadd.f32 %v1927, 1.0
  %v1933 = vadd.f32 %v1929, 1.0
  %v1934 = vrcp.pop %v1930
  %v1935 = vmul.f32 1.0, %v1934
  %v1936 = vrcp.pop %v1931
  %v1937 = vmul.f32 1.0, %v1936
  %v1938 = vrcp.pop %v1932
  %v1939 = vmul.f32 1.0, %v1938
  %v1940 = vrcp.pop %v1933
  %v1941 = vmul.f32 1.0, %v1940
  %v1942 = vmul.f32 %v1906, %v1935
  %v1943 = vmul.f32 %v1908, %v1937
  %v1944 = vmul.f32 %v1910, %v1939
  %v1945 = vmul.f32 %v1912, %v1941
  %v1946 = vpack.c.bf16 %v1944, %v1942
  %v1947 = vpack.c.bf16 %v1945, %v1943
  %v1948 = vld [vmem:[%s10] sm:$0xf]
  %v1949 = vld [vmem:[%s10 + $0x4] sm:$0xf]
  %v1950 = vld [vmem:[%s10 + $0x8] sm:$0xf]
  %v1951 = vld [vmem:[%s10 + $0xc] sm:$0xf]
  %v1952 = vld [vmem:[%s10 + $0x10] sm:$0xf]
  %v1953 = vld [vmem:[%s10 + $0x14] sm:$0xf]
  %v1954 = vld [vmem:[%s10 + $0x18] sm:$0xf]
  %v1955 = vld [vmem:[%s10 + $0x1c] sm:$0xf]
  %v1956 = vld [vmem:[%s10 + $0x20] sm:$0xf]
  %v1957 = vld [vmem:[%s10 + $0x24] sm:$0xf]
  %v1958 = vld [vmem:[%s10 + $0x28] sm:$0xf]
  %v1959 = vld [vmem:[%s10 + $0x2c] sm:$0xf]
  %v1960 = vld [vmem:[%s10 + $0x30] sm:$0xf]
  %v1961 = vld [vmem:[%s10 + $0x34] sm:$0xf]
  %v1962 = vld [vmem:[%s10 + $0x38] sm:$0xf]
  %v1963 = vld [vmem:[%s10 + $0x3c] sm:$0xf]
  %v1964 = vld [vmem:[%s10 + $0x40] sm:$0xf]
  %v1965 = vld [vmem:[%s10 + $0x44] sm:$0xf]
  %v1966 = vld [vmem:[%s10 + $0x48] sm:$0xf]
  %v1967 = vld [vmem:[%s10 + $0x4c] sm:$0xf]
  %v1968 = vld [vmem:[%s10 + $0x50] sm:$0xf]
  %v1969 = vld [vmem:[%s10 + $0x54] sm:$0xf]
  %v1970 = vld [vmem:[%s10 + $0x58] sm:$0xf]
  %v1971 = vld [vmem:[%s10 + $0x5c] sm:$0xf]
  %v1972 = vld [vmem:[%s10 + $0x60] sm:$0xf]
  %v1973 = vld [vmem:[%s10 + $0x64] sm:$0xf]
  %v1974 = vld [vmem:[%s10 + $0x68] sm:$0xf]
  %v1975 = vld [vmem:[%s10 + $0x6c] sm:$0xf]
  %v1976 = vld [vmem:[%s10 + $0x70] sm:$0xf]
  %v1977 = vld [vmem:[%s10 + $0x74] sm:$0xf]
  %v1978 = vld [vmem:[%s10 + $0x78] sm:$0xf]
  %v1979 = vld [vmem:[%s10 + $0x7c] sm:$0xf]
  %v2012 = vunpack.c.l.b16 %v1948
  %v2013 = vunpack.c.l.b16 %v1949
  %v2014 = vunpack.c.l.b16 %v1950
  %v2015 = vunpack.c.l.b16 %v1951
  %v2016 = vunpack.c.l.b16 %v1952
  %v2017 = vunpack.c.l.b16 %v1953
  %v2018 = vunpack.c.l.b16 %v1954
  %v2019 = vunpack.c.l.b16 %v1955
  %v2020 = vunpack.c.l.b16 %v1956
  %v2021 = vunpack.c.l.b16 %v1957
  %v2022 = vunpack.c.l.b16 %v1958
  %v2023 = vunpack.c.l.b16 %v1959
  %v2024 = vunpack.c.l.b16 %v1960
  %v2025 = vunpack.c.l.b16 %v1961
  %v2026 = vunpack.c.l.b16 %v1962
  %v2027 = vunpack.c.l.b16 %v1963
  %v2028 = vunpack.c.l.b16 %v1964
  %v2029 = vunpack.c.l.b16 %v1965
  %v2030 = vunpack.c.l.b16 %v1966
  %v2031 = vunpack.c.l.b16 %v1967
  %v2032 = vunpack.c.l.b16 %v1968
  %v2033 = vunpack.c.l.b16 %v1969
  %v2034 = vunpack.c.l.b16 %v1970
  %v2035 = vunpack.c.l.b16 %v1971
  %v2036 = vunpack.c.l.b16 %v1972
  %v2037 = vunpack.c.l.b16 %v1973
  %v2038 = vunpack.c.l.b16 %v1974
  %v2039 = vunpack.c.l.b16 %v1975
  %v2040 = vunpack.c.l.b16 %v1976
  %v2041 = vunpack.c.l.b16 %v1977
  %v2042 = vunpack.c.l.b16 %v1978
  %v2043 = vunpack.c.l.b16 %v1979
  %v2044 = vpack.c.b16 %v2013, %v2012
  %v2045 = vpack.c.b16 %v2015, %v2014
  %v2046 = vpack.c.b16 %v2017, %v2016
  %v2047 = vpack.c.b16 %v2019, %v2018
  %v2048 = vpack.c.b16 %v2021, %v2020
  %v2049 = vpack.c.b16 %v2023, %v2022
  %v2050 = vpack.c.b16 %v2025, %v2024
  %v2051 = vpack.c.b16 %v2027, %v2026
  %v2052 = vpack.c.b16 %v2029, %v2028
  %v2053 = vpack.c.b16 %v2031, %v2030
  %v2054 = vpack.c.b16 %v2033, %v2032
  %v2055 = vpack.c.b16 %v2035, %v2034
  %v2056 = vpack.c.b16 %v2037, %v2036
  %v2057 = vpack.c.b16 %v2039, %v2038
  %v2058 = vpack.c.b16 %v2041, %v2040
  %v2059 = vpack.c.b16 %v2043, %v2042
  %2076 = vmatprep.subr.bf16.mxu0 0
  %2077 = vmatpush1.bf16.msra.mxu0 %v2051
  %2078 = vmatprep.subr.bf16.mxu0 0
  %2079 = vmatpush1.bf16.msra.mxu0 %v2050
  %2080 = vmatprep.subr.bf16.mxu0 0
  %2081 = vmatpush1.bf16.msra.mxu0 %v2049
  %2082 = vmatprep.subr.bf16.mxu0 0
  %2083 = vmatpush1.bf16.msra.mxu0 %v2048
  %2084 = vmatprep.subr.bf16.mxu0 0
  %2085 = vmatpush1.bf16.msra.mxu0 %v2047
  %2086 = vmatprep.subr.bf16.mxu0 0
  %2087 = vmatpush1.bf16.msra.mxu0 %v2046
  %2088 = vmatprep.subr.bf16.mxu0 0
  %2089 = vmatpush1.bf16.msra.mxu0 %v2045
  %2090 = vmatprep.subr.bf16.mxu0 0
  %2091 = vmatpush1.bf16.msra.mxu0 %v2044
  %2092 = vmatprep.subr.bf16.mxu0 0
  %2093 = vmatpush2.bf16.msra.mxu0 %v2059
  %2094 = vmatprep.subr.bf16.mxu0 0
  %2095 = vmatpush2.bf16.msra.mxu0 %v2058
  %2096 = vmatprep.subr.bf16.mxu0 0
  %2097 = vmatpush2.bf16.msra.mxu0 %v2057
  %2098 = vmatprep.subr.bf16.mxu0 0
  %2099 = vmatpush2.bf16.msra.mxu0 %v2056
  %2100 = vmatprep.subr.bf16.mxu0 0
  %2101 = vmatpush2.bf16.msra.mxu0 %v2055
  %2102 = vmatprep.subr.bf16.mxu0 0
  %2103 = vmatpush2.bf16.msra.mxu0 %v2054
  %2104 = vmatprep.subr.bf16.mxu0 0
  %2105 = vmatpush2.bf16.msra.mxu0 %v2053
  %2106 = vmatprep.subr.bf16.mxu0 0
  %2107 = vmatpush2.bf16.msra.mxu0 %v2052
  %2108 = vmatprep.mubr.bf16.mxu0 %v1947
  %2109 = vmatmul.mubr.bf16.gmra.mxu0 %v1946
  %v2110 = vpop.f32.mrf.mxu0
  %v2111 = vadd.f32 0.0, %v2110
  %v2112 = vpop.f32.mrf.mxu0
  %v2113 = vpop.f32.mrf.mxu0
  %v2114 = vadd.f32 0.0, %v2113
  %v2115 = vpop.f32.mrf.mxu0
  %2116 = vdwg.mxu0
  %v2117 = vadd.f32 %v1763, %v2111
  %v2118 = vadd.f32 %v1764, %v2114
  %v2119 = vld [vmem:[%s11] sm:$0x1]
  %v2121 = vlaneseq
  %v2122 = vshrl.u32 %v2121, 7
  %v2123 = vsub.s32 0, %v2122
  %v2124 = vrot.slane %v2119, %v2123
  %v2126 = vadd.f32 %v2117, %v2124
  %v2127 = vadd.f32 %v2118, %v2124
  %s2128 = scalar_lea.vmem %s3, 6
  %v2129 = vld [vmem:[%s2128] sm:$0x1]
  %s2130 = scalar_lea.vmem %s3, 7
  %v2131 = vld [vmem:[%s2130] sm:$0x1]
  %s2132 = scalar_lea.vmem %s3, 8
  %v2133 = vld [vmem:[%s2132] sm:$0x1]
  %s2134 = scalar_lea.vmem %s3, 9
  %v2135 = vld [vmem:[%s2134] sm:$0x1]
  %v2136 = vsel %vm593, %v2126, 0.0
  %2137 = vadd.xlane.f32.xlu0 %v2136
  %v2138 = vpop.xlane.xlu0 %2137
  %v2139 = vsel %vm597, %v2127, 0.0
  %2140 = vadd.xlane.f32.xlu0 %v2139
  %v2141 = vpop.xlane.xlu0 %2140
  %v2142 = vmul.f32 %v2138, %v601
  %v2143 = vmul.f32 %v2141, %v601
  %v2144 = vsub.f32 %v2126, %v2142
  %v2145 = vsub.f32 %v2127, %v2143
  %v2146 = vmul.f32 %v2144, %v2144
  %v2147 = vmul.f32 %v2145, %v2145
  %v2148 = vsel %vm593, %v2146, 0.0
  %2149 = vadd.xlane.f32.xlu0 %v2148
  %v2150 = vpop.xlane.xlu0 %2149
  %v2151 = vsel %vm597, %v2147, 0.0
  %2152 = vadd.xlane.f32.xlu0 %v2151
  %v2153 = vpop.xlane.xlu0 %2152
  %v2154 = vmul.f32 %v2150, %v601
  %v2155 = vmul.f32 %v2153, %v601
  %v2156 = vadd.f32 %v2154, 1e-05
  %v2157 = vadd.f32 %v2155, 1e-05
  %v2158 = vrsqrt.pop %v2156
  %v2159 = vrsqrt.pop %v2157
  %v2160 = vmul.f32 %v2144, %v2158
  %v2161 = vmul.f32 %v2145, %v2159
  %v2163 = vlaneseq
  %v2164 = vshrl.u32 %v2163, 7
  %v2165 = vsub.s32 0, %v2164
  %v2166 = vrot.slane %v2129, %v2165
  %v2168 = vmul.f32 %v2160, %v2166
  %v2169 = vmul.f32 %v2161, %v2166
  %v2171 = vlaneseq
  %v2172 = vshrl.u32 %v2171, 7
  %v2173 = vsub.s32 0, %v2172
  %v2174 = vrot.slane %v2131, %v2173
  %v2176 = vadd.f32 %v2168, %v2174
  %v2177 = vadd.f32 %v2169, %v2174
  %v2178 = vpack.c.bf16 %v2177, %v2176
  %s2179 = scalar_lea.vmem %s4, 64
  %v2180 = vld [vmem:[%s2179] sm:$0xff]
  %v2181 = vld [vmem:[%s2179 + $0x8] sm:$0xff]
  %v2182 = vld [vmem:[%s2179 + $0x10] sm:$0xff]
  %v2183 = vld [vmem:[%s2179 + $0x18] sm:$0xff]
  %v2184 = vld [vmem:[%s2179 + $0x20] sm:$0xff]
  %v2185 = vld [vmem:[%s2179 + $0x28] sm:$0xff]
  %v2186 = vld [vmem:[%s2179 + $0x30] sm:$0xff]
  %v2187 = vld [vmem:[%s2179 + $0x38] sm:$0xff]
  %s2188 = scalar_lea.vmem %s5, 2
  %v2189 = vld [vmem:[%s2188] sm:$0x3]
  %v2191 = vlaneseq
  %v2192 = vshrl.u32 %v2191, 7
  %v2193 = vsub.s32 0, %v2192
  %v2194 = vrot.slane %v2189, %v2193
  %v2195 = vlaneseq
  %v2196 = vshrl.u32 %v2195, 7
  %v2197 = vsub.s32 1, %v2196
  %v2198 = vrot.slane %v2189, %v2197
  %v2209 = vunpack.c.l.b16 %v2180
  %v2210 = vunpack.c.h.b16 %v2180
  %v2211 = vunpack.c.l.b16 %v2181
  %v2212 = vunpack.c.h.b16 %v2181
  %v2213 = vunpack.c.l.b16 %v2182
  %v2214 = vunpack.c.h.b16 %v2182
  %v2215 = vunpack.c.l.b16 %v2183
  %v2216 = vunpack.c.h.b16 %v2183
  %v2217 = vunpack.c.l.b16 %v2184
  %v2218 = vunpack.c.h.b16 %v2184
  %v2219 = vunpack.c.l.b16 %v2185
  %v2220 = vunpack.c.h.b16 %v2185
  %v2221 = vunpack.c.l.b16 %v2186
  %v2222 = vunpack.c.h.b16 %v2186
  %v2223 = vunpack.c.l.b16 %v2187
  %v2224 = vunpack.c.h.b16 %v2187
  %v2225 = vpack.c.b16 %v2211, %v2209
  %v2226 = vpack.c.b16 %v2212, %v2210
  %v2227 = vpack.c.b16 %v2215, %v2213
  %v2228 = vpack.c.b16 %v2216, %v2214
  %v2229 = vpack.c.b16 %v2219, %v2217
  %v2230 = vpack.c.b16 %v2220, %v2218
  %v2231 = vpack.c.b16 %v2223, %v2221
  %v2232 = vpack.c.b16 %v2224, %v2222
  %v2242 = vsel %vm593, %v2178, 0
  %2244 = vmatprep.subr.bf16.mxu0 0
  %2245 = vmatpush1.bf16.msra.mxu0 0
  %2246 = vmatprep.subr.bf16.mxu0 0
  %2247 = vmatpush1.bf16.msra.mxu0 0
  %2248 = vmatprep.subr.bf16.mxu0 0
  %2249 = vmatpush1.bf16.msra.mxu0 0
  %2250 = vmatprep.subr.bf16.mxu0 0
  %2251 = vmatpush1.bf16.msra.mxu0 0
  %2252 = vmatprep.subr.bf16.mxu0 %v2232
  %2253 = vmatpush1.bf16.msra.mxu0 %v2231
  %2254 = vmatprep.subr.bf16.mxu0 %v2230
  %2255 = vmatpush1.bf16.msra.mxu0 %v2229
  %2256 = vmatprep.subr.bf16.mxu0 %v2228
  %2257 = vmatpush1.bf16.msra.mxu0 %v2227
  %2258 = vmatprep.subr.bf16.mxu0 %v2226
  %2259 = vmatpush1.bf16.msra.mxu0 %v2225
  %2260 = vmatprep.subr.bf16.mxu0 0
  %2261 = vmatpush2.bf16.msra.mxu0 0
  %2262 = vmatprep.subr.bf16.mxu0 0
  %2263 = vmatpush2.bf16.msra.mxu0 0
  %2264 = vmatprep.subr.bf16.mxu0 0
  %2265 = vmatpush2.bf16.msra.mxu0 0
  %2266 = vmatprep.subr.bf16.mxu0 0
  %2267 = vmatpush2.bf16.msra.mxu0 0
  %2268 = vmatprep.subr.bf16.mxu0 0
  %2269 = vmatpush2.bf16.msra.mxu0 0
  %2270 = vmatprep.subr.bf16.mxu0 0
  %2271 = vmatpush2.bf16.msra.mxu0 0
  %2272 = vmatprep.subr.bf16.mxu0 0
  %2273 = vmatpush2.bf16.msra.mxu0 0
  %2274 = vmatprep.subr.bf16.mxu0 0
  %2275 = vmatpush2.bf16.msra.mxu0 0
  %2276 = vmatprep.mubr.bf16.mxu0 0
  %2277 = vmatmul.mubr.bf16.gmra.mxu0 %v2242
  %v2278 = vpop.f32.mrf.mxu0
  %v2279 = vadd.f32 %v2194, %v2278
  %v2280 = vpop.f32.mrf.mxu0
  %v2281 = vadd.f32 %v2198, %v2280
  %v2282 = vpop.f32.mrf.mxu0
  %v2283 = vadd.f32 %v2194, %v2282
  %v2284 = vpop.f32.mrf.mxu0
  %v2285 = vadd.f32 %v2198, %v2284
  %2286 = vdwg.mxu0
  %2289 = vrot.lane.b32.xlu0 %v2279, 64
  %v2290 = vpop.permute.xlu0 %2289
  %2291 = vrot.lane.b32.xlu0 %v2283, 64
  %v2292 = vpop.permute.xlu0 %2291
  %v2293 = vsel %vm832, %v2279, 0
  %v2295 = vsel %vm832, %v2283, 0
  %v2297 = vsel %vm832, %v2290, 0
  %v2299 = vsel %vm832, %v2292, 0
  %2301 = vmatprep.subr.mxu0 0.0
  %2302 = vmatpush1.xpose.msra.mxu0 0.0
  %2303 = vmatprep.subr.mxu0 0.0
  %2304 = vmatpush1.xpose.msra.mxu0 0.0
  %2305 = vmatprep.subr.mxu0 0.0
  %2306 = vmatpush1.xpose.msra.mxu0 0.0
  %2307 = vmatprep.subr.mxu0 0.0
  %2308 = vmatpush1.xpose.msra.mxu0 0.0
  %2309 = vmatprep.subr.mxu0 0.0
  %2310 = vmatpush1.xpose.msra.mxu0 0.0
  %2311 = vmatprep.subr.mxu0 0.0
  %2312 = vmatpush1.xpose.msra.mxu0 0.0
  %2313 = vmatprep.subr.mxu0 0.0
  %2314 = vmatpush1.xpose.msra.mxu0 0.0
  %2315 = vmatprep.subr.mxu0 0.0
  %2316 = vmatpush1.xpose.msra.mxu0 0.0
  %2317 = vmatprep.subr.mxu0 0.0
  %2318 = vmatpush1.xpose.msra.mxu0 0.0
  %2319 = vmatprep.subr.mxu0 0.0
  %2320 = vmatpush1.xpose.msra.mxu0 0.0
  %2321 = vmatprep.subr.mxu0 0.0
  %2322 = vmatpush1.xpose.msra.mxu0 0.0
  %2323 = vmatprep.subr.mxu0 0.0
  %2324 = vmatpush1.xpose.msra.mxu0 0.0
  %2325 = vmatprep.subr.mxu0 0.0
  %2326 = vmatpush1.xpose.msra.mxu0 0.0
  %2327 = vmatprep.subr.mxu0 0.0
  %2328 = vmatpush1.xpose.msra.mxu0 0.0
  %2329 = vmatprep.subr.mxu0 0.0
  %2330 = vmatpush1.xpose.msra.mxu0 %v2299
  %2331 = vmatprep.subr.mxu0 0.0
  %2332 = vmatpush1.xpose.msra.mxu0 %v2297
  %2333 = vmatprep.subr.mxu0 0.0
  %2334 = vmatpush2.xpose.msra.mxu0 0.0
  %2335 = vmatprep.subr.mxu0 0.0
  %2336 = vmatpush2.xpose.msra.mxu0 0.0
  %2337 = vmatprep.subr.mxu0 0.0
  %2338 = vmatpush2.xpose.msra.mxu0 0.0
  %2339 = vmatprep.subr.mxu0 0.0
  %2340 = vmatpush2.xpose.msra.mxu0 0.0
  %2341 = vmatprep.subr.mxu0 0.0
  %2342 = vmatpush2.xpose.msra.mxu0 0.0
  %2343 = vmatprep.subr.mxu0 0.0
  %2344 = vmatpush2.xpose.msra.mxu0 0.0
  %2345 = vmatprep.subr.mxu0 0.0
  %2346 = vmatpush2.xpose.msra.mxu0 0.0
  %2347 = vmatprep.subr.mxu0 0.0
  %2348 = vmatpush2.xpose.msra.mxu0 0.0
  %2349 = vmatprep.subr.mxu0 0.0
  %2350 = vmatpush2.xpose.msra.mxu0 0.0
  %2351 = vmatprep.subr.mxu0 0.0
  %2352 = vmatpush2.xpose.msra.mxu0 0.0
  %2353 = vmatprep.subr.mxu0 0.0
  %2354 = vmatpush2.xpose.msra.mxu0 0.0
  %2355 = vmatprep.subr.mxu0 0.0
  %2356 = vmatpush2.xpose.msra.mxu0 0.0
  %2357 = vmatprep.subr.mxu0 0.0
  %2358 = vmatpush2.xpose.msra.mxu0 0.0
  %2359 = vmatprep.subr.mxu0 0.0
  %2360 = vmatpush2.xpose.msra.mxu0 0.0
  %2361 = vmatprep.subr.mxu0 0.0
  %2362 = vmatpush2.xpose.msra.mxu0 0.0
  %2363 = vmatprep.subr.mxu0 0.0
  %2364 = vmatpush2.xpose.msra.mxu0 0.0
  %2365 = vmatprep.mubr.f32.mxu0 0.0
  %2366 = vmatmul.mubr.f32.gmra.mxu0 %v2293
  %v2367 = vpop.f32.mrf.mxu0
  %v2368 = vadd.f32 0.0, %v2367
  %v2369 = vpop.f32.mrf.mxu0
  %2370 = vmatprep.mubr.f32.mxu0 0.0
  %2371 = vmatmul.mubr.f32.gmra.mxu0 %v2295
  %v2372 = vpop.f32.mrf.mxu0
  %v2373 = vadd.f32 0.0, %v2372
  %v2374 = vpop.f32.mrf.mxu0
  %2375 = vdwg.mxu0
  %v2376 = vmul.f32 %v2368, 0.25
  %v2377 = vmul.f32 %v2373, 0.25
  %v2378 = vadd.f32 %v2376, %v667
  %v2379 = vadd.f32 %v2377, %v668
  %v2380 = vsel %vm920, %v2378, -inf
  %2381 = vmax.xlane.f32.xlu0 %v2380
  %v2382 = vpop.xlane.xlu0 %2381
  %v2383 = vsel %vm924, %v2379, -inf
  %2384 = vmax.xlane.f32.xlu0 %v2383
  %v2385 = vpop.xlane.xlu0 %2384
  %v2386 = vsub.f32 %v2378, %v2382
  %v2387 = vsub.f32 %v2379, %v2385
  %v2388 = vmul.f32 %v2386, 1.442695
  %v2389 = vpow.pop %v2388
  %v2390 = vmul.f32 %v2387, 1.442695
  %v2391 = vpow.pop %v2390
  %v2392 = vsel %vm920, %v2389, 0.0
  %2393 = vadd.xlane.f32.xlu0 %v2392
  %v2394 = vpop.xlane.xlu0 %2393
  %v2395 = vsel %vm924, %v2391, 0.0
  %2396 = vadd.xlane.f32.xlu0 %v2395
  %v2397 = vpop.xlane.xlu0 %2396
  %v2398 = vrcp.pop %v2394
  %v2399 = vrcp.pop %v2397
  %v2400 = vmul.f32 %v2389, %v2398
  %v2401 = vmul.f32 %v2391, %v2399
  %v2403 = vsel %vm920, %v2400, 0
  %v2406 = vsel %vm920, %v2401, 0
  %v2409 = vsel %vm950, %v2285, 0
  %2411 = vmatprep.subr.mxu0 0.0
  %2412 = vmatpush1.msra.mxu0 0.0
  %2413 = vmatprep.subr.mxu0 0.0
  %2414 = vmatpush1.msra.mxu0 0.0
  %2415 = vmatprep.subr.mxu0 0.0
  %2416 = vmatpush1.msra.mxu0 0.0
  %2417 = vmatprep.subr.mxu0 0.0
  %2418 = vmatpush1.msra.mxu0 0.0
  %2419 = vmatprep.subr.mxu0 0.0
  %2420 = vmatpush1.msra.mxu0 0.0
  %2421 = vmatprep.subr.mxu0 0.0
  %2422 = vmatpush1.msra.mxu0 0.0
  %2423 = vmatprep.subr.mxu0 0.0
  %2424 = vmatpush1.msra.mxu0 0.0
  %2425 = vmatprep.subr.mxu0 0.0
  %2426 = vmatpush1.msra.mxu0 0.0
  %2427 = vmatprep.subr.mxu0 0.0
  %2428 = vmatpush1.msra.mxu0 0.0
  %2429 = vmatprep.subr.mxu0 0.0
  %2430 = vmatpush1.msra.mxu0 0.0
  %2431 = vmatprep.subr.mxu0 0.0
  %2432 = vmatpush1.msra.mxu0 0.0
  %2433 = vmatprep.subr.mxu0 0.0
  %2434 = vmatpush1.msra.mxu0 0.0
  %2435 = vmatprep.subr.mxu0 0.0
  %2436 = vmatpush1.msra.mxu0 0.0
  %2437 = vmatprep.subr.mxu0 0.0
  %2438 = vmatpush1.msra.mxu0 0.0
  %2439 = vmatprep.subr.mxu0 0.0
  %2440 = vmatpush1.msra.mxu0 %v2409
  %2441 = vmatprep.subr.mxu0 0.0
  %2442 = vmatpush1.msra.mxu0 %v2281
  %2443 = vmatprep.subr.mxu0 0.0
  %2444 = vmatpush2.msra.mxu0 0.0
  %2445 = vmatprep.subr.mxu0 0.0
  %2446 = vmatpush2.msra.mxu0 0.0
  %2447 = vmatprep.subr.mxu0 0.0
  %2448 = vmatpush2.msra.mxu0 0.0
  %2449 = vmatprep.subr.mxu0 0.0
  %2450 = vmatpush2.msra.mxu0 0.0
  %2451 = vmatprep.subr.mxu0 0.0
  %2452 = vmatpush2.msra.mxu0 0.0
  %2453 = vmatprep.subr.mxu0 0.0
  %2454 = vmatpush2.msra.mxu0 0.0
  %2455 = vmatprep.subr.mxu0 0.0
  %2456 = vmatpush2.msra.mxu0 0.0
  %2457 = vmatprep.subr.mxu0 0.0
  %2458 = vmatpush2.msra.mxu0 0.0
  %2459 = vmatprep.subr.mxu0 0.0
  %2460 = vmatpush2.msra.mxu0 0.0
  %2461 = vmatprep.subr.mxu0 0.0
  %2462 = vmatpush2.msra.mxu0 0.0
  %2463 = vmatprep.subr.mxu0 0.0
  %2464 = vmatpush2.msra.mxu0 0.0
  %2465 = vmatprep.subr.mxu0 0.0
  %2466 = vmatpush2.msra.mxu0 0.0
  %2467 = vmatprep.subr.mxu0 0.0
  %2468 = vmatpush2.msra.mxu0 0.0
  %2469 = vmatprep.subr.mxu0 0.0
  %2470 = vmatpush2.msra.mxu0 0.0
  %2471 = vmatprep.subr.mxu0 0.0
  %2472 = vmatpush2.msra.mxu0 0.0
  %2473 = vmatprep.subr.mxu0 0.0
  %2474 = vmatpush2.msra.mxu0 0.0
  %2475 = vmatprep.mubr.f32.mxu0 0.0
  %2476 = vmatmul.mubr.f32.gmra.mxu0 %v2403
  %v2477 = vpop.f32.mrf.mxu0
  %v2478 = vadd.f32 0.0, %v2477
  %v2479 = vpop.f32.mrf.mxu0
  %2480 = vmatprep.mubr.f32.mxu0 0.0
  %2481 = vmatmul.mubr.f32.gmra.mxu0 %v2406
  %v2482 = vpop.f32.mrf.mxu0
  %v2483 = vadd.f32 0.0, %v2482
  %v2484 = vpop.f32.mrf.mxu0
  %2485 = vdwg.mxu0
  %2486 = vrot.lane.b32.xlu0 %v2279, 112
  %v2487 = vpop.permute.xlu0 %2486
  %2488 = vrot.lane.b32.xlu0 %v2283, 112
  %v2489 = vpop.permute.xlu0 %2488
  %2490 = vrot.lane.b32.xlu0 %v2279, 48
  %v2491 = vpop.permute.xlu0 %2490
  %2492 = vrot.lane.b32.xlu0 %v2283, 48
  %v2493 = vpop.permute.xlu0 %2492
  %v2494 = vsel %vm832, %v2487, 0
  %v2496 = vsel %vm832, %v2489, 0
  %v2498 = vsel %vm832, %v2491, 0
  %v2500 = vsel %vm832, %v2493, 0
  %2502 = vmatprep.subr.mxu0 0.0
  %2503 = vmatpush1.xpose.msra.mxu0 0.0
  %2504 = vmatprep.subr.mxu0 0.0
  %2505 = vmatpush1.xpose.msra.mxu0 0.0
  %2506 = vmatprep.subr.mxu0 0.0
  %2507 = vmatpush1.xpose.msra.mxu0 0.0
  %2508 = vmatprep.subr.mxu0 0.0
  %2509 = vmatpush1.xpose.msra.mxu0 0.0
  %2510 = vmatprep.subr.mxu0 0.0
  %2511 = vmatpush1.xpose.msra.mxu0 0.0
  %2512 = vmatprep.subr.mxu0 0.0
  %2513 = vmatpush1.xpose.msra.mxu0 0.0
  %2514 = vmatprep.subr.mxu0 0.0
  %2515 = vmatpush1.xpose.msra.mxu0 0.0
  %2516 = vmatprep.subr.mxu0 0.0
  %2517 = vmatpush1.xpose.msra.mxu0 0.0
  %2518 = vmatprep.subr.mxu0 0.0
  %2519 = vmatpush1.xpose.msra.mxu0 0.0
  %2520 = vmatprep.subr.mxu0 0.0
  %2521 = vmatpush1.xpose.msra.mxu0 0.0
  %2522 = vmatprep.subr.mxu0 0.0
  %2523 = vmatpush1.xpose.msra.mxu0 0.0
  %2524 = vmatprep.subr.mxu0 0.0
  %2525 = vmatpush1.xpose.msra.mxu0 0.0
  %2526 = vmatprep.subr.mxu0 0.0
  %2527 = vmatpush1.xpose.msra.mxu0 0.0
  %2528 = vmatprep.subr.mxu0 0.0
  %2529 = vmatpush1.xpose.msra.mxu0 0.0
  %2530 = vmatprep.subr.mxu0 0.0
  %2531 = vmatpush1.xpose.msra.mxu0 %v2500
  %2532 = vmatprep.subr.mxu0 0.0
  %2533 = vmatpush1.xpose.msra.mxu0 %v2498
  %2534 = vmatprep.subr.mxu0 0.0
  %2535 = vmatpush2.xpose.msra.mxu0 0.0
  %2536 = vmatprep.subr.mxu0 0.0
  %2537 = vmatpush2.xpose.msra.mxu0 0.0
  %2538 = vmatprep.subr.mxu0 0.0
  %2539 = vmatpush2.xpose.msra.mxu0 0.0
  %2540 = vmatprep.subr.mxu0 0.0
  %2541 = vmatpush2.xpose.msra.mxu0 0.0
  %2542 = vmatprep.subr.mxu0 0.0
  %2543 = vmatpush2.xpose.msra.mxu0 0.0
  %2544 = vmatprep.subr.mxu0 0.0
  %2545 = vmatpush2.xpose.msra.mxu0 0.0
  %2546 = vmatprep.subr.mxu0 0.0
  %2547 = vmatpush2.xpose.msra.mxu0 0.0
  %2548 = vmatprep.subr.mxu0 0.0
  %2549 = vmatpush2.xpose.msra.mxu0 0.0
  %2550 = vmatprep.subr.mxu0 0.0
  %2551 = vmatpush2.xpose.msra.mxu0 0.0
  %2552 = vmatprep.subr.mxu0 0.0
  %2553 = vmatpush2.xpose.msra.mxu0 0.0
  %2554 = vmatprep.subr.mxu0 0.0
  %2555 = vmatpush2.xpose.msra.mxu0 0.0
  %2556 = vmatprep.subr.mxu0 0.0
  %2557 = vmatpush2.xpose.msra.mxu0 0.0
  %2558 = vmatprep.subr.mxu0 0.0
  %2559 = vmatpush2.xpose.msra.mxu0 0.0
  %2560 = vmatprep.subr.mxu0 0.0
  %2561 = vmatpush2.xpose.msra.mxu0 0.0
  %2562 = vmatprep.subr.mxu0 0.0
  %2563 = vmatpush2.xpose.msra.mxu0 0.0
  %2564 = vmatprep.subr.mxu0 0.0
  %2565 = vmatpush2.xpose.msra.mxu0 0.0
  %2566 = vmatprep.mubr.f32.mxu0 0.0
  %2567 = vmatmul.mubr.f32.gmra.mxu0 %v2494
  %v2568 = vpop.f32.mrf.mxu0
  %v2569 = vadd.f32 0.0, %v2568
  %v2570 = vpop.f32.mrf.mxu0
  %2571 = vmatprep.mubr.f32.mxu0 0.0
  %2572 = vmatmul.mubr.f32.gmra.mxu0 %v2496
  %v2573 = vpop.f32.mrf.mxu0
  %v2574 = vadd.f32 0.0, %v2573
  %v2575 = vpop.f32.mrf.mxu0
  %2576 = vdwg.mxu0
  %v2577 = vmul.f32 %v2569, 0.25
  %v2578 = vmul.f32 %v2574, 0.25
  %v2579 = vadd.f32 %v2577, %v667
  %v2580 = vadd.f32 %v2578, %v668
  %v2581 = vsel %vm920, %v2579, -inf
  %2582 = vmax.xlane.f32.xlu0 %v2581
  %v2583 = vpop.xlane.xlu0 %2582
  %v2584 = vsel %vm924, %v2580, -inf
  %2585 = vmax.xlane.f32.xlu0 %v2584
  %v2586 = vpop.xlane.xlu0 %2585
  %v2587 = vsub.f32 %v2579, %v2583
  %v2588 = vsub.f32 %v2580, %v2586
  %v2589 = vmul.f32 %v2587, 1.442695
  %v2590 = vpow.pop %v2589
  %v2591 = vmul.f32 %v2588, 1.442695
  %v2592 = vpow.pop %v2591
  %v2593 = vsel %vm920, %v2590, 0.0
  %2594 = vadd.xlane.f32.xlu0 %v2593
  %v2595 = vpop.xlane.xlu0 %2594
  %v2596 = vsel %vm924, %v2592, 0.0
  %2597 = vadd.xlane.f32.xlu0 %v2596
  %v2598 = vpop.xlane.xlu0 %2597
  %v2599 = vrcp.pop %v2595
  %v2600 = vrcp.pop %v2598
  %v2601 = vmul.f32 %v2590, %v2599
  %v2602 = vmul.f32 %v2592, %v2600
  %2604 = vrot.lane.b32.xlu0 %v2281, 112
  %v2605 = vpop.permute.xlu0 %2604
  %2606 = vrot.lane.b32.xlu0 %v2285, 112
  %v2607 = vpop.permute.xlu0 %2606
  %v2610 = vsel %vm920, %v2601, 0
  %v2613 = vsel %vm920, %v2602, 0
  %v2615 = vsel %vm950, %v2607, 0
  %2617 = vmatprep.subr.mxu0 0.0
  %2618 = vmatpush1.msra.mxu0 0.0
  %2619 = vmatprep.subr.mxu0 0.0
  %2620 = vmatpush1.msra.mxu0 0.0
  %2621 = vmatprep.subr.mxu0 0.0
  %2622 = vmatpush1.msra.mxu0 0.0
  %2623 = vmatprep.subr.mxu0 0.0
  %2624 = vmatpush1.msra.mxu0 0.0
  %2625 = vmatprep.subr.mxu0 0.0
  %2626 = vmatpush1.msra.mxu0 0.0
  %2627 = vmatprep.subr.mxu0 0.0
  %2628 = vmatpush1.msra.mxu0 0.0
  %2629 = vmatprep.subr.mxu0 0.0
  %2630 = vmatpush1.msra.mxu0 0.0
  %2631 = vmatprep.subr.mxu0 0.0
  %2632 = vmatpush1.msra.mxu0 0.0
  %2633 = vmatprep.subr.mxu0 0.0
  %2634 = vmatpush1.msra.mxu0 0.0
  %2635 = vmatprep.subr.mxu0 0.0
  %2636 = vmatpush1.msra.mxu0 0.0
  %2637 = vmatprep.subr.mxu0 0.0
  %2638 = vmatpush1.msra.mxu0 0.0
  %2639 = vmatprep.subr.mxu0 0.0
  %2640 = vmatpush1.msra.mxu0 0.0
  %2641 = vmatprep.subr.mxu0 0.0
  %2642 = vmatpush1.msra.mxu0 0.0
  %2643 = vmatprep.subr.mxu0 0.0
  %2644 = vmatpush1.msra.mxu0 0.0
  %2645 = vmatprep.subr.mxu0 0.0
  %2646 = vmatpush1.msra.mxu0 %v2615
  %2647 = vmatprep.subr.mxu0 0.0
  %2648 = vmatpush1.msra.mxu0 %v2605
  %2649 = vmatprep.subr.mxu0 0.0
  %2650 = vmatpush2.msra.mxu0 0.0
  %2651 = vmatprep.subr.mxu0 0.0
  %2652 = vmatpush2.msra.mxu0 0.0
  %2653 = vmatprep.subr.mxu0 0.0
  %2654 = vmatpush2.msra.mxu0 0.0
  %2655 = vmatprep.subr.mxu0 0.0
  %2656 = vmatpush2.msra.mxu0 0.0
  %2657 = vmatprep.subr.mxu0 0.0
  %2658 = vmatpush2.msra.mxu0 0.0
  %2659 = vmatprep.subr.mxu0 0.0
  %2660 = vmatpush2.msra.mxu0 0.0
  %2661 = vmatprep.subr.mxu0 0.0
  %2662 = vmatpush2.msra.mxu0 0.0
  %2663 = vmatprep.subr.mxu0 0.0
  %2664 = vmatpush2.msra.mxu0 0.0
  %2665 = vmatprep.subr.mxu0 0.0
  %2666 = vmatpush2.msra.mxu0 0.0
  %2667 = vmatprep.subr.mxu0 0.0
  %2668 = vmatpush2.msra.mxu0 0.0
  %2669 = vmatprep.subr.mxu0 0.0
  %2670 = vmatpush2.msra.mxu0 0.0
  %2671 = vmatprep.subr.mxu0 0.0
  %2672 = vmatpush2.msra.mxu0 0.0
  %2673 = vmatprep.subr.mxu0 0.0
  %2674 = vmatpush2.msra.mxu0 0.0
  %2675 = vmatprep.subr.mxu0 0.0
  %2676 = vmatpush2.msra.mxu0 0.0
  %2677 = vmatprep.subr.mxu0 0.0
  %2678 = vmatpush2.msra.mxu0 0.0
  %2679 = vmatprep.subr.mxu0 0.0
  %2680 = vmatpush2.msra.mxu0 0.0
  %2681 = vmatprep.mubr.f32.mxu0 0.0
  %2682 = vmatmul.mubr.f32.gmra.mxu0 %v2610
  %v2683 = vpop.f32.mrf.mxu0
  %v2684 = vadd.f32 0.0, %v2683
  %v2685 = vpop.f32.mrf.mxu0
  %2686 = vmatprep.mubr.f32.mxu0 0.0
  %2687 = vmatmul.mubr.f32.gmra.mxu0 %v2613
  %v2688 = vpop.f32.mrf.mxu0
  %v2689 = vadd.f32 0.0, %v2688
  %v2690 = vpop.f32.mrf.mxu0
  %2691 = vdwg.mxu0
  %2692 = vrot.lane.b32.xlu0 %v2279, 96
  %v2693 = vpop.permute.xlu0 %2692
  %2694 = vrot.lane.b32.xlu0 %v2283, 96
  %v2695 = vpop.permute.xlu0 %2694
  %2696 = vrot.lane.b32.xlu0 %v2279, 32
  %v2697 = vpop.permute.xlu0 %2696
  %2698 = vrot.lane.b32.xlu0 %v2283, 32
  %v2699 = vpop.permute.xlu0 %2698
  %v2700 = vsel %vm832, %v2693, 0
  %v2702 = vsel %vm832, %v2695, 0
  %v2704 = vsel %vm832, %v2697, 0
  %v2706 = vsel %vm832, %v2699, 0
  %2708 = vmatprep.subr.mxu0 0.0
  %2709 = vmatpush1.xpose.msra.mxu0 0.0
  %2710 = vmatprep.subr.mxu0 0.0
  %2711 = vmatpush1.xpose.msra.mxu0 0.0
  %2712 = vmatprep.subr.mxu0 0.0
  %2713 = vmatpush1.xpose.msra.mxu0 0.0
  %2714 = vmatprep.subr.mxu0 0.0
  %2715 = vmatpush1.xpose.msra.mxu0 0.0
  %2716 = vmatprep.subr.mxu0 0.0
  %2717 = vmatpush1.xpose.msra.mxu0 0.0
  %2718 = vmatprep.subr.mxu0 0.0
  %2719 = vmatpush1.xpose.msra.mxu0 0.0
  %2720 = vmatprep.subr.mxu0 0.0
  %2721 = vmatpush1.xpose.msra.mxu0 0.0
  %2722 = vmatprep.subr.mxu0 0.0
  %2723 = vmatpush1.xpose.msra.mxu0 0.0
  %2724 = vmatprep.subr.mxu0 0.0
  %2725 = vmatpush1.xpose.msra.mxu0 0.0
  %2726 = vmatprep.subr.mxu0 0.0
  %2727 = vmatpush1.xpose.msra.mxu0 0.0
  %2728 = vmatprep.subr.mxu0 0.0
  %2729 = vmatpush1.xpose.msra.mxu0 0.0
  %2730 = vmatprep.subr.mxu0 0.0
  %2731 = vmatpush1.xpose.msra.mxu0 0.0
  %2732 = vmatprep.subr.mxu0 0.0
  %2733 = vmatpush1.xpose.msra.mxu0 0.0
  %2734 = vmatprep.subr.mxu0 0.0
  %2735 = vmatpush1.xpose.msra.mxu0 0.0
  %2736 = vmatprep.subr.mxu0 0.0
  %2737 = vmatpush1.xpose.msra.mxu0 %v2706
  %2738 = vmatprep.subr.mxu0 0.0
  %2739 = vmatpush1.xpose.msra.mxu0 %v2704
  %2740 = vmatprep.subr.mxu0 0.0
  %2741 = vmatpush2.xpose.msra.mxu0 0.0
  %2742 = vmatprep.subr.mxu0 0.0
  %2743 = vmatpush2.xpose.msra.mxu0 0.0
  %2744 = vmatprep.subr.mxu0 0.0
  %2745 = vmatpush2.xpose.msra.mxu0 0.0
  %2746 = vmatprep.subr.mxu0 0.0
  %2747 = vmatpush2.xpose.msra.mxu0 0.0
  %2748 = vmatprep.subr.mxu0 0.0
  %2749 = vmatpush2.xpose.msra.mxu0 0.0
  %2750 = vmatprep.subr.mxu0 0.0
  %2751 = vmatpush2.xpose.msra.mxu0 0.0
  %2752 = vmatprep.subr.mxu0 0.0
  %2753 = vmatpush2.xpose.msra.mxu0 0.0
  %2754 = vmatprep.subr.mxu0 0.0
  %2755 = vmatpush2.xpose.msra.mxu0 0.0
  %2756 = vmatprep.subr.mxu0 0.0
  %2757 = vmatpush2.xpose.msra.mxu0 0.0
  %2758 = vmatprep.subr.mxu0 0.0
  %2759 = vmatpush2.xpose.msra.mxu0 0.0
  %2760 = vmatprep.subr.mxu0 0.0
  %2761 = vmatpush2.xpose.msra.mxu0 0.0
  %2762 = vmatprep.subr.mxu0 0.0
  %2763 = vmatpush2.xpose.msra.mxu0 0.0
  %2764 = vmatprep.subr.mxu0 0.0
  %2765 = vmatpush2.xpose.msra.mxu0 0.0
  %2766 = vmatprep.subr.mxu0 0.0
  %2767 = vmatpush2.xpose.msra.mxu0 0.0
  %2768 = vmatprep.subr.mxu0 0.0
  %2769 = vmatpush2.xpose.msra.mxu0 0.0
  %2770 = vmatprep.subr.mxu0 0.0
  %2771 = vmatpush2.xpose.msra.mxu0 0.0
  %2772 = vmatprep.mubr.f32.mxu0 0.0
  %2773 = vmatmul.mubr.f32.gmra.mxu0 %v2700
  %v2774 = vpop.f32.mrf.mxu0
  %v2775 = vadd.f32 0.0, %v2774
  %v2776 = vpop.f32.mrf.mxu0
  %2777 = vmatprep.mubr.f32.mxu0 0.0
  %2778 = vmatmul.mubr.f32.gmra.mxu0 %v2702
  %v2779 = vpop.f32.mrf.mxu0
  %v2780 = vadd.f32 0.0, %v2779
  %v2781 = vpop.f32.mrf.mxu0
  %2782 = vdwg.mxu0
  %v2783 = vmul.f32 %v2775, 0.25
  %v2784 = vmul.f32 %v2780, 0.25
  %v2785 = vadd.f32 %v2783, %v667
  %v2786 = vadd.f32 %v2784, %v668
  %v2787 = vsel %vm920, %v2785, -inf
  %2788 = vmax.xlane.f32.xlu0 %v2787
  %v2789 = vpop.xlane.xlu0 %2788
  %v2790 = vsel %vm924, %v2786, -inf
  %2791 = vmax.xlane.f32.xlu0 %v2790
  %v2792 = vpop.xlane.xlu0 %2791
  %v2793 = vsub.f32 %v2785, %v2789
  %v2794 = vsub.f32 %v2786, %v2792
  %v2795 = vmul.f32 %v2793, 1.442695
  %v2796 = vpow.pop %v2795
  %v2797 = vmul.f32 %v2794, 1.442695
  %v2798 = vpow.pop %v2797
  %v2799 = vsel %vm920, %v2796, 0.0
  %2800 = vadd.xlane.f32.xlu0 %v2799
  %v2801 = vpop.xlane.xlu0 %2800
  %v2802 = vsel %vm924, %v2798, 0.0
  %2803 = vadd.xlane.f32.xlu0 %v2802
  %v2804 = vpop.xlane.xlu0 %2803
  %v2805 = vrcp.pop %v2801
  %v2806 = vrcp.pop %v2804
  %v2807 = vmul.f32 %v2796, %v2805
  %v2808 = vmul.f32 %v2798, %v2806
  %2809 = vrot.lane.b32.xlu0 %v2281, 96
  %v2810 = vpop.permute.xlu0 %2809
  %2811 = vrot.lane.b32.xlu0 %v2285, 96
  %v2812 = vpop.permute.xlu0 %2811
  %v2815 = vsel %vm920, %v2807, 0
  %v2818 = vsel %vm920, %v2808, 0
  %v2820 = vsel %vm950, %v2812, 0
  %2822 = vmatprep.subr.mxu0 0.0
  %2823 = vmatpush1.msra.mxu0 0.0
  %2824 = vmatprep.subr.mxu0 0.0
  %2825 = vmatpush1.msra.mxu0 0.0
  %2826 = vmatprep.subr.mxu0 0.0
  %2827 = vmatpush1.msra.mxu0 0.0
  %2828 = vmatprep.subr.mxu0 0.0
  %2829 = vmatpush1.msra.mxu0 0.0
  %2830 = vmatprep.subr.mxu0 0.0
  %2831 = vmatpush1.msra.mxu0 0.0
  %2832 = vmatprep.subr.mxu0 0.0
  %2833 = vmatpush1.msra.mxu0 0.0
  %2834 = vmatprep.subr.mxu0 0.0
  %2835 = vmatpush1.msra.mxu0 0.0
  %2836 = vmatprep.subr.mxu0 0.0
  %2837 = vmatpush1.msra.mxu0 0.0
  %2838 = vmatprep.subr.mxu0 0.0
  %2839 = vmatpush1.msra.mxu0 0.0
  %2840 = vmatprep.subr.mxu0 0.0
  %2841 = vmatpush1.msra.mxu0 0.0
  %2842 = vmatprep.subr.mxu0 0.0
  %2843 = vmatpush1.msra.mxu0 0.0
  %2844 = vmatprep.subr.mxu0 0.0
  %2845 = vmatpush1.msra.mxu0 0.0
  %2846 = vmatprep.subr.mxu0 0.0
  %2847 = vmatpush1.msra.mxu0 0.0
  %2848 = vmatprep.subr.mxu0 0.0
  %2849 = vmatpush1.msra.mxu0 0.0
  %2850 = vmatprep.subr.mxu0 0.0
  %2851 = vmatpush1.msra.mxu0 %v2820
  %2852 = vmatprep.subr.mxu0 0.0
  %2853 = vmatpush1.msra.mxu0 %v2810
  %2854 = vmatprep.subr.mxu0 0.0
  %2855 = vmatpush2.msra.mxu0 0.0
  %2856 = vmatprep.subr.mxu0 0.0
  %2857 = vmatpush2.msra.mxu0 0.0
  %2858 = vmatprep.subr.mxu0 0.0
  %2859 = vmatpush2.msra.mxu0 0.0
  %2860 = vmatprep.subr.mxu0 0.0
  %2861 = vmatpush2.msra.mxu0 0.0
  %2862 = vmatprep.subr.mxu0 0.0
  %2863 = vmatpush2.msra.mxu0 0.0
  %2864 = vmatprep.subr.mxu0 0.0
  %2865 = vmatpush2.msra.mxu0 0.0
  %2866 = vmatprep.subr.mxu0 0.0
  %2867 = vmatpush2.msra.mxu0 0.0
  %2868 = vmatprep.subr.mxu0 0.0
  %2869 = vmatpush2.msra.mxu0 0.0
  %2870 = vmatprep.subr.mxu0 0.0
  %2871 = vmatpush2.msra.mxu0 0.0
  %2872 = vmatprep.subr.mxu0 0.0
  %2873 = vmatpush2.msra.mxu0 0.0
  %2874 = vmatprep.subr.mxu0 0.0
  %2875 = vmatpush2.msra.mxu0 0.0
  %2876 = vmatprep.subr.mxu0 0.0
  %2877 = vmatpush2.msra.mxu0 0.0
  %2878 = vmatprep.subr.mxu0 0.0
  %2879 = vmatpush2.msra.mxu0 0.0
  %2880 = vmatprep.subr.mxu0 0.0
  %2881 = vmatpush2.msra.mxu0 0.0
  %2882 = vmatprep.subr.mxu0 0.0
  %2883 = vmatpush2.msra.mxu0 0.0
  %2884 = vmatprep.subr.mxu0 0.0
  %2885 = vmatpush2.msra.mxu0 0.0
  %2886 = vmatprep.mubr.f32.mxu0 0.0
  %2887 = vmatmul.mubr.f32.gmra.mxu0 %v2815
  %v2888 = vpop.f32.mrf.mxu0
  %v2889 = vadd.f32 0.0, %v2888
  %v2890 = vpop.f32.mrf.mxu0
  %2891 = vmatprep.mubr.f32.mxu0 0.0
  %2892 = vmatmul.mubr.f32.gmra.mxu0 %v2818
  %v2893 = vpop.f32.mrf.mxu0
  %v2894 = vadd.f32 0.0, %v2893
  %v2895 = vpop.f32.mrf.mxu0
  %2896 = vdwg.mxu0
  %2897 = vrot.lane.b32.xlu0 %v2279, 80
  %v2898 = vpop.permute.xlu0 %2897
  %2899 = vrot.lane.b32.xlu0 %v2283, 80
  %v2900 = vpop.permute.xlu0 %2899
  %2901 = vrot.lane.b32.xlu0 %v2279, 16
  %v2902 = vpop.permute.xlu0 %2901
  %2903 = vrot.lane.b32.xlu0 %v2283, 16
  %v2904 = vpop.permute.xlu0 %2903
  %v2905 = vsel %vm832, %v2898, 0
  %v2907 = vsel %vm832, %v2900, 0
  %v2909 = vsel %vm832, %v2902, 0
  %v2911 = vsel %vm832, %v2904, 0
  %2913 = vmatprep.subr.mxu0 0.0
  %2914 = vmatpush1.xpose.msra.mxu0 0.0
  %2915 = vmatprep.subr.mxu0 0.0
  %2916 = vmatpush1.xpose.msra.mxu0 0.0
  %2917 = vmatprep.subr.mxu0 0.0
  %2918 = vmatpush1.xpose.msra.mxu0 0.0
  %2919 = vmatprep.subr.mxu0 0.0
  %2920 = vmatpush1.xpose.msra.mxu0 0.0
  %2921 = vmatprep.subr.mxu0 0.0
  %2922 = vmatpush1.xpose.msra.mxu0 0.0
  %2923 = vmatprep.subr.mxu0 0.0
  %2924 = vmatpush1.xpose.msra.mxu0 0.0
  %2925 = vmatprep.subr.mxu0 0.0
  %2926 = vmatpush1.xpose.msra.mxu0 0.0
  %2927 = vmatprep.subr.mxu0 0.0
  %2928 = vmatpush1.xpose.msra.mxu0 0.0
  %2929 = vmatprep.subr.mxu0 0.0
  %2930 = vmatpush1.xpose.msra.mxu0 0.0
  %2931 = vmatprep.subr.mxu0 0.0
  %2932 = vmatpush1.xpose.msra.mxu0 0.0
  %2933 = vmatprep.subr.mxu0 0.0
  %2934 = vmatpush1.xpose.msra.mxu0 0.0
  %2935 = vmatprep.subr.mxu0 0.0
  %2936 = vmatpush1.xpose.msra.mxu0 0.0
  %2937 = vmatprep.subr.mxu0 0.0
  %2938 = vmatpush1.xpose.msra.mxu0 0.0
  %2939 = vmatprep.subr.mxu0 0.0
  %2940 = vmatpush1.xpose.msra.mxu0 0.0
  %2941 = vmatprep.subr.mxu0 0.0
  %2942 = vmatpush1.xpose.msra.mxu0 %v2911
  %2943 = vmatprep.subr.mxu0 0.0
  %2944 = vmatpush1.xpose.msra.mxu0 %v2909
  %2945 = vmatprep.subr.mxu0 0.0
  %2946 = vmatpush2.xpose.msra.mxu0 0.0
  %2947 = vmatprep.subr.mxu0 0.0
  %2948 = vmatpush2.xpose.msra.mxu0 0.0
  %2949 = vmatprep.subr.mxu0 0.0
  %2950 = vmatpush2.xpose.msra.mxu0 0.0
  %2951 = vmatprep.subr.mxu0 0.0
  %2952 = vmatpush2.xpose.msra.mxu0 0.0
  %2953 = vmatprep.subr.mxu0 0.0
  %2954 = vmatpush2.xpose.msra.mxu0 0.0
  %2955 = vmatprep.subr.mxu0 0.0
  %2956 = vmatpush2.xpose.msra.mxu0 0.0
  %2957 = vmatprep.subr.mxu0 0.0
  %2958 = vmatpush2.xpose.msra.mxu0 0.0
  %2959 = vmatprep.subr.mxu0 0.0
  %2960 = vmatpush2.xpose.msra.mxu0 0.0
  %2961 = vmatprep.subr.mxu0 0.0
  %2962 = vmatpush2.xpose.msra.mxu0 0.0
  %2963 = vmatprep.subr.mxu0 0.0
  %2964 = vmatpush2.xpose.msra.mxu0 0.0
  %2965 = vmatprep.subr.mxu0 0.0
  %2966 = vmatpush2.xpose.msra.mxu0 0.0
  %2967 = vmatprep.subr.mxu0 0.0
  %2968 = vmatpush2.xpose.msra.mxu0 0.0
  %2969 = vmatprep.subr.mxu0 0.0
  %2970 = vmatpush2.xpose.msra.mxu0 0.0
  %2971 = vmatprep.subr.mxu0 0.0
  %2972 = vmatpush2.xpose.msra.mxu0 0.0
  %2973 = vmatprep.subr.mxu0 0.0
  %2974 = vmatpush2.xpose.msra.mxu0 0.0
  %2975 = vmatprep.subr.mxu0 0.0
  %2976 = vmatpush2.xpose.msra.mxu0 0.0
  %2977 = vmatprep.mubr.f32.mxu0 0.0
  %2978 = vmatmul.mubr.f32.gmra.mxu0 %v2905
  %v2979 = vpop.f32.mrf.mxu0
  %v2980 = vadd.f32 0.0, %v2979
  %v2981 = vpop.f32.mrf.mxu0
  %2982 = vmatprep.mubr.f32.mxu0 0.0
  %2983 = vmatmul.mubr.f32.gmra.mxu0 %v2907
  %v2984 = vpop.f32.mrf.mxu0
  %v2985 = vadd.f32 0.0, %v2984
  %v2986 = vpop.f32.mrf.mxu0
  %2987 = vdwg.mxu0
  %v2988 = vmul.f32 %v2980, 0.25
  %v2989 = vmul.f32 %v2985, 0.25
  %v2990 = vadd.f32 %v2988, %v667
  %v2991 = vadd.f32 %v2989, %v668
  %v2992 = vsel %vm920, %v2990, -inf
  %2993 = vmax.xlane.f32.xlu0 %v2992
  %v2994 = vpop.xlane.xlu0 %2993
  %v2995 = vsel %vm924, %v2991, -inf
  %2996 = vmax.xlane.f32.xlu0 %v2995
  %v2997 = vpop.xlane.xlu0 %2996
  %v2998 = vsub.f32 %v2990, %v2994
  %v2999 = vsub.f32 %v2991, %v2997
  %v3000 = vmul.f32 %v2998, 1.442695
  %v3001 = vpow.pop %v3000
  %v3002 = vmul.f32 %v2999, 1.442695
  %v3003 = vpow.pop %v3002
  %v3004 = vsel %vm920, %v3001, 0.0
  %3005 = vadd.xlane.f32.xlu0 %v3004
  %v3006 = vpop.xlane.xlu0 %3005
  %v3007 = vsel %vm924, %v3003, 0.0
  %3008 = vadd.xlane.f32.xlu0 %v3007
  %v3009 = vpop.xlane.xlu0 %3008
  %v3010 = vrcp.pop %v3006
  %v3011 = vrcp.pop %v3009
  %v3012 = vmul.f32 %v3001, %v3010
  %v3013 = vmul.f32 %v3003, %v3011
  %3014 = vrot.lane.b32.xlu0 %v2281, 80
  %v3015 = vpop.permute.xlu0 %3014
  %3016 = vrot.lane.b32.xlu0 %v2285, 80
  %v3017 = vpop.permute.xlu0 %3016
  %v3020 = vsel %vm920, %v3012, 0
  %v3023 = vsel %vm920, %v3013, 0
  %v3025 = vsel %vm950, %v3017, 0
  %3027 = vmatprep.subr.mxu0 0.0
  %3028 = vmatpush1.msra.mxu0 0.0
  %3029 = vmatprep.subr.mxu0 0.0
  %3030 = vmatpush1.msra.mxu0 0.0
  %3031 = vmatprep.subr.mxu0 0.0
  %3032 = vmatpush1.msra.mxu0 0.0
  %3033 = vmatprep.subr.mxu0 0.0
  %3034 = vmatpush1.msra.mxu0 0.0
  %3035 = vmatprep.subr.mxu0 0.0
  %3036 = vmatpush1.msra.mxu0 0.0
  %3037 = vmatprep.subr.mxu0 0.0
  %3038 = vmatpush1.msra.mxu0 0.0
  %3039 = vmatprep.subr.mxu0 0.0
  %3040 = vmatpush1.msra.mxu0 0.0
  %3041 = vmatprep.subr.mxu0 0.0
  %3042 = vmatpush1.msra.mxu0 0.0
  %3043 = vmatprep.subr.mxu0 0.0
  %3044 = vmatpush1.msra.mxu0 0.0
  %3045 = vmatprep.subr.mxu0 0.0
  %3046 = vmatpush1.msra.mxu0 0.0
  %3047 = vmatprep.subr.mxu0 0.0
  %3048 = vmatpush1.msra.mxu0 0.0
  %3049 = vmatprep.subr.mxu0 0.0
  %3050 = vmatpush1.msra.mxu0 0.0
  %3051 = vmatprep.subr.mxu0 0.0
  %3052 = vmatpush1.msra.mxu0 0.0
  %3053 = vmatprep.subr.mxu0 0.0
  %3054 = vmatpush1.msra.mxu0 0.0
  %3055 = vmatprep.subr.mxu0 0.0
  %3056 = vmatpush1.msra.mxu0 %v3025
  %3057 = vmatprep.subr.mxu0 0.0
  %3058 = vmatpush1.msra.mxu0 %v3015
  %3059 = vmatprep.subr.mxu0 0.0
  %3060 = vmatpush2.msra.mxu0 0.0
  %3061 = vmatprep.subr.mxu0 0.0
  %3062 = vmatpush2.msra.mxu0 0.0
  %3063 = vmatprep.subr.mxu0 0.0
  %3064 = vmatpush2.msra.mxu0 0.0
  %3065 = vmatprep.subr.mxu0 0.0
  %3066 = vmatpush2.msra.mxu0 0.0
  %3067 = vmatprep.subr.mxu0 0.0
  %3068 = vmatpush2.msra.mxu0 0.0
  %3069 = vmatprep.subr.mxu0 0.0
  %3070 = vmatpush2.msra.mxu0 0.0
  %3071 = vmatprep.subr.mxu0 0.0
  %3072 = vmatpush2.msra.mxu0 0.0
  %3073 = vmatprep.subr.mxu0 0.0
  %3074 = vmatpush2.msra.mxu0 0.0
  %3075 = vmatprep.subr.mxu0 0.0
  %3076 = vmatpush2.msra.mxu0 0.0
  %3077 = vmatprep.subr.mxu0 0.0
  %3078 = vmatpush2.msra.mxu0 0.0
  %3079 = vmatprep.subr.mxu0 0.0
  %3080 = vmatpush2.msra.mxu0 0.0
  %3081 = vmatprep.subr.mxu0 0.0
  %3082 = vmatpush2.msra.mxu0 0.0
  %3083 = vmatprep.subr.mxu0 0.0
  %3084 = vmatpush2.msra.mxu0 0.0
  %3085 = vmatprep.subr.mxu0 0.0
  %3086 = vmatpush2.msra.mxu0 0.0
  %3087 = vmatprep.subr.mxu0 0.0
  %3088 = vmatpush2.msra.mxu0 0.0
  %3089 = vmatprep.subr.mxu0 0.0
  %3090 = vmatpush2.msra.mxu0 0.0
  %3091 = vmatprep.mubr.f32.mxu0 0.0
  %3092 = vmatmul.mubr.f32.gmra.mxu0 %v3020
  %v3093 = vpop.f32.mrf.mxu0
  %v3094 = vadd.f32 0.0, %v3093
  %v3095 = vpop.f32.mrf.mxu0
  %3096 = vmatprep.mubr.f32.mxu0 0.0
  %3097 = vmatmul.mubr.f32.gmra.mxu0 %v3023
  %v3098 = vpop.f32.mrf.mxu0
  %v3099 = vadd.f32 0.0, %v3098
  %v3100 = vpop.f32.mrf.mxu0
  %3101 = vdwg.mxu0
  %3104 = vrot.lane.b32.xlu0 %v2684, 16
  %v3105 = vpop.permute.xlu0 %3104
  %3106 = vrot.lane.b32.xlu0 %v2689, 16
  %v3107 = vpop.permute.xlu0 %3106
  %3112 = vrot.lane.b32.xlu0 %v2889, 32
  %v3113 = vpop.permute.xlu0 %3112
  %3114 = vrot.lane.b32.xlu0 %v2894, 32
  %v3115 = vpop.permute.xlu0 %3114
  %3120 = vrot.lane.b32.xlu0 %v3094, 48
  %v3121 = vpop.permute.xlu0 %3120
  %3122 = vrot.lane.b32.xlu0 %v3099, 48
  %v3123 = vpop.permute.xlu0 %3122
  %v3126 = vsel %vm832, %v2478, %v3105
  %v3127 = vsel %vm832, %v2483, %v3107
  %v3128 = vsel %vm1671, %v3126, %v3113
  %v3129 = vsel %vm1671, %v3127, %v3115
  %v3130 = vsel %vm1674, %v3128, %v3121
  %v3131 = vsel %vm1674, %v3129, %v3123
  %v3132 = vpack.c.bf16 %v3131, %v3130
  %s3133 = scalar_lea.vmem %s6, 32
  %v3134 = vld [vmem:[%s3133] sm:$0xf]
  %v3135 = vld [vmem:[%s3133 + $0x4] sm:$0xf]
  %v3136 = vld [vmem:[%s3133 + $0x8] sm:$0xf]
  %v3137 = vld [vmem:[%s3133 + $0xc] sm:$0xf]
  %v3138 = vld [vmem:[%s3133 + $0x10] sm:$0xf]
  %v3139 = vld [vmem:[%s3133 + $0x14] sm:$0xf]
  %v3140 = vld [vmem:[%s3133 + $0x18] sm:$0xf]
  %v3141 = vld [vmem:[%s3133 + $0x1c] sm:$0xf]
  %v3150 = vunpack.c.l.b16 %v3134
  %v3151 = vunpack.c.l.b16 %v3135
  %v3152 = vunpack.c.l.b16 %v3136
  %v3153 = vunpack.c.l.b16 %v3137
  %v3154 = vunpack.c.l.b16 %v3138
  %v3155 = vunpack.c.l.b16 %v3139
  %v3156 = vunpack.c.l.b16 %v3140
  %v3157 = vunpack.c.l.b16 %v3141
  %v3158 = vpack.c.b16 %v3151, %v3150
  %v3159 = vpack.c.b16 %v3153, %v3152
  %v3160 = vpack.c.b16 %v3155, %v3154
  %v3161 = vpack.c.b16 %v3157, %v3156
  %v3167 = vsel %vm593, %v3132, 0
  %3169 = vmatprep.subr.bf16.mxu0 0
  %3170 = vmatpush1.bf16.msra.mxu0 0
  %3171 = vmatprep.subr.bf16.mxu0 0
  %3172 = vmatpush1.bf16.msra.mxu0 0
  %3173 = vmatprep.subr.bf16.mxu0 0
  %3174 = vmatpush1.bf16.msra.mxu0 0
  %3175 = vmatprep.subr.bf16.mxu0 0
  %3176 = vmatpush1.bf16.msra.mxu0 0
  %3177 = vmatprep.subr.bf16.mxu0 0
  %3178 = vmatpush1.bf16.msra.mxu0 %v3161
  %3179 = vmatprep.subr.bf16.mxu0 0
  %3180 = vmatpush1.bf16.msra.mxu0 %v3160
  %3181 = vmatprep.subr.bf16.mxu0 0
  %3182 = vmatpush1.bf16.msra.mxu0 %v3159
  %3183 = vmatprep.subr.bf16.mxu0 0
  %3184 = vmatpush1.bf16.msra.mxu0 %v3158
  %3185 = vmatprep.subr.bf16.mxu0 0
  %3186 = vmatpush2.bf16.msra.mxu0 0
  %3187 = vmatprep.subr.bf16.mxu0 0
  %3188 = vmatpush2.bf16.msra.mxu0 0
  %3189 = vmatprep.subr.bf16.mxu0 0
  %3190 = vmatpush2.bf16.msra.mxu0 0
  %3191 = vmatprep.subr.bf16.mxu0 0
  %3192 = vmatpush2.bf16.msra.mxu0 0
  %3193 = vmatprep.subr.bf16.mxu0 0
  %3194 = vmatpush2.bf16.msra.mxu0 0
  %3195 = vmatprep.subr.bf16.mxu0 0
  %3196 = vmatpush2.bf16.msra.mxu0 0
  %3197 = vmatprep.subr.bf16.mxu0 0
  %3198 = vmatpush2.bf16.msra.mxu0 0
  %3199 = vmatprep.subr.bf16.mxu0 0
  %3200 = vmatpush2.bf16.msra.mxu0 0
  %3201 = vmatprep.mubr.bf16.mxu0 0
  %3202 = vmatmul.mubr.bf16.gmra.mxu0 %v3167
  %v3203 = vpop.f32.mrf.mxu0
  %v3204 = vadd.f32 0.0, %v3203
  %v3205 = vpop.f32.mrf.mxu0
  %v3206 = vpop.f32.mrf.mxu0
  %v3207 = vadd.f32 0.0, %v3206
  %v3208 = vpop.f32.mrf.mxu0
  %3209 = vdwg.mxu0
  %v3210 = vadd.f32 %v2126, %v3204
  %v3211 = vadd.f32 %v2127, %v3207
  %s3212 = scalar_lea.vmem %s7, 1
  %v3213 = vld [vmem:[%s3212] sm:$0x1]
  %v3215 = vlaneseq
  %v3216 = vshrl.u32 %v3215, 7
  %v3217 = vsub.s32 0, %v3216
  %v3218 = vrot.slane %v3213, %v3217
  %v3220 = vadd.f32 %v3210, %v3218
  %v3221 = vadd.f32 %v3211, %v3218
  %v3222 = vsel %vm593, %v3220, 0.0
  %3223 = vadd.xlane.f32.xlu0 %v3222
  %v3224 = vpop.xlane.xlu0 %3223
  %v3225 = vsel %vm597, %v3221, 0.0
  %3226 = vadd.xlane.f32.xlu0 %v3225
  %v3227 = vpop.xlane.xlu0 %3226
  %v3228 = vmul.f32 %v3224, %v601
  %v3229 = vmul.f32 %v3227, %v601
  %v3230 = vsub.f32 %v3220, %v3228
  %v3231 = vsub.f32 %v3221, %v3229
  %v3232 = vmul.f32 %v3230, %v3230
  %v3233 = vmul.f32 %v3231, %v3231
  %v3234 = vsel %vm593, %v3232, 0.0
  %3235 = vadd.xlane.f32.xlu0 %v3234
  %v3236 = vpop.xlane.xlu0 %3235
  %v3237 = vsel %vm597, %v3233, 0.0
  %3238 = vadd.xlane.f32.xlu0 %v3237
  %v3239 = vpop.xlane.xlu0 %3238
  %v3240 = vmul.f32 %v3236, %v601
  %v3241 = vmul.f32 %v3239, %v601
  %v3242 = vadd.f32 %v3240, 1e-05
  %v3243 = vadd.f32 %v3241, 1e-05
  %v3244 = vrsqrt.pop %v3242
  %v3245 = vrsqrt.pop %v3243
  %v3246 = vmul.f32 %v3230, %v3244
  %v3247 = vmul.f32 %v3231, %v3245
  %v3249 = vlaneseq
  %v3250 = vshrl.u32 %v3249, 7
  %v3251 = vsub.s32 0, %v3250
  %v3252 = vrot.slane %v2133, %v3251
  %v3254 = vmul.f32 %v3246, %v3252
  %v3255 = vmul.f32 %v3247, %v3252
  %v3257 = vlaneseq
  %v3258 = vshrl.u32 %v3257, 7
  %v3259 = vsub.s32 0, %v3258
  %v3260 = vrot.slane %v2135, %v3259
  %v3262 = vadd.f32 %v3254, %v3260
  %v3263 = vadd.f32 %v3255, %v3260
  %v3264 = vpack.c.bf16 %v3263, %v3262
  %s3265 = scalar_lea.vmem %s8, 64
  %v3266 = vld [vmem:[%s3265] sm:$0xff]
  %v3267 = vld [vmem:[%s3265 + $0x8] sm:$0xff]
  %v3268 = vld [vmem:[%s3265 + $0x10] sm:$0xff]
  %v3269 = vld [vmem:[%s3265 + $0x18] sm:$0xff]
  %v3270 = vld [vmem:[%s3265 + $0x20] sm:$0xff]
  %v3271 = vld [vmem:[%s3265 + $0x28] sm:$0xff]
  %v3272 = vld [vmem:[%s3265 + $0x30] sm:$0xff]
  %v3273 = vld [vmem:[%s3265 + $0x38] sm:$0xff]
  %s3274 = scalar_lea.vmem %s9, 2
  %v3275 = vld [vmem:[%s3274] sm:$0x3]
  %v3277 = vlaneseq
  %v3278 = vshrl.u32 %v3277, 7
  %v3279 = vsub.s32 0, %v3278
  %v3280 = vrot.slane %v3275, %v3279
  %v3281 = vlaneseq
  %v3282 = vshrl.u32 %v3281, 7
  %v3283 = vsub.s32 1, %v3282
  %v3284 = vrot.slane %v3275, %v3283
  %v3295 = vunpack.c.l.b16 %v3266
  %v3296 = vunpack.c.h.b16 %v3266
  %v3297 = vunpack.c.l.b16 %v3267
  %v3298 = vunpack.c.h.b16 %v3267
  %v3299 = vunpack.c.l.b16 %v3268
  %v3300 = vunpack.c.h.b16 %v3268
  %v3301 = vunpack.c.l.b16 %v3269
  %v3302 = vunpack.c.h.b16 %v3269
  %v3303 = vunpack.c.l.b16 %v3270
  %v3304 = vunpack.c.h.b16 %v3270
  %v3305 = vunpack.c.l.b16 %v3271
  %v3306 = vunpack.c.h.b16 %v3271
  %v3307 = vunpack.c.l.b16 %v3272
  %v3308 = vunpack.c.h.b16 %v3272
  %v3309 = vunpack.c.l.b16 %v3273
  %v3310 = vunpack.c.h.b16 %v3273
  %v3311 = vpack.c.b16 %v3297, %v3295
  %v3312 = vpack.c.b16 %v3298, %v3296
  %v3313 = vpack.c.b16 %v3301, %v3299
  %v3314 = vpack.c.b16 %v3302, %v3300
  %v3315 = vpack.c.b16 %v3305, %v3303
  %v3316 = vpack.c.b16 %v3306, %v3304
  %v3317 = vpack.c.b16 %v3309, %v3307
  %v3318 = vpack.c.b16 %v3310, %v3308
  %v3328 = vsel %vm593, %v3264, 0
  %3330 = vmatprep.subr.bf16.mxu0 0
  %3331 = vmatpush1.bf16.msra.mxu0 0
  %3332 = vmatprep.subr.bf16.mxu0 0
  %3333 = vmatpush1.bf16.msra.mxu0 0
  %3334 = vmatprep.subr.bf16.mxu0 0
  %3335 = vmatpush1.bf16.msra.mxu0 0
  %3336 = vmatprep.subr.bf16.mxu0 0
  %3337 = vmatpush1.bf16.msra.mxu0 0
  %3338 = vmatprep.subr.bf16.mxu0 %v3318
  %3339 = vmatpush1.bf16.msra.mxu0 %v3317
  %3340 = vmatprep.subr.bf16.mxu0 %v3316
  %3341 = vmatpush1.bf16.msra.mxu0 %v3315
  %3342 = vmatprep.subr.bf16.mxu0 %v3314
  %3343 = vmatpush1.bf16.msra.mxu0 %v3313
  %3344 = vmatprep.subr.bf16.mxu0 %v3312
  %3345 = vmatpush1.bf16.msra.mxu0 %v3311
  %3346 = vmatprep.subr.bf16.mxu0 0
  %3347 = vmatpush2.bf16.msra.mxu0 0
  %3348 = vmatprep.subr.bf16.mxu0 0
  %3349 = vmatpush2.bf16.msra.mxu0 0
  %3350 = vmatprep.subr.bf16.mxu0 0
  %3351 = vmatpush2.bf16.msra.mxu0 0
  %3352 = vmatprep.subr.bf16.mxu0 0
  %3353 = vmatpush2.bf16.msra.mxu0 0
  %3354 = vmatprep.subr.bf16.mxu0 0
  %3355 = vmatpush2.bf16.msra.mxu0 0
  %3356 = vmatprep.subr.bf16.mxu0 0
  %3357 = vmatpush2.bf16.msra.mxu0 0
  %3358 = vmatprep.subr.bf16.mxu0 0
  %3359 = vmatpush2.bf16.msra.mxu0 0
  %3360 = vmatprep.subr.bf16.mxu0 0
  %3361 = vmatpush2.bf16.msra.mxu0 0
  %3362 = vmatprep.mubr.bf16.mxu0 0
  %3363 = vmatmul.mubr.bf16.gmra.mxu0 %v3328
  %v3364 = vpop.f32.mrf.mxu0
  %v3365 = vadd.f32 %v3280, %v3364
  %v3366 = vpop.f32.mrf.mxu0
  %v3367 = vadd.f32 %v3284, %v3366
  %v3368 = vpop.f32.mrf.mxu0
  %v3369 = vadd.f32 %v3280, %v3368
  %v3370 = vpop.f32.mrf.mxu0
  %v3371 = vadd.f32 %v3284, %v3370
  %3372 = vdwg.mxu0
  %v3373 = vmul.f32 %v3365, 1.702
  %v3374 = vmul.f32 %v3367, 1.702
  %v3375 = vmul.f32 %v3369, 1.702
  %v3376 = vmul.f32 %v3371, 1.702
  %v3377 = vxor.u32 %v3373, 2147483648
  %v3378 = vxor.u32 %v3374, 2147483648
  %v3379 = vxor.u32 %v3375, 2147483648
  %v3380 = vxor.u32 %v3376, 2147483648
  %v3381 = vmul.f32 %v3377, 1.442695
  %v3382 = vpow.pop %v3381
  %v3383 = vmul.f32 %v3378, 1.442695
  %v3384 = vpow.pop %v3383
  %v3385 = vmul.f32 %v3379, 1.442695
  %v3386 = vpow.pop %v3385
  %v3387 = vmul.f32 %v3380, 1.442695
  %v3388 = vpow.pop %v3387
  %v3389 = vadd.f32 %v3382, 1.0
  %v3390 = vadd.f32 %v3384, 1.0
  %v3391 = vadd.f32 %v3386, 1.0
  %v3392 = vadd.f32 %v3388, 1.0
  %v3393 = vrcp.pop %v3389
  %v3394 = vmul.f32 1.0, %v3393
  %v3395 = vrcp.pop %v3390
  %v3396 = vmul.f32 1.0, %v3395
  %v3397 = vrcp.pop %v3391
  %v3398 = vmul.f32 1.0, %v3397
  %v3399 = vrcp.pop %v3392
  %v3400 = vmul.f32 1.0, %v3399
  %v3401 = vmul.f32 %v3365, %v3394
  %v3402 = vmul.f32 %v3367, %v3396
  %v3403 = vmul.f32 %v3369, %v3398
  %v3404 = vmul.f32 %v3371, %v3400
  %v3405 = vpack.c.bf16 %v3403, %v3401
  %v3406 = vpack.c.bf16 %v3404, %v3402
  %s3407 = scalar_lea.vmem %s10, 128
  %v3408 = vld [vmem:[%s3407] sm:$0xf]
  %v3409 = vld [vmem:[%s3407 + $0x4] sm:$0xf]
  %v3410 = vld [vmem:[%s3407 + $0x8] sm:$0xf]
  %v3411 = vld [vmem:[%s3407 + $0xc] sm:$0xf]
  %v3412 = vld [vmem:[%s3407 + $0x10] sm:$0xf]
  %v3413 = vld [vmem:[%s3407 + $0x14] sm:$0xf]
  %v3414 = vld [vmem:[%s3407 + $0x18] sm:$0xf]
  %v3415 = vld [vmem:[%s3407 + $0x1c] sm:$0xf]
  %v3416 = vld [vmem:[%s3407 + $0x20] sm:$0xf]
  %v3417 = vld [vmem:[%s3407 + $0x24] sm:$0xf]
  %v3418 = vld [vmem:[%s3407 + $0x28] sm:$0xf]
  %v3419 = vld [vmem:[%s3407 + $0x2c] sm:$0xf]
  %v3420 = vld [vmem:[%s3407 + $0x30] sm:$0xf]
  %v3421 = vld [vmem:[%s3407 + $0x34] sm:$0xf]
  %v3422 = vld [vmem:[%s3407 + $0x38] sm:$0xf]
  %v3423 = vld [vmem:[%s3407 + $0x3c] sm:$0xf]
  %v3424 = vld [vmem:[%s3407 + $0x40] sm:$0xf]
  %v3425 = vld [vmem:[%s3407 + $0x44] sm:$0xf]
  %v3426 = vld [vmem:[%s3407 + $0x48] sm:$0xf]
  %v3427 = vld [vmem:[%s3407 + $0x4c] sm:$0xf]
  %v3428 = vld [vmem:[%s3407 + $0x50] sm:$0xf]
  %v3429 = vld [vmem:[%s3407 + $0x54] sm:$0xf]
  %v3430 = vld [vmem:[%s3407 + $0x58] sm:$0xf]
  %v3431 = vld [vmem:[%s3407 + $0x5c] sm:$0xf]
  %v3432 = vld [vmem:[%s3407 + $0x60] sm:$0xf]
  %v3433 = vld [vmem:[%s3407 + $0x64] sm:$0xf]
  %v3434 = vld [vmem:[%s3407 + $0x68] sm:$0xf]
  %v3435 = vld [vmem:[%s3407 + $0x6c] sm:$0xf]
  %v3436 = vld [vmem:[%s3407 + $0x70] sm:$0xf]
  %v3437 = vld [vmem:[%s3407 + $0x74] sm:$0xf]
  %v3438 = vld [vmem:[%s3407 + $0x78] sm:$0xf]
  %v3439 = vld [vmem:[%s3407 + $0x7c] sm:$0xf]
  %v3472 = vunpack.c.l.b16 %v3408
  %v3473 = vunpack.c.l.b16 %v3409
  %v3474 = vunpack.c.l.b16 %v3410
  %v3475 = vunpack.c.l.b16 %v3411
  %v3476 = vunpack.c.l.b16 %v3412
  %v3477 = vunpack.c.l.b16 %v3413
  %v3478 = vunpack.c.l.b16 %v3414
  %v3479 = vunpack.c.l.b16 %v3415
  %v3480 = vunpack.c.l.b16 %v3416
  %v3481 = vunpack.c.l.b16 %v3417
  %v3482 = vunpack.c.l.b16 %v3418
  %v3483 = vunpack.c.l.b16 %v3419
  %v3484 = vunpack.c.l.b16 %v3420
  %v3485 = vunpack.c.l.b16 %v3421
  %v3486 = vunpack.c.l.b16 %v3422
  %v3487 = vunpack.c.l.b16 %v3423
  %v3488 = vunpack.c.l.b16 %v3424
  %v3489 = vunpack.c.l.b16 %v3425
  %v3490 = vunpack.c.l.b16 %v3426
  %v3491 = vunpack.c.l.b16 %v3427
  %v3492 = vunpack.c.l.b16 %v3428
  %v3493 = vunpack.c.l.b16 %v3429
  %v3494 = vunpack.c.l.b16 %v3430
  %v3495 = vunpack.c.l.b16 %v3431
  %v3496 = vunpack.c.l.b16 %v3432
  %v3497 = vunpack.c.l.b16 %v3433
  %v3498 = vunpack.c.l.b16 %v3434
  %v3499 = vunpack.c.l.b16 %v3435
  %v3500 = vunpack.c.l.b16 %v3436
  %v3501 = vunpack.c.l.b16 %v3437
  %v3502 = vunpack.c.l.b16 %v3438
  %v3503 = vunpack.c.l.b16 %v3439
  %v3504 = vpack.c.b16 %v3473, %v3472
  %v3505 = vpack.c.b16 %v3475, %v3474
  %v3506 = vpack.c.b16 %v3477, %v3476
  %v3507 = vpack.c.b16 %v3479, %v3478
  %v3508 = vpack.c.b16 %v3481, %v3480
  %v3509 = vpack.c.b16 %v3483, %v3482
  %v3510 = vpack.c.b16 %v3485, %v3484
  %v3511 = vpack.c.b16 %v3487, %v3486
  %v3512 = vpack.c.b16 %v3489, %v3488
  %v3513 = vpack.c.b16 %v3491, %v3490
  %v3514 = vpack.c.b16 %v3493, %v3492
  %v3515 = vpack.c.b16 %v3495, %v3494
  %v3516 = vpack.c.b16 %v3497, %v3496
  %v3517 = vpack.c.b16 %v3499, %v3498
  %v3518 = vpack.c.b16 %v3501, %v3500
  %v3519 = vpack.c.b16 %v3503, %v3502
  %3536 = vmatprep.subr.bf16.mxu0 0
  %3537 = vmatpush1.bf16.msra.mxu0 %v3511
  %3538 = vmatprep.subr.bf16.mxu0 0
  %3539 = vmatpush1.bf16.msra.mxu0 %v3510
  %3540 = vmatprep.subr.bf16.mxu0 0
  %3541 = vmatpush1.bf16.msra.mxu0 %v3509
  %3542 = vmatprep.subr.bf16.mxu0 0
  %3543 = vmatpush1.bf16.msra.mxu0 %v3508
  %3544 = vmatprep.subr.bf16.mxu0 0
  %3545 = vmatpush1.bf16.msra.mxu0 %v3507
  %3546 = vmatprep.subr.bf16.mxu0 0
  %3547 = vmatpush1.bf16.msra.mxu0 %v3506
  %3548 = vmatprep.subr.bf16.mxu0 0
  %3549 = vmatpush1.bf16.msra.mxu0 %v3505
  %3550 = vmatprep.subr.bf16.mxu0 0
  %3551 = vmatpush1.bf16.msra.mxu0 %v3504
  %3552 = vmatprep.subr.bf16.mxu0 0
  %3553 = vmatpush2.bf16.msra.mxu0 %v3519
  %3554 = vmatprep.subr.bf16.mxu0 0
  %3555 = vmatpush2.bf16.msra.mxu0 %v3518
  %3556 = vmatprep.subr.bf16.mxu0 0
  %3557 = vmatpush2.bf16.msra.mxu0 %v3517
  %3558 = vmatprep.subr.bf16.mxu0 0
  %3559 = vmatpush2.bf16.msra.mxu0 %v3516
  %3560 = vmatprep.subr.bf16.mxu0 0
  %3561 = vmatpush2.bf16.msra.mxu0 %v3515
  %3562 = vmatprep.subr.bf16.mxu0 0
  %3563 = vmatpush2.bf16.msra.mxu0 %v3514
  %3564 = vmatprep.subr.bf16.mxu0 0
  %3565 = vmatpush2.bf16.msra.mxu0 %v3513
  %3566 = vmatprep.subr.bf16.mxu0 0
  %3567 = vmatpush2.bf16.msra.mxu0 %v3512
  %3568 = vmatprep.mubr.bf16.mxu0 %v3406
  %3569 = vmatmul.mubr.bf16.gmra.mxu0 %v3405
  %v3570 = vpop.f32.mrf.mxu0
  %v3571 = vadd.f32 0.0, %v3570
  %v3572 = vpop.f32.mrf.mxu0
  %v3573 = vpop.f32.mrf.mxu0
  %v3574 = vadd.f32 0.0, %v3573
  %v3575 = vpop.f32.mrf.mxu0
  %3576 = vdwg.mxu0
  %v3577 = vadd.f32 %v3220, %v3571
  %v3578 = vadd.f32 %v3221, %v3574
  %s3579 = scalar_lea.vmem %s11, 1
  %v3580 = vld [vmem:[%s3579] sm:$0x1]
  %v3582 = vlaneseq
  %v3583 = vshrl.u32 %v3582, 7
  %v3584 = vsub.s32 0, %v3583
  %v3585 = vrot.slane %v3580, %v3584
  %v3587 = vadd.f32 %v3577, %v3585
  %v3588 = vadd.f32 %v3578, %v3585
  %v3589 = vmul.u32 %v639, 5
  %vm3590 = vcmp.eq.s32.totalorder %v642, %v3589
  %v3591 = vsel %vm3590, 1.0, 0.0
  %v3593 = vsel %vm920, %v3591, 0
  %v3596 = vsel %vm950, %v3588, 0
  %3598 = vmatprep.subr.mxu0 0.0
  %3599 = vmatpush1.msra.mxu0 0.0
  %3600 = vmatprep.subr.mxu0 0.0
  %3601 = vmatpush1.msra.mxu0 0.0
  %3602 = vmatprep.subr.mxu0 0.0
  %3603 = vmatpush1.msra.mxu0 0.0
  %3604 = vmatprep.subr.mxu0 0.0
  %3605 = vmatpush1.msra.mxu0 0.0
  %3606 = vmatprep.subr.mxu0 0.0
  %3607 = vmatpush1.msra.mxu0 0.0
  %3608 = vmatprep.subr.mxu0 0.0
  %3609 = vmatpush1.msra.mxu0 0.0
  %3610 = vmatprep.subr.mxu0 0.0
  %3611 = vmatpush1.msra.mxu0 0.0
  %3612 = vmatprep.subr.mxu0 0.0
  %3613 = vmatpush1.msra.mxu0 0.0
  %3614 = vmatprep.subr.mxu0 0.0
  %3615 = vmatpush1.msra.mxu0 0.0
  %3616 = vmatprep.subr.mxu0 0.0
  %3617 = vmatpush1.msra.mxu0 0.0
  %3618 = vmatprep.subr.mxu0 0.0
  %3619 = vmatpush1.msra.mxu0 0.0
  %3620 = vmatprep.subr.mxu0 0.0
  %3621 = vmatpush1.msra.mxu0 0.0
  %3622 = vmatprep.subr.mxu0 0.0
  %3623 = vmatpush1.msra.mxu0 0.0
  %3624 = vmatprep.subr.mxu0 0.0
  %3625 = vmatpush1.msra.mxu0 0.0
  %3626 = vmatprep.subr.mxu0 0.0
  %3627 = vmatpush1.msra.mxu0 %v3596
  %3628 = vmatprep.subr.mxu0 0.0
  %3629 = vmatpush1.msra.mxu0 %v3587
  %3630 = vmatprep.subr.mxu0 0.0
  %3631 = vmatpush2.msra.mxu0 0.0
  %3632 = vmatprep.subr.mxu0 0.0
  %3633 = vmatpush2.msra.mxu0 0.0
  %3634 = vmatprep.subr.mxu0 0.0
  %3635 = vmatpush2.msra.mxu0 0.0
  %3636 = vmatprep.subr.mxu0 0.0
  %3637 = vmatpush2.msra.mxu0 0.0
  %3638 = vmatprep.subr.mxu0 0.0
  %3639 = vmatpush2.msra.mxu0 0.0
  %3640 = vmatprep.subr.mxu0 0.0
  %3641 = vmatpush2.msra.mxu0 0.0
  %3642 = vmatprep.subr.mxu0 0.0
  %3643 = vmatpush2.msra.mxu0 0.0
  %3644 = vmatprep.subr.mxu0 0.0
  %3645 = vmatpush2.msra.mxu0 0.0
  %3646 = vmatprep.subr.mxu0 0.0
  %3647 = vmatpush2.msra.mxu0 0.0
  %3648 = vmatprep.subr.mxu0 0.0
  %3649 = vmatpush2.msra.mxu0 0.0
  %3650 = vmatprep.subr.mxu0 0.0
  %3651 = vmatpush2.msra.mxu0 0.0
  %3652 = vmatprep.subr.mxu0 0.0
  %3653 = vmatpush2.msra.mxu0 0.0
  %3654 = vmatprep.subr.mxu0 0.0
  %3655 = vmatpush2.msra.mxu0 0.0
  %3656 = vmatprep.subr.mxu0 0.0
  %3657 = vmatpush2.msra.mxu0 0.0
  %3658 = vmatprep.subr.mxu0 0.0
  %3659 = vmatpush2.msra.mxu0 0.0
  %3660 = vmatprep.subr.mxu0 0.0
  %3661 = vmatpush2.msra.mxu0 0.0
  %3662 = vmatprep.mubr.f32.mxu0 0.0
  %3663 = vmatmul.mubr.f32.gmra.mxu0 %v3593
  %v3664 = vpop.f32.mrf.mxu0
  %v3665 = vadd.f32 0.0, %v3664
  %v3666 = vpop.f32.mrf.mxu0
  %3667 = vdwg.mxu0
  %s3668 = scalar_lea.vmem %s3, 10
  %v3669 = vld [vmem:[%s3668] sm:$0x1]
  %s3670 = scalar_lea.vmem %s3, 11
  %v3671 = vld [vmem:[%s3670] sm:$0x1]
  %v3672 = vsel %vm597, %v3665, 0.0
  %3673 = vadd.xlane.f32.xlu0 %v3672
  %v3674 = vpop.xlane.xlu0 %3673
  %v3675 = vmul.f32 %v3674, %v601
  %v3676 = vsub.f32 %v3665, %v3675
  %v3677 = vmul.f32 %v3676, %v3676
  %v3678 = vsel %vm597, %v3677, 0.0
  %3679 = vadd.xlane.f32.xlu0 %v3678
  %v3680 = vpop.xlane.xlu0 %3679
  %v3681 = vmul.f32 %v3680, %v601
  %v3682 = vadd.f32 %v3681, 1e-05
  %v3683 = vrsqrt.pop %v3682
  %v3684 = vmul.f32 %v3676, %v3683
  %v3686 = vlaneseq
  %v3687 = vshrl.u32 %v3686, 7
  %v3688 = vsub.s32 0, %v3687
  %v3689 = vrot.slane %v3669, %v3688
  %v3691 = vmul.f32 %v3684, %v3689
  %v3693 = vlaneseq
  %v3694 = vshrl.u32 %v3693, 7
  %v3695 = vsub.s32 0, %v3694
  %v3696 = vrot.slane %v3671, %v3695
  %v3698 = vadd.f32 %v3691, %v3696
  %v3699 = vpack.c.bf16 %v3698, %v3698
  %v3700 = vld [vmem:[%s12] sm:$0xf]
  %v3701 = vld [vmem:[%s12 + $0x4] sm:$0xf]
  %v3702 = vld [vmem:[%s12 + $0x8] sm:$0xf]
  %v3703 = vld [vmem:[%s12 + $0xc] sm:$0xf]
  %v3704 = vld [vmem:[%s12 + $0x10] sm:$0xf]
  %v3705 = vld [vmem:[%s12 + $0x14] sm:$0xf]
  %v3706 = vld [vmem:[%s12 + $0x18] sm:$0xf]
  %v3707 = vld [vmem:[%s12 + $0x1c] sm:$0xf]
  %v3716 = vunpack.c.l.b16 %v3700
  %v3717 = vunpack.c.l.b16 %v3701
  %v3718 = vunpack.c.l.b16 %v3702
  %v3719 = vunpack.c.l.b16 %v3703
  %v3720 = vunpack.c.l.b16 %v3704
  %v3721 = vunpack.c.l.b16 %v3705
  %v3722 = vunpack.c.l.b16 %v3706
  %v3723 = vunpack.c.l.b16 %v3707
  %v3724 = vpack.c.b16 %v3717, %v3716
  %v3725 = vpack.c.b16 %v3719, %v3718
  %v3726 = vpack.c.b16 %v3721, %v3720
  %v3727 = vpack.c.b16 %v3723, %v3722
  %v3733 = vsel %vm593, %v3699, 0
  %3735 = vmatprep.subr.bf16.mxu0 0
  %3736 = vmatpush1.bf16.msra.mxu0 0
  %3737 = vmatprep.subr.bf16.mxu0 0
  %3738 = vmatpush1.bf16.msra.mxu0 0
  %3739 = vmatprep.subr.bf16.mxu0 0
  %3740 = vmatpush1.bf16.msra.mxu0 0
  %3741 = vmatprep.subr.bf16.mxu0 0
  %3742 = vmatpush1.bf16.msra.mxu0 0
  %3743 = vmatprep.subr.bf16.mxu0 0
  %3744 = vmatpush1.bf16.msra.mxu0 %v3727
  %3745 = vmatprep.subr.bf16.mxu0 0
  %3746 = vmatpush1.bf16.msra.mxu0 %v3726
  %3747 = vmatprep.subr.bf16.mxu0 0
  %3748 = vmatpush1.bf16.msra.mxu0 %v3725
  %3749 = vmatprep.subr.bf16.mxu0 0
  %3750 = vmatpush1.bf16.msra.mxu0 %v3724
  %3751 = vmatprep.subr.bf16.mxu0 0
  %3752 = vmatpush2.bf16.msra.mxu0 0
  %3753 = vmatprep.subr.bf16.mxu0 0
  %3754 = vmatpush2.bf16.msra.mxu0 0
  %3755 = vmatprep.subr.bf16.mxu0 0
  %3756 = vmatpush2.bf16.msra.mxu0 0
  %3757 = vmatprep.subr.bf16.mxu0 0
  %3758 = vmatpush2.bf16.msra.mxu0 0
  %3759 = vmatprep.subr.bf16.mxu0 0
  %3760 = vmatpush2.bf16.msra.mxu0 0
  %3761 = vmatprep.subr.bf16.mxu0 0
  %3762 = vmatpush2.bf16.msra.mxu0 0
  %3763 = vmatprep.subr.bf16.mxu0 0
  %3764 = vmatpush2.bf16.msra.mxu0 0
  %3765 = vmatprep.subr.bf16.mxu0 0
  %3766 = vmatpush2.bf16.msra.mxu0 0
  %3767 = vmatprep.mubr.bf16.mxu0 0
  %3768 = vmatmul.mubr.bf16.gmra.mxu0 %v3733
  %v3769 = vpop.f32.mrf.mxu0
  %v3770 = vadd.f32 0.0, %v3769
  %v3771 = vpop.f32.mrf.mxu0
  %v3772 = vpop.f32.mrf.mxu0
  %v3773 = vpop.f32.mrf.mxu0
  %3774 = vdwg.mxu0
  %v3775 = vmul.f32 %v3770, %v3770
  %vm3776 = vcmask 254976
  %v3777 = vsel %vm3776, %v3775, 0.0
  %3778 = vadd.xlane.f32.xlu0 %v3777
  %v3779 = vpop.xlane.xlu0 %3778
  %v3780 = vadd.f32 %v3779, 1e-12
  %v3781 = vrsqrt.pop %v3780
  %v3782 = vmul.f32 %v3770, %v3781
  %3783 = vst.msk [vmem:[%s13] sm:$0x3] %vm3776, %v3782
  // Predicated region
  $region54: #{clip_inference.2} parent=0 // pred_check
    _
  $region55: #{clip_inference.2} parent=0 // pred_check_branch
    %3785 = sbr.rel (0) target = $region57
  $region56: #{clip_inference.2} parent=0 // pred_region
    _
  $region57: #{clip_inference.2} parent=0 // pred_fallthru
    _
  // Predicated region
  $region58: #{clip_inference.2} parent=0 // pred_check
    _
  $region59: #{clip_inference.2} parent=0 // pred_check_branch
    %3787 = sbr.rel (0) target = $region61
  $region60: #{clip_inference.2} parent=0 // pred_region
    _
  $region61: #{clip_inference.2} parent=0 // pred_fallthru
    _

</llo_original>
